<compile_context>
chip_gen: v7x
topology: tpu7x:2x2x1
jax: 0.10.0
libtpu: 0.0.40
codegen_flags: <defaults>
</compile_context>

<pallas_src>
import functools

import jax
import jax.numpy as jnp
from jax import lax
from jax.experimental import pallas as pl
from jax.experimental.pallas import tpu as pltpu


# ---------------------------------------------------------------------------
# In-kernel building block: conv(VALID) + maxpool(2,2) + ReLU, all on the MXU.
# ---------------------------------------------------------------------------
def _conv_pool_relu_stage(get_rows, K, h_in, wb_ref, brow_ref, pw_ref, ph_ref):
    """One conv + pool + relu stage.

    get_rows(kh, h_out) -> (h_out, w_in*c_in) bf16 row window starting at kh
    wb_ref   : (K, w_in*c_in, w_out*c_out) bf16 banded weights (kw/ci folded
               into the contraction dim; one matmul per kh)
    brow_ref : (1, w_out*c_out) f32 bias tiled over w_out
    pw_ref   : (2, w_out*c_out, (w_out//2)*c_out) bf16 0/1 even/odd width sel.
    ph_ref   : (2, h_out//2, h_out) bf16 0/1 even/odd row selectors, or None
               when h_out == 2 (pool done with two row slices)
    returns  : (h_out//2, (w_out//2)*c_out) f32, post-ReLU
    """
    f32 = jnp.float32
    bf16 = jnp.bfloat16
    h_out = h_in - K + 1

    # Convolution: K banded bf16 matmuls accumulated in f32.
    acc = jnp.dot(get_rows(0, h_out), wb_ref[0], preferred_element_type=f32)
    for kh in range(1, K):
        acc = acc + jnp.dot(get_rows(kh, h_out), wb_ref[kh],
                            preferred_element_type=f32)
    z = acc + brow_ref[...]                                   # (h_out, w_out*c_out) f32

    # Max-pool over H: select even/odd rows (exact 0/1 matmuls) and max them.
    if ph_ref is None:
        assert h_out == 2
        zh = jnp.maximum(z[0:1, :], z[1:2, :]).astype(bf16)
    else:
        zb = z.astype(bf16)
        zh = jnp.maximum(
            jnp.dot(ph_ref[0], zb, preferred_element_type=f32),
            jnp.dot(ph_ref[1], zb, preferred_element_type=f32)).astype(bf16)

    # Max-pool over W: select even/odd width blocks (lane compaction via MXU).
    a = jnp.maximum(
        jnp.dot(zh, pw_ref[0], preferred_element_type=f32),
        jnp.dot(zh, pw_ref[1], preferred_element_type=f32))

    return jnp.maximum(a, 0.0)                                # ReLU, f32


def _fused_net_kernel(x_ref, wb1_ref, b1_ref, ph1_ref, pw1_ref,
                      wb2_ref, b2_ref, ph2_ref, pw2_ref,
                      wb3_ref, b3_ref, pw3_ref, o_ref):
    """Whole network for a TB-image batch tile; everything stays in VMEM."""
    bf16 = jnp.bfloat16
    tb = x_ref.shape[0]
    # Unrolled loop over the TB independent images of this tile.
    for t in range(tb):
        a1 = _conv_pool_relu_stage(
            lambda kh, ho, _t=t: x_ref[_t, kh:kh + ho, :],     # read window from ref
            5, 28, wb1_ref, b1_ref, pw1_ref, ph1_ref)          # (12, 96)  f32
        a1b = a1.astype(bf16)
        a2 = _conv_pool_relu_stage(
            lambda kh, ho, _a=a1b: _a[kh:kh + ho, :],
            5, 12, wb2_ref, b2_ref, pw2_ref, ph2_ref)          # (4, 64)   f32
        a2b = a2.astype(bf16)
        a3 = _conv_pool_relu_stage(
            lambda kh, ho, _a=a2b: _a[kh:kh + ho, :],
            3, 4, wb3_ref, b3_ref, pw3_ref, None)              # (1, 32)   f32

        # Pooled spatial extent is 1x1 -> spatial mean is the identity.
        feat = a3
        # torch.nn.functional.normalize: x / max(||x||_2, eps), eps=1e-12.
        ss = jnp.sum(feat * feat)
        inv = lax.rsqrt(jnp.maximum(ss, 1e-24))                # EUP rsqrt
        o_ref[:, :, t * 32:(t + 1) * 32] = (feat * inv)[None, :, :]


# ---------------------------------------------------------------------------
# Wrapper-side (XLA) weight re-packing: banded conv matrices & pool selectors.
# ---------------------------------------------------------------------------
def _banded_weights(w, w_in):
    """(K, K, Cin, Cout) HWIO conv weights -> (K, w_in*Cin, w_out*Cout) banded
    matrices: WB[kh][w*Cin+ci, wo*Cout+co] = w[kh, w-wo, ci, co] (0 elsewhere)."""
    K, _, c_in, c_out = w.shape
    w_out = w_in - K + 1
    wi = jnp.arange(w_in)[:, None]
    wo = jnp.arange(w_out)[None, :]
    kw = wi - wo
    valid = (kw >= 0) & (kw < K)
    g = w[:, jnp.clip(kw, 0, K - 1), :, :]               # (K, w_in, w_out, Cin, Cout)
    g = jnp.where(valid[None, :, :, None, None], g, 0.0)
    g = jnp.transpose(g, (0, 1, 3, 2, 4))                # (K, w_in, Cin, w_out, Cout)
    return g.reshape(K, w_in * c_in, w_out * c_out).astype(jnp.bfloat16)


def _row_pool_selectors(h_out):
    """(2, h_out//2, h_out) bf16 0/1 matrices selecting even / odd rows."""
    p = h_out // 2
    idx = jnp.arange(p)
    base = jnp.zeros((p, h_out), jnp.float32)
    return jnp.stack([base.at[idx, 2 * idx].set(1.0),
                      base.at[idx, 2 * idx + 1].set(1.0)]).astype(jnp.bfloat16)


def _lane_pool_selectors(w_out, c_out):
    """(2, w_out*c_out, (w_out//2)*c_out) bf16 0/1 matrices selecting even/odd
    width positions (lane index = w*c_out + c) and compacting the lanes."""
    p = w_out // 2
    j = jnp.arange(p)[:, None]
    c = jnp.arange(c_out)[None, :]
    cols = (j * c_out + c).reshape(-1)
    base = jnp.zeros((w_out * c_out, p * c_out), jnp.float32)
    even = base.at[(2 * j * c_out + c).reshape(-1), cols].set(1.0)
    odd = base.at[((2 * j + 1) * c_out + c).reshape(-1), cols].set(1.0)
    return jnp.stack([even, odd]).astype(jnp.bfloat16)


@functools.partial(jax.jit, static_argnames=("tb",))
def model_forward(x_nchw, params, tb=8):
    n, c_in, h, w = x_nchw.shape
    assert c_in == 1 and h == 28 and w == 28, "kernel is specialised to 1x28x28 inputs"

    # Batch-tile size: amortize per-grid-step overhead over `tb` images while
    # keeping the grid length >= 2 so both v7x TensorCores get work.
    tb = int(max(1, min(tb, n // 2 if n >= 2 else 1)))
    n_tiles = -(-n // tb)
    n_pad = n_tiles * tb

    x = x_nchw[:, 0, :, :].astype(jnp.bfloat16)            # (N, 28, 28): W on lanes
    if n_pad != n:
        x = jnp.concatenate(
            [x, jnp.zeros((n_pad - n, 28, 28), jnp.bfloat16)], axis=0)

    wb1 = _banded_weights(params["w1"], 28)               # (5, 28, 192)
    wb2 = _banded_weights(params["w2"], 12)               # (5, 96, 128)
    wb3 = _banded_weights(params["w3"], 4)                # (3, 64, 64)
    b1r = jnp.tile(params["b1"], 24)[None, :].astype(jnp.float32)   # (1, 192)
    b2r = jnp.tile(params["b2"], 8)[None, :].astype(jnp.float32)    # (1, 128)
    b3r = jnp.tile(params["b3"], 2)[None, :].astype(jnp.float32)    # (1, 64)
    ph1 = _row_pool_selectors(24)                         # (2, 12, 24)
    ph2 = _row_pool_selectors(8)                          # (2, 4, 8)
    pw1 = _lane_pool_selectors(24, 8)                     # (2, 192, 96)
    pw2 = _lane_pool_selectors(8, 16)                     # (2, 128, 64)
    pw3 = _lane_pool_selectors(2, 32)                     # (2, 64, 32)

    rep2 = lambda i: (0, 0)
    rep3 = lambda i: (0, 0, 0)
    out = pl.pallas_call(
        _fused_net_kernel,
        out_shape=jax.ShapeDtypeStruct((n_tiles, 1, tb * 32), jnp.float32),
        grid=(n_tiles,),
        in_specs=[
            pl.BlockSpec((tb, 28, 28), lambda i: (i, 0, 0)),
            pl.BlockSpec(wb1.shape, rep3),
            pl.BlockSpec(b1r.shape, rep2),
            pl.BlockSpec(ph1.shape, rep3),
            pl.BlockSpec(pw1.shape, rep3),
            pl.BlockSpec(wb2.shape, rep3),
            pl.BlockSpec(b2r.shape, rep2),
            pl.BlockSpec(ph2.shape, rep3),
            pl.BlockSpec(pw2.shape, rep3),
            pl.BlockSpec(wb3.shape, rep3),
            pl.BlockSpec(b3r.shape, rep2),
            pl.BlockSpec(pw3.shape, rep3),
        ],
        out_specs=pl.BlockSpec((1, 1, tb * 32), lambda i: (i, 0, 0)),
        compiler_params=pltpu.CompilerParams(
            dimension_semantics=("parallel",)),
    )(x, wb1, b1r, ph1, pw1, wb2, b2r, ph2, pw2, wb3, b3r, pw3)

    # (n_tiles, 1, tb*32) lane-dense slab -> (N, 32) features.
    return out.reshape(n_pad, 32)[:n]


# ---------------------------------------------------------------------------
# Parameters & pure-JAX reference
# ---------------------------------------------------------------------------
def init_params(key):
    """Deterministic synthetic parameters (PyTorch-like uniform(-1/sqrt(fan_in), ...))."""
    ks = jax.random.split(key, 6)

    def u(k, shape, fan_in):
        bound = 1.0 / float(fan_in) ** 0.5
        return jax.random.uniform(k, shape, jnp.float32, -bound, bound)

    return {
        "w1": u(ks[0], (5, 5, 1, 8), 5 * 5 * 1),
        "b1": u(ks[1], (8,), 5 * 5 * 1),
        "w2": u(ks[2], (5, 5, 8, 16), 5 * 5 * 8),
        "b2": u(ks[3], (16,), 5 * 5 * 8),
        "w3": u(ks[4], (3, 3, 16, 32), 3 * 3 * 16),
        "b3": u(ks[5], (32,), 3 * 3 * 16),
    }


def reference_forward(x_nchw, params):
    """Pure-JAX reference mirroring the PyTorch forward."""
    x = jnp.transpose(x_nchw, (0, 2, 3, 1)).astype(jnp.float32)

    def layer(x, w, b):
        y = lax.conv_general_dilated(
            x, w, window_strides=(1, 1), padding="VALID",
            dimension_numbers=("NHWC", "HWIO", "NHWC")) + b
        y = lax.reduce_window(y, -jnp.inf, lax.max,
                              (1, 2, 2, 1), (1, 2, 2, 1), "VALID")
        return jnp.maximum(y, 0.0)

    x = layer(x, params["w1"], params["b1"])
    x = layer(x, params["w2"], params["b2"])
    x = layer(x, params["w3"], params["b3"])
    feat = jnp.mean(x, axis=(1, 2))
    return feat / jnp.maximum(jnp.linalg.norm(feat, axis=1, keepdims=True), 1e-12)


if __name__ == "__main__":
    key = jax.random.PRNGKey(0)
    pkey, xkey = jax.random.split(key)
    params = init_params(pkey)

    # MNIST-like input, NCHW as in PyTorch: (batch=8, channels=1, 28, 28)
    x = jax.random.normal(xkey, (8, 1, 28, 28), jnp.float32)

    out = jax.block_until_ready(model_forward(x, params))
    ref = jax.block_until_ready(reference_forward(x, params))

    assert out.shape == (8, 32), out.shape
    # Tolerance allows for bf16 MXU operands (f32 accumulation) vs XLA's f32 conv path.
    if not bool(jnp.allclose(out, ref, atol=2.5e-2, rtol=2.5e-2)):
        raise AssertionError("Pallas output does not match pure-JAX reference")
    print("KERNEL_OK")
</pallas_src>

<mosaic_0001>
module attributes {stable_mosaic.version = 11 : i64} {
  func.func @_fused_net_kernel(%arg0: i32, %arg1: memref<4x28x28xbf16, #tpu.memory_space<vmem>>, %arg2: memref<5x28x192xbf16, #tpu.memory_space<vmem>>, %arg3: memref<1x192xf32, #tpu.memory_space<vmem>>, %arg4: memref<2x12x24xbf16, #tpu.memory_space<vmem>>, %arg5: memref<2x192x96xbf16, #tpu.memory_space<vmem>>, %arg6: memref<5x96x128xbf16, #tpu.memory_space<vmem>>, %arg7: memref<1x128xf32, #tpu.memory_space<vmem>>, %arg8: memref<2x4x8xbf16, #tpu.memory_space<vmem>>, %arg9: memref<2x128x64xbf16, #tpu.memory_space<vmem>>, %arg10: memref<3x64x64xbf16, #tpu.memory_space<vmem>>, %arg11: memref<1x64xf32, #tpu.memory_space<vmem>>, %arg12: memref<2x64x32xbf16, #tpu.memory_space<vmem>>, %arg13: memref<1x1x128xf32, #tpu.memory_space<vmem>>) attributes {dimension_semantics = [#tpu.dimension_semantics<parallel>], iteration_bounds = array<i64: 2>, scalar_prefetch = 0 : i64, scratch_operands = 0 : i64, tpu.core_type = #tpu.core_type<tc>, window_params = [{transform_indices = @transform_0, window_bounds = array<i64: 4, 28, 28>}, {pipeline_mode = #tpu.pipeline_mode<synchronous>, transform_indices = @transform_1, window_bounds = array<i64: 5, 28, 192>}, {pipeline_mode = #tpu.pipeline_mode<synchronous>, transform_indices = @transform_2, window_bounds = array<i64: 1, 192>}, {pipeline_mode = #tpu.pipeline_mode<synchronous>, transform_indices = @transform_3, window_bounds = array<i64: 2, 12, 24>}, {pipeline_mode = #tpu.pipeline_mode<synchronous>, transform_indices = @transform_4, window_bounds = array<i64: 2, 192, 96>}, {pipeline_mode = #tpu.pipeline_mode<synchronous>, transform_indices = @transform_5, window_bounds = array<i64: 5, 96, 128>}, {pipeline_mode = #tpu.pipeline_mode<synchronous>, transform_indices = @transform_6, window_bounds = array<i64: 1, 128>}, {pipeline_mode = #tpu.pipeline_mode<synchronous>, transform_indices = @transform_7, window_bounds = array<i64: 2, 4, 8>}, {pipeline_mode = #tpu.pipeline_mode<synchronous>, transform_indices = @transform_8, window_bounds = array<i64: 2, 128, 64>}, {pipeline_mode = #tpu.pipeline_mode<synchronous>, transform_indices = @transform_9, window_bounds = array<i64: 3, 64, 64>}, {pipeline_mode = #tpu.pipeline_mode<synchronous>, transform_indices = @transform_10, window_bounds = array<i64: 1, 64>}, {pipeline_mode = #tpu.pipeline_mode<synchronous>, transform_indices = @transform_11, window_bounds = array<i64: 2, 64, 32>}, {transform_indices = @transform_12, window_bounds = array<i64: 1, 1, 128>}]} {
    %c0 = arith.constant 0 : index
    %c0_0 = arith.constant 0 : index
    %c0_1 = arith.constant 0 : index
    %0 = vector.load %arg1[%c0, %c0_0, %c0_1] : memref<4x28x28xbf16, #tpu.memory_space<vmem>>, vector<1x24x28xbf16>
    %1 = vector.shape_cast %0 : vector<1x24x28xbf16> to vector<24x28xbf16>
    %c0_2 = arith.constant 0 : index
    %c0_3 = arith.constant 0 : index
    %c0_4 = arith.constant 0 : index
    %2 = vector.load %arg2[%c0_2, %c0_3, %c0_4] : memref<5x28x192xbf16, #tpu.memory_space<vmem>>, vector<1x28x192xbf16>
    %3 = vector.shape_cast %2 : vector<1x28x192xbf16> to vector<28x192xbf16>
    %cst = arith.constant dense<0.000000e+00> : vector<24x192xf32>
    %4 = tpu.matmul %1, %3, %cst {dimension_numbers = #tpu.dot_dimension_numbers<[1], [0], [0], [1], [0, 0, 1, 1], [], []>} : vector<24x28xbf16>, vector<28x192xbf16>, vector<24x192xf32> -> vector<24x192xf32>
    %c0_5 = arith.constant 0 : index
    %c1 = arith.constant 1 : index
    %c0_6 = arith.constant 0 : index
    %5 = vector.load %arg1[%c0_5, %c1, %c0_6] : memref<4x28x28xbf16, #tpu.memory_space<vmem>>, vector<1x24x28xbf16>
    %6 = vector.shape_cast %5 : vector<1x24x28xbf16> to vector<24x28xbf16>
    %c1_7 = arith.constant 1 : index
    %c0_8 = arith.constant 0 : index
    %c0_9 = arith.constant 0 : index
    %7 = vector.load %arg2[%c1_7, %c0_8, %c0_9] : memref<5x28x192xbf16, #tpu.memory_space<vmem>>, vector<1x28x192xbf16>
    %8 = vector.shape_cast %7 : vector<1x28x192xbf16> to vector<28x192xbf16>
    %cst_10 = arith.constant dense<0.000000e+00> : vector<24x192xf32>
    %9 = tpu.matmul %6, %8, %cst_10 {dimension_numbers = #tpu.dot_dimension_numbers<[1], [0], [0], [1], [0, 0, 1, 1], [], []>} : vector<24x28xbf16>, vector<28x192xbf16>, vector<24x192xf32> -> vector<24x192xf32>
    %10 = arith.addf %4, %9 : vector<24x192xf32>
    %c0_11 = arith.constant 0 : index
    %c2 = arith.constant 2 : index
    %c0_12 = arith.constant 0 : index
    %11 = vector.load %arg1[%c0_11, %c2, %c0_12] : memref<4x28x28xbf16, #tpu.memory_space<vmem>>, vector<1x24x28xbf16>
    %12 = vector.shape_cast %11 : vector<1x24x28xbf16> to vector<24x28xbf16>
    %c2_13 = arith.constant 2 : index
    %c0_14 = arith.constant 0 : index
    %c0_15 = arith.constant 0 : index
    %13 = vector.load %arg2[%c2_13, %c0_14, %c0_15] : memref<5x28x192xbf16, #tpu.memory_space<vmem>>, vector<1x28x192xbf16>
    %14 = vector.shape_cast %13 : vector<1x28x192xbf16> to vector<28x192xbf16>
    %cst_16 = arith.constant dense<0.000000e+00> : vector<24x192xf32>
    %15 = tpu.matmul %12, %14, %cst_16 {dimension_numbers = #tpu.dot_dimension_numbers<[1], [0], [0], [1], [0, 0, 1, 1], [], []>} : vector<24x28xbf16>, vector<28x192xbf16>, vector<24x192xf32> -> vector<24x192xf32>
    %16 = arith.addf %10, %15 : vector<24x192xf32>
    %c0_17 = arith.constant 0 : index
    %c3 = arith.constant 3 : index
    %c0_18 = arith.constant 0 : index
    %17 = vector.load %arg1[%c0_17, %c3, %c0_18] : memref<4x28x28xbf16, #tpu.memory_space<vmem>>, vector<1x24x28xbf16>
    %18 = vector.shape_cast %17 : vector<1x24x28xbf16> to vector<24x28xbf16>
    %c3_19 = arith.constant 3 : index
    %c0_20 = arith.constant 0 : index
    %c0_21 = arith.constant 0 : index
    %19 = vector.load %arg2[%c3_19, %c0_20, %c0_21] : memref<5x28x192xbf16, #tpu.memory_space<vmem>>, vector<1x28x192xbf16>
    %20 = vector.shape_cast %19 : vector<1x28x192xbf16> to vector<28x192xbf16>
    %cst_22 = arith.constant dense<0.000000e+00> : vector<24x192xf32>
    %21 = tpu.matmul %18, %20, %cst_22 {dimension_numbers = #tpu.dot_dimension_numbers<[1], [0], [0], [1], [0, 0, 1, 1], [], []>} : vector<24x28xbf16>, vector<28x192xbf16>, vector<24x192xf32> -> vector<24x192xf32>
    %22 = arith.addf %16, %21 : vector<24x192xf32>
    %c0_23 = arith.constant 0 : index
    %c4 = arith.constant 4 : index
    %c0_24 = arith.constant 0 : index
    %23 = vector.load %arg1[%c0_23, %c4, %c0_24] : memref<4x28x28xbf16, #tpu.memory_space<vmem>>, vector<1x24x28xbf16>
    %24 = vector.shape_cast %23 : vector<1x24x28xbf16> to vector<24x28xbf16>
    %c4_25 = arith.constant 4 : index
    %c0_26 = arith.constant 0 : index
    %c0_27 = arith.constant 0 : index
    %25 = vector.load %arg2[%c4_25, %c0_26, %c0_27] : memref<5x28x192xbf16, #tpu.memory_space<vmem>>, vector<1x28x192xbf16>
    %26 = vector.shape_cast %25 : vector<1x28x192xbf16> to vector<28x192xbf16>
    %cst_28 = arith.constant dense<0.000000e+00> : vector<24x192xf32>
    %27 = tpu.matmul %24, %26, %cst_28 {dimension_numbers = #tpu.dot_dimension_numbers<[1], [0], [0], [1], [0, 0, 1, 1], [], []>} : vector<24x28xbf16>, vector<28x192xbf16>, vector<24x192xf32> -> vector<24x192xf32>
    %28 = arith.addf %22, %27 : vector<24x192xf32>
    %c0_29 = arith.constant 0 : index
    %c0_30 = arith.constant 0 : index
    %29 = vector.load %arg3[%c0_29, %c0_30] : memref<1x192xf32, #tpu.memory_space<vmem>>, vector<1x192xf32>
    %30 = vector.broadcast %29 : vector<1x192xf32> to vector<24x192xf32>
    %31 = arith.addf %28, %30 : vector<24x192xf32>
    %32 = arith.truncf %31 : vector<24x192xf32> to vector<24x192xbf16>
    %c0_31 = arith.constant 0 : index
    %c0_32 = arith.constant 0 : index
    %c0_33 = arith.constant 0 : index
    %33 = vector.load %arg4[%c0_31, %c0_32, %c0_33] : memref<2x12x24xbf16, #tpu.memory_space<vmem>>, vector<1x12x24xbf16>
    %34 = vector.shape_cast %33 : vector<1x12x24xbf16> to vector<12x24xbf16>
    %cst_34 = arith.constant dense<0.000000e+00> : vector<12x192xf32>
    %35 = tpu.matmul %34, %32, %cst_34 {dimension_numbers = #tpu.dot_dimension_numbers<[1], [0], [0], [1], [0, 0, 1, 1], [], []>} : vector<12x24xbf16>, vector<24x192xbf16>, vector<12x192xf32> -> vector<12x192xf32>
    %c1_35 = arith.constant 1 : index
    %c0_36 = arith.constant 0 : index
    %c0_37 = arith.constant 0 : index
    %36 = vector.load %arg4[%c1_35, %c0_36, %c0_37] : memref<2x12x24xbf16, #tpu.memory_space<vmem>>, vector<1x12x24xbf16>
    %37 = vector.shape_cast %36 : vector<1x12x24xbf16> to vector<12x24xbf16>
    %cst_38 = arith.constant dense<0.000000e+00> : vector<12x192xf32>
    %38 = tpu.matmul %37, %32, %cst_38 {dimension_numbers = #tpu.dot_dimension_numbers<[1], [0], [0], [1], [0, 0, 1, 1], [], []>} : vector<12x24xbf16>, vector<24x192xbf16>, vector<12x192xf32> -> vector<12x192xf32>
    %39 = arith.maximumf %35, %38 : vector<12x192xf32>
    %40 = arith.truncf %39 : vector<12x192xf32> to vector<12x192xbf16>
    %c0_39 = arith.constant 0 : index
    %c0_40 = arith.constant 0 : index
    %c0_41 = arith.constant 0 : index
    %41 = vector.load %arg5[%c0_39, %c0_40, %c0_41] : memref<2x192x96xbf16, #tpu.memory_space<vmem>>, vector<1x192x96xbf16>
    %42 = vector.shape_cast %41 : vector<1x192x96xbf16> to vector<192x96xbf16>
    %cst_42 = arith.constant dense<0.000000e+00> : vector<12x96xf32>
    %43 = tpu.matmul %40, %42, %cst_42 {dimension_numbers = #tpu.dot_dimension_numbers<[1], [0], [0], [1], [0, 0, 1, 1], [], []>} : vector<12x192xbf16>, vector<192x96xbf16>, vector<12x96xf32> -> vector<12x96xf32>
    %c1_43 = arith.constant 1 : index
    %c0_44 = arith.constant 0 : index
    %c0_45 = arith.constant 0 : index
    %44 = vector.load %arg5[%c1_43, %c0_44, %c0_45] : memref<2x192x96xbf16, #tpu.memory_space<vmem>>, vector<1x192x96xbf16>
    %45 = vector.shape_cast %44 : vector<1x192x96xbf16> to vector<192x96xbf16>
    %cst_46 = arith.constant dense<0.000000e+00> : vector<12x96xf32>
    %46 = tpu.matmul %40, %45, %cst_46 {dimension_numbers = #tpu.dot_dimension_numbers<[1], [0], [0], [1], [0, 0, 1, 1], [], []>} : vector<12x192xbf16>, vector<192x96xbf16>, vector<12x96xf32> -> vector<12x96xf32>
    %47 = arith.maximumf %43, %46 : vector<12x96xf32>
    %cst_47 = arith.constant 0.000000e+00 : f32
    %48 = vector.broadcast %cst_47 : f32 to vector<12x96xf32>
    %49 = arith.maximumf %47, %48 : vector<12x96xf32>
    %50 = arith.truncf %49 : vector<12x96xf32> to vector<12x96xbf16>
    %51 = vector.extract_strided_slice %50 {offsets = [0, 0], sizes = [8, 96], strides = [1, 1]} : vector<12x96xbf16> to vector<8x96xbf16>
    %c0_48 = arith.constant 0 : index
    %c0_49 = arith.constant 0 : index
    %c0_50 = arith.constant 0 : index
    %52 = vector.load %arg6[%c0_48, %c0_49, %c0_50] : memref<5x96x128xbf16, #tpu.memory_space<vmem>>, vector<1x96x128xbf16>
    %53 = vector.shape_cast %52 : vector<1x96x128xbf16> to vector<96x128xbf16>
    %cst_51 = arith.constant dense<0.000000e+00> : vector<8x128xf32>
    %54 = tpu.matmul %51, %53, %cst_51 {dimension_numbers = #tpu.dot_dimension_numbers<[1], [0], [0], [1], [0, 0, 1, 1], [], []>} : vector<8x96xbf16>, vector<96x128xbf16>, vector<8x128xf32> -> vector<8x128xf32>
    %55 = vector.extract_strided_slice %50 {offsets = [1, 0], sizes = [8, 96], strides = [1, 1]} : vector<12x96xbf16> to vector<8x96xbf16>
    %c1_52 = arith.constant 1 : index
    %c0_53 = arith.constant 0 : index
    %c0_54 = arith.constant 0 : index
    %56 = vector.load %arg6[%c1_52, %c0_53, %c0_54] : memref<5x96x128xbf16, #tpu.memory_space<vmem>>, vector<1x96x128xbf16>
    %57 = vector.shape_cast %56 : vector<1x96x128xbf16> to vector<96x128xbf16>
    %cst_55 = arith.constant dense<0.000000e+00> : vector<8x128xf32>
    %58 = tpu.matmul %55, %57, %cst_55 {dimension_numbers = #tpu.dot_dimension_numbers<[1], [0], [0], [1], [0, 0, 1, 1], [], []>} : vector<8x96xbf16>, vector<96x128xbf16>, vector<8x128xf32> -> vector<8x128xf32>
    %59 = arith.addf %54, %58 : vector<8x128xf32>
    %60 = vector.extract_strided_slice %50 {offsets = [2, 0], sizes = [8, 96], strides = [1, 1]} : vector<12x96xbf16> to vector<8x96xbf16>
    %c2_56 = arith.constant 2 : index
    %c0_57 = arith.constant 0 : index
    %c0_58 = arith.constant 0 : index
    %61 = vector.load %arg6[%c2_56, %c0_57, %c0_58] : memref<5x96x128xbf16, #tpu.memory_space<vmem>>, vector<1x96x128xbf16>
    %62 = vector.shape_cast %61 : vector<1x96x128xbf16> to vector<96x128xbf16>
    %cst_59 = arith.constant dense<0.000000e+00> : vector<8x128xf32>
    %63 = tpu.matmul %60, %62, %cst_59 {dimension_numbers = #tpu.dot_dimension_numbers<[1], [0], [0], [1], [0, 0, 1, 1], [], []>} : vector<8x96xbf16>, vector<96x128xbf16>, vector<8x128xf32> -> vector<8x128xf32>
    %64 = arith.addf %59, %63 : vector<8x128xf32>
    %65 = vector.extract_strided_slice %50 {offsets = [3, 0], sizes = [8, 96], strides = [1, 1]} : vector<12x96xbf16> to vector<8x96xbf16>
    %c3_60 = arith.constant 3 : index
    %c0_61 = arith.constant 0 : index
    %c0_62 = arith.constant 0 : index
    %66 = vector.load %arg6[%c3_60, %c0_61, %c0_62] : memref<5x96x128xbf16, #tpu.memory_space<vmem>>, vector<1x96x128xbf16>
    %67 = vector.shape_cast %66 : vector<1x96x128xbf16> to vector<96x128xbf16>
    %cst_63 = arith.constant dense<0.000000e+00> : vector<8x128xf32>
    %68 = tpu.matmul %65, %67, %cst_63 {dimension_numbers = #tpu.dot_dimension_numbers<[1], [0], [0], [1], [0, 0, 1, 1], [], []>} : vector<8x96xbf16>, vector<96x128xbf16>, vector<8x128xf32> -> vector<8x128xf32>
    %69 = arith.addf %64, %68 : vector<8x128xf32>
    %70 = vector.extract_strided_slice %50 {offsets = [4, 0], sizes = [8, 96], strides = [1, 1]} : vector<12x96xbf16> to vector<8x96xbf16>
    %c4_64 = arith.constant 4 : index
    %c0_65 = arith.constant 0 : index
    %c0_66 = arith.constant 0 : index
    %71 = vector.load %arg6[%c4_64, %c0_65, %c0_66] : memref<5x96x128xbf16, #tpu.memory_space<vmem>>, vector<1x96x128xbf16>
    %72 = vector.shape_cast %71 : vector<1x96x128xbf16> to vector<96x128xbf16>
    %cst_67 = arith.constant dense<0.000000e+00> : vector<8x128xf32>
    %73 = tpu.matmul %70, %72, %cst_67 {dimension_numbers = #tpu.dot_dimension_numbers<[1], [0], [0], [1], [0, 0, 1, 1], [], []>} : vector<8x96xbf16>, vector<96x128xbf16>, vector<8x128xf32> -> vector<8x128xf32>
    %74 = arith.addf %69, %73 : vector<8x128xf32>
    %c0_68 = arith.constant 0 : index
    %c0_69 = arith.constant 0 : index
    %75 = vector.load %arg7[%c0_68, %c0_69] : memref<1x128xf32, #tpu.memory_space<vmem>>, vector<1x128xf32>
    %76 = vector.broadcast %75 : vector<1x128xf32> to vector<8x128xf32>
    %77 = arith.addf %74, %76 : vector<8x128xf32>
    %78 = arith.truncf %77 : vector<8x128xf32> to vector<8x128xbf16>
    %c0_70 = arith.constant 0 : index
    %c0_71 = arith.constant 0 : index
    %c0_72 = arith.constant 0 : index
    %79 = vector.load %arg8[%c0_70, %c0_71, %c0_72] : memref<2x4x8xbf16, #tpu.memory_space<vmem>>, vector<1x4x8xbf16>
    %80 = vector.shape_cast %79 : vector<1x4x8xbf16> to vector<4x8xbf16>
    %cst_73 = arith.constant dense<0.000000e+00> : vector<4x128xf32>
    %81 = tpu.matmul %80, %78, %cst_73 {dimension_numbers = #tpu.dot_dimension_numbers<[1], [0], [0], [1], [0, 0, 1, 1], [], []>} : vector<4x8xbf16>, vector<8x128xbf16>, vector<4x128xf32> -> vector<4x128xf32>
    %c1_74 = arith.constant 1 : index
    %c0_75 = arith.constant 0 : index
    %c0_76 = arith.constant 0 : index
    %82 = vector.load %arg8[%c1_74, %c0_75, %c0_76] : memref<2x4x8xbf16, #tpu.memory_space<vmem>>, vector<1x4x8xbf16>
    %83 = vector.shape_cast %82 : vector<1x4x8xbf16> to vector<4x8xbf16>
    %cst_77 = arith.constant dense<0.000000e+00> : vector<4x128xf32>
    %84 = tpu.matmul %83, %78, %cst_77 {dimension_numbers = #tpu.dot_dimension_numbers<[1], [0], [0], [1], [0, 0, 1, 1], [], []>} : vector<4x8xbf16>, vector<8x128xbf16>, vector<4x128xf32> -> vector<4x128xf32>
    %85 = arith.maximumf %81, %84 : vector<4x128xf32>
    %86 = arith.truncf %85 : vector<4x128xf32> to vector<4x128xbf16>
    %c0_78 = arith.constant 0 : index
    %c0_79 = arith.constant 0 : index
    %c0_80 = arith.constant 0 : index
    %87 = vector.load %arg9[%c0_78, %c0_79, %c0_80] : memref<2x128x64xbf16, #tpu.memory_space<vmem>>, vector<1x128x64xbf16>
    %88 = vector.shape_cast %87 : vector<1x128x64xbf16> to vector<128x64xbf16>
    %cst_81 = arith.constant dense<0.000000e+00> : vector<4x64xf32>
    %89 = tpu.matmul %86, %88, %cst_81 {dimension_numbers = #tpu.dot_dimension_numbers<[1], [0], [0], [1], [0, 0, 1, 1], [], []>} : vector<4x128xbf16>, vector<128x64xbf16>, vector<4x64xf32> -> vector<4x64xf32>
    %c1_82 = arith.constant 1 : index
    %c0_83 = arith.constant 0 : index
    %c0_84 = arith.constant 0 : index
    %90 = vector.load %arg9[%c1_82, %c0_83, %c0_84] : memref<2x128x64xbf16, #tpu.memory_space<vmem>>, vector<1x128x64xbf16>
    %91 = vector.shape_cast %90 : vector<1x128x64xbf16> to vector<128x64xbf16>
    %cst_85 = arith.constant dense<0.000000e+00> : vector<4x64xf32>
    %92 = tpu.matmul %86, %91, %cst_85 {dimension_numbers = #tpu.dot_dimension_numbers<[1], [0], [0], [1], [0, 0, 1, 1], [], []>} : vector<4x128xbf16>, vector<128x64xbf16>, vector<4x64xf32> -> vector<4x64xf32>
    %93 = arith.maximumf %89, %92 : vector<4x64xf32>
    %cst_86 = arith.constant 0.000000e+00 : f32
    %94 = vector.broadcast %cst_86 : f32 to vector<4x64xf32>
    %95 = arith.maximumf %93, %94 : vector<4x64xf32>
    %96 = arith.truncf %95 : vector<4x64xf32> to vector<4x64xbf16>
    %97 = vector.extract_strided_slice %96 {offsets = [0, 0], sizes = [2, 64], strides = [1, 1]} : vector<4x64xbf16> to vector<2x64xbf16>
    %c0_87 = arith.constant 0 : index
    %c0_88 = arith.constant 0 : index
    %c0_89 = arith.constant 0 : index
    %98 = vector.load %arg10[%c0_87, %c0_88, %c0_89] : memref<3x64x64xbf16, #tpu.memory_space<vmem>>, vector<1x64x64xbf16>
    %99 = vector.shape_cast %98 : vector<1x64x64xbf16> to vector<64x64xbf16>
    %cst_90 = arith.constant dense<0.000000e+00> : vector<2x64xf32>
    %100 = tpu.matmul %97, %99, %cst_90 {dimension_numbers = #tpu.dot_dimension_numbers<[1], [0], [0], [1], [0, 0, 1, 1], [], []>} : vector<2x64xbf16>, vector<64x64xbf16>, vector<2x64xf32> -> vector<2x64xf32>
    %101 = vector.extract_strided_slice %96 {offsets = [1, 0], sizes = [2, 64], strides = [1, 1]} : vector<4x64xbf16> to vector<2x64xbf16>
    %c1_91 = arith.constant 1 : index
    %c0_92 = arith.constant 0 : index
    %c0_93 = arith.constant 0 : index
    %102 = vector.load %arg10[%c1_91, %c0_92, %c0_93] : memref<3x64x64xbf16, #tpu.memory_space<vmem>>, vector<1x64x64xbf16>
    %103 = vector.shape_cast %102 : vector<1x64x64xbf16> to vector<64x64xbf16>
    %cst_94 = arith.constant dense<0.000000e+00> : vector<2x64xf32>
    %104 = tpu.matmul %101, %103, %cst_94 {dimension_numbers = #tpu.dot_dimension_numbers<[1], [0], [0], [1], [0, 0, 1, 1], [], []>} : vector<2x64xbf16>, vector<64x64xbf16>, vector<2x64xf32> -> vector<2x64xf32>
    %105 = arith.addf %100, %104 : vector<2x64xf32>
    %106 = vector.extract_strided_slice %96 {offsets = [2, 0], sizes = [2, 64], strides = [1, 1]} : vector<4x64xbf16> to vector<2x64xbf16>
    %c2_95 = arith.constant 2 : index
    %c0_96 = arith.constant 0 : index
    %c0_97 = arith.constant 0 : index
    %107 = vector.load %arg10[%c2_95, %c0_96, %c0_97] : memref<3x64x64xbf16, #tpu.memory_space<vmem>>, vector<1x64x64xbf16>
    %108 = vector.shape_cast %107 : vector<1x64x64xbf16> to vector<64x64xbf16>
    %cst_98 = arith.constant dense<0.000000e+00> : vector<2x64xf32>
    %109 = tpu.matmul %106, %108, %cst_98 {dimension_numbers = #tpu.dot_dimension_numbers<[1], [0], [0], [1], [0, 0, 1, 1], [], []>} : vector<2x64xbf16>, vector<64x64xbf16>, vector<2x64xf32> -> vector<2x64xf32>
    %110 = arith.addf %105, %109 : vector<2x64xf32>
    %c0_99 = arith.constant 0 : index
    %c0_100 = arith.constant 0 : index
    %111 = vector.load %arg11[%c0_99, %c0_100] : memref<1x64xf32, #tpu.memory_space<vmem>>, vector<1x64xf32>
    %112 = vector.broadcast %111 : vector<1x64xf32> to vector<2x64xf32>
    %113 = arith.addf %110, %112 : vector<2x64xf32>
    %114 = vector.extract_strided_slice %113 {offsets = [0, 0], sizes = [1, 64], strides = [1, 1]} : vector<2x64xf32> to vector<1x64xf32>
    %115 = vector.extract_strided_slice %113 {offsets = [1, 0], sizes = [1, 64], strides = [1, 1]} : vector<2x64xf32> to vector<1x64xf32>
    %116 = arith.maximumf %114, %115 : vector<1x64xf32>
    %117 = arith.truncf %116 : vector<1x64xf32> to vector<1x64xbf16>
    %c0_101 = arith.constant 0 : index
    %c0_102 = arith.constant 0 : index
    %c0_103 = arith.constant 0 : index
    %118 = vector.load %arg12[%c0_101, %c0_102, %c0_103] : memref<2x64x32xbf16, #tpu.memory_space<vmem>>, vector<1x64x32xbf16>
    %119 = vector.shape_cast %118 : vector<1x64x32xbf16> to vector<64x32xbf16>
    %cst_104 = arith.constant dense<0.000000e+00> : vector<1x32xf32>
    %120 = tpu.matmul %117, %119, %cst_104 {dimension_numbers = #tpu.dot_dimension_numbers<[1], [0], [0], [1], [0, 0, 1, 1], [], []>} : vector<1x64xbf16>, vector<64x32xbf16>, vector<1x32xf32> -> vector<1x32xf32>
    %c1_105 = arith.constant 1 : index
    %c0_106 = arith.constant 0 : index
    %c0_107 = arith.constant 0 : index
    %121 = vector.load %arg12[%c1_105, %c0_106, %c0_107] : memref<2x64x32xbf16, #tpu.memory_space<vmem>>, vector<1x64x32xbf16>
    %122 = vector.shape_cast %121 : vector<1x64x32xbf16> to vector<64x32xbf16>
    %cst_108 = arith.constant dense<0.000000e+00> : vector<1x32xf32>
    %123 = tpu.matmul %117, %122, %cst_108 {dimension_numbers = #tpu.dot_dimension_numbers<[1], [0], [0], [1], [0, 0, 1, 1], [], []>} : vector<1x64xbf16>, vector<64x32xbf16>, vector<1x32xf32> -> vector<1x32xf32>
    %124 = arith.maximumf %120, %123 : vector<1x32xf32>
    %cst_109 = arith.constant 0.000000e+00 : f32
    %125 = vector.broadcast %cst_109 : f32 to vector<1x32xf32>
    %126 = arith.maximumf %124, %125 : vector<1x32xf32>
    %127 = arith.mulf %126, %126 : vector<1x32xf32>
    %128 = vector.shape_cast %127 : vector<1x32xf32> to vector<1x1x32xf32>
    %cst_110 = arith.constant dense<0.000000e+00> : vector<1xf32>
    %129 = vector.multi_reduction <add>, %128, %cst_110 [1, 2] : vector<1x1x32xf32> to vector<1xf32>
    %130 = vector.shape_cast %129 : vector<1xf32> to vector<1x1x1xf32>
    %131 = vector.extract %130[0, 0, 0] : f32 from vector<1x1x1xf32>
    %cst_111 = arith.constant 1.000000e-24 : f32
    %132 = arith.maximumf %131, %cst_111 : f32
    %133 = math.rsqrt %132 : f32
    %134 = vector.broadcast %133 : f32 to vector<1x32xf32>
    %135 = arith.mulf %126, %134 : vector<1x32xf32>
    %136 = vector.shape_cast %135 : vector<1x32xf32> to vector<1x1x32xf32>
    %c0_112 = arith.constant 0 : index
    %c0_113 = arith.constant 0 : index
    %c0_114 = arith.constant 0 : index
    %137 = vector.load %arg13[%c0_112, %c0_113, %c0_114] : memref<1x1x128xf32, #tpu.memory_space<vmem>>, vector<1x1x32xf32>
    tpu.vector_store %arg13[%c0_112, %c0_113, %c0_114], %136 {strides = array<i32>} : memref<1x1x128xf32, #tpu.memory_space<vmem>>, vector<1x1x32xf32>,
    %c1_115 = arith.constant 1 : index
    %c0_116 = arith.constant 0 : index
    %c0_117 = arith.constant 0 : index
    %138 = vector.load %arg1[%c1_115, %c0_116, %c0_117] : memref<4x28x28xbf16, #tpu.memory_space<vmem>>, vector<1x24x28xbf16>
    %139 = vector.shape_cast %138 : vector<1x24x28xbf16> to vector<24x28xbf16>
    %c0_118 = arith.constant 0 : index
    %c0_119 = arith.constant 0 : index
    %c0_120 = arith.constant 0 : index
    %140 = vector.load %arg2[%c0_118, %c0_119, %c0_120] : memref<5x28x192xbf16, #tpu.memory_space<vmem>>, vector<1x28x192xbf16>
    %141 = vector.shape_cast %140 : vector<1x28x192xbf16> to vector<28x192xbf16>
    %cst_121 = arith.constant dense<0.000000e+00> : vector<24x192xf32>
    %142 = tpu.matmul %139, %141, %cst_121 {dimension_numbers = #tpu.dot_dimension_numbers<[1], [0], [0], [1], [0, 0, 1, 1], [], []>} : vector<24x28xbf16>, vector<28x192xbf16>, vector<24x192xf32> -> vector<24x192xf32>
    %c1_122 = arith.constant 1 : index
    %c1_123 = arith.constant 1 : index
    %c0_124 = arith.constant 0 : index
    %143 = vector.load %arg1[%c1_122, %c1_123, %c0_124] : memref<4x28x28xbf16, #tpu.memory_space<vmem>>, vector<1x24x28xbf16>
    %144 = vector.shape_cast %143 : vector<1x24x28xbf16> to vector<24x28xbf16>
    %c1_125 = arith.constant 1 : index
    %c0_126 = arith.constant 0 : index
    %c0_127 = arith.constant 0 : index
    %145 = vector.load %arg2[%c1_125, %c0_126, %c0_127] : memref<5x28x192xbf16, #tpu.memory_space<vmem>>, vector<1x28x192xbf16>
    %146 = vector.shape_cast %145 : vector<1x28x192xbf16> to vector<28x192xbf16>
    %cst_128 = arith.constant dense<0.000000e+00> : vector<24x192xf32>
    %147 = tpu.matmul %144, %146, %cst_128 {dimension_numbers = #tpu.dot_dimension_numbers<[1], [0], [0], [1], [0, 0, 1, 1], [], []>} : vector<24x28xbf16>, vector<28x192xbf16>, vector<24x192xf32> -> vector<24x192xf32>
    %148 = arith.addf %142, %147 : vector<24x192xf32>
    %c1_129 = arith.constant 1 : index
    %c2_130 = arith.constant 2 : index
    %c0_131 = arith.constant 0 : index
    %149 = vector.load %arg1[%c1_129, %c2_130, %c0_131] : memref<4x28x28xbf16, #tpu.memory_space<vmem>>, vector<1x24x28xbf16>
    %150 = vector.shape_cast %149 : vector<1x24x28xbf16> to vector<24x28xbf16>
    %c2_132 = arith.constant 2 : index
    %c0_133 = arith.constant 0 : index
    %c0_134 = arith.constant 0 : index
    %151 = vector.load %arg2[%c2_132, %c0_133, %c0_134] : memref<5x28x192xbf16, #tpu.memory_space<vmem>>, vector<1x28x192xbf16>
    %152 = vector.shape_cast %151 : vector<1x28x192xbf16> to vector<28x192xbf16>
    %cst_135 = arith.constant dense<0.000000e+00> : vector<24x192xf32>
    %153 = tpu.matmul %150, %152, %cst_135 {dimension_numbers = #tpu.dot_dimension_numbers<[1], [0], [0], [1], [0, 0, 1, 1], [], []>} : vector<24x28xbf16>, vector<28x192xbf16>, vector<24x192xf32> -> vector<24x192xf32>
    %154 = arith.addf %148, %153 : vector<24x192xf32>
    %c1_136 = arith.constant 1 : index
    %c3_137 = arith.constant 3 : index
    %c0_138 = arith.constant 0 : index
    %155 = vector.load %arg1[%c1_136, %c3_137, %c0_138] : memref<4x28x28xbf16, #tpu.memory_space<vmem>>, vector<1x24x28xbf16>
    %156 = vector.shape_cast %155 : vector<1x24x28xbf16> to vector<24x28xbf16>
    %c3_139 = arith.constant 3 : index
    %c0_140 = arith.constant 0 : index
    %c0_141 = arith.constant 0 : index
    %157 = vector.load %arg2[%c3_139, %c0_140, %c0_141] : memref<5x28x192xbf16, #tpu.memory_space<vmem>>, vector<1x28x192xbf16>
    %158 = vector.shape_cast %157 : vector<1x28x192xbf16> to vector<28x192xbf16>
    %cst_142 = arith.constant dense<0.000000e+00> : vector<24x192xf32>
    %159 = tpu.matmul %156, %158, %cst_142 {dimension_numbers = #tpu.dot_dimension_numbers<[1], [0], [0], [1], [0, 0, 1, 1], [], []>} : vector<24x28xbf16>, vector<28x192xbf16>, vector<24x192xf32> -> vector<24x192xf32>
    %160 = arith.addf %154, %159 : vector<24x192xf32>
    %c1_143 = arith.constant 1 : index
    %c4_144 = arith.constant 4 : index
    %c0_145 = arith.constant 0 : index
    %161 = vector.load %arg1[%c1_143, %c4_144, %c0_145] : memref<4x28x28xbf16, #tpu.memory_space<vmem>>, vector<1x24x28xbf16>
    %162 = vector.shape_cast %161 : vector<1x24x28xbf16> to vector<24x28xbf16>
    %c4_146 = arith.constant 4 : index
    %c0_147 = arith.constant 0 : index
    %c0_148 = arith.constant 0 : index
    %163 = vector.load %arg2[%c4_146, %c0_147, %c0_148] : memref<5x28x192xbf16, #tpu.memory_space<vmem>>, vector<1x28x192xbf16>
    %164 = vector.shape_cast %163 : vector<1x28x192xbf16> to vector<28x192xbf16>
    %cst_149 = arith.constant dense<0.000000e+00> : vector<24x192xf32>
    %165 = tpu.matmul %162, %164, %cst_149 {dimension_numbers = #tpu.dot_dimension_numbers<[1], [0], [0], [1], [0, 0, 1, 1], [], []>} : vector<24x28xbf16>, vector<28x192xbf16>, vector<24x192xf32> -> vector<24x192xf32>
    %166 = arith.addf %160, %165 : vector<24x192xf32>
    %c0_150 = arith.constant 0 : index
    %c0_151 = arith.constant 0 : index
    %167 = vector.load %arg3[%c0_150, %c0_151] : memref<1x192xf32, #tpu.memory_space<vmem>>, vector<1x192xf32>
    %168 = vector.broadcast %167 : vector<1x192xf32> to vector<24x192xf32>
    %169 = arith.addf %166, %168 : vector<24x192xf32>
    %170 = arith.truncf %169 : vector<24x192xf32> to vector<24x192xbf16>
    %c0_152 = arith.constant 0 : index
    %c0_153 = arith.constant 0 : index
    %c0_154 = arith.constant 0 : index
    %171 = vector.load %arg4[%c0_152, %c0_153, %c0_154] : memref<2x12x24xbf16, #tpu.memory_space<vmem>>, vector<1x12x24xbf16>
    %172 = vector.shape_cast %171 : vector<1x12x24xbf16> to vector<12x24xbf16>
    %cst_155 = arith.constant dense<0.000000e+00> : vector<12x192xf32>
    %173 = tpu.matmul %172, %170, %cst_155 {dimension_numbers = #tpu.dot_dimension_numbers<[1], [0], [0], [1], [0, 0, 1, 1], [], []>} : vector<12x24xbf16>, vector<24x192xbf16>, vector<12x192xf32> -> vector<12x192xf32>
    %c1_156 = arith.constant 1 : index
    %c0_157 = arith.constant 0 : index
    %c0_158 = arith.constant 0 : index
    %174 = vector.load %arg4[%c1_156, %c0_157, %c0_158] : memref<2x12x24xbf16, #tpu.memory_space<vmem>>, vector<1x12x24xbf16>
    %175 = vector.shape_cast %174 : vector<1x12x24xbf16> to vector<12x24xbf16>
    %cst_159 = arith.constant dense<0.000000e+00> : vector<12x192xf32>
    %176 = tpu.matmul %175, %170, %cst_159 {dimension_numbers = #tpu.dot_dimension_numbers<[1], [0], [0], [1], [0, 0, 1, 1], [], []>} : vector<12x24xbf16>, vector<24x192xbf16>, vector<12x192xf32> -> vector<12x192xf32>
    %177 = arith.maximumf %173, %176 : vector<12x192xf32>
    %178 = arith.truncf %177 : vector<12x192xf32> to vector<12x192xbf16>
    %c0_160 = arith.constant 0 : index
    %c0_161 = arith.constant 0 : index
    %c0_162 = arith.constant 0 : index
    %179 = vector.load %arg5[%c0_160, %c0_161, %c0_162] : memref<2x192x96xbf16, #tpu.memory_space<vmem>>, vector<1x192x96xbf16>
    %180 = vector.shape_cast %179 : vector<1x192x96xbf16> to vector<192x96xbf16>
    %cst_163 = arith.constant dense<0.000000e+00> : vector<12x96xf32>
    %181 = tpu.matmul %178, %180, %cst_163 {dimension_numbers = #tpu.dot_dimension_numbers<[1], [0], [0], [1], [0, 0, 1, 1], [], []>} : vector<12x192xbf16>, vector<192x96xbf16>, vector<12x96xf32> -> vector<12x96xf32>
    %c1_164 = arith.constant 1 : index
    %c0_165 = arith.constant 0 : index
    %c0_166 = arith.constant 0 : index
    %182 = vector.load %arg5[%c1_164, %c0_165, %c0_166] : memref<2x192x96xbf16, #tpu.memory_space<vmem>>, vector<1x192x96xbf16>
    %183 = vector.shape_cast %182 : vector<1x192x96xbf16> to vector<192x96xbf16>
    %cst_167 = arith.constant dense<0.000000e+00> : vector<12x96xf32>
    %184 = tpu.matmul %178, %183, %cst_167 {dimension_numbers = #tpu.dot_dimension_numbers<[1], [0], [0], [1], [0, 0, 1, 1], [], []>} : vector<12x192xbf16>, vector<192x96xbf16>, vector<12x96xf32> -> vector<12x96xf32>
    %185 = arith.maximumf %181, %184 : vector<12x96xf32>
    %cst_168 = arith.constant 0.000000e+00 : f32
    %186 = vector.broadcast %cst_168 : f32 to vector<12x96xf32>
    %187 = arith.maximumf %185, %186 : vector<12x96xf32>
    %188 = arith.truncf %187 : vector<12x96xf32> to vector<12x96xbf16>
    %189 = vector.extract_strided_slice %188 {offsets = [0, 0], sizes = [8, 96], strides = [1, 1]} : vector<12x96xbf16> to vector<8x96xbf16>
    %c0_169 = arith.constant 0 : index
    %c0_170 = arith.constant 0 : index
    %c0_171 = arith.constant 0 : index
    %190 = vector.load %arg6[%c0_169, %c0_170, %c0_171] : memref<5x96x128xbf16, #tpu.memory_space<vmem>>, vector<1x96x128xbf16>
    %191 = vector.shape_cast %190 : vector<1x96x128xbf16> to vector<96x128xbf16>
    %cst_172 = arith.constant dense<0.000000e+00> : vector<8x128xf32>
    %192 = tpu.matmul %189, %191, %cst_172 {dimension_numbers = #tpu.dot_dimension_numbers<[1], [0], [0], [1], [0, 0, 1, 1], [], []>} : vector<8x96xbf16>, vector<96x128xbf16>, vector<8x128xf32> -> vector<8x128xf32>
    %193 = vector.extract_strided_slice %188 {offsets = [1, 0], sizes = [8, 96], strides = [1, 1]} : vector<12x96xbf16> to vector<8x96xbf16>
    %c1_173 = arith.constant 1 : index
    %c0_174 = arith.constant 0 : index
    %c0_175 = arith.constant 0 : index
    %194 = vector.load %arg6[%c1_173, %c0_174, %c0_175] : memref<5x96x128xbf16, #tpu.memory_space<vmem>>, vector<1x96x128xbf16>
    %195 = vector.shape_cast %194 : vector<1x96x128xbf16> to vector<96x128xbf16>
    %cst_176 = arith.constant dense<0.000000e+00> : vector<8x128xf32>
    %196 = tpu.matmul %193, %195, %cst_176 {dimension_numbers = #tpu.dot_dimension_numbers<[1], [0], [0], [1], [0, 0, 1, 1], [], []>} : vector<8x96xbf16>, vector<96x128xbf16>, vector<8x128xf32> -> vector<8x128xf32>
    %197 = arith.addf %192, %196 : vector<8x128xf32>
    %198 = vector.extract_strided_slice %188 {offsets = [2, 0], sizes = [8, 96], strides = [1, 1]} : vector<12x96xbf16> to vector<8x96xbf16>
    %c2_177 = arith.constant 2 : index
    %c0_178 = arith.constant 0 : index
    %c0_179 = arith.constant 0 : index
    %199 = vector.load %arg6[%c2_177, %c0_178, %c0_179] : memref<5x96x128xbf16, #tpu.memory_space<vmem>>, vector<1x96x128xbf16>
    %200 = vector.shape_cast %199 : vector<1x96x128xbf16> to vector<96x128xbf16>
    %cst_180 = arith.constant dense<0.000000e+00> : vector<8x128xf32>
    %201 = tpu.matmul %198, %200, %cst_180 {dimension_numbers = #tpu.dot_dimension_numbers<[1], [0], [0], [1], [0, 0, 1, 1], [], []>} : vector<8x96xbf16>, vector<96x128xbf16>, vector<8x128xf32> -> vector<8x128xf32>
    %202 = arith.addf %197, %201 : vector<8x128xf32>
    %203 = vector.extract_strided_slice %188 {offsets = [3, 0], sizes = [8, 96], strides = [1, 1]} : vector<12x96xbf16> to vector<8x96xbf16>
    %c3_181 = arith.constant 3 : index
    %c0_182 = arith.constant 0 : index
    %c0_183 = arith.constant 0 : index
    %204 = vector.load %arg6[%c3_181, %c0_182, %c0_183] : memref<5x96x128xbf16, #tpu.memory_space<vmem>>, vector<1x96x128xbf16>
    %205 = vector.shape_cast %204 : vector<1x96x128xbf16> to vector<96x128xbf16>
    %cst_184 = arith.constant dense<0.000000e+00> : vector<8x128xf32>
    %206 = tpu.matmul %203, %205, %cst_184 {dimension_numbers = #tpu.dot_dimension_numbers<[1], [0], [0], [1], [0, 0, 1, 1], [], []>} : vector<8x96xbf16>, vector<96x128xbf16>, vector<8x128xf32> -> vector<8x128xf32>
    %207 = arith.addf %202, %206 : vector<8x128xf32>
    %208 = vector.extract_strided_slice %188 {offsets = [4, 0], sizes = [8, 96], strides = [1, 1]} : vector<12x96xbf16> to vector<8x96xbf16>
    %c4_185 = arith.constant 4 : index
    %c0_186 = arith.constant 0 : index
    %c0_187 = arith.constant 0 : index
    %209 = vector.load %arg6[%c4_185, %c0_186, %c0_187] : memref<5x96x128xbf16, #tpu.memory_space<vmem>>, vector<1x96x128xbf16>
    %210 = vector.shape_cast %209 : vector<1x96x128xbf16> to vector<96x128xbf16>
    %cst_188 = arith.constant dense<0.000000e+00> : vector<8x128xf32>
    %211 = tpu.matmul %208, %210, %cst_188 {dimension_numbers = #tpu.dot_dimension_numbers<[1], [0], [0], [1], [0, 0, 1, 1], [], []>} : vector<8x96xbf16>, vector<96x128xbf16>, vector<8x128xf32> -> vector<8x128xf32>
    %212 = arith.addf %207, %211 : vector<8x128xf32>
    %c0_189 = arith.constant 0 : index
    %c0_190 = arith.constant 0 : index
    %213 = vector.load %arg7[%c0_189, %c0_190] : memref<1x128xf32, #tpu.memory_space<vmem>>, vector<1x128xf32>
    %214 = vector.broadcast %213 : vector<1x128xf32> to vector<8x128xf32>
    %215 = arith.addf %212, %214 : vector<8x128xf32>
    %216 = arith.truncf %215 : vector<8x128xf32> to vector<8x128xbf16>
    %c0_191 = arith.constant 0 : index
    %c0_192 = arith.constant 0 : index
    %c0_193 = arith.constant 0 : index
    %217 = vector.load %arg8[%c0_191, %c0_192, %c0_193] : memref<2x4x8xbf16, #tpu.memory_space<vmem>>, vector<1x4x8xbf16>
    %218 = vector.shape_cast %217 : vector<1x4x8xbf16> to vector<4x8xbf16>
    %cst_194 = arith.constant dense<0.000000e+00> : vector<4x128xf32>
    %219 = tpu.matmul %218, %216, %cst_194 {dimension_numbers = #tpu.dot_dimension_numbers<[1], [0], [0], [1], [0, 0, 1, 1], [], []>} : vector<4x8xbf16>, vector<8x128xbf16>, vector<4x128xf32> -> vector<4x128xf32>
    %c1_195 = arith.constant 1 : index
    %c0_196 = arith.constant 0 : index
    %c0_197 = arith.constant 0 : index
    %220 = vector.load %arg8[%c1_195, %c0_196, %c0_197] : memref<2x4x8xbf16, #tpu.memory_space<vmem>>, vector<1x4x8xbf16>
    %221 = vector.shape_cast %220 : vector<1x4x8xbf16> to vector<4x8xbf16>
    %cst_198 = arith.constant dense<0.000000e+00> : vector<4x128xf32>
    %222 = tpu.matmul %221, %216, %cst_198 {dimension_numbers = #tpu.dot_dimension_numbers<[1], [0], [0], [1], [0, 0, 1, 1], [], []>} : vector<4x8xbf16>, vector<8x128xbf16>, vector<4x128xf32> -> vector<4x128xf32>
    %223 = arith.maximumf %219, %222 : vector<4x128xf32>
    %224 = arith.truncf %223 : vector<4x128xf32> to vector<4x128xbf16>
    %c0_199 = arith.constant 0 : index
    %c0_200 = arith.constant 0 : index
    %c0_201 = arith.constant 0 : index
    %225 = vector.load %arg9[%c0_199, %c0_200, %c0_201] : memref<2x128x64xbf16, #tpu.memory_space<vmem>>, vector<1x128x64xbf16>
    %226 = vector.shape_cast %225 : vector<1x128x64xbf16> to vector<128x64xbf16>
    %cst_202 = arith.constant dense<0.000000e+00> : vector<4x64xf32>
    %227 = tpu.matmul %224, %226, %cst_202 {dimension_numbers = #tpu.dot_dimension_numbers<[1], [0], [0], [1], [0, 0, 1, 1], [], []>} : vector<4x128xbf16>, vector<128x64xbf16>, vector<4x64xf32> -> vector<4x64xf32>
    %c1_203 = arith.constant 1 : index
    %c0_204 = arith.constant 0 : index
    %c0_205 = arith.constant 0 : index
    %228 = vector.load %arg9[%c1_203, %c0_204, %c0_205] : memref<2x128x64xbf16, #tpu.memory_space<vmem>>, vector<1x128x64xbf16>
    %229 = vector.shape_cast %228 : vector<1x128x64xbf16> to vector<128x64xbf16>
    %cst_206 = arith.constant dense<0.000000e+00> : vector<4x64xf32>
    %230 = tpu.matmul %224, %229, %cst_206 {dimension_numbers = #tpu.dot_dimension_numbers<[1], [0], [0], [1], [0, 0, 1, 1], [], []>} : vector<4x128xbf16>, vector<128x64xbf16>, vector<4x64xf32> -> vector<4x64xf32>
    %231 = arith.maximumf %227, %230 : vector<4x64xf32>
    %cst_207 = arith.constant 0.000000e+00 : f32
    %232 = vector.broadcast %cst_207 : f32 to vector<4x64xf32>
    %233 = arith.maximumf %231, %232 : vector<4x64xf32>
    %234 = arith.truncf %233 : vector<4x64xf32> to vector<4x64xbf16>
    %235 = vector.extract_strided_slice %234 {offsets = [0, 0], sizes = [2, 64], strides = [1, 1]} : vector<4x64xbf16> to vector<2x64xbf16>
    %c0_208 = arith.constant 0 : index
    %c0_209 = arith.constant 0 : index
    %c0_210 = arith.constant 0 : index
    %236 = vector.load %arg10[%c0_208, %c0_209, %c0_210] : memref<3x64x64xbf16, #tpu.memory_space<vmem>>, vector<1x64x64xbf16>
    %237 = vector.shape_cast %236 : vector<1x64x64xbf16> to vector<64x64xbf16>
    %cst_211 = arith.constant dense<0.000000e+00> : vector<2x64xf32>
    %238 = tpu.matmul %235, %237, %cst_211 {dimension_numbers = #tpu.dot_dimension_numbers<[1], [0], [0], [1], [0, 0, 1, 1], [], []>} : vector<2x64xbf16>, vector<64x64xbf16>, vector<2x64xf32> -> vector<2x64xf32>
    %239 = vector.extract_strided_slice %234 {offsets = [1, 0], sizes = [2, 64], strides = [1, 1]} : vector<4x64xbf16> to vector<2x64xbf16>
    %c1_212 = arith.constant 1 : index
    %c0_213 = arith.constant 0 : index
    %c0_214 = arith.constant 0 : index
    %240 = vector.load %arg10[%c1_212, %c0_213, %c0_214] : memref<3x64x64xbf16, #tpu.memory_space<vmem>>, vector<1x64x64xbf16>
    %241 = vector.shape_cast %240 : vector<1x64x64xbf16> to vector<64x64xbf16>
    %cst_215 = arith.constant dense<0.000000e+00> : vector<2x64xf32>
    %242 = tpu.matmul %239, %241, %cst_215 {dimension_numbers = #tpu.dot_dimension_numbers<[1], [0], [0], [1], [0, 0, 1, 1], [], []>} : vector<2x64xbf16>, vector<64x64xbf16>, vector<2x64xf32> -> vector<2x64xf32>
    %243 = arith.addf %238, %242 : vector<2x64xf32>
    %244 = vector.extract_strided_slice %234 {offsets = [2, 0], sizes = [2, 64], strides = [1, 1]} : vector<4x64xbf16> to vector<2x64xbf16>
    %c2_216 = arith.constant 2 : index
    %c0_217 = arith.constant 0 : index
    %c0_218 = arith.constant 0 : index
    %245 = vector.load %arg10[%c2_216, %c0_217, %c0_218] : memref<3x64x64xbf16, #tpu.memory_space<vmem>>, vector<1x64x64xbf16>
    %246 = vector.shape_cast %245 : vector<1x64x64xbf16> to vector<64x64xbf16>
    %cst_219 = arith.constant dense<0.000000e+00> : vector<2x64xf32>
    %247 = tpu.matmul %244, %246, %cst_219 {dimension_numbers = #tpu.dot_dimension_numbers<[1], [0], [0], [1], [0, 0, 1, 1], [], []>} : vector<2x64xbf16>, vector<64x64xbf16>, vector<2x64xf32> -> vector<2x64xf32>
    %248 = arith.addf %243, %247 : vector<2x64xf32>
    %c0_220 = arith.constant 0 : index
    %c0_221 = arith.constant 0 : index
    %249 = vector.load %arg11[%c0_220, %c0_221] : memref<1x64xf32, #tpu.memory_space<vmem>>, vector<1x64xf32>
    %250 = vector.broadcast %249 : vector<1x64xf32> to vector<2x64xf32>
    %251 = arith.addf %248, %250 : vector<2x64xf32>
    %252 = vector.extract_strided_slice %251 {offsets = [0, 0], sizes = [1, 64], strides = [1, 1]} : vector<2x64xf32> to vector<1x64xf32>
    %253 = vector.extract_strided_slice %251 {offsets = [1, 0], sizes = [1, 64], strides = [1, 1]} : vector<2x64xf32> to vector<1x64xf32>
    %254 = arith.maximumf %252, %253 : vector<1x64xf32>
    %255 = arith.truncf %254 : vector<1x64xf32> to vector<1x64xbf16>
    %c0_222 = arith.constant 0 : index
    %c0_223 = arith.constant 0 : index
    %c0_224 = arith.constant 0 : index
    %256 = vector.load %arg12[%c0_222, %c0_223, %c0_224] : memref<2x64x32xbf16, #tpu.memory_space<vmem>>, vector<1x64x32xbf16>
    %257 = vector.shape_cast %256 : vector<1x64x32xbf16> to vector<64x32xbf16>
    %cst_225 = arith.constant dense<0.000000e+00> : vector<1x32xf32>
    %258 = tpu.matmul %255, %257, %cst_225 {dimension_numbers = #tpu.dot_dimension_numbers<[1], [0], [0], [1], [0, 0, 1, 1], [], []>} : vector<1x64xbf16>, vector<64x32xbf16>, vector<1x32xf32> -> vector<1x32xf32>
    %c1_226 = arith.constant 1 : index
    %c0_227 = arith.constant 0 : index
    %c0_228 = arith.constant 0 : index
    %259 = vector.load %arg12[%c1_226, %c0_227, %c0_228] : memref<2x64x32xbf16, #tpu.memory_space<vmem>>, vector<1x64x32xbf16>
    %260 = vector.shape_cast %259 : vector<1x64x32xbf16> to vector<64x32xbf16>
    %cst_229 = arith.constant dense<0.000000e+00> : vector<1x32xf32>
    %261 = tpu.matmul %255, %260, %cst_229 {dimension_numbers = #tpu.dot_dimension_numbers<[1], [0], [0], [1], [0, 0, 1, 1], [], []>} : vector<1x64xbf16>, vector<64x32xbf16>, vector<1x32xf32> -> vector<1x32xf32>
    %262 = arith.maximumf %258, %261 : vector<1x32xf32>
    %cst_230 = arith.constant 0.000000e+00 : f32
    %263 = vector.broadcast %cst_230 : f32 to vector<1x32xf32>
    %264 = arith.maximumf %262, %263 : vector<1x32xf32>
    %265 = arith.mulf %264, %264 : vector<1x32xf32>
    %266 = vector.shape_cast %265 : vector<1x32xf32> to vector<1x1x32xf32>
    %cst_231 = arith.constant dense<0.000000e+00> : vector<1xf32>
    %267 = vector.multi_reduction <add>, %266, %cst_231 [1, 2] : vector<1x1x32xf32> to vector<1xf32>
    %268 = vector.shape_cast %267 : vector<1xf32> to vector<1x1x1xf32>
    %269 = vector.extract %268[0, 0, 0] : f32 from vector<1x1x1xf32>
    %cst_232 = arith.constant 1.000000e-24 : f32
    %270 = arith.maximumf %269, %cst_232 : f32
    %271 = math.rsqrt %270 : f32
    %272 = vector.broadcast %271 : f32 to vector<1x32xf32>
    %273 = arith.mulf %264, %272 : vector<1x32xf32>
    %274 = vector.shape_cast %273 : vector<1x32xf32> to vector<1x1x32xf32>
    %c0_233 = arith.constant 0 : index
    %c0_234 = arith.constant 0 : index
    %c32 = arith.constant 32 : index
    %275 = vector.load %arg13[%c0_233, %c0_234, %c32] : memref<1x1x128xf32, #tpu.memory_space<vmem>>, vector<1x1x32xf32>
    tpu.vector_store %arg13[%c0_233, %c0_234, %c32], %274 {strides = array<i32>} : memref<1x1x128xf32, #tpu.memory_space<vmem>>, vector<1x1x32xf32>,
    %c2_235 = arith.constant 2 : index
    %c0_236 = arith.constant 0 : index
    %c0_237 = arith.constant 0 : index
    %276 = vector.load %arg1[%c2_235, %c0_236, %c0_237] : memref<4x28x28xbf16, #tpu.memory_space<vmem>>, vector<1x24x28xbf16>
    %277 = vector.shape_cast %276 : vector<1x24x28xbf16> to vector<24x28xbf16>
    %c0_238 = arith.constant 0 : index
    %c0_239 = arith.constant 0 : index
    %c0_240 = arith.constant 0 : index
    %278 = vector.load %arg2[%c0_238, %c0_239, %c0_240] : memref<5x28x192xbf16, #tpu.memory_space<vmem>>, vector<1x28x192xbf16>
    %279 = vector.shape_cast %278 : vector<1x28x192xbf16> to vector<28x192xbf16>
    %cst_241 = arith.constant dense<0.000000e+00> : vector<24x192xf32>
    %280 = tpu.matmul %277, %279, %cst_241 {dimension_numbers = #tpu.dot_dimension_numbers<[1], [0], [0], [1], [0, 0, 1, 1], [], []>} : vector<24x28xbf16>, vector<28x192xbf16>, vector<24x192xf32> -> vector<24x192xf32>
    %c2_242 = arith.constant 2 : index
    %c1_243 = arith.constant 1 : index
    %c0_244 = arith.constant 0 : index
    %281 = vector.load %arg1[%c2_242, %c1_243, %c0_244] : memref<4x28x28xbf16, #tpu.memory_space<vmem>>, vector<1x24x28xbf16>
    %282 = vector.shape_cast %281 : vector<1x24x28xbf16> to vector<24x28xbf16>
    %c1_245 = arith.constant 1 : index
    %c0_246 = arith.constant 0 : index
    %c0_247 = arith.constant 0 : index
    %283 = vector.load %arg2[%c1_245, %c0_246, %c0_247] : memref<5x28x192xbf16, #tpu.memory_space<vmem>>, vector<1x28x192xbf16>
    %284 = vector.shape_cast %283 : vector<1x28x192xbf16> to vector<28x192xbf16>
    %cst_248 = arith.constant dense<0.000000e+00> : vector<24x192xf32>
    %285 = tpu.matmul %282, %284, %cst_248 {dimension_numbers = #tpu.dot_dimension_numbers<[1], [0], [0], [1], [0, 0, 1, 1], [], []>} : vector<24x28xbf16>, vector<28x192xbf16>, vector<24x192xf32> -> vector<24x192xf32>
    %286 = arith.addf %280, %285 : vector<24x192xf32>
    %c2_249 = arith.constant 2 : index
    %c2_250 = arith.constant 2 : index
    %c0_251 = arith.constant 0 : index
    %287 = vector.load %arg1[%c2_249, %c2_250, %c0_251] : memref<4x28x28xbf16, #tpu.memory_space<vmem>>, vector<1x24x28xbf16>
    %288 = vector.shape_cast %287 : vector<1x24x28xbf16> to vector<24x28xbf16>
    %c2_252 = arith.constant 2 : index
    %c0_253 = arith.constant 0 : index
    %c0_254 = arith.constant 0 : index
    %289 = vector.load %arg2[%c2_252, %c0_253, %c0_254] : memref<5x28x192xbf16, #tpu.memory_space<vmem>>, vector<1x28x192xbf16>
    %290 = vector.shape_cast %289 : vector<1x28x192xbf16> to vector<28x192xbf16>
    %cst_255 = arith.constant dense<0.000000e+00> : vector<24x192xf32>
    %291 = tpu.matmul %288, %290, %cst_255 {dimension_numbers = #tpu.dot_dimension_numbers<[1], [0], [0], [1], [0, 0, 1, 1], [], []>} : vector<24x28xbf16>, vector<28x192xbf16>, vector<24x192xf32> -> vector<24x192xf32>
    %292 = arith.addf %286, %291 : vector<24x192xf32>
    %c2_256 = arith.constant 2 : index
    %c3_257 = arith.constant 3 : index
    %c0_258 = arith.constant 0 : index
    %293 = vector.load %arg1[%c2_256, %c3_257, %c0_258] : memref<4x28x28xbf16, #tpu.memory_space<vmem>>, vector<1x24x28xbf16>
    %294 = vector.shape_cast %293 : vector<1x24x28xbf16> to vector<24x28xbf16>
    %c3_259 = arith.constant 3 : index
    %c0_260 = arith.constant 0 : index
    %c0_261 = arith.constant 0 : index
    %295 = vector.load %arg2[%c3_259, %c0_260, %c0_261] : memref<5x28x192xbf16, #tpu.memory_space<vmem>>, vector<1x28x192xbf16>
    %296 = vector.shape_cast %295 : vector<1x28x192xbf16> to vector<28x192xbf16>
    %cst_262 = arith.constant dense<0.000000e+00> : vector<24x192xf32>
    %297 = tpu.matmul %294, %296, %cst_262 {dimension_numbers = #tpu.dot_dimension_numbers<[1], [0], [0], [1], [0, 0, 1, 1], [], []>} : vector<24x28xbf16>, vector<28x192xbf16>, vector<24x192xf32> -> vector<24x192xf32>
    %298 = arith.addf %292, %297 : vector<24x192xf32>
    %c2_263 = arith.constant 2 : index
    %c4_264 = arith.constant 4 : index
    %c0_265 = arith.constant 0 : index
    %299 = vector.load %arg1[%c2_263, %c4_264, %c0_265] : memref<4x28x28xbf16, #tpu.memory_space<vmem>>, vector<1x24x28xbf16>
    %300 = vector.shape_cast %299 : vector<1x24x28xbf16> to vector<24x28xbf16>
    %c4_266 = arith.constant 4 : index
    %c0_267 = arith.constant 0 : index
    %c0_268 = arith.constant 0 : index
    %301 = vector.load %arg2[%c4_266, %c0_267, %c0_268] : memref<5x28x192xbf16, #tpu.memory_space<vmem>>, vector<1x28x192xbf16>
    %302 = vector.shape_cast %301 : vector<1x28x192xbf16> to vector<28x192xbf16>
    %cst_269 = arith.constant dense<0.000000e+00> : vector<24x192xf32>
    %303 = tpu.matmul %300, %302, %cst_269 {dimension_numbers = #tpu.dot_dimension_numbers<[1], [0], [0], [1], [0, 0, 1, 1], [], []>} : vector<24x28xbf16>, vector<28x192xbf16>, vector<24x192xf32> -> vector<24x192xf32>
    %304 = arith.addf %298, %303 : vector<24x192xf32>
    %c0_270 = arith.constant 0 : index
    %c0_271 = arith.constant 0 : index
    %305 = vector.load %arg3[%c0_270, %c0_271] : memref<1x192xf32, #tpu.memory_space<vmem>>, vector<1x192xf32>
    %306 = vector.broadcast %305 : vector<1x192xf32> to vector<24x192xf32>
    %307 = arith.addf %304, %306 : vector<24x192xf32>
    %308 = arith.truncf %307 : vector<24x192xf32> to vector<24x192xbf16>
    %c0_272 = arith.constant 0 : index
    %c0_273 = arith.constant 0 : index
    %c0_274 = arith.constant 0 : index
    %309 = vector.load %arg4[%c0_272, %c0_273, %c0_274] : memref<2x12x24xbf16, #tpu.memory_space<vmem>>, vector<1x12x24xbf16>
    %310 = vector.shape_cast %309 : vector<1x12x24xbf16> to vector<12x24xbf16>
    %cst_275 = arith.constant dense<0.000000e+00> : vector<12x192xf32>
    %311 = tpu.matmul %310, %308, %cst_275 {dimension_numbers = #tpu.dot_dimension_numbers<[1], [0], [0], [1], [0, 0, 1, 1], [], []>} : vector<12x24xbf16>, vector<24x192xbf16>, vector<12x192xf32> -> vector<12x192xf32>
    %c1_276 = arith.constant 1 : index
    %c0_277 = arith.constant 0 : index
    %c0_278 = arith.constant 0 : index
    %312 = vector.load %arg4[%c1_276, %c0_277, %c0_278] : memref<2x12x24xbf16, #tpu.memory_space<vmem>>, vector<1x12x24xbf16>
    %313 = vector.shape_cast %312 : vector<1x12x24xbf16> to vector<12x24xbf16>
    %cst_279 = arith.constant dense<0.000000e+00> : vector<12x192xf32>
    %314 = tpu.matmul %313, %308, %cst_279 {dimension_numbers = #tpu.dot_dimension_numbers<[1], [0], [0], [1], [0, 0, 1, 1], [], []>} : vector<12x24xbf16>, vector<24x192xbf16>, vector<12x192xf32> -> vector<12x192xf32>
    %315 = arith.maximumf %311, %314 : vector<12x192xf32>
    %316 = arith.truncf %315 : vector<12x192xf32> to vector<12x192xbf16>
    %c0_280 = arith.constant 0 : index
    %c0_281 = arith.constant 0 : index
    %c0_282 = arith.constant 0 : index
    %317 = vector.load %arg5[%c0_280, %c0_281, %c0_282] : memref<2x192x96xbf16, #tpu.memory_space<vmem>>, vector<1x192x96xbf16>
    %318 = vector.shape_cast %317 : vector<1x192x96xbf16> to vector<192x96xbf16>
    %cst_283 = arith.constant dense<0.000000e+00> : vector<12x96xf32>
    %319 = tpu.matmul %316, %318, %cst_283 {dimension_numbers = #tpu.dot_dimension_numbers<[1], [0], [0], [1], [0, 0, 1, 1], [], []>} : vector<12x192xbf16>, vector<192x96xbf16>, vector<12x96xf32> -> vector<12x96xf32>
    %c1_284 = arith.constant 1 : index
    %c0_285 = arith.constant 0 : index
    %c0_286 = arith.constant 0 : index
    %320 = vector.load %arg5[%c1_284, %c0_285, %c0_286] : memref<2x192x96xbf16, #tpu.memory_space<vmem>>, vector<1x192x96xbf16>
    %321 = vector.shape_cast %320 : vector<1x192x96xbf16> to vector<192x96xbf16>
    %cst_287 = arith.constant dense<0.000000e+00> : vector<12x96xf32>
    %322 = tpu.matmul %316, %321, %cst_287 {dimension_numbers = #tpu.dot_dimension_numbers<[1], [0], [0], [1], [0, 0, 1, 1], [], []>} : vector<12x192xbf16>, vector<192x96xbf16>, vector<12x96xf32> -> vector<12x96xf32>
    %323 = arith.maximumf %319, %322 : vector<12x96xf32>
    %cst_288 = arith.constant 0.000000e+00 : f32
    %324 = vector.broadcast %cst_288 : f32 to vector<12x96xf32>
    %325 = arith.maximumf %323, %324 : vector<12x96xf32>
    %326 = arith.truncf %325 : vector<12x96xf32> to vector<12x96xbf16>
    %327 = vector.extract_strided_slice %326 {offsets = [0, 0], sizes = [8, 96], strides = [1, 1]} : vector<12x96xbf16> to vector<8x96xbf16>
    %c0_289 = arith.constant 0 : index
    %c0_290 = arith.constant 0 : index
    %c0_291 = arith.constant 0 : index
    %328 = vector.load %arg6[%c0_289, %c0_290, %c0_291] : memref<5x96x128xbf16, #tpu.memory_space<vmem>>, vector<1x96x128xbf16>
    %329 = vector.shape_cast %328 : vector<1x96x128xbf16> to vector<96x128xbf16>
    %cst_292 = arith.constant dense<0.000000e+00> : vector<8x128xf32>
    %330 = tpu.matmul %327, %329, %cst_292 {dimension_numbers = #tpu.dot_dimension_numbers<[1], [0], [0], [1], [0, 0, 1, 1], [], []>} : vector<8x96xbf16>, vector<96x128xbf16>, vector<8x128xf32> -> vector<8x128xf32>
    %331 = vector.extract_strided_slice %326 {offsets = [1, 0], sizes = [8, 96], strides = [1, 1]} : vector<12x96xbf16> to vector<8x96xbf16>
    %c1_293 = arith.constant 1 : index
    %c0_294 = arith.constant 0 : index
    %c0_295 = arith.constant 0 : index
    %332 = vector.load %arg6[%c1_293, %c0_294, %c0_295] : memref<5x96x128xbf16, #tpu.memory_space<vmem>>, vector<1x96x128xbf16>
    %333 = vector.shape_cast %332 : vector<1x96x128xbf16> to vector<96x128xbf16>
    %cst_296 = arith.constant dense<0.000000e+00> : vector<8x128xf32>
    %334 = tpu.matmul %331, %333, %cst_296 {dimension_numbers = #tpu.dot_dimension_numbers<[1], [0], [0], [1], [0, 0, 1, 1], [], []>} : vector<8x96xbf16>, vector<96x128xbf16>, vector<8x128xf32> -> vector<8x128xf32>
    %335 = arith.addf %330, %334 : vector<8x128xf32>
    %336 = vector.extract_strided_slice %326 {offsets = [2, 0], sizes = [8, 96], strides = [1, 1]} : vector<12x96xbf16> to vector<8x96xbf16>
    %c2_297 = arith.constant 2 : index
    %c0_298 = arith.constant 0 : index
    %c0_299 = arith.constant 0 : index
    %337 = vector.load %arg6[%c2_297, %c0_298, %c0_299] : memref<5x96x128xbf16, #tpu.memory_space<vmem>>, vector<1x96x128xbf16>
    %338 = vector.shape_cast %337 : vector<1x96x128xbf16> to vector<96x128xbf16>
    %cst_300 = arith.constant dense<0.000000e+00> : vector<8x128xf32>
    %339 = tpu.matmul %336, %338, %cst_300 {dimension_numbers = #tpu.dot_dimension_numbers<[1], [0], [0], [1], [0, 0, 1, 1], [], []>} : vector<8x96xbf16>, vector<96x128xbf16>, vector<8x128xf32> -> vector<8x128xf32>
    %340 = arith.addf %335, %339 : vector<8x128xf32>
    %341 = vector.extract_strided_slice %326 {offsets = [3, 0], sizes = [8, 96], strides = [1, 1]} : vector<12x96xbf16> to vector<8x96xbf16>
    %c3_301 = arith.constant 3 : index
    %c0_302 = arith.constant 0 : index
    %c0_303 = arith.constant 0 : index
    %342 = vector.load %arg6[%c3_301, %c0_302, %c0_303] : memref<5x96x128xbf16, #tpu.memory_space<vmem>>, vector<1x96x128xbf16>
    %343 = vector.shape_cast %342 : vector<1x96x128xbf16> to vector<96x128xbf16>
    %cst_304 = arith.constant dense<0.000000e+00> : vector<8x128xf32>
    %344 = tpu.matmul %341, %343, %cst_304 {dimension_numbers = #tpu.dot_dimension_numbers<[1], [0], [0], [1], [0, 0, 1, 1], [], []>} : vector<8x96xbf16>, vector<96x128xbf16>, vector<8x128xf32> -> vector<8x128xf32>
    %345 = arith.addf %340, %344 : vector<8x128xf32>
    %346 = vector.extract_strided_slice %326 {offsets = [4, 0], sizes = [8, 96], strides = [1, 1]} : vector<12x96xbf16> to vector<8x96xbf16>
    %c4_305 = arith.constant 4 : index
    %c0_306 = arith.constant 0 : index
    %c0_307 = arith.constant 0 : index
    %347 = vector.load %arg6[%c4_305, %c0_306, %c0_307] : memref<5x96x128xbf16, #tpu.memory_space<vmem>>, vector<1x96x128xbf16>
    %348 = vector.shape_cast %347 : vector<1x96x128xbf16> to vector<96x128xbf16>
    %cst_308 = arith.constant dense<0.000000e+00> : vector<8x128xf32>
    %349 = tpu.matmul %346, %348, %cst_308 {dimension_numbers = #tpu.dot_dimension_numbers<[1], [0], [0], [1], [0, 0, 1, 1], [], []>} : vector<8x96xbf16>, vector<96x128xbf16>, vector<8x128xf32> -> vector<8x128xf32>
    %350 = arith.addf %345, %349 : vector<8x128xf32>
    %c0_309 = arith.constant 0 : index
    %c0_310 = arith.constant 0 : index
    %351 = vector.load %arg7[%c0_309, %c0_310] : memref<1x128xf32, #tpu.memory_space<vmem>>, vector<1x128xf32>
    %352 = vector.broadcast %351 : vector<1x128xf32> to vector<8x128xf32>
    %353 = arith.addf %350, %352 : vector<8x128xf32>
    %354 = arith.truncf %353 : vector<8x128xf32> to vector<8x128xbf16>
    %c0_311 = arith.constant 0 : index
    %c0_312 = arith.constant 0 : index
    %c0_313 = arith.constant 0 : index
    %355 = vector.load %arg8[%c0_311, %c0_312, %c0_313] : memref<2x4x8xbf16, #tpu.memory_space<vmem>>, vector<1x4x8xbf16>
    %356 = vector.shape_cast %355 : vector<1x4x8xbf16> to vector<4x8xbf16>
    %cst_314 = arith.constant dense<0.000000e+00> : vector<4x128xf32>
    %357 = tpu.matmul %356, %354, %cst_314 {dimension_numbers = #tpu.dot_dimension_numbers<[1], [0], [0], [1], [0, 0, 1, 1], [], []>} : vector<4x8xbf16>, vector<8x128xbf16>, vector<4x128xf32> -> vector<4x128xf32>
    %c1_315 = arith.constant 1 : index
    %c0_316 = arith.constant 0 : index
    %c0_317 = arith.constant 0 : index
    %358 = vector.load %arg8[%c1_315, %c0_316, %c0_317] : memref<2x4x8xbf16, #tpu.memory_space<vmem>>, vector<1x4x8xbf16>
    %359 = vector.shape_cast %358 : vector<1x4x8xbf16> to vector<4x8xbf16>
    %cst_318 = arith.constant dense<0.000000e+00> : vector<4x128xf32>
    %360 = tpu.matmul %359, %354, %cst_318 {dimension_numbers = #tpu.dot_dimension_numbers<[1], [0], [0], [1], [0, 0, 1, 1], [], []>} : vector<4x8xbf16>, vector<8x128xbf16>, vector<4x128xf32> -> vector<4x128xf32>
    %361 = arith.maximumf %357, %360 : vector<4x128xf32>
    %362 = arith.truncf %361 : vector<4x128xf32> to vector<4x128xbf16>
    %c0_319 = arith.constant 0 : index
    %c0_320 = arith.constant 0 : index
    %c0_321 = arith.constant 0 : index
    %363 = vector.load %arg9[%c0_319, %c0_320, %c0_321] : memref<2x128x64xbf16, #tpu.memory_space<vmem>>, vector<1x128x64xbf16>
    %364 = vector.shape_cast %363 : vector<1x128x64xbf16> to vector<128x64xbf16>
    %cst_322 = arith.constant dense<0.000000e+00> : vector<4x64xf32>
    %365 = tpu.matmul %362, %364, %cst_322 {dimension_numbers = #tpu.dot_dimension_numbers<[1], [0], [0], [1], [0, 0, 1, 1], [], []>} : vector<4x128xbf16>, vector<128x64xbf16>, vector<4x64xf32> -> vector<4x64xf32>
    %c1_323 = arith.constant 1 : index
    %c0_324 = arith.constant 0 : index
    %c0_325 = arith.constant 0 : index
    %366 = vector.load %arg9[%c1_323, %c0_324, %c0_325] : memref<2x128x64xbf16, #tpu.memory_space<vmem>>, vector<1x128x64xbf16>
    %367 = vector.shape_cast %366 : vector<1x128x64xbf16> to vector<128x64xbf16>
    %cst_326 = arith.constant dense<0.000000e+00> : vector<4x64xf32>
    %368 = tpu.matmul %362, %367, %cst_326 {dimension_numbers = #tpu.dot_dimension_numbers<[1], [0], [0], [1], [0, 0, 1, 1], [], []>} : vector<4x128xbf16>, vector<128x64xbf16>, vector<4x64xf32> -> vector<4x64xf32>
    %369 = arith.maximumf %365, %368 : vector<4x64xf32>
    %cst_327 = arith.constant 0.000000e+00 : f32
    %370 = vector.broadcast %cst_327 : f32 to vector<4x64xf32>
    %371 = arith.maximumf %369, %370 : vector<4x64xf32>
    %372 = arith.truncf %371 : vector<4x64xf32> to vector<4x64xbf16>
    %373 = vector.extract_strided_slice %372 {offsets = [0, 0], sizes = [2, 64], strides = [1, 1]} : vector<4x64xbf16> to vector<2x64xbf16>
    %c0_328 = arith.constant 0 : index
    %c0_329 = arith.constant 0 : index
    %c0_330 = arith.constant 0 : index
    %374 = vector.load %arg10[%c0_328, %c0_329, %c0_330] : memref<3x64x64xbf16, #tpu.memory_space<vmem>>, vector<1x64x64xbf16>
    %375 = vector.shape_cast %374 : vector<1x64x64xbf16> to vector<64x64xbf16>
    %cst_331 = arith.constant dense<0.000000e+00> : vector<2x64xf32>
    %376 = tpu.matmul %373, %375, %cst_331 {dimension_numbers = #tpu.dot_dimension_numbers<[1], [0], [0], [1], [0, 0, 1, 1], [], []>} : vector<2x64xbf16>, vector<64x64xbf16>, vector<2x64xf32> -> vector<2x64xf32>
    %377 = vector.extract_strided_slice %372 {offsets = [1, 0], sizes = [2, 64], strides = [1, 1]} : vector<4x64xbf16> to vector<2x64xbf16>
    %c1_332 = arith.constant 1 : index
    %c0_333 = arith.constant 0 : index
    %c0_334 = arith.constant 0 : index
    %378 = vector.load %arg10[%c1_332, %c0_333, %c0_334] : memref<3x64x64xbf16, #tpu.memory_space<vmem>>, vector<1x64x64xbf16>
    %379 = vector.shape_cast %378 : vector<1x64x64xbf16> to vector<64x64xbf16>
    %cst_335 = arith.constant dense<0.000000e+00> : vector<2x64xf32>
    %380 = tpu.matmul %377, %379, %cst_335 {dimension_numbers = #tpu.dot_dimension_numbers<[1], [0], [0], [1], [0, 0, 1, 1], [], []>} : vector<2x64xbf16>, vector<64x64xbf16>, vector<2x64xf32> -> vector<2x64xf32>
    %381 = arith.addf %376, %380 : vector<2x64xf32>
    %382 = vector.extract_strided_slice %372 {offsets = [2, 0], sizes = [2, 64], strides = [1, 1]} : vector<4x64xbf16> to vector<2x64xbf16>
    %c2_336 = arith.constant 2 : index
    %c0_337 = arith.constant 0 : index
    %c0_338 = arith.constant 0 : index
    %383 = vector.load %arg10[%c2_336, %c0_337, %c0_338] : memref<3x64x64xbf16, #tpu.memory_space<vmem>>, vector<1x64x64xbf16>
    %384 = vector.shape_cast %383 : vector<1x64x64xbf16> to vector<64x64xbf16>
    %cst_339 = arith.constant dense<0.000000e+00> : vector<2x64xf32>
    %385 = tpu.matmul %382, %384, %cst_339 {dimension_numbers = #tpu.dot_dimension_numbers<[1], [0], [0], [1], [0, 0, 1, 1], [], []>} : vector<2x64xbf16>, vector<64x64xbf16>, vector<2x64xf32> -> vector<2x64xf32>
    %386 = arith.addf %381, %385 : vector<2x64xf32>
    %c0_340 = arith.constant 0 : index
    %c0_341 = arith.constant 0 : index
    %387 = vector.load %arg11[%c0_340, %c0_341] : memref<1x64xf32, #tpu.memory_space<vmem>>, vector<1x64xf32>
    %388 = vector.broadcast %387 : vector<1x64xf32> to vector<2x64xf32>
    %389 = arith.addf %386, %388 : vector<2x64xf32>
    %390 = vector.extract_strided_slice %389 {offsets = [0, 0], sizes = [1, 64], strides = [1, 1]} : vector<2x64xf32> to vector<1x64xf32>
    %391 = vector.extract_strided_slice %389 {offsets = [1, 0], sizes = [1, 64], strides = [1, 1]} : vector<2x64xf32> to vector<1x64xf32>
    %392 = arith.maximumf %390, %391 : vector<1x64xf32>
    %393 = arith.truncf %392 : vector<1x64xf32> to vector<1x64xbf16>
    %c0_342 = arith.constant 0 : index
    %c0_343 = arith.constant 0 : index
    %c0_344 = arith.constant 0 : index
    %394 = vector.load %arg12[%c0_342, %c0_343, %c0_344] : memref<2x64x32xbf16, #tpu.memory_space<vmem>>, vector<1x64x32xbf16>
    %395 = vector.shape_cast %394 : vector<1x64x32xbf16> to vector<64x32xbf16>
    %cst_345 = arith.constant dense<0.000000e+00> : vector<1x32xf32>
    %396 = tpu.matmul %393, %395, %cst_345 {dimension_numbers = #tpu.dot_dimension_numbers<[1], [0], [0], [1], [0, 0, 1, 1], [], []>} : vector<1x64xbf16>, vector<64x32xbf16>, vector<1x32xf32> -> vector<1x32xf32>
    %c1_346 = arith.constant 1 : index
    %c0_347 = arith.constant 0 : index
    %c0_348 = arith.constant 0 : index
    %397 = vector.load %arg12[%c1_346, %c0_347, %c0_348] : memref<2x64x32xbf16, #tpu.memory_space<vmem>>, vector<1x64x32xbf16>
    %398 = vector.shape_cast %397 : vector<1x64x32xbf16> to vector<64x32xbf16>
    %cst_349 = arith.constant dense<0.000000e+00> : vector<1x32xf32>
    %399 = tpu.matmul %393, %398, %cst_349 {dimension_numbers = #tpu.dot_dimension_numbers<[1], [0], [0], [1], [0, 0, 1, 1], [], []>} : vector<1x64xbf16>, vector<64x32xbf16>, vector<1x32xf32> -> vector<1x32xf32>
    %400 = arith.maximumf %396, %399 : vector<1x32xf32>
    %cst_350 = arith.constant 0.000000e+00 : f32
    %401 = vector.broadcast %cst_350 : f32 to vector<1x32xf32>
    %402 = arith.maximumf %400, %401 : vector<1x32xf32>
    %403 = arith.mulf %402, %402 : vector<1x32xf32>
    %404 = vector.shape_cast %403 : vector<1x32xf32> to vector<1x1x32xf32>
    %cst_351 = arith.constant dense<0.000000e+00> : vector<1xf32>
    %405 = vector.multi_reduction <add>, %404, %cst_351 [1, 2] : vector<1x1x32xf32> to vector<1xf32>
    %406 = vector.shape_cast %405 : vector<1xf32> to vector<1x1x1xf32>
    %407 = vector.extract %406[0, 0, 0] : f32 from vector<1x1x1xf32>
    %cst_352 = arith.constant 1.000000e-24 : f32
    %408 = arith.maximumf %407, %cst_352 : f32
    %409 = math.rsqrt %408 : f32
    %410 = vector.broadcast %409 : f32 to vector<1x32xf32>
    %411 = arith.mulf %402, %410 : vector<1x32xf32>
    %412 = vector.shape_cast %411 : vector<1x32xf32> to vector<1x1x32xf32>
    %c0_353 = arith.constant 0 : index
    %c0_354 = arith.constant 0 : index
    %c64 = arith.constant 64 : index
    %413 = vector.load %arg13[%c0_353, %c0_354, %c64] : memref<1x1x128xf32, #tpu.memory_space<vmem>>, vector<1x1x32xf32>
    tpu.vector_store %arg13[%c0_353, %c0_354, %c64], %412 {strides = array<i32>} : memref<1x1x128xf32, #tpu.memory_space<vmem>>, vector<1x1x32xf32>,
    %c3_355 = arith.constant 3 : index
    %c0_356 = arith.constant 0 : index
    %c0_357 = arith.constant 0 : index
    %414 = vector.load %arg1[%c3_355, %c0_356, %c0_357] : memref<4x28x28xbf16, #tpu.memory_space<vmem>>, vector<1x24x28xbf16>
    %415 = vector.shape_cast %414 : vector<1x24x28xbf16> to vector<24x28xbf16>
    %c0_358 = arith.constant 0 : index
    %c0_359 = arith.constant 0 : index
    %c0_360 = arith.constant 0 : index
    %416 = vector.load %arg2[%c0_358, %c0_359, %c0_360] : memref<5x28x192xbf16, #tpu.memory_space<vmem>>, vector<1x28x192xbf16>
    %417 = vector.shape_cast %416 : vector<1x28x192xbf16> to vector<28x192xbf16>
    %cst_361 = arith.constant dense<0.000000e+00> : vector<24x192xf32>
    %418 = tpu.matmul %415, %417, %cst_361 {dimension_numbers = #tpu.dot_dimension_numbers<[1], [0], [0], [1], [0, 0, 1, 1], [], []>} : vector<24x28xbf16>, vector<28x192xbf16>, vector<24x192xf32> -> vector<24x192xf32>
    %c3_362 = arith.constant 3 : index
    %c1_363 = arith.constant 1 : index
    %c0_364 = arith.constant 0 : index
    %419 = vector.load %arg1[%c3_362, %c1_363, %c0_364] : memref<4x28x28xbf16, #tpu.memory_space<vmem>>, vector<1x24x28xbf16>
    %420 = vector.shape_cast %419 : vector<1x24x28xbf16> to vector<24x28xbf16>
    %c1_365 = arith.constant 1 : index
    %c0_366 = arith.constant 0 : index
    %c0_367 = arith.constant 0 : index
    %421 = vector.load %arg2[%c1_365, %c0_366, %c0_367] : memref<5x28x192xbf16, #tpu.memory_space<vmem>>, vector<1x28x192xbf16>
    %422 = vector.shape_cast %421 : vector<1x28x192xbf16> to vector<28x192xbf16>
    %cst_368 = arith.constant dense<0.000000e+00> : vector<24x192xf32>
    %423 = tpu.matmul %420, %422, %cst_368 {dimension_numbers = #tpu.dot_dimension_numbers<[1], [0], [0], [1], [0, 0, 1, 1], [], []>} : vector<24x28xbf16>, vector<28x192xbf16>, vector<24x192xf32> -> vector<24x192xf32>
    %424 = arith.addf %418, %423 : vector<24x192xf32>
    %c3_369 = arith.constant 3 : index
    %c2_370 = arith.constant 2 : index
    %c0_371 = arith.constant 0 : index
    %425 = vector.load %arg1[%c3_369, %c2_370, %c0_371] : memref<4x28x28xbf16, #tpu.memory_space<vmem>>, vector<1x24x28xbf16>
    %426 = vector.shape_cast %425 : vector<1x24x28xbf16> to vector<24x28xbf16>
    %c2_372 = arith.constant 2 : index
    %c0_373 = arith.constant 0 : index
    %c0_374 = arith.constant 0 : index
    %427 = vector.load %arg2[%c2_372, %c0_373, %c0_374] : memref<5x28x192xbf16, #tpu.memory_space<vmem>>, vector<1x28x192xbf16>
    %428 = vector.shape_cast %427 : vector<1x28x192xbf16> to vector<28x192xbf16>
    %cst_375 = arith.constant dense<0.000000e+00> : vector<24x192xf32>
    %429 = tpu.matmul %426, %428, %cst_375 {dimension_numbers = #tpu.dot_dimension_numbers<[1], [0], [0], [1], [0, 0, 1, 1], [], []>} : vector<24x28xbf16>, vector<28x192xbf16>, vector<24x192xf32> -> vector<24x192xf32>
    %430 = arith.addf %424, %429 : vector<24x192xf32>
    %c3_376 = arith.constant 3 : index
    %c3_377 = arith.constant 3 : index
    %c0_378 = arith.constant 0 : index
    %431 = vector.load %arg1[%c3_376, %c3_377, %c0_378] : memref<4x28x28xbf16, #tpu.memory_space<vmem>>, vector<1x24x28xbf16>
    %432 = vector.shape_cast %431 : vector<1x24x28xbf16> to vector<24x28xbf16>
    %c3_379 = arith.constant 3 : index
    %c0_380 = arith.constant 0 : index
    %c0_381 = arith.constant 0 : index
    %433 = vector.load %arg2[%c3_379, %c0_380, %c0_381] : memref<5x28x192xbf16, #tpu.memory_space<vmem>>, vector<1x28x192xbf16>
    %434 = vector.shape_cast %433 : vector<1x28x192xbf16> to vector<28x192xbf16>
    %cst_382 = arith.constant dense<0.000000e+00> : vector<24x192xf32>
    %435 = tpu.matmul %432, %434, %cst_382 {dimension_numbers = #tpu.dot_dimension_numbers<[1], [0], [0], [1], [0, 0, 1, 1], [], []>} : vector<24x28xbf16>, vector<28x192xbf16>, vector<24x192xf32> -> vector<24x192xf32>
    %436 = arith.addf %430, %435 : vector<24x192xf32>
    %c3_383 = arith.constant 3 : index
    %c4_384 = arith.constant 4 : index
    %c0_385 = arith.constant 0 : index
    %437 = vector.load %arg1[%c3_383, %c4_384, %c0_385] : memref<4x28x28xbf16, #tpu.memory_space<vmem>>, vector<1x24x28xbf16>
    %438 = vector.shape_cast %437 : vector<1x24x28xbf16> to vector<24x28xbf16>
    %c4_386 = arith.constant 4 : index
    %c0_387 = arith.constant 0 : index
    %c0_388 = arith.constant 0 : index
    %439 = vector.load %arg2[%c4_386, %c0_387, %c0_388] : memref<5x28x192xbf16, #tpu.memory_space<vmem>>, vector<1x28x192xbf16>
    %440 = vector.shape_cast %439 : vector<1x28x192xbf16> to vector<28x192xbf16>
    %cst_389 = arith.constant dense<0.000000e+00> : vector<24x192xf32>
    %441 = tpu.matmul %438, %440, %cst_389 {dimension_numbers = #tpu.dot_dimension_numbers<[1], [0], [0], [1], [0, 0, 1, 1], [], []>} : vector<24x28xbf16>, vector<28x192xbf16>, vector<24x192xf32> -> vector<24x192xf32>
    %442 = arith.addf %436, %441 : vector<24x192xf32>
    %c0_390 = arith.constant 0 : index
    %c0_391 = arith.constant 0 : index
    %443 = vector.load %arg3[%c0_390, %c0_391] : memref<1x192xf32, #tpu.memory_space<vmem>>, vector<1x192xf32>
    %444 = vector.broadcast %443 : vector<1x192xf32> to vector<24x192xf32>
    %445 = arith.addf %442, %444 : vector<24x192xf32>
    %446 = arith.truncf %445 : vector<24x192xf32> to vector<24x192xbf16>
    %c0_392 = arith.constant 0 : index
    %c0_393 = arith.constant 0 : index
    %c0_394 = arith.constant 0 : index
    %447 = vector.load %arg4[%c0_392, %c0_393, %c0_394] : memref<2x12x24xbf16, #tpu.memory_space<vmem>>, vector<1x12x24xbf16>
    %448 = vector.shape_cast %447 : vector<1x12x24xbf16> to vector<12x24xbf16>
    %cst_395 = arith.constant dense<0.000000e+00> : vector<12x192xf32>
    %449 = tpu.matmul %448, %446, %cst_395 {dimension_numbers = #tpu.dot_dimension_numbers<[1], [0], [0], [1], [0, 0, 1, 1], [], []>} : vector<12x24xbf16>, vector<24x192xbf16>, vector<12x192xf32> -> vector<12x192xf32>
    %c1_396 = arith.constant 1 : index
    %c0_397 = arith.constant 0 : index
    %c0_398 = arith.constant 0 : index
    %450 = vector.load %arg4[%c1_396, %c0_397, %c0_398] : memref<2x12x24xbf16, #tpu.memory_space<vmem>>, vector<1x12x24xbf16>
    %451 = vector.shape_cast %450 : vector<1x12x24xbf16> to vector<12x24xbf16>
    %cst_399 = arith.constant dense<0.000000e+00> : vector<12x192xf32>
    %452 = tpu.matmul %451, %446, %cst_399 {dimension_numbers = #tpu.dot_dimension_numbers<[1], [0], [0], [1], [0, 0, 1, 1], [], []>} : vector<12x24xbf16>, vector<24x192xbf16>, vector<12x192xf32> -> vector<12x192xf32>
    %453 = arith.maximumf %449, %452 : vector<12x192xf32>
    %454 = arith.truncf %453 : vector<12x192xf32> to vector<12x192xbf16>
    %c0_400 = arith.constant 0 : index
    %c0_401 = arith.constant 0 : index
    %c0_402 = arith.constant 0 : index
    %455 = vector.load %arg5[%c0_400, %c0_401, %c0_402] : memref<2x192x96xbf16, #tpu.memory_space<vmem>>, vector<1x192x96xbf16>
    %456 = vector.shape_cast %455 : vector<1x192x96xbf16> to vector<192x96xbf16>
    %cst_403 = arith.constant dense<0.000000e+00> : vector<12x96xf32>
    %457 = tpu.matmul %454, %456, %cst_403 {dimension_numbers = #tpu.dot_dimension_numbers<[1], [0], [0], [1], [0, 0, 1, 1], [], []>} : vector<12x192xbf16>, vector<192x96xbf16>, vector<12x96xf32> -> vector<12x96xf32>
    %c1_404 = arith.constant 1 : index
    %c0_405 = arith.constant 0 : index
    %c0_406 = arith.constant 0 : index
    %458 = vector.load %arg5[%c1_404, %c0_405, %c0_406] : memref<2x192x96xbf16, #tpu.memory_space<vmem>>, vector<1x192x96xbf16>
    %459 = vector.shape_cast %458 : vector<1x192x96xbf16> to vector<192x96xbf16>
    %cst_407 = arith.constant dense<0.000000e+00> : vector<12x96xf32>
    %460 = tpu.matmul %454, %459, %cst_407 {dimension_numbers = #tpu.dot_dimension_numbers<[1], [0], [0], [1], [0, 0, 1, 1], [], []>} : vector<12x192xbf16>, vector<192x96xbf16>, vector<12x96xf32> -> vector<12x96xf32>
    %461 = arith.maximumf %457, %460 : vector<12x96xf32>
    %cst_408 = arith.constant 0.000000e+00 : f32
    %462 = vector.broadcast %cst_408 : f32 to vector<12x96xf32>
    %463 = arith.maximumf %461, %462 : vector<12x96xf32>
    %464 = arith.truncf %463 : vector<12x96xf32> to vector<12x96xbf16>
    %465 = vector.extract_strided_slice %464 {offsets = [0, 0], sizes = [8, 96], strides = [1, 1]} : vector<12x96xbf16> to vector<8x96xbf16>
    %c0_409 = arith.constant 0 : index
    %c0_410 = arith.constant 0 : index
    %c0_411 = arith.constant 0 : index
    %466 = vector.load %arg6[%c0_409, %c0_410, %c0_411] : memref<5x96x128xbf16, #tpu.memory_space<vmem>>, vector<1x96x128xbf16>
    %467 = vector.shape_cast %466 : vector<1x96x128xbf16> to vector<96x128xbf16>
    %cst_412 = arith.constant dense<0.000000e+00> : vector<8x128xf32>
    %468 = tpu.matmul %465, %467, %cst_412 {dimension_numbers = #tpu.dot_dimension_numbers<[1], [0], [0], [1], [0, 0, 1, 1], [], []>} : vector<8x96xbf16>, vector<96x128xbf16>, vector<8x128xf32> -> vector<8x128xf32>
    %469 = vector.extract_strided_slice %464 {offsets = [1, 0], sizes = [8, 96], strides = [1, 1]} : vector<12x96xbf16> to vector<8x96xbf16>
    %c1_413 = arith.constant 1 : index
    %c0_414 = arith.constant 0 : index
    %c0_415 = arith.constant 0 : index
    %470 = vector.load %arg6[%c1_413, %c0_414, %c0_415] : memref<5x96x128xbf16, #tpu.memory_space<vmem>>, vector<1x96x128xbf16>
    %471 = vector.shape_cast %470 : vector<1x96x128xbf16> to vector<96x128xbf16>
    %cst_416 = arith.constant dense<0.000000e+00> : vector<8x128xf32>
    %472 = tpu.matmul %469, %471, %cst_416 {dimension_numbers = #tpu.dot_dimension_numbers<[1], [0], [0], [1], [0, 0, 1, 1], [], []>} : vector<8x96xbf16>, vector<96x128xbf16>, vector<8x128xf32> -> vector<8x128xf32>
    %473 = arith.addf %468, %472 : vector<8x128xf32>
    %474 = vector.extract_strided_slice %464 {offsets = [2, 0], sizes = [8, 96], strides = [1, 1]} : vector<12x96xbf16> to vector<8x96xbf16>
    %c2_417 = arith.constant 2 : index
    %c0_418 = arith.constant 0 : index
    %c0_419 = arith.constant 0 : index
    %475 = vector.load %arg6[%c2_417, %c0_418, %c0_419] : memref<5x96x128xbf16, #tpu.memory_space<vmem>>, vector<1x96x128xbf16>
    %476 = vector.shape_cast %475 : vector<1x96x128xbf16> to vector<96x128xbf16>
    %cst_420 = arith.constant dense<0.000000e+00> : vector<8x128xf32>
    %477 = tpu.matmul %474, %476, %cst_420 {dimension_numbers = #tpu.dot_dimension_numbers<[1], [0], [0], [1], [0, 0, 1, 1], [], []>} : vector<8x96xbf16>, vector<96x128xbf16>, vector<8x128xf32> -> vector<8x128xf32>
    %478 = arith.addf %473, %477 : vector<8x128xf32>
    %479 = vector.extract_strided_slice %464 {offsets = [3, 0], sizes = [8, 96], strides = [1, 1]} : vector<12x96xbf16> to vector<8x96xbf16>
    %c3_421 = arith.constant 3 : index
    %c0_422 = arith.constant 0 : index
    %c0_423 = arith.constant 0 : index
    %480 = vector.load %arg6[%c3_421, %c0_422, %c0_423] : memref<5x96x128xbf16, #tpu.memory_space<vmem>>, vector<1x96x128xbf16>
    %481 = vector.shape_cast %480 : vector<1x96x128xbf16> to vector<96x128xbf16>
    %cst_424 = arith.constant dense<0.000000e+00> : vector<8x128xf32>
    %482 = tpu.matmul %479, %481, %cst_424 {dimension_numbers = #tpu.dot_dimension_numbers<[1], [0], [0], [1], [0, 0, 1, 1], [], []>} : vector<8x96xbf16>, vector<96x128xbf16>, vector<8x128xf32> -> vector<8x128xf32>
    %483 = arith.addf %478, %482 : vector<8x128xf32>
    %484 = vector.extract_strided_slice %464 {offsets = [4, 0], sizes = [8, 96], strides = [1, 1]} : vector<12x96xbf16> to vector<8x96xbf16>
    %c4_425 = arith.constant 4 : index
    %c0_426 = arith.constant 0 : index
    %c0_427 = arith.constant 0 : index
    %485 = vector.load %arg6[%c4_425, %c0_426, %c0_427] : memref<5x96x128xbf16, #tpu.memory_space<vmem>>, vector<1x96x128xbf16>
    %486 = vector.shape_cast %485 : vector<1x96x128xbf16> to vector<96x128xbf16>
    %cst_428 = arith.constant dense<0.000000e+00> : vector<8x128xf32>
    %487 = tpu.matmul %484, %486, %cst_428 {dimension_numbers = #tpu.dot_dimension_numbers<[1], [0], [0], [1], [0, 0, 1, 1], [], []>} : vector<8x96xbf16>, vector<96x128xbf16>, vector<8x128xf32> -> vector<8x128xf32>
    %488 = arith.addf %483, %487 : vector<8x128xf32>
    %c0_429 = arith.constant 0 : index
    %c0_430 = arith.constant 0 : index
    %489 = vector.load %arg7[%c0_429, %c0_430] : memref<1x128xf32, #tpu.memory_space<vmem>>, vector<1x128xf32>
    %490 = vector.broadcast %489 : vector<1x128xf32> to vector<8x128xf32>
    %491 = arith.addf %488, %490 : vector<8x128xf32>
    %492 = arith.truncf %491 : vector<8x128xf32> to vector<8x128xbf16>
    %c0_431 = arith.constant 0 : index
    %c0_432 = arith.constant 0 : index
    %c0_433 = arith.constant 0 : index
    %493 = vector.load %arg8[%c0_431, %c0_432, %c0_433] : memref<2x4x8xbf16, #tpu.memory_space<vmem>>, vector<1x4x8xbf16>
    %494 = vector.shape_cast %493 : vector<1x4x8xbf16> to vector<4x8xbf16>
    %cst_434 = arith.constant dense<0.000000e+00> : vector<4x128xf32>
    %495 = tpu.matmul %494, %492, %cst_434 {dimension_numbers = #tpu.dot_dimension_numbers<[1], [0], [0], [1], [0, 0, 1, 1], [], []>} : vector<4x8xbf16>, vector<8x128xbf16>, vector<4x128xf32> -> vector<4x128xf32>
    %c1_435 = arith.constant 1 : index
    %c0_436 = arith.constant 0 : index
    %c0_437 = arith.constant 0 : index
    %496 = vector.load %arg8[%c1_435, %c0_436, %c0_437] : memref<2x4x8xbf16, #tpu.memory_space<vmem>>, vector<1x4x8xbf16>
    %497 = vector.shape_cast %496 : vector<1x4x8xbf16> to vector<4x8xbf16>
    %cst_438 = arith.constant dense<0.000000e+00> : vector<4x128xf32>
    %498 = tpu.matmul %497, %492, %cst_438 {dimension_numbers = #tpu.dot_dimension_numbers<[1], [0], [0], [1], [0, 0, 1, 1], [], []>} : vector<4x8xbf16>, vector<8x128xbf16>, vector<4x128xf32> -> vector<4x128xf32>
    %499 = arith.maximumf %495, %498 : vector<4x128xf32>
    %500 = arith.truncf %499 : vector<4x128xf32> to vector<4x128xbf16>
    %c0_439 = arith.constant 0 : index
    %c0_440 = arith.constant 0 : index
    %c0_441 = arith.constant 0 : index
    %501 = vector.load %arg9[%c0_439, %c0_440, %c0_441] : memref<2x128x64xbf16, #tpu.memory_space<vmem>>, vector<1x128x64xbf16>
    %502 = vector.shape_cast %501 : vector<1x128x64xbf16> to vector<128x64xbf16>
    %cst_442 = arith.constant dense<0.000000e+00> : vector<4x64xf32>
    %503 = tpu.matmul %500, %502, %cst_442 {dimension_numbers = #tpu.dot_dimension_numbers<[1], [0], [0], [1], [0, 0, 1, 1], [], []>} : vector<4x128xbf16>, vector<128x64xbf16>, vector<4x64xf32> -> vector<4x64xf32>
    %c1_443 = arith.constant 1 : index
    %c0_444 = arith.constant 0 : index
    %c0_445 = arith.constant 0 : index
    %504 = vector.load %arg9[%c1_443, %c0_444, %c0_445] : memref<2x128x64xbf16, #tpu.memory_space<vmem>>, vector<1x128x64xbf16>
    %505 = vector.shape_cast %504 : vector<1x128x64xbf16> to vector<128x64xbf16>
    %cst_446 = arith.constant dense<0.000000e+00> : vector<4x64xf32>
    %506 = tpu.matmul %500, %505, %cst_446 {dimension_numbers = #tpu.dot_dimension_numbers<[1], [0], [0], [1], [0, 0, 1, 1], [], []>} : vector<4x128xbf16>, vector<128x64xbf16>, vector<4x64xf32> -> vector<4x64xf32>
    %507 = arith.maximumf %503, %506 : vector<4x64xf32>
    %cst_447 = arith.constant 0.000000e+00 : f32
    %508 = vector.broadcast %cst_447 : f32 to vector<4x64xf32>
    %509 = arith.maximumf %507, %508 : vector<4x64xf32>
    %510 = arith.truncf %509 : vector<4x64xf32> to vector<4x64xbf16>
    %511 = vector.extract_strided_slice %510 {offsets = [0, 0], sizes = [2, 64], strides = [1, 1]} : vector<4x64xbf16> to vector<2x64xbf16>
    %c0_448 = arith.constant 0 : index
    %c0_449 = arith.constant 0 : index
    %c0_450 = arith.constant 0 : index
    %512 = vector.load %arg10[%c0_448, %c0_449, %c0_450] : memref<3x64x64xbf16, #tpu.memory_space<vmem>>, vector<1x64x64xbf16>
    %513 = vector.shape_cast %512 : vector<1x64x64xbf16> to vector<64x64xbf16>
    %cst_451 = arith.constant dense<0.000000e+00> : vector<2x64xf32>
    %514 = tpu.matmul %511, %513, %cst_451 {dimension_numbers = #tpu.dot_dimension_numbers<[1], [0], [0], [1], [0, 0, 1, 1], [], []>} : vector<2x64xbf16>, vector<64x64xbf16>, vector<2x64xf32> -> vector<2x64xf32>
    %515 = vector.extract_strided_slice %510 {offsets = [1, 0], sizes = [2, 64], strides = [1, 1]} : vector<4x64xbf16> to vector<2x64xbf16>
    %c1_452 = arith.constant 1 : index
    %c0_453 = arith.constant 0 : index
    %c0_454 = arith.constant 0 : index
    %516 = vector.load %arg10[%c1_452, %c0_453, %c0_454] : memref<3x64x64xbf16, #tpu.memory_space<vmem>>, vector<1x64x64xbf16>
    %517 = vector.shape_cast %516 : vector<1x64x64xbf16> to vector<64x64xbf16>
    %cst_455 = arith.constant dense<0.000000e+00> : vector<2x64xf32>
    %518 = tpu.matmul %515, %517, %cst_455 {dimension_numbers = #tpu.dot_dimension_numbers<[1], [0], [0], [1], [0, 0, 1, 1], [], []>} : vector<2x64xbf16>, vector<64x64xbf16>, vector<2x64xf32> -> vector<2x64xf32>
    %519 = arith.addf %514, %518 : vector<2x64xf32>
    %520 = vector.extract_strided_slice %510 {offsets = [2, 0], sizes = [2, 64], strides = [1, 1]} : vector<4x64xbf16> to vector<2x64xbf16>
    %c2_456 = arith.constant 2 : index
    %c0_457 = arith.constant 0 : index
    %c0_458 = arith.constant 0 : index
    %521 = vector.load %arg10[%c2_456, %c0_457, %c0_458] : memref<3x64x64xbf16, #tpu.memory_space<vmem>>, vector<1x64x64xbf16>
    %522 = vector.shape_cast %521 : vector<1x64x64xbf16> to vector<64x64xbf16>
    %cst_459 = arith.constant dense<0.000000e+00> : vector<2x64xf32>
    %523 = tpu.matmul %520, %522, %cst_459 {dimension_numbers = #tpu.dot_dimension_numbers<[1], [0], [0], [1], [0, 0, 1, 1], [], []>} : vector<2x64xbf16>, vector<64x64xbf16>, vector<2x64xf32> -> vector<2x64xf32>
    %524 = arith.addf %519, %523 : vector<2x64xf32>
    %c0_460 = arith.constant 0 : index
    %c0_461 = arith.constant 0 : index
    %525 = vector.load %arg11[%c0_460, %c0_461] : memref<1x64xf32, #tpu.memory_space<vmem>>, vector<1x64xf32>
    %526 = vector.broadcast %525 : vector<1x64xf32> to vector<2x64xf32>
    %527 = arith.addf %524, %526 : vector<2x64xf32>
    %528 = vector.extract_strided_slice %527 {offsets = [0, 0], sizes = [1, 64], strides = [1, 1]} : vector<2x64xf32> to vector<1x64xf32>
    %529 = vector.extract_strided_slice %527 {offsets = [1, 0], sizes = [1, 64], strides = [1, 1]} : vector<2x64xf32> to vector<1x64xf32>
    %530 = arith.maximumf %528, %529 : vector<1x64xf32>
    %531 = arith.truncf %530 : vector<1x64xf32> to vector<1x64xbf16>
    %c0_462 = arith.constant 0 : index
    %c0_463 = arith.constant 0 : index
    %c0_464 = arith.constant 0 : index
    %532 = vector.load %arg12[%c0_462, %c0_463, %c0_464] : memref<2x64x32xbf16, #tpu.memory_space<vmem>>, vector<1x64x32xbf16>
    %533 = vector.shape_cast %532 : vector<1x64x32xbf16> to vector<64x32xbf16>
    %cst_465 = arith.constant dense<0.000000e+00> : vector<1x32xf32>
    %534 = tpu.matmul %531, %533, %cst_465 {dimension_numbers = #tpu.dot_dimension_numbers<[1], [0], [0], [1], [0, 0, 1, 1], [], []>} : vector<1x64xbf16>, vector<64x32xbf16>, vector<1x32xf32> -> vector<1x32xf32>
    %c1_466 = arith.constant 1 : index
    %c0_467 = arith.constant 0 : index
    %c0_468 = arith.constant 0 : index
    %535 = vector.load %arg12[%c1_466, %c0_467, %c0_468] : memref<2x64x32xbf16, #tpu.memory_space<vmem>>, vector<1x64x32xbf16>
    %536 = vector.shape_cast %535 : vector<1x64x32xbf16> to vector<64x32xbf16>
    %cst_469 = arith.constant dense<0.000000e+00> : vector<1x32xf32>
    %537 = tpu.matmul %531, %536, %cst_469 {dimension_numbers = #tpu.dot_dimension_numbers<[1], [0], [0], [1], [0, 0, 1, 1], [], []>} : vector<1x64xbf16>, vector<64x32xbf16>, vector<1x32xf32> -> vector<1x32xf32>
    %538 = arith.maximumf %534, %537 : vector<1x32xf32>
    %cst_470 = arith.constant 0.000000e+00 : f32
    %539 = vector.broadcast %cst_470 : f32 to vector<1x32xf32>
    %540 = arith.maximumf %538, %539 : vector<1x32xf32>
    %541 = arith.mulf %540, %540 : vector<1x32xf32>
    %542 = vector.shape_cast %541 : vector<1x32xf32> to vector<1x1x32xf32>
    %cst_471 = arith.constant dense<0.000000e+00> : vector<1xf32>
    %543 = vector.multi_reduction <add>, %542, %cst_471 [1, 2] : vector<1x1x32xf32> to vector<1xf32>
    %544 = vector.shape_cast %543 : vector<1xf32> to vector<1x1x1xf32>
    %545 = vector.extract %544[0, 0, 0] : f32 from vector<1x1x1xf32>
    %cst_472 = arith.constant 1.000000e-24 : f32
    %546 = arith.maximumf %545, %cst_472 : f32
    %547 = math.rsqrt %546 : f32
    %548 = vector.broadcast %547 : f32 to vector<1x32xf32>
    %549 = arith.mulf %540, %548 : vector<1x32xf32>
    %550 = vector.shape_cast %549 : vector<1x32xf32> to vector<1x1x32xf32>
    %c0_473 = arith.constant 0 : index
    %c0_474 = arith.constant 0 : index
    %c96 = arith.constant 96 : index
    %551 = vector.load %arg13[%c0_473, %c0_474, %c96] : memref<1x1x128xf32, #tpu.memory_space<vmem>>, vector<1x1x32xf32>
    tpu.vector_store %arg13[%c0_473, %c0_474, %c96], %550 {strides = array<i32>} : memref<1x1x128xf32, #tpu.memory_space<vmem>>, vector<1x1x32xf32>,
    return
  }
  func.func @transform_0(%arg0: i32) -> (i32, i32, i32) {
    %c0_i32 = arith.constant 0 : i32
    %c0_i32_0 = arith.constant 0 : i32
    %c0_i32_1 = arith.constant 0 : i32
    return %arg0, %c0_i32, %c0_i32_0 : i32, i32, i32
  }
  func.func @transform_1(%arg0: i32) -> (i32, i32, i32) {
    %c0_i32 = arith.constant 0 : i32
    %c0_i32_0 = arith.constant 0 : i32
    %c0_i32_1 = arith.constant 0 : i32
    %c0_i32_2 = arith.constant 0 : i32
    return %c0_i32, %c0_i32_0, %c0_i32_1 : i32, i32, i32
  }
  func.func @transform_2(%arg0: i32) -> (i32, i32) {
    %c0_i32 = arith.constant 0 : i32
    %c0_i32_0 = arith.constant 0 : i32
    %c0_i32_1 = arith.constant 0 : i32
    return %c0_i32, %c0_i32_0 : i32, i32
  }
  func.func @transform_3(%arg0: i32) -> (i32, i32, i32) {
    %c0_i32 = arith.constant 0 : i32
    %c0_i32_0 = arith.constant 0 : i32
    %c0_i32_1 = arith.constant 0 : i32
    %c0_i32_2 = arith.constant 0 : i32
    return %c0_i32, %c0_i32_0, %c0_i32_1 : i32, i32, i32
  }
  func.func @transform_4(%arg0: i32) -> (i32, i32, i32) {
    %c0_i32 = arith.constant 0 : i32
    %c0_i32_0 = arith.constant 0 : i32
    %c0_i32_1 = arith.constant 0 : i32
    %c0_i32_2 = arith.constant 0 : i32
    return %c0_i32, %c0_i32_0, %c0_i32_1 : i32, i32, i32
  }
  func.func @transform_5(%arg0: i32) -> (i32, i32, i32) {
    %c0_i32 = arith.constant 0 : i32
    %c0_i32_0 = arith.constant 0 : i32
    %c0_i32_1 = arith.constant 0 : i32
    %c0_i32_2 = arith.constant 0 : i32
    return %c0_i32, %c0_i32_0, %c0_i32_1 : i32, i32, i32
  }
  func.func @transform_6(%arg0: i32) -> (i32, i32) {
    %c0_i32 = arith.constant 0 : i32
    %c0_i32_0 = arith.constant 0 : i32
    %c0_i32_1 = arith.constant 0 : i32
    return %c0_i32, %c0_i32_0 : i32, i32
  }
  func.func @transform_7(%arg0: i32) -> (i32, i32, i32) {
    %c0_i32 = arith.constant 0 : i32
    %c0_i32_0 = arith.constant 0 : i32
    %c0_i32_1 = arith.constant 0 : i32
    %c0_i32_2 = arith.constant 0 : i32
    return %c0_i32, %c0_i32_0, %c0_i32_1 : i32, i32, i32
  }
  func.func @transform_8(%arg0: i32) -> (i32, i32, i32) {
    %c0_i32 = arith.constant 0 : i32
    %c0_i32_0 = arith.constant 0 : i32
    %c0_i32_1 = arith.constant 0 : i32
    %c0_i32_2 = arith.constant 0 : i32
    return %c0_i32, %c0_i32_0, %c0_i32_1 : i32, i32, i32
  }
  func.func @transform_9(%arg0: i32) -> (i32, i32, i32) {
    %c0_i32 = arith.constant 0 : i32
    %c0_i32_0 = arith.constant 0 : i32
    %c0_i32_1 = arith.constant 0 : i32
    %c0_i32_2 = arith.constant 0 : i32
    return %c0_i32, %c0_i32_0, %c0_i32_1 : i32, i32, i32
  }
  func.func @transform_10(%arg0: i32) -> (i32, i32) {
    %c0_i32 = arith.constant 0 : i32
    %c0_i32_0 = arith.constant 0 : i32
    %c0_i32_1 = arith.constant 0 : i32
    return %c0_i32, %c0_i32_0 : i32, i32
  }
  func.func @transform_11(%arg0: i32) -> (i32, i32, i32) {
    %c0_i32 = arith.constant 0 : i32
    %c0_i32_0 = arith.constant 0 : i32
    %c0_i32_1 = arith.constant 0 : i32
    %c0_i32_2 = arith.constant 0 : i32
    return %c0_i32, %c0_i32_0, %c0_i32_1 : i32, i32, i32
  }
  func.func @transform_12(%arg0: i32) -> (i32, i32, i32) {
    %c0_i32 = arith.constant 0 : i32
    %c0_i32_0 = arith.constant 0 : i32
    %c0_i32_1 = arith.constant 0 : i32
    return %arg0, %c0_i32, %c0_i32_0 : i32, i32, i32
  }
}

</mosaic_0001>

<llo_original>
// kernel: tile.18
$region0: #{tile.18}
  #allocation0 [shape = 's32[1]{0}', space=sflag, size = 0x4, scoped, tag = 'scoped memory for tile.18']
  %s0 = inlined_call_operand.vmem [shape: f32[8], index: 0, kind: input, shape index: {}]
  %s1 = inlined_call_operand.vmem [shape: f32[24,8], index: 1, kind: output, shape index: {}]
  // Predicated region
  $region2: #{tile.18} parent=0 // pred_check
    _
  $region3: #{tile.18} parent=0 // pred_check_branch
    %3 = sbr.rel (0) target = $region5
  $region4: #{tile.18} parent=0 // pred_region
    _
  $region5: #{tile.18} parent=0 // pred_fallthru
    _
  %v4 = vld [vmem:[%s0] ss:$0 sm:$0xff]
  %5 = vst [vmem:[%s1] sm:$0xff] %v4
  %s6 = scalar_lea.vmem %s1, 8
  %7 = vst [vmem:[%s6] sm:$0xff] %v4
  %s8 = scalar_lea.vmem %s1, 16
  %9 = vst [vmem:[%s8] sm:$0xff] %v4

// kernel: tile.19
$region0: #{tile.19}
  %s0 = inlined_call_operand.vmem [shape: f32[24,8], index: 0, kind: input, shape index: {}]
  %s1 = inlined_call_operand.vmem [shape: f32[1,192], index: 1, kind: output, shape index: {}]
  $region1: #{tile.19} parent=0
    #allocation0 [shape = 'u8[8192]{0}', space=vmem, size = 0x2000, scoped, tag = 'scoped mem for output reshape']
    %s2 = smov 3
    %v3 = vld [vmem:[%s0] ss:$16 sm:%s2]
    %vm4 = vcmask 64512
    %5 = vst.msk [vmem:[#allocation0] ss:$8 sm:$0x3] %vm4, %v3
    %s6 = scalar_lea.vmem %s0, 15
    %v7 = vld [vmem:[%s6] sm:$0x1]
    %8 = vrot.lane.b32.xlu0 %v7, 120
    %v9 = vpop.permute.xlu0 %8
    %vm10 = vcmask 1048512
    %11 = vst.msk [vmem:[#allocation0] sm:$0x1] %vm10, %v9
    %s12 = scalar_lea.vmem %s0, 14
    %v13 = vld [vmem:[%s12] sm:$0x1]
    %14 = vrot.lane.b32.xlu0 %v13, 112
    %v15 = vpop.permute.xlu0 %14
    %vm16 = vcmask 982912
    %17 = vst.msk [vmem:[#allocation0] sm:$0x1] %vm16, %v15
    %s18 = scalar_lea.vmem %s0, 13
    %v19 = vld [vmem:[%s18] sm:$0x1]
    %20 = vrot.lane.b32.xlu0 %v19, 104
    %v21 = vpop.permute.xlu0 %20
    %vm22 = vcmask 917312
    %23 = vst.msk [vmem:[#allocation0] sm:$0x1] %vm22, %v21
    %s24 = scalar_lea.vmem %s0, 12
    %v25 = vld [vmem:[%s24] sm:$0x1]
    %26 = vrot.lane.b32.xlu0 %v25, 96
    %v27 = vpop.permute.xlu0 %26
    %vm28 = vcmask 851712
    %29 = vst.msk [vmem:[#allocation0] sm:$0x1] %vm28, %v27
    %s30 = scalar_lea.vmem %s0, 11
    %v31 = vld [vmem:[%s30] sm:$0x1]
    %32 = vrot.lane.b32.xlu0 %v31, 88
    %v33 = vpop.permute.xlu0 %32
    %vm34 = vcmask 786112
    %35 = vst.msk [vmem:[#allocation0] sm:$0x1] %vm34, %v33
    %s36 = scalar_lea.vmem %s0, 10
    %v37 = vld [vmem:[%s36] sm:$0x1]
    %38 = vrot.lane.b32.xlu0 %v37, 80
    %v39 = vpop.permute.xlu0 %38
    %vm40 = vcmask 720512
    %41 = vst.msk [vmem:[#allocation0] sm:$0x1] %vm40, %v39
    %s42 = scalar_lea.vmem %s0, 9
    %v43 = vld [vmem:[%s42] sm:$0x1]
    %44 = vrot.lane.b32.xlu0 %v43, 72
    %v45 = vpop.permute.xlu0 %44
    %vm46 = vcmask 654912
    %47 = vst.msk [vmem:[#allocation0] sm:$0x1] %vm46, %v45
    %s48 = scalar_lea.vmem %s0, 8
    %v49 = vld [vmem:[%s48] sm:$0x1]
    %50 = vrot.lane.b32.xlu0 %v49, 64
    %v51 = vpop.permute.xlu0 %50
    %vm52 = vcmask 589312
    %53 = vst.msk [vmem:[#allocation0] sm:$0x1] %vm52, %v51
    %s54 = scalar_lea.vmem %s0, 7
    %s55 = smov 3
    %v56 = vld [vmem:[%s54] ss:$16 sm:%s55]
    %57 = vrot.lane.b32.xlu0 %v56, 56
    %v58 = vpop.permute.xlu0 %57
    %vm59 = vcmask 523712
    %60 = vst.msk [vmem:[#allocation0] ss:$8 sm:$0x3] %vm59, %v58
    %s61 = scalar_lea.vmem %s0, 6
    %s62 = smov 3
    %v63 = vld [vmem:[%s61] ss:$16 sm:%s62]
    %64 = vrot.lane.b32.xlu0 %v63, 48
    %v65 = vpop.permute.xlu0 %64
    %vm66 = vcmask 458112
    %67 = vst.msk [vmem:[#allocation0] ss:$8 sm:$0x3] %vm66, %v65
    %s68 = scalar_lea.vmem %s0, 5
    %s69 = smov 3
    %v70 = vld [vmem:[%s68] ss:$16 sm:%s69]
    %71 = vrot.lane.b32.xlu0 %v70, 40
    %v72 = vpop.permute.xlu0 %71
    %vm73 = vcmask 392512
    %74 = vst.msk [vmem:[#allocation0] ss:$8 sm:$0x3] %vm73, %v72
    %s75 = scalar_lea.vmem %s0, 4
    %s76 = smov 3
    %v77 = vld [vmem:[%s75] ss:$16 sm:%s76]
    %78 = vrot.lane.b32.xlu0 %v77, 32
    %v79 = vpop.permute.xlu0 %78
    %vm80 = vcmask 326912
    %81 = vst.msk [vmem:[#allocation0] ss:$8 sm:$0x3] %vm80, %v79
    %s82 = scalar_lea.vmem %s0, 3
    %s83 = smov 3
    %v84 = vld [vmem:[%s82] ss:$16 sm:%s83]
    %85 = vrot.lane.b32.xlu0 %v84, 24
    %v86 = vpop.permute.xlu0 %85
    %vm87 = vcmask 261312
    %88 = vst.msk [vmem:[#allocation0] ss:$8 sm:$0x3] %vm87, %v86
    %s89 = scalar_lea.vmem %s0, 2
    %s90 = smov 3
    %v91 = vld [vmem:[%s89] ss:$16 sm:%s90]
    %92 = vrot.lane.b32.xlu0 %v91, 16
    %v93 = vpop.permute.xlu0 %92
    %vm94 = vcmask 195712
    %95 = vst.msk [vmem:[#allocation0] ss:$8 sm:$0x3] %vm94, %v93
    %s96 = scalar_lea.vmem %s0, 1
    %s97 = smov 3
    %v98 = vld [vmem:[%s96] ss:$16 sm:%s97]
    %99 = vrot.lane.b32.xlu0 %v98, 8
    %v100 = vpop.permute.xlu0 %99
    %vm101 = vcmask 130112
    %102 = vst.msk [vmem:[#allocation0] ss:$8 sm:$0x3] %vm101, %v100
    %s104 = sshllo.u32 0, 1
    %v106 = vld [vmem:[#allocation0] sm:%s104]
    %s107 = sshllo.u32 0, 1
    %108 = vst [vmem:[%s1] sm:%s107] %v106
    %s109 = scalar_lea.vmem [#allocation0], 8
    %v110 = vld [vmem:[%s109] sm:%s104]
    %s111 = sshllo.u32 0, 1
    %s112 = scalar_lea.vmem %s1, 1
    %113 = vst [vmem:[%s112] sm:%s111] %v110

// kernel: tile.23
$region0: #{tile.23}
  #allocation0 [shape = 's32[1]{0}', space=sflag, size = 0x4, scoped, tag = 'scoped memory for tile.23']
  %s0 = inlined_call_operand.vmem [shape: f32[16], index: 0, kind: input, shape index: {}]
  %s1 = inlined_call_operand.vmem [shape: f32[8,16], index: 1, kind: output, shape index: {}]
  // Predicated region
  $region2: #{tile.23} parent=0 // pred_check
    _
  $region3: #{tile.23} parent=0 // pred_check_branch
    %3 = sbr.rel (0) target = $region5
  $region4: #{tile.23} parent=0 // pred_region
    _
  $region5: #{tile.23} parent=0 // pred_fallthru
    _
  %v4 = vld [vmem:[%s0] ss:$0 sm:$0xff]
  %5 = vst [vmem:[%s1] sm:$0xff] %v4

// kernel: tile.24
$region0: #{tile.24}
  %s0 = inlined_call_operand.vmem [shape: f32[8,16], index: 0, kind: input, shape index: {}]
  %s1 = inlined_call_operand.vmem [shape: f32[1,128], index: 1, kind: output, shape index: {}]
  $region1: #{tile.24} parent=0
    #allocation0 [shape = 'u8[4096]{0}', space=vmem, size = 0x1000, scoped, tag = 'scoped mem for output reshape']
    %v2 = vld [vmem:[%s0] sm:$0x1]
    %vm3 = vcmask 130048
    %4 = vst.msk [vmem:[#allocation0] sm:$0x1] %vm3, %v2
    %s5 = scalar_lea.vmem %s0, 7
    %v6 = vld [vmem:[%s5] sm:$0x1]
    %7 = vrot.lane.b32.xlu0 %v6, 112
    %v8 = vpop.permute.xlu0 %7
    %vm9 = vcmask 1048448
    %10 = vst.msk [vmem:[#allocation0] sm:$0x1] %vm9, %v8
    %s11 = scalar_lea.vmem %s0, 6
    %v12 = vld [vmem:[%s11] sm:$0x1]
    %13 = vrot.lane.b32.xlu0 %v12, 96
    %v14 = vpop.permute.xlu0 %13
    %vm15 = vcmask 917248
    %16 = vst.msk [vmem:[#allocation0] sm:$0x1] %vm15, %v14
    %s17 = scalar_lea.vmem %s0, 5
    %v18 = vld [vmem:[%s17] sm:$0x1]
    %19 = vrot.lane.b32.xlu0 %v18, 80
    %v20 = vpop.permute.xlu0 %19
    %vm21 = vcmask 786048
    %22 = vst.msk [vmem:[#allocation0] sm:$0x1] %vm21, %v20
    %s23 = scalar_lea.vmem %s0, 4
    %v24 = vld [vmem:[%s23] sm:$0x1]
    %25 = vrot.lane.b32.xlu0 %v24, 64
    %v26 = vpop.permute.xlu0 %25
    %vm27 = vcmask 654848
    %28 = vst.msk [vmem:[#allocation0] sm:$0x1] %vm27, %v26
    %s29 = scalar_lea.vmem %s0, 3
    %v30 = vld [vmem:[%s29] sm:$0x1]
    %31 = vrot.lane.b32.xlu0 %v30, 48
    %v32 = vpop.permute.xlu0 %31
    %vm33 = vcmask 523648
    %34 = vst.msk [vmem:[#allocation0] sm:$0x1] %vm33, %v32
    %s35 = scalar_lea.vmem %s0, 2
    %v36 = vld [vmem:[%s35] sm:$0x1]
    %37 = vrot.lane.b32.xlu0 %v36, 32
    %v38 = vpop.permute.xlu0 %37
    %vm39 = vcmask 392448
    %40 = vst.msk [vmem:[#allocation0] sm:$0x1] %vm39, %v38
    %s41 = scalar_lea.vmem %s0, 1
    %v42 = vld [vmem:[%s41] sm:$0x1]
    %43 = vrot.lane.b32.xlu0 %v42, 16
    %v44 = vpop.permute.xlu0 %43
    %vm45 = vcmask 261248
    %46 = vst.msk [vmem:[#allocation0] sm:$0x1] %vm45, %v44
    %s48 = sshllo.u32 0, 1
    %v50 = vld [vmem:[#allocation0] sm:%s48]
    %s51 = sshllo.u32 0, 1
    %52 = vst [vmem:[%s1] sm:%s51] %v50

// kernel: tile.28
$region0: #{tile.28}
  #allocation0 [shape = 's32[1]{0}', space=sflag, size = 0x4, scoped, tag = 'scoped memory for tile.28']
  %s0 = inlined_call_operand.vmem [shape: f32[32], index: 0, kind: input, shape index: {}]
  %s1 = inlined_call_operand.vmem [shape: f32[2,32], index: 1, kind: output, shape index: {}]
  // Predicated region
  $region2: #{tile.28} parent=0 // pred_check
    _
  $region3: #{tile.28} parent=0 // pred_check_branch
    %3 = sbr.rel (0) target = $region5
  $region4: #{tile.28} parent=0 // pred_region
    _
  $region5: #{tile.28} parent=0 // pred_fallthru
    _
  %v4 = vld [vmem:[%s0] ss:$0 sm:$0xff]
  %5 = vst [vmem:[%s1] sm:$0x3] %v4

// kernel: tile.29
$region0: #{tile.29}
  %s0 = inlined_call_operand.vmem [shape: f32[2,32], index: 0, kind: input, shape index: {}]
  %s1 = inlined_call_operand.vmem [shape: f32[1,64], index: 1, kind: output, shape index: {}]
  $region1: #{tile.29} parent=0
    #allocation0 [shape = 'u8[4096]{0}', space=vmem, size = 0x1000, scoped, tag = 'scoped mem for output reshape']
    #allocation1 [shape = 'u8[4096]{0}', space=vmem, size = 0x1000, scoped, tag = 'scoped mem for input reshape']
    %s3 = sshllo.u32 0, 2
    %v4 = vld [vmem:[%s0] sm:%s3]
    %5 = vst [vmem:[#allocation1] sm:%s3] %v4
    %v6 = vld [vmem:[#allocation1] sm:$0x1]
    %vm7 = vcmask 261120
    %8 = vst.msk [vmem:[#allocation0] sm:$0x1] %vm7, %v6
    %s9 = scalar_lea.vmem [#allocation1], 1
    %v10 = vld [vmem:[%s9] sm:$0x1]
    %11 = vrot.lane.b32.xlu0 %v10, 32
    %v12 = vpop.permute.xlu0 %11
    %vm13 = vcmask 523520
    %14 = vst.msk [vmem:[#allocation0] sm:$0x1] %vm13, %v12
    %s16 = sshllo.u32 0, 1
    %v18 = vld [vmem:[#allocation0] sm:%s16]
    %s19 = sshllo.u32 0, 1
    %20 = vst [vmem:[%s1] sm:%s19] %v18

// kernel: model_forward.1
$region0: #{model_forward.1}
  #allocation0 [shape = 'u32[]', space=smem, size = 0x4, offset = 0x4, fixed_abs, tag = 'smem constant byte address 0x4 - core index']
  #allocation1 [shape = 'u32[144,128]{1,0:T(1,128)}', space=vmem, size = 0x12000, scoped, tag = 'internal scratch']
  %s0 = inlined_call_operand.vmem [shape: bf16[8,28,28], index: 0, kind: input, shape index: {}]
  %s1 = inlined_call_operand.vmem [shape: bf16[5,28,192], index: 1, kind: input, shape index: {}]
  %s2 = inlined_call_operand.vmem [shape: f32[1,192], index: 2, kind: input, shape index: {}]
  %s3 = inlined_call_operand.vmem [shape: bf16[2,12,24], index: 3, kind: input, shape index: {}]
  %s4 = inlined_call_operand.vmem [shape: bf16[2,192,96], index: 4, kind: input, shape index: {}]
  %s5 = inlined_call_operand.vmem [shape: bf16[5,96,128], index: 5, kind: input, shape index: {}]
  %s6 = inlined_call_operand.vmem [shape: f32[1,128], index: 6, kind: input, shape index: {}]
  %s7 = inlined_call_operand.vmem [shape: bf16[2,4,8], index: 7, kind: input, shape index: {}]
  %s8 = inlined_call_operand.vmem [shape: bf16[2,128,64], index: 8, kind: input, shape index: {}]
  %s9 = inlined_call_operand.vmem [shape: bf16[3,64,64], index: 9, kind: input, shape index: {}]
  %s10 = inlined_call_operand.vmem [shape: f32[1,64], index: 10, kind: input, shape index: {}]
  %s11 = inlined_call_operand.vmem [shape: bf16[2,64,32], index: 11, kind: input, shape index: {}]
  %s12 = inlined_call_operand.vmem [shape: f32[2,1,128], index: 12, kind: output, shape index: {}]
  %s13 = sld [smem:[#allocation0]]
  $region81: #{model_forward.1} parent=0
    _
  %s15 = ssub.s32 1, %s13
  %s16 = scalar_select 0, %s15, %s13
  loop: start=0, step=1, limit=4
  $region2: #{model_forward.1} parent=0 // loop_pre_header
    _
  $region3: #{model_forward.1} parent=0 // loop_header
    %s18 = sphi 0, %s22
    %p19 = scmp.ge.s32.totalorder %s18, 4
    %s28 = sphi 0, %s30
    %s31 = sphi 0, %s28
    %s32 = sphi 0, %s31
    %s48 = sphi 0, %s32
    %s52 = sphi 0, %s52
    %s54 = sphi 0, %s52
    %s55 = sphi 0, %s54
    %s69 = sphi 0, %s55
    %s73 = sphi 0, %s73
    %s75 = sphi 0, %s73
    %s76 = sphi 0, %s75
    %s90 = sphi 0, %s76
    %s94 = sphi 0, %s94
    %s96 = sphi 0, %s94
    %s97 = sphi 0, %s96
    %s111 = sphi 0, %s97
    %s115 = sphi 0, %s115
    %s117 = sphi 0, %s115
    %s118 = sphi 0, %s117
    %s132 = sphi 0, %s118
    %s136 = sphi 0, %s136
    %s138 = sphi 0, %s136
    %s139 = sphi 0, %s138
    %s153 = sphi 0, %s139
    %s157 = sphi 0, %s157
    %s159 = sphi 0, %s157
    %s160 = sphi 0, %s159
    %s174 = sphi 0, %s160
    %s178 = sphi 0, %s178
    %s180 = sphi 0, %s178
    %s181 = sphi 0, %s180
    %s195 = sphi 0, %s181
    %s199 = sphi 0, %s199
    %s201 = sphi 0, %s199
    %s202 = sphi 0, %s201
    %s216 = sphi 0, %s202
    %s220 = sphi 0, %s220
    %s222 = sphi 0, %s220
    %s223 = sphi 0, %s222
    %s237 = sphi 0, %s223
    %s241 = sphi 0, %s241
    %s243 = sphi 0, %s241
    %s244 = sphi 0, %s243
    %s258 = sphi 0, %s244
    %s262 = sphi 0, %s262
    %s264 = sphi 0, %s262
    %s265 = sphi 0, %s264
    %s279 = sphi 0, %s265
    %s285 = sphi 0, %s287
    %s288 = sphi 0, %s285
    %s289 = sphi 0, %s288
    %s305 = sphi 0, %s289
  $region4: #{model_forward.1} parent=0 // loop_header_branch
    %21 = sbr.rel (%p19) target = $region8
  $region5: #{model_forward.1} parent=0 // loop_body
    %s23 = ssub.s32 %s18, 1
    %s24 = ssub.s32 %s18, 2
    %s25 = sadd.s32 %s18, 1
    %s26 = ssub.s32 %s18, %s25
    %p27 = scmp.eq.s32.totalorder %s26, 0
    %s29 = sadd.s32 %s28, 1
    %s30 = scalar_select %p27, %s28, %s29
    %p33 = pneg %p27
    %p34 = scmp.eq.s32.totalorder %s18, 1
    %p35 = por %p33, %p34
    %p36 = scmp.ne.s32.totalorder %s28, %s31
    %p37 = scmp.eq.s32.totalorder %s18, 0
    %p38 = por %p36, %p37
    %p39 = scmp.ne.s32.totalorder %s28, %s31
    %p40 = scmp.eq.s32.totalorder %s23, 1
    %p41 = por %p39, %p40
    %p42 = scmp.ne.s32.totalorder %s31, %s32
    %p43 = scmp.eq.s32.totalorder %s23, 0
    %p44 = por %p42, %p43
    %p45 = scmp.ne.s32.totalorder %s31, %s32
    %p46 = scmp.eq.s32.totalorder %s24, 1
    %p47 = por %p45, %p46
    %p49 = scmp.ne.s32.totalorder %s32, %s48
    %p50 = scmp.eq.s32.totalorder %s24, 0
    %p51 = por %p49, %p50
    %s53 = sadd.s32 %s52, 1
    %p56 = scmp.eq.s32.totalorder %s18, 1
    %p57 = scmp.ne.s32.totalorder %s52, %s54
    %p58 = scmp.eq.s32.totalorder %s18, 0
    %p59 = por %p57, %p58
    %p60 = scmp.ne.s32.totalorder %s52, %s54
    %p61 = scmp.eq.s32.totalorder %s23, 1
    %p62 = por %p60, %p61
    %p63 = scmp.ne.s32.totalorder %s54, %s55
    %p64 = scmp.eq.s32.totalorder %s23, 0
    %p65 = por %p63, %p64
    %p66 = scmp.ne.s32.totalorder %s54, %s55
    %p67 = scmp.eq.s32.totalorder %s24, 1
    %p68 = por %p66, %p67
    %p70 = scmp.ne.s32.totalorder %s55, %s69
    %p71 = scmp.eq.s32.totalorder %s24, 0
    %p72 = por %p70, %p71
    %s74 = sadd.s32 %s73, 1
    %p77 = scmp.eq.s32.totalorder %s18, 1
    %p78 = scmp.ne.s32.totalorder %s73, %s75
    %p79 = scmp.eq.s32.totalorder %s18, 0
    %p80 = por %p78, %p79
    %p81 = scmp.ne.s32.totalorder %s73, %s75
    %p82 = scmp.eq.s32.totalorder %s23, 1
    %p83 = por %p81, %p82
    %p84 = scmp.ne.s32.totalorder %s75, %s76
    %p85 = scmp.eq.s32.totalorder %s23, 0
    %p86 = por %p84, %p85
    %p87 = scmp.ne.s32.totalorder %s75, %s76
    %p88 = scmp.eq.s32.totalorder %s24, 1
    %p89 = por %p87, %p88
    %p91 = scmp.ne.s32.totalorder %s76, %s90
    %p92 = scmp.eq.s32.totalorder %s24, 0
    %p93 = por %p91, %p92
    %s95 = sadd.s32 %s94, 1
    %p98 = scmp.eq.s32.totalorder %s18, 1
    %p99 = scmp.ne.s32.totalorder %s94, %s96
    %p100 = scmp.eq.s32.totalorder %s18, 0
    %p101 = por %p99, %p100
    %p102 = scmp.ne.s32.totalorder %s94, %s96
    %p103 = scmp.eq.s32.totalorder %s23, 1
    %p104 = por %p102, %p103
    %p105 = scmp.ne.s32.totalorder %s96, %s97
    %p106 = scmp.eq.s32.totalorder %s23, 0
    %p107 = por %p105, %p106
    %p108 = scmp.ne.s32.totalorder %s96, %s97
    %p109 = scmp.eq.s32.totalorder %s24, 1
    %p110 = por %p108, %p109
    %p112 = scmp.ne.s32.totalorder %s97, %s111
    %p113 = scmp.eq.s32.totalorder %s24, 0
    %p114 = por %p112, %p113
    %s116 = sadd.s32 %s115, 1
    %p119 = scmp.eq.s32.totalorder %s18, 1
    %p120 = scmp.ne.s32.totalorder %s115, %s117
    %p121 = scmp.eq.s32.totalorder %s18, 0
    %p122 = por %p120, %p121
    %p123 = scmp.ne.s32.totalorder %s115, %s117
    %p124 = scmp.eq.s32.totalorder %s23, 1
    %p125 = por %p123, %p124
    %p126 = scmp.ne.s32.totalorder %s117, %s118
    %p127 = scmp.eq.s32.totalorder %s23, 0
    %p128 = por %p126, %p127
    %p129 = scmp.ne.s32.totalorder %s117, %s118
    %p130 = scmp.eq.s32.totalorder %s24, 1
    %p131 = por %p129, %p130
    %p133 = scmp.ne.s32.totalorder %s118, %s132
    %p134 = scmp.eq.s32.totalorder %s24, 0
    %p135 = por %p133, %p134
    %s137 = sadd.s32 %s136, 1
    %p140 = scmp.eq.s32.totalorder %s18, 1
    %p141 = scmp.ne.s32.totalorder %s136, %s138
    %p142 = scmp.eq.s32.totalorder %s18, 0
    %p143 = por %p141, %p142
    %p144 = scmp.ne.s32.totalorder %s136, %s138
    %p145 = scmp.eq.s32.totalorder %s23, 1
    %p146 = por %p144, %p145
    %p147 = scmp.ne.s32.totalorder %s138, %s139
    %p148 = scmp.eq.s32.totalorder %s23, 0
    %p149 = por %p147, %p148
    %p150 = scmp.ne.s32.totalorder %s138, %s139
    %p151 = scmp.eq.s32.totalorder %s24, 1
    %p152 = por %p150, %p151
    %p154 = scmp.ne.s32.totalorder %s139, %s153
    %p155 = scmp.eq.s32.totalorder %s24, 0
    %p156 = por %p154, %p155
    %s158 = sadd.s32 %s157, 1
    %p161 = scmp.eq.s32.totalorder %s18, 1
    %p162 = scmp.ne.s32.totalorder %s157, %s159
    %p163 = scmp.eq.s32.totalorder %s18, 0
    %p164 = por %p162, %p163
    %p165 = scmp.ne.s32.totalorder %s157, %s159
    %p166 = scmp.eq.s32.totalorder %s23, 1
    %p167 = por %p165, %p166
    %p168 = scmp.ne.s32.totalorder %s159, %s160
    %p169 = scmp.eq.s32.totalorder %s23, 0
    %p170 = por %p168, %p169
    %p171 = scmp.ne.s32.totalorder %s159, %s160
    %p172 = scmp.eq.s32.totalorder %s24, 1
    %p173 = por %p171, %p172
    %p175 = scmp.ne.s32.totalorder %s160, %s174
    %p176 = scmp.eq.s32.totalorder %s24, 0
    %p177 = por %p175, %p176
    %s179 = sadd.s32 %s178, 1
    %p182 = scmp.eq.s32.totalorder %s18, 1
    %p183 = scmp.ne.s32.totalorder %s178, %s180
    %p184 = scmp.eq.s32.totalorder %s18, 0
    %p185 = por %p183, %p184
    %p186 = scmp.ne.s32.totalorder %s178, %s180
    %p187 = scmp.eq.s32.totalorder %s23, 1
    %p188 = por %p186, %p187
    %p189 = scmp.ne.s32.totalorder %s180, %s181
    %p190 = scmp.eq.s32.totalorder %s23, 0
    %p191 = por %p189, %p190
    %p192 = scmp.ne.s32.totalorder %s180, %s181
    %p193 = scmp.eq.s32.totalorder %s24, 1
    %p194 = por %p192, %p193
    %p196 = scmp.ne.s32.totalorder %s181, %s195
    %p197 = scmp.eq.s32.totalorder %s24, 0
    %p198 = por %p196, %p197
    %s200 = sadd.s32 %s199, 1
    %p203 = scmp.eq.s32.totalorder %s18, 1
    %p204 = scmp.ne.s32.totalorder %s199, %s201
    %p205 = scmp.eq.s32.totalorder %s18, 0
    %p206 = por %p204, %p205
    %p207 = scmp.ne.s32.totalorder %s199, %s201
    %p208 = scmp.eq.s32.totalorder %s23, 1
    %p209 = por %p207, %p208
    %p210 = scmp.ne.s32.totalorder %s201, %s202
    %p211 = scmp.eq.s32.totalorder %s23, 0
    %p212 = por %p210, %p211
    %p213 = scmp.ne.s32.totalorder %s201, %s202
    %p214 = scmp.eq.s32.totalorder %s24, 1
    %p215 = por %p213, %p214
    %p217 = scmp.ne.s32.totalorder %s202, %s216
    %p218 = scmp.eq.s32.totalorder %s24, 0
    %p219 = por %p217, %p218
    %s221 = sadd.s32 %s220, 1
    %p224 = scmp.eq.s32.totalorder %s18, 1
    %p225 = scmp.ne.s32.totalorder %s220, %s222
    %p226 = scmp.eq.s32.totalorder %s18, 0
    %p227 = por %p225, %p226
    %p228 = scmp.ne.s32.totalorder %s220, %s222
    %p229 = scmp.eq.s32.totalorder %s23, 1
    %p230 = por %p228, %p229
    %p231 = scmp.ne.s32.totalorder %s222, %s223
    %p232 = scmp.eq.s32.totalorder %s23, 0
    %p233 = por %p231, %p232
    %p234 = scmp.ne.s32.totalorder %s222, %s223
    %p235 = scmp.eq.s32.totalorder %s24, 1
    %p236 = por %p234, %p235
    %p238 = scmp.ne.s32.totalorder %s223, %s237
    %p239 = scmp.eq.s32.totalorder %s24, 0
    %p240 = por %p238, %p239
    %s242 = sadd.s32 %s241, 1
    %p245 = scmp.eq.s32.totalorder %s18, 1
    %p246 = scmp.ne.s32.totalorder %s241, %s243
    %p247 = scmp.eq.s32.totalorder %s18, 0
    %p248 = por %p246, %p247
    %p249 = scmp.ne.s32.totalorder %s241, %s243
    %p250 = scmp.eq.s32.totalorder %s23, 1
    %p251 = por %p249, %p250
    %p252 = scmp.ne.s32.totalorder %s243, %s244
    %p253 = scmp.eq.s32.totalorder %s23, 0
    %p254 = por %p252, %p253
    %p255 = scmp.ne.s32.totalorder %s243, %s244
    %p256 = scmp.eq.s32.totalorder %s24, 1
    %p257 = por %p255, %p256
    %p259 = scmp.ne.s32.totalorder %s244, %s258
    %p260 = scmp.eq.s32.totalorder %s24, 0
    %p261 = por %p259, %p260
    %s263 = sadd.s32 %s262, 1
    %p266 = scmp.eq.s32.totalorder %s18, 1
    %p267 = scmp.ne.s32.totalorder %s262, %s264
    %p268 = scmp.eq.s32.totalorder %s18, 0
    %p269 = por %p267, %p268
    %p270 = scmp.ne.s32.totalorder %s262, %s264
    %p271 = scmp.eq.s32.totalorder %s23, 1
    %p272 = por %p270, %p271
    %p273 = scmp.ne.s32.totalorder %s264, %s265
    %p274 = scmp.eq.s32.totalorder %s23, 0
    %p275 = por %p273, %p274
    %p276 = scmp.ne.s32.totalorder %s264, %s265
    %p277 = scmp.eq.s32.totalorder %s24, 1
    %p278 = por %p276, %p277
    %p280 = scmp.ne.s32.totalorder %s265, %s279
    %p281 = scmp.eq.s32.totalorder %s24, 0
    %p282 = por %p280, %p281
    %s283 = ssub.s32 %s18, %s25
    %p284 = scmp.eq.s32.totalorder %s283, 0
    %s286 = sadd.s32 %s285, 1
    %s287 = scalar_select %p284, %s285, %s286
    %p290 = pneg %p284
    %p291 = scmp.eq.s32.totalorder %s18, 1
    %p292 = por %p290, %p291
    %p293 = scmp.ne.s32.totalorder %s285, %s288
    %p294 = scmp.eq.s32.totalorder %s18, 0
    %p295 = por %p293, %p294
    %p296 = scmp.ne.s32.totalorder %s285, %s288
    %p297 = scmp.eq.s32.totalorder %s23, 1
    %p298 = por %p296, %p297
    %p299 = scmp.ne.s32.totalorder %s288, %s289
    %p300 = scmp.eq.s32.totalorder %s23, 0
    %p301 = por %p299, %p300
    %p302 = scmp.ne.s32.totalorder %s288, %s289
    %p303 = scmp.eq.s32.totalorder %s24, 1
    %p304 = por %p302, %p303
    %p306 = scmp.ne.s32.totalorder %s289, %s305
    %p307 = scmp.eq.s32.totalorder %s24, 0
    %p308 = por %p306, %p307
    %p309 = scmp.le.s32.totalorder 1, %s18
    %p310 = scmp.lt.s32.totalorder %s18, 3
    %p311 = pnand %p309, %p310
    %p312 = pneg %p311
    // Predicated region
    $region9: #{model_forward.1} parent=5 // pred_check
      _
    $region10: #{model_forward.1} parent=5 // pred_check_branch
      %314 = sbr.rel (%p311) target = $region12
    $region11: #{model_forward.1} parent=5 // pred_region
      %s315 = ssub.s32 %s18, 1
      // Predicated region
      $region13: #{model_forward.1} parent=11 // pred_check
        %p316 = pneg %p65
      $region14: #{model_forward.1} parent=11 // pred_check_branch
        %318 = sbr.rel (%p316) target = $region16
      $region15: #{model_forward.1} parent=11 // pred_region
        _
      $region16: #{model_forward.1} parent=11 // pred_fallthru
        _
      // Predicated region
      $region17: #{model_forward.1} parent=11 // pred_check
        %p319 = pneg %p86
      $region18: #{model_forward.1} parent=11 // pred_check_branch
        %321 = sbr.rel (%p319) target = $region20
      $region19: #{model_forward.1} parent=11 // pred_region
        _
      $region20: #{model_forward.1} parent=11 // pred_fallthru
        _
      // Predicated region
      $region21: #{model_forward.1} parent=11 // pred_check
        %p322 = pneg %p107
      $region22: #{model_forward.1} parent=11 // pred_check_branch
        %324 = sbr.rel (%p322) target = $region24
      $region23: #{model_forward.1} parent=11 // pred_region
        _
      $region24: #{model_forward.1} parent=11 // pred_fallthru
        _
      // Predicated region
      $region25: #{model_forward.1} parent=11 // pred_check
        %p325 = pneg %p128
      $region26: #{model_forward.1} parent=11 // pred_check_branch
        %327 = sbr.rel (%p325) target = $region28
      $region27: #{model_forward.1} parent=11 // pred_region
        _
      $region28: #{model_forward.1} parent=11 // pred_fallthru
        _
      // Predicated region
      $region29: #{model_forward.1} parent=11 // pred_check
        %p328 = pneg %p149
      $region30: #{model_forward.1} parent=11 // pred_check_branch
        %330 = sbr.rel (%p328) target = $region32
      $region31: #{model_forward.1} parent=11 // pred_region
        _
      $region32: #{model_forward.1} parent=11 // pred_fallthru
        _
      // Predicated region
      $region33: #{model_forward.1} parent=11 // pred_check
        %p331 = pneg %p170
      $region34: #{model_forward.1} parent=11 // pred_check_branch
        %333 = sbr.rel (%p331) target = $region36
      $region35: #{model_forward.1} parent=11 // pred_region
        _
      $region36: #{model_forward.1} parent=11 // pred_fallthru
        _
      // Predicated region
      $region37: #{model_forward.1} parent=11 // pred_check
        %p334 = pneg %p191
      $region38: #{model_forward.1} parent=11 // pred_check_branch
        %336 = sbr.rel (%p334) target = $region40
      $region39: #{model_forward.1} parent=11 // pred_region
        _
      $region40: #{model_forward.1} parent=11 // pred_fallthru
        _
      // Predicated region
      $region41: #{model_forward.1} parent=11 // pred_check
        %p337 = pneg %p212
      $region42: #{model_forward.1} parent=11 // pred_check_branch
        %339 = sbr.rel (%p337) target = $region44
      $region43: #{model_forward.1} parent=11 // pred_region
        _
      $region44: #{model_forward.1} parent=11 // pred_fallthru
        _
      // Predicated region
      $region45: #{model_forward.1} parent=11 // pred_check
        %p340 = pneg %p233
      $region46: #{model_forward.1} parent=11 // pred_check_branch
        %342 = sbr.rel (%p340) target = $region48
      $region47: #{model_forward.1} parent=11 // pred_region
        _
      $region48: #{model_forward.1} parent=11 // pred_fallthru
        _
      // Predicated region
      $region49: #{model_forward.1} parent=11 // pred_check
        %p343 = pneg %p254
      $region50: #{model_forward.1} parent=11 // pred_check_branch
        %345 = sbr.rel (%p343) target = $region52
      $region51: #{model_forward.1} parent=11 // pred_region
        _
      $region52: #{model_forward.1} parent=11 // pred_fallthru
        _
      // Predicated region
      $region53: #{model_forward.1} parent=11 // pred_check
        %p346 = pneg %p275
      $region54: #{model_forward.1} parent=11 // pred_check_branch
        %348 = sbr.rel (%p346) target = $region56
      $region55: #{model_forward.1} parent=11 // pred_region
        _
      $region56: #{model_forward.1} parent=11 // pred_fallthru
        _
    $region12: #{model_forward.1} parent=5 // pred_fallthru
      _
    %p349 = scmp.lt.s32.totalorder %s18, 2
    // Predicated region
    $region57: #{model_forward.1} parent=5 // pred_check
      %p350 = pneg %p349
    $region58: #{model_forward.1} parent=5 // pred_check_branch
      %352 = sbr.rel (%p350) target = $region60
    $region59: #{model_forward.1} parent=5 // pred_region
      // Predicated region
      $region61: #{model_forward.1} parent=59 // pred_check
        %p353 = pneg %p38
      $region62: #{model_forward.1} parent=59 // pred_check_branch
        %355 = sbr.rel (%p353) target = $region64
      $region63: #{model_forward.1} parent=59 // pred_region
        %s356 = smul.u32 4, %s18
        %p357 = scmp.lt.s32.totalorder %s356, 7
        %s358 = scalar_select %p357, %s356, 7
        %s359 = smul.addr %s358, 4
        %s360 = smul.addr %s359, 4
        %s361 = scalar_lea.vmem %s0, %s360
        %s362 = smul.u32 4, %s18
      $region64: #{model_forward.1} parent=59 // pred_fallthru
        _
    $region60: #{model_forward.1} parent=5 // pred_fallthru
      _
    %p363 = scmp.le.s32.totalorder 1, %s18
    %p364 = scmp.lt.s32.totalorder %s18, 3
    %p365 = pnand %p363, %p364
    %p366 = pneg %p365
    // Predicated region
    $region65: #{model_forward.1} parent=5 // pred_check
      _
    $region66: #{model_forward.1} parent=5 // pred_check_branch
      %368 = sbr.rel (%p365) target = $region68
    $region67: #{model_forward.1} parent=5 // pred_region
      %s369 = ssub.s32 %s18, 1
      %s370 = smul.u32 4, %s23
      %p371 = scmp.lt.s32.totalorder %s370, 7
      %s372 = scalar_select %p371, %s370, 7
      %s373 = smul.addr %s372, 4
      %s374 = smul.addr %s373, 4
      %s375 = scalar_lea.vmem %s0, %s374
      %p376 = pneg %p44
      %p377 = pneg %p41
      %p378 = pneg %p65
      %p379 = pneg %p62
      %p380 = pneg %p86
      %p381 = pneg %p83
      %p382 = pneg %p107
      %p383 = pneg %p104
      %p384 = pneg %p128
      %p385 = pneg %p125
      %p386 = pneg %p149
      %p387 = pneg %p146
      %p388 = pneg %p170
      %p389 = pneg %p167
      %p390 = pneg %p191
      %p391 = pneg %p188
      %p392 = pneg %p212
      %p393 = pneg %p209
      %p394 = pneg %p233
      %p395 = pneg %p230
      %p396 = pneg %p254
      %p397 = pneg %p251
      %p398 = pneg %p275
      %p399 = pneg %p272
      %p400 = pneg %p301
      %p401 = pneg %p298
      %p402 = scmp.lt.s32.totalorder %s23, 1
      %s403 = scalar_select %p402, %s23, 1
      %s404 = scalar_lea.vmem %s12, %s403
      %s405 = smul.u32 4, %s23
      %p406 = scmp.lt.s32.totalorder %s405, 7
      %s407 = scalar_select %p406, %s405, 7
      %s408 = smul.addr %s407, 4
      %s409 = smul.addr %s408, 4
      %s410 = scalar_lea.vmem %s0, %s409
      %s411 = smul.u32 4, %s23
      %p412 = scmp.lt.s32.totalorder %s23, 1
      %s413 = scalar_select %p412, %s23, 1
      %s414 = scalar_lea.vmem %s12, %s413
      %v416 = vld [vmem:[%s410] sm:$0xf]
      %v417 = vld [vmem:[%s410 + $0x4] sm:$0xf]
      %v418 = vld [vmem:[%s410 + $0x8] sm:$0xf]
      %v419 = vld [vmem:[%s1] sm:$0xff]
      %v420 = vld [vmem:[%s1 + $0x8] sm:$0xff]
      %v421 = vld [vmem:[%s1 + $0x10] sm:$0xff]
      %v422 = vld [vmem:[%s1 + $0x18] sm:$0x33]
      %v423 = vld [vmem:[%s410 + $0xc] sm:$0x1]
      %s424 = scalar_lea.vmem %s1, 32
      %v425 = vld [vmem:[%s424] sm:$0xff]
      %v426 = vld [vmem:[%s424 + $0x8] sm:$0xff]
      %v427 = vld [vmem:[%s424 + $0x10] sm:$0xff]
      %v428 = vld [vmem:[%s424 + $0x18] sm:$0x33]
      %v433 = vunpack.c.l.b16 %v416
      %v434 = vunpack.c.l.b16 %v417
      %v435 = vunpack.c.l.b16 %v418
      %v436 = vunpack.c.l.b16 %v423
      %v437 = vpack.c.b16 %v434, %v433
      %v438 = vpack.c.b16 %v436, %v435
      %vm439 = vsmask.f32 7424
      %v441 = vshrl.u32 %v437, 16
      %v443 = vshll.u32 %v437, 16
      %v445 = vrot.slane %v443, 1
      %v446 = vor.u32 %v441, %v445
      %v448 = vshll.u32 %v438, 16
      %v450 = vrot.slane %v448, 1
      %v451 = vsel %vm439, %v446, %v450
      %v452 = vshrl.u32 %v438, 16
      %v454 = vor.u32 %v452, %v450
      %v459 = vunpack.c.l.b16 %v425
      %v460 = vunpack.c.h.b16 %v425
      %v461 = vunpack.c.l.b16 %v426
      %v462 = vunpack.c.h.b16 %v426
      %v463 = vunpack.c.l.b16 %v427
      %v464 = vunpack.c.h.b16 %v427
      %v465 = vunpack.c.l.b16 %v428
      %v466 = vunpack.c.h.b16 %v428
      %v467 = vpack.c.b16 %v461, %v459
      %v468 = vpack.c.b16 %v462, %v460
      %v469 = vpack.c.b16 %v465, %v463
      %v470 = vpack.c.b16 %v466, %v464
      %vm473 = vcmask 228352
      %v475 = vsel %vm473, %v451, 0
      %v478 = vsel %vm473, %v454, 0
      %vm480 = vcmask 1045504
      %v482 = vsel %vm480, %v469, 0
      %v485 = vsel %vm480, %v470, 0
      %487 = vmatprep.subr.bf16.mxu0 %v468
      %488 = vmatpush1.bf16.msra.mxu0 %v467
      %489 = vmatprep.subr.bf16.mxu0 %v485
      %490 = vmatpush1.bf16.msra.mxu0 %v482
      %491 = vmatprep.subr.bf16.mxu0 0
      %492 = vmatpush1.bf16.msra.mxu0 0
      %493 = vmatprep.subr.bf16.mxu0 0
      %494 = vmatpush1.bf16.msra.mxu0 0
      %495 = vmatprep.subr.bf16.mxu0 0
      %496 = vmatpush1.bf16.msra.mxu0 0
      %497 = vmatprep.subr.bf16.mxu0 0
      %498 = vmatpush1.bf16.msra.mxu0 0
      %499 = vmatprep.subr.bf16.mxu0 0
      %500 = vmatpush1.bf16.msra.mxu0 0
      %501 = vmatprep.subr.bf16.mxu0 0
      %502 = vmatpush1.bf16.msra.mxu0 0
      %503 = vmatprep.subr.bf16.mxu0 0
      %504 = vmatpush1.bf16.msra.mxu0 0
      %505 = vmatprep.subr.bf16.mxu0 0
      %506 = vmatpush1.bf16.msra.mxu0 0
      %507 = vmatprep.subr.bf16.mxu0 0
      %508 = vmatpush1.bf16.msra.mxu0 0
      %509 = vmatprep.subr.bf16.mxu0 0
      %510 = vmatpush1.bf16.msra.mxu0 0
      %511 = vmatprep.subr.bf16.mxu0 0
      %512 = vmatpush1.bf16.msra.mxu0 0
      %513 = vmatprep.subr.bf16.mxu0 0
      %514 = vmatpush1.bf16.msra.mxu0 0
      %515 = vmatprep.subr.bf16.mxu0 0
      %516 = vmatpush1.bf16.msra.mxu0 0
      %517 = vmatprep.subr.bf16.mxu0 0
      %518 = vmatpush1.bf16.msra.mxu0 0
      %519 = vmatprep.mubr.bf16.mxu0 0
      %520 = vmatmul.mubr.bf16.gmra.mrb[0].mxu0 %v475
      %v521 = vpop.f32.mrb[0].mxu0
      %v522 = vadd.f32 0.0, %v521
      %v523 = vpop.f32.mrb[0].mxu0
      %v524 = vadd.f32 0.0, %v523
      %v525 = vpop.f32.mrb[0].mxu0
      %v526 = vadd.f32 0.0, %v525
      %v527 = vpop.f32.mrb[0].mxu0
      %v528 = vadd.f32 0.0, %v527
      %529 = vmatprep.mubr.bf16.mxu0 0
      %530 = vmatmul.mubr.bf16.gmra.mrb[0].mxu0 %v478
      %v531 = vpop.f32.mrb[0].mxu0
      %v532 = vadd.f32 0.0, %v531
      %v533 = vpop.f32.mrb[0].mxu0
      %v534 = vadd.f32 0.0, %v533
      %v535 = vpop.f32.mrb[0].mxu0
      %v536 = vpop.f32.mrb[0].mxu0
      %537 = vdwg.mxu0
      %v538 = vpack.c.b16 %v435, %v435
      %v543 = vunpack.c.l.b16 %v419
      %v544 = vunpack.c.h.b16 %v419
      %v545 = vunpack.c.l.b16 %v420
      %v546 = vunpack.c.h.b16 %v420
      %v547 = vunpack.c.l.b16 %v421
      %v548 = vunpack.c.h.b16 %v421
      %v549 = vunpack.c.l.b16 %v422
      %v550 = vunpack.c.h.b16 %v422
      %v551 = vpack.c.b16 %v545, %v543
      %v552 = vpack.c.b16 %v546, %v544
      %v553 = vpack.c.b16 %v549, %v547
      %v554 = vpack.c.b16 %v550, %v548
      %v557 = vsel %vm473, %v437, 0
      %v560 = vsel %vm473, %v538, 0
      %v563 = vsel %vm480, %v553, 0
      %v566 = vsel %vm480, %v554, 0
      %568 = vmatprep.subr.bf16.mxu0 %v552
      %569 = vmatpush1.bf16.msra.mxu0 %v551
      %570 = vmatprep.subr.bf16.mxu0 %v566
      %571 = vmatpush1.bf16.msra.mxu0 %v563
      %572 = vmatprep.subr.bf16.mxu0 0
      %573 = vmatpush1.bf16.msra.mxu0 0
      %574 = vmatprep.subr.bf16.mxu0 0
      %575 = vmatpush1.bf16.msra.mxu0 0
      %576 = vmatprep.subr.bf16.mxu0 0
      %577 = vmatpush1.bf16.msra.mxu0 0
      %578 = vmatprep.subr.bf16.mxu0 0
      %579 = vmatpush1.bf16.msra.mxu0 0
      %580 = vmatprep.subr.bf16.mxu0 0
      %581 = vmatpush1.bf16.msra.mxu0 0
      %582 = vmatprep.subr.bf16.mxu0 0
      %583 = vmatpush1.bf16.msra.mxu0 0
      %584 = vmatprep.subr.bf16.mxu0 0
      %585 = vmatpush1.bf16.msra.mxu0 0
      %586 = vmatprep.subr.bf16.mxu0 0
      %587 = vmatpush1.bf16.msra.mxu0 0
      %588 = vmatprep.subr.bf16.mxu0 0
      %589 = vmatpush1.bf16.msra.mxu0 0
      %590 = vmatprep.subr.bf16.mxu0 0
      %591 = vmatpush1.bf16.msra.mxu0 0
      %592 = vmatprep.subr.bf16.mxu0 0
      %593 = vmatpush1.bf16.msra.mxu0 0
      %594 = vmatprep.subr.bf16.mxu0 0
      %595 = vmatpush1.bf16.msra.mxu0 0
      %596 = vmatprep.subr.bf16.mxu0 0
      %597 = vmatpush1.bf16.msra.mxu0 0
      %598 = vmatprep.subr.bf16.mxu0 0
      %599 = vmatpush1.bf16.msra.mxu0 0
      %600 = vmatprep.mubr.bf16.mxu0 0
      %601 = vmatmul.mubr.bf16.gmra.mrb[0].mxu0 %v557
      %v602 = vpop.f32.mrb[0].mxu0
      %v603 = vadd.f32 %v522, %v602
      %v604 = vpop.f32.mrb[0].mxu0
      %v605 = vadd.f32 %v524, %v604
      %v606 = vpop.f32.mrb[0].mxu0
      %v607 = vadd.f32 %v526, %v606
      %v608 = vpop.f32.mrb[0].mxu0
      %v609 = vadd.f32 %v528, %v608
      %610 = vmatprep.mubr.bf16.mxu0 0
      %611 = vmatmul.mubr.bf16.gmra.mrb[0].mxu0 %v560
      %v612 = vpop.f32.mrb[0].mxu0
      %v613 = vadd.f32 %v532, %v612
      %v614 = vpop.f32.mrb[0].mxu0
      %v615 = vadd.f32 %v534, %v614
      %v616 = vpop.f32.mrb[0].mxu0
      %v617 = vpop.f32.mrb[0].mxu0
      %618 = vdwg.mxu0
      %v619 = vld [vmem:[%s410] sm:$0xe]
      %s620 = scalar_lea.vmem %s1, 64
      %v621 = vld [vmem:[%s620] sm:$0xff]
      %v622 = vld [vmem:[%s620 + $0x8] sm:$0xff]
      %v623 = vld [vmem:[%s620 + $0x10] sm:$0xff]
      %v624 = vld [vmem:[%s620 + $0x18] sm:$0x33]
      %v626 = vunpack.c.l.b16 %v619
      %v627 = vpack.c.b16 %v434, %v626
      %vm628 = vcmask 1046528
      %v629 = vrot.slane %v627, 1
      %v630 = vrot.slane %v438, 1
      %v631 = vsel %vm628, %v629, %v630
      %v636 = vunpack.c.l.b16 %v621
      %v637 = vunpack.c.h.b16 %v621
      %v638 = vunpack.c.l.b16 %v622
      %v639 = vunpack.c.h.b16 %v622
      %v640 = vunpack.c.l.b16 %v623
      %v641 = vunpack.c.h.b16 %v623
      %v642 = vunpack.c.l.b16 %v624
      %v643 = vunpack.c.h.b16 %v624
      %v644 = vpack.c.b16 %v638, %v636
      %v645 = vpack.c.b16 %v639, %v637
      %v646 = vpack.c.b16 %v642, %v640
      %v647 = vpack.c.b16 %v643, %v641
      %v651 = vsel %vm473, %v631, 0
      %v654 = vsel %vm473, %v630, 0
      %v657 = vsel %vm480, %v646, 0
      %v660 = vsel %vm480, %v647, 0
      %662 = vmatprep.subr.bf16.mxu0 %v645
      %663 = vmatpush1.bf16.msra.mxu0 %v644
      %664 = vmatprep.subr.bf16.mxu0 %v660
      %665 = vmatpush1.bf16.msra.mxu0 %v657
      %666 = vmatprep.subr.bf16.mxu0 0
      %667 = vmatpush1.bf16.msra.mxu0 0
      %668 = vmatprep.subr.bf16.mxu0 0
      %669 = vmatpush1.bf16.msra.mxu0 0
      %670 = vmatprep.subr.bf16.mxu0 0
      %671 = vmatpush1.bf16.msra.mxu0 0
      %672 = vmatprep.subr.bf16.mxu0 0
      %673 = vmatpush1.bf16.msra.mxu0 0
      %674 = vmatprep.subr.bf16.mxu0 0
      %675 = vmatpush1.bf16.msra.mxu0 0
      %676 = vmatprep.subr.bf16.mxu0 0
      %677 = vmatpush1.bf16.msra.mxu0 0
      %678 = vmatprep.subr.bf16.mxu0 0
      %679 = vmatpush1.bf16.msra.mxu0 0
      %680 = vmatprep.subr.bf16.mxu0 0
      %681 = vmatpush1.bf16.msra.mxu0 0
      %682 = vmatprep.subr.bf16.mxu0 0
      %683 = vmatpush1.bf16.msra.mxu0 0
      %684 = vmatprep.subr.bf16.mxu0 0
      %685 = vmatpush1.bf16.msra.mxu0 0
      %686 = vmatprep.subr.bf16.mxu0 0
      %687 = vmatpush1.bf16.msra.mxu0 0
      %688 = vmatprep.subr.bf16.mxu0 0
      %689 = vmatpush1.bf16.msra.mxu0 0
      %690 = vmatprep.subr.bf16.mxu0 0
      %691 = vmatpush1.bf16.msra.mxu0 0
      %692 = vmatprep.subr.bf16.mxu0 0
      %693 = vmatpush1.bf16.msra.mxu0 0
      %694 = vmatprep.mubr.bf16.mxu0 0
      %695 = vmatmul.mubr.bf16.gmra.mrb[0].mxu0 %v651
      %v696 = vpop.f32.mrb[0].mxu0
      %v697 = vadd.f32 0.0, %v696
      %v698 = vpop.f32.mrb[0].mxu0
      %v699 = vadd.f32 0.0, %v698
      %v700 = vpop.f32.mrb[0].mxu0
      %v701 = vadd.f32 0.0, %v700
      %v702 = vpop.f32.mrb[0].mxu0
      %v703 = vadd.f32 0.0, %v702
      %704 = vmatprep.mubr.bf16.mxu0 0
      %705 = vmatmul.mubr.bf16.gmra.mrb[0].mxu0 %v654
      %v706 = vpop.f32.mrb[0].mxu0
      %v707 = vadd.f32 0.0, %v706
      %v708 = vpop.f32.mrb[0].mxu0
      %v709 = vadd.f32 0.0, %v708
      %v710 = vpop.f32.mrb[0].mxu0
      %v711 = vpop.f32.mrb[0].mxu0
      %712 = vdwg.mxu0
      %v713 = vadd.f32 %v603, %v697
      %v714 = vadd.f32 %v605, %v699
      %v715 = vadd.f32 %v607, %v701
      %v716 = vadd.f32 %v609, %v703
      %v717 = vadd.f32 %v613, %v707
      %v718 = vadd.f32 %v615, %v709
      %v719 = vld [vmem:[%s410 + $0xc] sm:$0x3]
      %s720 = scalar_lea.vmem %s1, 96
      %v721 = vld [vmem:[%s720] sm:$0xff]
      %v722 = vld [vmem:[%s720 + $0x8] sm:$0xff]
      %v723 = vld [vmem:[%s720 + $0x10] sm:$0xff]
      %v724 = vld [vmem:[%s720 + $0x18] sm:$0x33]
      %v726 = vunpack.c.l.b16 %v719
      %v727 = vpack.c.b16 %v726, %v435
      %vm728 = vsmask.f32 6400
      %v730 = vshrl.u32 %v627, 16
      %v732 = vrot.slane %v730, 1
      %v733 = vshll.u32 %v627, 16
      %v735 = vrot.slane %v733, 2
      %v736 = vor.u32 %v732, %v735
      %v738 = vshrl.u32 %v727, 16
      %v740 = vrot.slane %v738, 1
      %v741 = vshll.u32 %v727, 16
      %v743 = vrot.slane %v741, 2
      %v744 = vor.u32 %v740, %v743
      %v745 = vsel %vm728, %v736, %v744
      %v750 = vunpack.c.l.b16 %v721
      %v751 = vunpack.c.h.b16 %v721
      %v752 = vunpack.c.l.b16 %v722
      %v753 = vunpack.c.h.b16 %v722
      %v754 = vunpack.c.l.b16 %v723
      %v755 = vunpack.c.h.b16 %v723
      %v756 = vunpack.c.l.b16 %v724
      %v757 = vunpack.c.h.b16 %v724
      %v758 = vpack.c.b16 %v752, %v750
      %v759 = vpack.c.b16 %v753, %v751
      %v760 = vpack.c.b16 %v756, %v754
      %v761 = vpack.c.b16 %v757, %v755
      %v765 = vsel %vm473, %v745, 0
      %v768 = vsel %vm473, %v744, 0
      %v771 = vsel %vm480, %v760, 0
      %v774 = vsel %vm480, %v761, 0
      %776 = vmatprep.subr.bf16.mxu0 %v759
      %777 = vmatpush1.bf16.msra.mxu0 %v758
      %778 = vmatprep.subr.bf16.mxu0 %v774
      %779 = vmatpush1.bf16.msra.mxu0 %v771
      %780 = vmatprep.subr.bf16.mxu0 0
      %781 = vmatpush1.bf16.msra.mxu0 0
      %782 = vmatprep.subr.bf16.mxu0 0
      %783 = vmatpush1.bf16.msra.mxu0 0
      %784 = vmatprep.subr.bf16.mxu0 0
      %785 = vmatpush1.bf16.msra.mxu0 0
      %786 = vmatprep.subr.bf16.mxu0 0
      %787 = vmatpush1.bf16.msra.mxu0 0
      %788 = vmatprep.subr.bf16.mxu0 0
      %789 = vmatpush1.bf16.msra.mxu0 0
      %790 = vmatprep.subr.bf16.mxu0 0
      %791 = vmatpush1.bf16.msra.mxu0 0
      %792 = vmatprep.subr.bf16.mxu0 0
      %793 = vmatpush1.bf16.msra.mxu0 0
      %794 = vmatprep.subr.bf16.mxu0 0
      %795 = vmatpush1.bf16.msra.mxu0 0
      %796 = vmatprep.subr.bf16.mxu0 0
      %797 = vmatpush1.bf16.msra.mxu0 0
      %798 = vmatprep.subr.bf16.mxu0 0
      %799 = vmatpush1.bf16.msra.mxu0 0
      %800 = vmatprep.subr.bf16.mxu0 0
      %801 = vmatpush1.bf16.msra.mxu0 0
      %802 = vmatprep.subr.bf16.mxu0 0
      %803 = vmatpush1.bf16.msra.mxu0 0
      %804 = vmatprep.subr.bf16.mxu0 0
      %805 = vmatpush1.bf16.msra.mxu0 0
      %806 = vmatprep.subr.bf16.mxu0 0
      %807 = vmatpush1.bf16.msra.mxu0 0
      %808 = vmatprep.mubr.bf16.mxu0 0
      %809 = vmatmul.mubr.bf16.gmra.mrb[0].mxu0 %v765
      %v810 = vpop.f32.mrb[0].mxu0
      %v811 = vadd.f32 0.0, %v810
      %v812 = vpop.f32.mrb[0].mxu0
      %v813 = vadd.f32 0.0, %v812
      %v814 = vpop.f32.mrb[0].mxu0
      %v815 = vadd.f32 0.0, %v814
      %v816 = vpop.f32.mrb[0].mxu0
      %v817 = vadd.f32 0.0, %v816
      %818 = vmatprep.mubr.bf16.mxu0 0
      %819 = vmatmul.mubr.bf16.gmra.mrb[0].mxu0 %v768
      %v820 = vpop.f32.mrb[0].mxu0
      %v821 = vadd.f32 0.0, %v820
      %v822 = vpop.f32.mrb[0].mxu0
      %v823 = vadd.f32 0.0, %v822
      %v824 = vpop.f32.mrb[0].mxu0
      %v825 = vpop.f32.mrb[0].mxu0
      %826 = vdwg.mxu0
      %v827 = vadd.f32 %v713, %v811
      %v828 = vadd.f32 %v714, %v813
      %v829 = vadd.f32 %v715, %v815
      %v830 = vadd.f32 %v716, %v817
      %v831 = vadd.f32 %v717, %v821
      %v832 = vadd.f32 %v718, %v823
      %v833 = vld [vmem:[%s410] sm:$0xc]
      %s834 = scalar_lea.vmem %s1, 128
      %v835 = vld [vmem:[%s834] sm:$0xff]
      %v836 = vld [vmem:[%s834 + $0x8] sm:$0xff]
      %v837 = vld [vmem:[%s834 + $0x10] sm:$0xff]
      %v838 = vld [vmem:[%s834 + $0x18] sm:$0x33]
      %v840 = vunpack.c.l.b16 %v833
      %v841 = vpack.c.b16 %v434, %v840
      %vm842 = vcmask 1045504
      %v843 = vrot.slane %v841, 2
      %v844 = vrot.slane %v727, 2
      %v845 = vsel %vm842, %v843, %v844
      %v850 = vunpack.c.l.b16 %v835
      %v851 = vunpack.c.h.b16 %v835
      %v852 = vunpack.c.l.b16 %v836
      %v853 = vunpack.c.h.b16 %v836
      %v854 = vunpack.c.l.b16 %v837
      %v855 = vunpack.c.h.b16 %v837
      %v856 = vunpack.c.l.b16 %v838
      %v857 = vunpack.c.h.b16 %v838
      %v858 = vpack.c.b16 %v852, %v850
      %v859 = vpack.c.b16 %v853, %v851
      %v860 = vpack.c.b16 %v856, %v854
      %v861 = vpack.c.b16 %v857, %v855
      %v865 = vsel %vm473, %v845, 0
      %v868 = vsel %vm473, %v844, 0
      %v871 = vsel %vm480, %v860, 0
      %v874 = vsel %vm480, %v861, 0
      %876 = vmatprep.subr.bf16.mxu0 %v859
      %877 = vmatpush1.bf16.msra.mxu0 %v858
      %878 = vmatprep.subr.bf16.mxu0 %v874
      %879 = vmatpush1.bf16.msra.mxu0 %v871
      %880 = vmatprep.subr.bf16.mxu0 0
      %881 = vmatpush1.bf16.msra.mxu0 0
      %882 = vmatprep.subr.bf16.mxu0 0
      %883 = vmatpush1.bf16.msra.mxu0 0
      %884 = vmatprep.subr.bf16.mxu0 0
      %885 = vmatpush1.bf16.msra.mxu0 0
      %886 = vmatprep.subr.bf16.mxu0 0
      %887 = vmatpush1.bf16.msra.mxu0 0
      %888 = vmatprep.subr.bf16.mxu0 0
      %889 = vmatpush1.bf16.msra.mxu0 0
      %890 = vmatprep.subr.bf16.mxu0 0
      %891 = vmatpush1.bf16.msra.mxu0 0
      %892 = vmatprep.subr.bf16.mxu0 0
      %893 = vmatpush1.bf16.msra.mxu0 0
      %894 = vmatprep.subr.bf16.mxu0 0
      %895 = vmatpush1.bf16.msra.mxu0 0
      %896 = vmatprep.subr.bf16.mxu0 0
      %897 = vmatpush1.bf16.msra.mxu0 0
      %898 = vmatprep.subr.bf16.mxu0 0
      %899 = vmatpush1.bf16.msra.mxu0 0
      %900 = vmatprep.subr.bf16.mxu0 0
      %901 = vmatpush1.bf16.msra.mxu0 0
      %902 = vmatprep.subr.bf16.mxu0 0
      %903 = vmatpush1.bf16.msra.mxu0 0
      %904 = vmatprep.subr.bf16.mxu0 0
      %905 = vmatpush1.bf16.msra.mxu0 0
      %906 = vmatprep.subr.bf16.mxu0 0
      %907 = vmatpush1.bf16.msra.mxu0 0
      %908 = vmatprep.mubr.bf16.mxu0 0
      %909 = vmatmul.mubr.bf16.gmra.mrb[0].mxu0 %v865
      %v910 = vpop.f32.mrb[0].mxu0
      %v911 = vadd.f32 0.0, %v910
      %v912 = vpop.f32.mrb[0].mxu0
      %v913 = vadd.f32 0.0, %v912
      %v914 = vpop.f32.mrb[0].mxu0
      %v915 = vadd.f32 0.0, %v914
      %v916 = vpop.f32.mrb[0].mxu0
      %v917 = vadd.f32 0.0, %v916
      %918 = vmatprep.mubr.bf16.mxu0 0
      %919 = vmatmul.mubr.bf16.gmra.mrb[0].mxu0 %v868
      %v920 = vpop.f32.mrb[0].mxu0
      %v921 = vadd.f32 0.0, %v920
      %v922 = vpop.f32.mrb[0].mxu0
      %v923 = vadd.f32 0.0, %v922
      %v924 = vpop.f32.mrb[0].mxu0
      %v925 = vpop.f32.mrb[0].mxu0
      %926 = vdwg.mxu0
      %v927 = vadd.f32 %v827, %v911
      %v928 = vadd.f32 %v828, %v913
      %v929 = vadd.f32 %v829, %v915
      %v930 = vadd.f32 %v830, %v917
      %v931 = vadd.f32 %v831, %v921
      %v932 = vadd.f32 %v832, %v923
      %v933 = vld [vmem:[%s2] sm:$0x3]
      %v935 = vlaneseq
      %v936 = vshrl.u32 %v935, 7
      %v937 = vsub.s32 0, %v936
      %v938 = vrot.slane %v933, %v937
      %v939 = vlaneseq
      %v940 = vshrl.u32 %v939, 7
      %v941 = vsub.s32 1, %v940
      %v942 = vrot.slane %v933, %v941
      %v945 = vadd.f32 %v927, %v938
      %v946 = vadd.f32 %v928, %v942
      %v947 = vadd.f32 %v929, %v938
      %v948 = vadd.f32 %v930, %v942
      %v949 = vadd.f32 %v931, %v938
      %v950 = vadd.f32 %v932, %v942
      %v951 = vpack.c.bf16 %v947, %v945
      %v952 = vpack.c.bf16 %v948, %v946
      %v953 = vpack.c.bf16 %v949, %v949
      %v954 = vpack.c.bf16 %v950, %v950
      %v955 = vld [vmem:[%s3] sm:$0xf]
      %v956 = vld [vmem:[%s3 + $0x4] sm:$0x3]
      %v959 = vunpack.c.l.b16 %v955
      %v960 = vunpack.c.l.b16 %v956
      %v961 = vpack.c.b16 %v960, %v959
      %vm962 = vcmask 195584
      %v964 = vsel %vm962, %v961, 0
      %vm966 = vcmask 1043456
      %v968 = vsel %vm966, %v953, 0
      %v971 = vsel %vm966, %v954, 0
      %973 = vmatprep.subr.bf16.mxu0 %v952
      %974 = vmatpush1.bf16.msra.mxu0 %v951
      %975 = vmatprep.subr.bf16.mxu0 %v971
      %976 = vmatpush1.bf16.msra.mxu0 %v968
      %977 = vmatprep.subr.bf16.mxu0 0
      %978 = vmatpush1.bf16.msra.mxu0 0
      %979 = vmatprep.subr.bf16.mxu0 0
      %980 = vmatpush1.bf16.msra.mxu0 0
      %981 = vmatprep.subr.bf16.mxu0 0
      %982 = vmatpush1.bf16.msra.mxu0 0
      %983 = vmatprep.subr.bf16.mxu0 0
      %984 = vmatpush1.bf16.msra.mxu0 0
      %985 = vmatprep.subr.bf16.mxu0 0
      %986 = vmatpush1.bf16.msra.mxu0 0
      %987 = vmatprep.subr.bf16.mxu0 0
      %988 = vmatpush1.bf16.msra.mxu0 0
      %989 = vmatprep.subr.bf16.mxu0 0
      %990 = vmatpush1.bf16.msra.mxu0 0
      %991 = vmatprep.subr.bf16.mxu0 0
      %992 = vmatpush1.bf16.msra.mxu0 0
      %993 = vmatprep.subr.bf16.mxu0 0
      %994 = vmatpush1.bf16.msra.mxu0 0
      %995 = vmatprep.subr.bf16.mxu0 0
      %996 = vmatpush1.bf16.msra.mxu0 0
      %997 = vmatprep.subr.bf16.mxu0 0
      %998 = vmatpush1.bf16.msra.mxu0 0
      %999 = vmatprep.subr.bf16.mxu0 0
      %1000 = vmatpush1.bf16.msra.mxu0 0
      %1001 = vmatprep.subr.bf16.mxu0 0
      %1002 = vmatpush1.bf16.msra.mxu0 0
      %1003 = vmatprep.subr.bf16.mxu0 0
      %1004 = vmatpush1.bf16.msra.mxu0 0
      %1005 = vmatprep.mubr.bf16.mxu0 0
      %1006 = vmatmul.mubr.bf16.gmra.mrb[0].mxu0 %v964
      %v1007 = vpop.f32.mrb[0].mxu0
      %v1008 = vadd.f32 0.0, %v1007
      %v1009 = vpop.f32.mrb[0].mxu0
      %v1010 = vadd.f32 0.0, %v1009
      %v1011 = vpop.f32.mrb[0].mxu0
      %v1012 = vadd.f32 0.0, %v1011
      %v1013 = vpop.f32.mrb[0].mxu0
      %v1014 = vadd.f32 0.0, %v1013
      %1015 = vdwg.mxu0
      %s1016 = scalar_lea.vmem %s3, 8
      %v1017 = vld [vmem:[%s1016] sm:$0xf]
      %v1018 = vld [vmem:[%s1016 + $0x4] sm:$0x3]
      %v1021 = vunpack.c.l.b16 %v1017
      %v1022 = vunpack.c.l.b16 %v1018
      %v1023 = vpack.c.b16 %v1022, %v1021
      %v1025 = vsel %vm962, %v1023, 0
      %1027 = vmatprep.subr.bf16.mxu0 %v952
      %1028 = vmatpush1.bf16.msra.mxu0 %v951
      %1029 = vmatprep.subr.bf16.mxu0 %v971
      %1030 = vmatpush1.bf16.msra.mxu0 %v968
      %1031 = vmatprep.subr.bf16.mxu0 0
      %1032 = vmatpush1.bf16.msra.mxu0 0
      %1033 = vmatprep.subr.bf16.mxu0 0
      %1034 = vmatpush1.bf16.msra.mxu0 0
      %1035 = vmatprep.subr.bf16.mxu0 0
      %1036 = vmatpush1.bf16.msra.mxu0 0
      %1037 = vmatprep.subr.bf16.mxu0 0
      %1038 = vmatpush1.bf16.msra.mxu0 0
      %1039 = vmatprep.subr.bf16.mxu0 0
      %1040 = vmatpush1.bf16.msra.mxu0 0
      %1041 = vmatprep.subr.bf16.mxu0 0
      %1042 = vmatpush1.bf16.msra.mxu0 0
      %1043 = vmatprep.subr.bf16.mxu0 0
      %1044 = vmatpush1.bf16.msra.mxu0 0
      %1045 = vmatprep.subr.bf16.mxu0 0
      %1046 = vmatpush1.bf16.msra.mxu0 0
      %1047 = vmatprep.subr.bf16.mxu0 0
      %1048 = vmatpush1.bf16.msra.mxu0 0
      %1049 = vmatprep.subr.bf16.mxu0 0
      %1050 = vmatpush1.bf16.msra.mxu0 0
      %1051 = vmatprep.subr.bf16.mxu0 0
      %1052 = vmatpush1.bf16.msra.mxu0 0
      %1053 = vmatprep.subr.bf16.mxu0 0
      %1054 = vmatpush1.bf16.msra.mxu0 0
      %1055 = vmatprep.subr.bf16.mxu0 0
      %1056 = vmatpush1.bf16.msra.mxu0 0
      %1057 = vmatprep.subr.bf16.mxu0 0
      %1058 = vmatpush1.bf16.msra.mxu0 0
      %1059 = vmatprep.mubr.bf16.mxu0 0
      %1060 = vmatmul.mubr.bf16.gmra.mrb[0].mxu0 %v1025
      %v1061 = vpop.f32.mrb[0].mxu0
      %v1062 = vadd.f32 0.0, %v1061
      %v1063 = vpop.f32.mrb[0].mxu0
      %v1064 = vadd.f32 0.0, %v1063
      %v1065 = vpop.f32.mrb[0].mxu0
      %v1066 = vadd.f32 0.0, %v1065
      %v1067 = vpop.f32.mrb[0].mxu0
      %v1068 = vadd.f32 0.0, %v1067
      %1069 = vdwg.mxu0
      %v1070 = vmax.f32 %v1008, %v1062
      %v1071 = vmax.f32 %v1010, %v1064
      %v1072 = vmax.f32 %v1012, %v1066
      %v1073 = vmax.f32 %v1014, %v1068
      %v1074 = vpack.c.bf16 %v1072, %v1070
      %v1075 = vpack.c.bf16 %v1073, %v1071
      %v1076 = vld [vmem:[%s4] sm:$0xf]
      %v1077 = vld [vmem:[%s4 + $0x4] sm:$0xf]
      %v1078 = vld [vmem:[%s4 + $0x8] sm:$0xf]
      %v1079 = vld [vmem:[%s4 + $0xc] sm:$0xf]
      %v1080 = vld [vmem:[%s4 + $0x10] sm:$0xf]
      %v1081 = vld [vmem:[%s4 + $0x14] sm:$0xf]
      %v1082 = vld [vmem:[%s4 + $0x18] sm:$0xf]
      %v1083 = vld [vmem:[%s4 + $0x1c] sm:$0xf]
      %v1084 = vld [vmem:[%s4 + $0x20] sm:$0xf]
      %v1085 = vld [vmem:[%s4 + $0x24] sm:$0xf]
      %v1086 = vld [vmem:[%s4 + $0x28] sm:$0xf]
      %v1087 = vld [vmem:[%s4 + $0x2c] sm:$0xf]
      %v1088 = vld [vmem:[%s4 + $0x30] sm:$0xf]
      %v1089 = vld [vmem:[%s4 + $0x34] sm:$0xf]
      %v1090 = vld [vmem:[%s4 + $0x38] sm:$0xf]
      %v1091 = vld [vmem:[%s4 + $0x3c] sm:$0xf]
      %v1092 = vld [vmem:[%s4 + $0x40] sm:$0xf]
      %v1093 = vld [vmem:[%s4 + $0x44] sm:$0xf]
      %v1094 = vld [vmem:[%s4 + $0x48] sm:$0xf]
      %v1095 = vld [vmem:[%s4 + $0x4c] sm:$0xf]
      %v1096 = vld [vmem:[%s4 + $0x50] sm:$0xf]
      %v1097 = vld [vmem:[%s4 + $0x54] sm:$0xf]
      %v1098 = vld [vmem:[%s4 + $0x58] sm:$0xf]
      %v1099 = vld [vmem:[%s4 + $0x5c] sm:$0xf]
      %v1124 = vunpack.c.l.b16 %v1076
      %v1125 = vunpack.c.l.b16 %v1077
      %v1126 = vunpack.c.l.b16 %v1078
      %v1127 = vunpack.c.l.b16 %v1079
      %v1128 = vunpack.c.l.b16 %v1080
      %v1129 = vunpack.c.l.b16 %v1081
      %v1130 = vunpack.c.l.b16 %v1082
      %v1131 = vunpack.c.l.b16 %v1083
      %v1132 = vunpack.c.l.b16 %v1084
      %v1133 = vunpack.c.l.b16 %v1085
      %v1134 = vunpack.c.l.b16 %v1086
      %v1135 = vunpack.c.l.b16 %v1087
      %v1136 = vunpack.c.l.b16 %v1088
      %v1137 = vunpack.c.l.b16 %v1089
      %v1138 = vunpack.c.l.b16 %v1090
      %v1139 = vunpack.c.l.b16 %v1091
      %v1140 = vunpack.c.l.b16 %v1092
      %v1141 = vunpack.c.l.b16 %v1093
      %v1142 = vunpack.c.l.b16 %v1094
      %v1143 = vunpack.c.l.b16 %v1095
      %v1144 = vunpack.c.l.b16 %v1096
      %v1145 = vunpack.c.l.b16 %v1097
      %v1146 = vunpack.c.l.b16 %v1098
      %v1147 = vunpack.c.l.b16 %v1099
      %v1148 = vpack.c.b16 %v1125, %v1124
      %v1149 = vpack.c.b16 %v1127, %v1126
      %v1150 = vpack.c.b16 %v1129, %v1128
      %v1151 = vpack.c.b16 %v1131, %v1130
      %v1152 = vpack.c.b16 %v1133, %v1132
      %v1153 = vpack.c.b16 %v1135, %v1134
      %v1154 = vpack.c.b16 %v1137, %v1136
      %v1155 = vpack.c.b16 %v1139, %v1138
      %v1156 = vpack.c.b16 %v1141, %v1140
      %v1157 = vpack.c.b16 %v1143, %v1142
      %v1158 = vpack.c.b16 %v1145, %v1144
      %v1159 = vpack.c.b16 %v1147, %v1146
      %vm1172 = vcmask 523264
      %v1174 = vsel %vm1172, %v1075, 0
      %1176 = vmatprep.subr.bf16.mxu0 0
      %1177 = vmatpush1.bf16.msra.mxu0 %v1148
      %1178 = vmatprep.subr.bf16.mxu0 0
      %1179 = vmatpush1.bf16.msra.mxu0 %v1149
      %1180 = vmatprep.subr.bf16.mxu0 0
      %1181 = vmatpush1.bf16.msra.mxu0 %v1150
      %1182 = vmatprep.subr.bf16.mxu0 0
      %1183 = vmatpush1.bf16.msra.mxu0 %v1151
      %1184 = vmatprep.subr.bf16.mxu0 0
      %1185 = vmatpush1.bf16.msra.mxu0 %v1152
      %1186 = vmatprep.subr.bf16.mxu0 0
      %1187 = vmatpush1.bf16.msra.mxu0 %v1153
      %1188 = vmatprep.subr.bf16.mxu0 0
      %1189 = vmatpush1.bf16.msra.mxu0 %v1154
      %1190 = vmatprep.subr.bf16.mxu0 0
      %1191 = vmatpush1.bf16.msra.mxu0 %v1155
      %1192 = vmatprep.subr.bf16.mxu0 0
      %1193 = vmatpush1.bf16.msra.mxu0 %v1156
      %1194 = vmatprep.subr.bf16.mxu0 0
      %1195 = vmatpush1.bf16.msra.mxu0 %v1157
      %1196 = vmatprep.subr.bf16.mxu0 0
      %1197 = vmatpush1.bf16.msra.mxu0 %v1158
      %1198 = vmatprep.subr.bf16.mxu0 0
      %1199 = vmatpush1.bf16.msra.mxu0 %v1159
      %1200 = vmatprep.subr.bf16.mxu0 0
      %1201 = vmatpush1.bf16.msra.mxu0 0
      %1202 = vmatprep.subr.bf16.mxu0 0
      %1203 = vmatpush1.bf16.msra.mxu0 0
      %1204 = vmatprep.subr.bf16.mxu0 0
      %1205 = vmatpush1.bf16.msra.mxu0 0
      %1206 = vmatprep.subr.bf16.mxu0 0
      %1207 = vmatpush1.bf16.msra.mxu0 0
      %1208 = vmatprep.mubr.bf16.mxu0 %v1174
      %1209 = vmatmul.mubr.bf16.gmra.mrb[0].mxu0 %v1074
      %v1210 = vpop.f32.mrb[0].mxu0
      %v1211 = vadd.f32 0.0, %v1210
      %v1212 = vpop.f32.mrb[0].mxu0
      %v1213 = vpop.f32.mrb[0].mxu0
      %v1214 = vadd.f32 0.0, %v1213
      %v1215 = vpop.f32.mrb[0].mxu0
      %1216 = vdwg.mxu0
      %s1217 = scalar_lea.vmem %s4, 96
      %v1218 = vld [vmem:[%s1217] sm:$0xf]
      %v1219 = vld [vmem:[%s1217 + $0x4] sm:$0xf]
      %v1220 = vld [vmem:[%s1217 + $0x8] sm:$0xf]
      %v1221 = vld [vmem:[%s1217 + $0xc] sm:$0xf]
      %v1222 = vld [vmem:[%s1217 + $0x10] sm:$0xf]
      %v1223 = vld [vmem:[%s1217 + $0x14] sm:$0xf]
      %v1224 = vld [vmem:[%s1217 + $0x18] sm:$0xf]
      %v1225 = vld [vmem:[%s1217 + $0x1c] sm:$0xf]
      %v1226 = vld [vmem:[%s1217 + $0x20] sm:$0xf]
      %v1227 = vld [vmem:[%s1217 + $0x24] sm:$0xf]
      %v1228 = vld [vmem:[%s1217 + $0x28] sm:$0xf]
      %v1229 = vld [vmem:[%s1217 + $0x2c] sm:$0xf]
      %v1230 = vld [vmem:[%s1217 + $0x30] sm:$0xf]
      %v1231 = vld [vmem:[%s1217 + $0x34] sm:$0xf]
      %v1232 = vld [vmem:[%s1217 + $0x38] sm:$0xf]
      %v1233 = vld [vmem:[%s1217 + $0x3c] sm:$0xf]
      %v1234 = vld [vmem:[%s1217 + $0x40] sm:$0xf]
      %v1235 = vld [vmem:[%s1217 + $0x44] sm:$0xf]
      %v1236 = vld [vmem:[%s1217 + $0x48] sm:$0xf]
      %v1237 = vld [vmem:[%s1217 + $0x4c] sm:$0xf]
      %v1238 = vld [vmem:[%s1217 + $0x50] sm:$0xf]
      %v1239 = vld [vmem:[%s1217 + $0x54] sm:$0xf]
      %v1240 = vld [vmem:[%s1217 + $0x58] sm:$0xf]
      %v1241 = vld [vmem:[%s1217 + $0x5c] sm:$0xf]
      %v1266 = vunpack.c.l.b16 %v1218
      %v1267 = vunpack.c.l.b16 %v1219
      %v1268 = vunpack.c.l.b16 %v1220
      %v1269 = vunpack.c.l.b16 %v1221
      %v1270 = vunpack.c.l.b16 %v1222
      %v1271 = vunpack.c.l.b16 %v1223
      %v1272 = vunpack.c.l.b16 %v1224
      %v1273 = vunpack.c.l.b16 %v1225
      %v1274 = vunpack.c.l.b16 %v1226
      %v1275 = vunpack.c.l.b16 %v1227
      %v1276 = vunpack.c.l.b16 %v1228
      %v1277 = vunpack.c.l.b16 %v1229
      %v1278 = vunpack.c.l.b16 %v1230
      %v1279 = vunpack.c.l.b16 %v1231
      %v1280 = vunpack.c.l.b16 %v1232
      %v1281 = vunpack.c.l.b16 %v1233
      %v1282 = vunpack.c.l.b16 %v1234
      %v1283 = vunpack.c.l.b16 %v1235
      %v1284 = vunpack.c.l.b16 %v1236
      %v1285 = vunpack.c.l.b16 %v1237
      %v1286 = vunpack.c.l.b16 %v1238
      %v1287 = vunpack.c.l.b16 %v1239
      %v1288 = vunpack.c.l.b16 %v1240
      %v1289 = vunpack.c.l.b16 %v1241
      %v1290 = vpack.c.b16 %v1267, %v1266
      %v1291 = vpack.c.b16 %v1269, %v1268
      %v1292 = vpack.c.b16 %v1271, %v1270
      %v1293 = vpack.c.b16 %v1273, %v1272
      %v1294 = vpack.c.b16 %v1275, %v1274
      %v1295 = vpack.c.b16 %v1277, %v1276
      %v1296 = vpack.c.b16 %v1279, %v1278
      %v1297 = vpack.c.b16 %v1281, %v1280
      %v1298 = vpack.c.b16 %v1283, %v1282
      %v1299 = vpack.c.b16 %v1285, %v1284
      %v1300 = vpack.c.b16 %v1287, %v1286
      %v1301 = vpack.c.b16 %v1289, %v1288
      %1314 = vmatprep.subr.bf16.mxu0 0
      %1315 = vmatpush1.bf16.msra.mxu0 %v1290
      %1316 = vmatprep.subr.bf16.mxu0 0
      %1317 = vmatpush1.bf16.msra.mxu0 %v1291
      %1318 = vmatprep.subr.bf16.mxu0 0
      %1319 = vmatpush1.bf16.msra.mxu0 %v1292
      %1320 = vmatprep.subr.bf16.mxu0 0
      %1321 = vmatpush1.bf16.msra.mxu0 %v1293
      %1322 = vmatprep.subr.bf16.mxu0 0
      %1323 = vmatpush1.bf16.msra.mxu0 %v1294
      %1324 = vmatprep.subr.bf16.mxu0 0
      %1325 = vmatpush1.bf16.msra.mxu0 %v1295
      %1326 = vmatprep.subr.bf16.mxu0 0
      %1327 = vmatpush1.bf16.msra.mxu0 %v1296
      %1328 = vmatprep.subr.bf16.mxu0 0
      %1329 = vmatpush1.bf16.msra.mxu0 %v1297
      %1330 = vmatprep.subr.bf16.mxu0 0
      %1331 = vmatpush1.bf16.msra.mxu0 %v1298
      %1332 = vmatprep.subr.bf16.mxu0 0
      %1333 = vmatpush1.bf16.msra.mxu0 %v1299
      %1334 = vmatprep.subr.bf16.mxu0 0
      %1335 = vmatpush1.bf16.msra.mxu0 %v1300
      %1336 = vmatprep.subr.bf16.mxu0 0
      %1337 = vmatpush1.bf16.msra.mxu0 %v1301
      %1338 = vmatprep.subr.bf16.mxu0 0
      %1339 = vmatpush1.bf16.msra.mxu0 0
      %1340 = vmatprep.subr.bf16.mxu0 0
      %1341 = vmatpush1.bf16.msra.mxu0 0
      %1342 = vmatprep.subr.bf16.mxu0 0
      %1343 = vmatpush1.bf16.msra.mxu0 0
      %1344 = vmatprep.subr.bf16.mxu0 0
      %1345 = vmatpush1.bf16.msra.mxu0 0
      %1346 = vmatprep.mubr.bf16.mxu0 %v1174
      %1347 = vmatmul.mubr.bf16.gmra.mrb[0].mxu0 %v1074
      %v1348 = vpop.f32.mrb[0].mxu0
      %v1349 = vadd.f32 0.0, %v1348
      %v1350 = vpop.f32.mrb[0].mxu0
      %v1351 = vpop.f32.mrb[0].mxu0
      %v1352 = vadd.f32 0.0, %v1351
      %v1353 = vpop.f32.mrb[0].mxu0
      %1354 = vdwg.mxu0
      %v1355 = vmax.f32 %v1211, %v1349
      %v1356 = vmax.f32 %v1214, %v1352
      %v1357 = vmax.f32 %v1355, 0.0
      %v1358 = vmax.f32 %v1356, 0.0
      %v1359 = vpack.c.bf16 %v1358, %v1357
      %v1360 = vld [vmem:[%s5] sm:$0xf]
      %v1361 = vld [vmem:[%s5 + $0x4] sm:$0xf]
      %v1362 = vld [vmem:[%s5 + $0x8] sm:$0xf]
      %v1363 = vld [vmem:[%s5 + $0xc] sm:$0xf]
      %v1364 = vld [vmem:[%s5 + $0x10] sm:$0xf]
      %v1365 = vld [vmem:[%s5 + $0x14] sm:$0xf]
      %v1366 = vld [vmem:[%s5 + $0x18] sm:$0xf]
      %v1367 = vld [vmem:[%s5 + $0x1c] sm:$0xf]
      %v1368 = vld [vmem:[%s5 + $0x20] sm:$0xf]
      %v1369 = vld [vmem:[%s5 + $0x24] sm:$0xf]
      %v1370 = vld [vmem:[%s5 + $0x28] sm:$0xf]
      %v1371 = vld [vmem:[%s5 + $0x2c] sm:$0xf]
      %s1372 = scalar_lea.vmem %s5, 48
      %v1373 = vld [vmem:[%s1372] sm:$0xf]
      %v1374 = vld [vmem:[%s1372 + $0x4] sm:$0xf]
      %v1375 = vld [vmem:[%s1372 + $0x8] sm:$0xf]
      %v1376 = vld [vmem:[%s1372 + $0xc] sm:$0xf]
      %v1377 = vld [vmem:[%s1372 + $0x10] sm:$0xf]
      %v1378 = vld [vmem:[%s1372 + $0x14] sm:$0xf]
      %v1379 = vld [vmem:[%s1372 + $0x18] sm:$0xf]
      %v1380 = vld [vmem:[%s1372 + $0x1c] sm:$0xf]
      %v1381 = vld [vmem:[%s1372 + $0x20] sm:$0xf]
      %v1382 = vld [vmem:[%s1372 + $0x24] sm:$0xf]
      %v1383 = vld [vmem:[%s1372 + $0x28] sm:$0xf]
      %v1384 = vld [vmem:[%s1372 + $0x2c] sm:$0xf]
      %v1386 = vshrl.u32 %v1359, 16
      %v1388 = vshll.u32 %v1359, 16
      %v1390 = vrot.slane %v1388, 1
      %v1391 = vor.u32 %v1386, %v1390
      %v1404 = vunpack.c.l.b16 %v1373
      %v1405 = vunpack.c.l.b16 %v1374
      %v1406 = vunpack.c.l.b16 %v1375
      %v1407 = vunpack.c.l.b16 %v1376
      %v1408 = vunpack.c.l.b16 %v1377
      %v1409 = vunpack.c.l.b16 %v1378
      %v1410 = vunpack.c.l.b16 %v1379
      %v1411 = vunpack.c.l.b16 %v1380
      %v1412 = vunpack.c.l.b16 %v1381
      %v1413 = vunpack.c.l.b16 %v1382
      %v1414 = vunpack.c.l.b16 %v1383
      %v1415 = vunpack.c.l.b16 %v1384
      %v1416 = vpack.c.b16 %v1405, %v1404
      %v1417 = vpack.c.b16 %v1407, %v1406
      %v1418 = vpack.c.b16 %v1409, %v1408
      %v1419 = vpack.c.b16 %v1411, %v1410
      %v1420 = vpack.c.b16 %v1413, %v1412
      %v1421 = vpack.c.b16 %v1415, %v1414
      %vm1428 = vcmask 785408
      %v1430 = vsel %vm1428, %v1391, 0
      %1432 = vmatprep.subr.bf16.mxu0 0
      %1433 = vmatpush1.bf16.msra.mxu0 %v1416
      %1434 = vmatprep.subr.bf16.mxu0 0
      %1435 = vmatpush1.bf16.msra.mxu0 %v1417
      %1436 = vmatprep.subr.bf16.mxu0 0
      %1437 = vmatpush1.bf16.msra.mxu0 %v1418
      %1438 = vmatprep.subr.bf16.mxu0 0
      %1439 = vmatpush1.bf16.msra.mxu0 %v1419
      %1440 = vmatprep.subr.bf16.mxu0 0
      %1441 = vmatpush1.bf16.msra.mxu0 %v1420
      %1442 = vmatprep.subr.bf16.mxu0 0
      %1443 = vmatpush1.bf16.msra.mxu0 %v1421
      %1444 = vmatprep.subr.bf16.mxu0 0
      %1445 = vmatpush1.bf16.msra.mxu0 0
      %1446 = vmatprep.subr.bf16.mxu0 0
      %1447 = vmatpush1.bf16.msra.mxu0 0
      %1448 = vmatprep.subr.bf16.mxu0 0
      %1449 = vmatpush1.bf16.msra.mxu0 0
      %1450 = vmatprep.subr.bf16.mxu0 0
      %1451 = vmatpush1.bf16.msra.mxu0 0
      %1452 = vmatprep.subr.bf16.mxu0 0
      %1453 = vmatpush1.bf16.msra.mxu0 0
      %1454 = vmatprep.subr.bf16.mxu0 0
      %1455 = vmatpush1.bf16.msra.mxu0 0
      %1456 = vmatprep.subr.bf16.mxu0 0
      %1457 = vmatpush1.bf16.msra.mxu0 0
      %1458 = vmatprep.subr.bf16.mxu0 0
      %1459 = vmatpush1.bf16.msra.mxu0 0
      %1460 = vmatprep.subr.bf16.mxu0 0
      %1461 = vmatpush1.bf16.msra.mxu0 0
      %1462 = vmatprep.subr.bf16.mxu0 0
      %1463 = vmatpush1.bf16.msra.mxu0 0
      %1464 = vmatprep.mubr.bf16.mxu0 0
      %1465 = vmatmul.mubr.bf16.gmra.mrb[0].mxu0 %v1430
      %v1466 = vpop.f32.mrb[0].mxu0
      %v1467 = vadd.f32 0.0, %v1466
      %v1468 = vpop.f32.mrb[0].mxu0
      %v1469 = vpop.f32.mrb[0].mxu0
      %v1470 = vpop.f32.mrb[0].mxu0
      %1471 = vdwg.mxu0
      %v1484 = vunpack.c.l.b16 %v1360
      %v1485 = vunpack.c.l.b16 %v1361
      %v1486 = vunpack.c.l.b16 %v1362
      %v1487 = vunpack.c.l.b16 %v1363
      %v1488 = vunpack.c.l.b16 %v1364
      %v1489 = vunpack.c.l.b16 %v1365
      %v1490 = vunpack.c.l.b16 %v1366
      %v1491 = vunpack.c.l.b16 %v1367
      %v1492 = vunpack.c.l.b16 %v1368
      %v1493 = vunpack.c.l.b16 %v1369
      %v1494 = vunpack.c.l.b16 %v1370
      %v1495 = vunpack.c.l.b16 %v1371
      %v1496 = vpack.c.b16 %v1485, %v1484
      %v1497 = vpack.c.b16 %v1487, %v1486
      %v1498 = vpack.c.b16 %v1489, %v1488
      %v1499 = vpack.c.b16 %v1491, %v1490
      %v1500 = vpack.c.b16 %v1493, %v1492
      %v1501 = vpack.c.b16 %v1495, %v1494
      %v1508 = vsel %vm1428, %v1359, 0
      %1510 = vmatprep.subr.bf16.mxu0 0
      %1511 = vmatpush1.bf16.msra.mxu0 %v1496
      %1512 = vmatprep.subr.bf16.mxu0 0
      %1513 = vmatpush1.bf16.msra.mxu0 %v1497
      %1514 = vmatprep.subr.bf16.mxu0 0
      %1515 = vmatpush1.bf16.msra.mxu0 %v1498
      %1516 = vmatprep.subr.bf16.mxu0 0
      %1517 = vmatpush1.bf16.msra.mxu0 %v1499
      %1518 = vmatprep.subr.bf16.mxu0 0
      %1519 = vmatpush1.bf16.msra.mxu0 %v1500
      %1520 = vmatprep.subr.bf16.mxu0 0
      %1521 = vmatpush1.bf16.msra.mxu0 %v1501
      %1522 = vmatprep.subr.bf16.mxu0 0
      %1523 = vmatpush1.bf16.msra.mxu0 0
      %1524 = vmatprep.subr.bf16.mxu0 0
      %1525 = vmatpush1.bf16.msra.mxu0 0
      %1526 = vmatprep.subr.bf16.mxu0 0
      %1527 = vmatpush1.bf16.msra.mxu0 0
      %1528 = vmatprep.subr.bf16.mxu0 0
      %1529 = vmatpush1.bf16.msra.mxu0 0
      %1530 = vmatprep.subr.bf16.mxu0 0
      %1531 = vmatpush1.bf16.msra.mxu0 0
      %1532 = vmatprep.subr.bf16.mxu0 0
      %1533 = vmatpush1.bf16.msra.mxu0 0
      %1534 = vmatprep.subr.bf16.mxu0 0
      %1535 = vmatpush1.bf16.msra.mxu0 0
      %1536 = vmatprep.subr.bf16.mxu0 0
      %1537 = vmatpush1.bf16.msra.mxu0 0
      %1538 = vmatprep.subr.bf16.mxu0 0
      %1539 = vmatpush1.bf16.msra.mxu0 0
      %1540 = vmatprep.subr.bf16.mxu0 0
      %1541 = vmatpush1.bf16.msra.mxu0 0
      %1542 = vmatprep.mubr.bf16.mxu0 0
      %1543 = vmatmul.mubr.bf16.gmra.mrb[0].mxu0 %v1508
      %v1544 = vpop.f32.mrb[0].mxu0
      %v1545 = vadd.f32 %v1467, %v1544
      %v1546 = vpop.f32.mrb[0].mxu0
      %v1547 = vpop.f32.mrb[0].mxu0
      %v1548 = vpop.f32.mrb[0].mxu0
      %1549 = vdwg.mxu0
      %s1550 = scalar_lea.vmem %s5, 96
      %v1551 = vld [vmem:[%s1550] sm:$0xf]
      %v1552 = vld [vmem:[%s1550 + $0x4] sm:$0xf]
      %v1553 = vld [vmem:[%s1550 + $0x8] sm:$0xf]
      %v1554 = vld [vmem:[%s1550 + $0xc] sm:$0xf]
      %v1555 = vld [vmem:[%s1550 + $0x10] sm:$0xf]
      %v1556 = vld [vmem:[%s1550 + $0x14] sm:$0xf]
      %v1557 = vld [vmem:[%s1550 + $0x18] sm:$0xf]
      %v1558 = vld [vmem:[%s1550 + $0x1c] sm:$0xf]
      %v1559 = vld [vmem:[%s1550 + $0x20] sm:$0xf]
      %v1560 = vld [vmem:[%s1550 + $0x24] sm:$0xf]
      %v1561 = vld [vmem:[%s1550 + $0x28] sm:$0xf]
      %v1562 = vld [vmem:[%s1550 + $0x2c] sm:$0xf]
      %v1564 = vrot.slane %v1359, 1
      %v1577 = vunpack.c.l.b16 %v1551
      %v1578 = vunpack.c.l.b16 %v1552
      %v1579 = vunpack.c.l.b16 %v1553
      %v1580 = vunpack.c.l.b16 %v1554
      %v1581 = vunpack.c.l.b16 %v1555
      %v1582 = vunpack.c.l.b16 %v1556
      %v1583 = vunpack.c.l.b16 %v1557
      %v1584 = vunpack.c.l.b16 %v1558
      %v1585 = vunpack.c.l.b16 %v1559
      %v1586 = vunpack.c.l.b16 %v1560
      %v1587 = vunpack.c.l.b16 %v1561
      %v1588 = vunpack.c.l.b16 %v1562
      %v1589 = vpack.c.b16 %v1578, %v1577
      %v1590 = vpack.c.b16 %v1580, %v1579
      %v1591 = vpack.c.b16 %v1582, %v1581
      %v1592 = vpack.c.b16 %v1584, %v1583
      %v1593 = vpack.c.b16 %v1586, %v1585
      %v1594 = vpack.c.b16 %v1588, %v1587
      %v1602 = vsel %vm1428, %v1564, 0
      %1604 = vmatprep.subr.bf16.mxu0 0
      %1605 = vmatpush1.bf16.msra.mxu0 %v1589
      %1606 = vmatprep.subr.bf16.mxu0 0
      %1607 = vmatpush1.bf16.msra.mxu0 %v1590
      %1608 = vmatprep.subr.bf16.mxu0 0
      %1609 = vmatpush1.bf16.msra.mxu0 %v1591
      %1610 = vmatprep.subr.bf16.mxu0 0
      %1611 = vmatpush1.bf16.msra.mxu0 %v1592
      %1612 = vmatprep.subr.bf16.mxu0 0
      %1613 = vmatpush1.bf16.msra.mxu0 %v1593
      %1614 = vmatprep.subr.bf16.mxu0 0
      %1615 = vmatpush1.bf16.msra.mxu0 %v1594
      %1616 = vmatprep.subr.bf16.mxu0 0
      %1617 = vmatpush1.bf16.msra.mxu0 0
      %1618 = vmatprep.subr.bf16.mxu0 0
      %1619 = vmatpush1.bf16.msra.mxu0 0
      %1620 = vmatprep.subr.bf16.mxu0 0
      %1621 = vmatpush1.bf16.msra.mxu0 0
      %1622 = vmatprep.subr.bf16.mxu0 0
      %1623 = vmatpush1.bf16.msra.mxu0 0
      %1624 = vmatprep.subr.bf16.mxu0 0
      %1625 = vmatpush1.bf16.msra.mxu0 0
      %1626 = vmatprep.subr.bf16.mxu0 0
      %1627 = vmatpush1.bf16.msra.mxu0 0
      %1628 = vmatprep.subr.bf16.mxu0 0
      %1629 = vmatpush1.bf16.msra.mxu0 0
      %1630 = vmatprep.subr.bf16.mxu0 0
      %1631 = vmatpush1.bf16.msra.mxu0 0
      %1632 = vmatprep.subr.bf16.mxu0 0
      %1633 = vmatpush1.bf16.msra.mxu0 0
      %1634 = vmatprep.subr.bf16.mxu0 0
      %1635 = vmatpush1.bf16.msra.mxu0 0
      %1636 = vmatprep.mubr.bf16.mxu0 0
      %1637 = vmatmul.mubr.bf16.gmra.mrb[0].mxu0 %v1602
      %v1638 = vpop.f32.mrb[0].mxu0
      %v1639 = vadd.f32 0.0, %v1638
      %v1640 = vpop.f32.mrb[0].mxu0
      %v1641 = vpop.f32.mrb[0].mxu0
      %v1642 = vpop.f32.mrb[0].mxu0
      %1643 = vdwg.mxu0
      %v1644 = vadd.f32 %v1545, %v1639
      %s1645 = scalar_lea.vmem %s5, 144
      %v1646 = vld [vmem:[%s1645] sm:$0xf]
      %v1647 = vld [vmem:[%s1645 + $0x4] sm:$0xf]
      %v1648 = vld [vmem:[%s1645 + $0x8] sm:$0xf]
      %v1649 = vld [vmem:[%s1645 + $0xc] sm:$0xf]
      %v1650 = vld [vmem:[%s1645 + $0x10] sm:$0xf]
      %v1651 = vld [vmem:[%s1645 + $0x14] sm:$0xf]
      %v1652 = vld [vmem:[%s1645 + $0x18] sm:$0xf]
      %v1653 = vld [vmem:[%s1645 + $0x1c] sm:$0xf]
      %v1654 = vld [vmem:[%s1645 + $0x20] sm:$0xf]
      %v1655 = vld [vmem:[%s1645 + $0x24] sm:$0xf]
      %v1656 = vld [vmem:[%s1645 + $0x28] sm:$0xf]
      %v1657 = vld [vmem:[%s1645 + $0x2c] sm:$0xf]
      %v1658 = vrot.slane %v1386, 1
      %v1659 = vrot.slane %v1388, 2
      %v1660 = vor.u32 %v1658, %v1659
      %v1673 = vunpack.c.l.b16 %v1646
      %v1674 = vunpack.c.l.b16 %v1647
      %v1675 = vunpack.c.l.b16 %v1648
      %v1676 = vunpack.c.l.b16 %v1649
      %v1677 = vunpack.c.l.b16 %v1650
      %v1678 = vunpack.c.l.b16 %v1651
      %v1679 = vunpack.c.l.b16 %v1652
      %v1680 = vunpack.c.l.b16 %v1653
      %v1681 = vunpack.c.l.b16 %v1654
      %v1682 = vunpack.c.l.b16 %v1655
      %v1683 = vunpack.c.l.b16 %v1656
      %v1684 = vunpack.c.l.b16 %v1657
      %v1685 = vpack.c.b16 %v1674, %v1673
      %v1686 = vpack.c.b16 %v1676, %v1675
      %v1687 = vpack.c.b16 %v1678, %v1677
      %v1688 = vpack.c.b16 %v1680, %v1679
      %v1689 = vpack.c.b16 %v1682, %v1681
      %v1690 = vpack.c.b16 %v1684, %v1683
      %v1698 = vsel %vm1428, %v1660, 0
      %1700 = vmatprep.subr.bf16.mxu0 0
      %1701 = vmatpush1.bf16.msra.mxu0 %v1685
      %1702 = vmatprep.subr.bf16.mxu0 0
      %1703 = vmatpush1.bf16.msra.mxu0 %v1686
      %1704 = vmatprep.subr.bf16.mxu0 0
      %1705 = vmatpush1.bf16.msra.mxu0 %v1687
      %1706 = vmatprep.subr.bf16.mxu0 0
      %1707 = vmatpush1.bf16.msra.mxu0 %v1688
      %1708 = vmatprep.subr.bf16.mxu0 0
      %1709 = vmatpush1.bf16.msra.mxu0 %v1689
      %1710 = vmatprep.subr.bf16.mxu0 0
      %1711 = vmatpush1.bf16.msra.mxu0 %v1690
      %1712 = vmatprep.subr.bf16.mxu0 0
      %1713 = vmatpush1.bf16.msra.mxu0 0
      %1714 = vmatprep.subr.bf16.mxu0 0
      %1715 = vmatpush1.bf16.msra.mxu0 0
      %1716 = vmatprep.subr.bf16.mxu0 0
      %1717 = vmatpush1.bf16.msra.mxu0 0
      %1718 = vmatprep.subr.bf16.mxu0 0
      %1719 = vmatpush1.bf16.msra.mxu0 0
      %1720 = vmatprep.subr.bf16.mxu0 0
      %1721 = vmatpush1.bf16.msra.mxu0 0
      %1722 = vmatprep.subr.bf16.mxu0 0
      %1723 = vmatpush1.bf16.msra.mxu0 0
      %1724 = vmatprep.subr.bf16.mxu0 0
      %1725 = vmatpush1.bf16.msra.mxu0 0
      %1726 = vmatprep.subr.bf16.mxu0 0
      %1727 = vmatpush1.bf16.msra.mxu0 0
      %1728 = vmatprep.subr.bf16.mxu0 0
      %1729 = vmatpush1.bf16.msra.mxu0 0
      %1730 = vmatprep.subr.bf16.mxu0 0
      %1731 = vmatpush1.bf16.msra.mxu0 0
      %1732 = vmatprep.mubr.bf16.mxu0 0
      %1733 = vmatmul.mubr.bf16.gmra.mrb[0].mxu0 %v1698
      %v1734 = vpop.f32.mrb[0].mxu0
      %v1735 = vadd.f32 0.0, %v1734
      %v1736 = vpop.f32.mrb[0].mxu0
      %v1737 = vpop.f32.mrb[0].mxu0
      %v1738 = vpop.f32.mrb[0].mxu0
      %1739 = vdwg.mxu0
      %v1740 = vadd.f32 %v1644, %v1735
      %s1741 = scalar_lea.vmem %s5, 192
      %v1742 = vld [vmem:[%s1741] sm:$0xf]
      %v1743 = vld [vmem:[%s1741 + $0x4] sm:$0xf]
      %v1744 = vld [vmem:[%s1741 + $0x8] sm:$0xf]
      %v1745 = vld [vmem:[%s1741 + $0xc] sm:$0xf]
      %v1746 = vld [vmem:[%s1741 + $0x10] sm:$0xf]
      %v1747 = vld [vmem:[%s1741 + $0x14] sm:$0xf]
      %v1748 = vld [vmem:[%s1741 + $0x18] sm:$0xf]
      %v1749 = vld [vmem:[%s1741 + $0x1c] sm:$0xf]
      %v1750 = vld [vmem:[%s1741 + $0x20] sm:$0xf]
      %v1751 = vld [vmem:[%s1741 + $0x24] sm:$0xf]
      %v1752 = vld [vmem:[%s1741 + $0x28] sm:$0xf]
      %v1753 = vld [vmem:[%s1741 + $0x2c] sm:$0xf]
      %v1754 = vrot.slane %v1359, 2
      %v1767 = vunpack.c.l.b16 %v1742
      %v1768 = vunpack.c.l.b16 %v1743
      %v1769 = vunpack.c.l.b16 %v1744
      %v1770 = vunpack.c.l.b16 %v1745
      %v1771 = vunpack.c.l.b16 %v1746
      %v1772 = vunpack.c.l.b16 %v1747
      %v1773 = vunpack.c.l.b16 %v1748
      %v1774 = vunpack.c.l.b16 %v1749
      %v1775 = vunpack.c.l.b16 %v1750
      %v1776 = vunpack.c.l.b16 %v1751
      %v1777 = vunpack.c.l.b16 %v1752
      %v1778 = vunpack.c.l.b16 %v1753
      %v1779 = vpack.c.b16 %v1768, %v1767
      %v1780 = vpack.c.b16 %v1770, %v1769
      %v1781 = vpack.c.b16 %v1772, %v1771
      %v1782 = vpack.c.b16 %v1774, %v1773
      %v1783 = vpack.c.b16 %v1776, %v1775
      %v1784 = vpack.c.b16 %v1778, %v1777
      %v1792 = vsel %vm1428, %v1754, 0
      %1794 = vmatprep.subr.bf16.mxu0 0
      %1795 = vmatpush1.bf16.msra.mxu0 %v1779
      %1796 = vmatprep.subr.bf16.mxu0 0
      %1797 = vmatpush1.bf16.msra.mxu0 %v1780
      %1798 = vmatprep.subr.bf16.mxu0 0
      %1799 = vmatpush1.bf16.msra.mxu0 %v1781
      %1800 = vmatprep.subr.bf16.mxu0 0
      %1801 = vmatpush1.bf16.msra.mxu0 %v1782
      %1802 = vmatprep.subr.bf16.mxu0 0
      %1803 = vmatpush1.bf16.msra.mxu0 %v1783
      %1804 = vmatprep.subr.bf16.mxu0 0
      %1805 = vmatpush1.bf16.msra.mxu0 %v1784
      %1806 = vmatprep.subr.bf16.mxu0 0
      %1807 = vmatpush1.bf16.msra.mxu0 0
      %1808 = vmatprep.subr.bf16.mxu0 0
      %1809 = vmatpush1.bf16.msra.mxu0 0
      %1810 = vmatprep.subr.bf16.mxu0 0
      %1811 = vmatpush1.bf16.msra.mxu0 0
      %1812 = vmatprep.subr.bf16.mxu0 0
      %1813 = vmatpush1.bf16.msra.mxu0 0
      %1814 = vmatprep.subr.bf16.mxu0 0
      %1815 = vmatpush1.bf16.msra.mxu0 0
      %1816 = vmatprep.subr.bf16.mxu0 0
      %1817 = vmatpush1.bf16.msra.mxu0 0
      %1818 = vmatprep.subr.bf16.mxu0 0
      %1819 = vmatpush1.bf16.msra.mxu0 0
      %1820 = vmatprep.subr.bf16.mxu0 0
      %1821 = vmatpush1.bf16.msra.mxu0 0
      %1822 = vmatprep.subr.bf16.mxu0 0
      %1823 = vmatpush1.bf16.msra.mxu0 0
      %1824 = vmatprep.subr.bf16.mxu0 0
      %1825 = vmatpush1.bf16.msra.mxu0 0
      %1826 = vmatprep.mubr.bf16.mxu0 0
      %1827 = vmatmul.mubr.bf16.gmra.mrb[0].mxu0 %v1792
      %v1828 = vpop.f32.mrb[0].mxu0
      %v1829 = vadd.f32 0.0, %v1828
      %v1830 = vpop.f32.mrb[0].mxu0
      %v1831 = vpop.f32.mrb[0].mxu0
      %v1832 = vpop.f32.mrb[0].mxu0
      %1833 = vdwg.mxu0
      %v1834 = vadd.f32 %v1740, %v1829
      %v1835 = vld [vmem:[%s6] sm:$0x1]
      %v1837 = vlaneseq
      %v1838 = vshrl.u32 %v1837, 7
      %v1839 = vsub.s32 0, %v1838
      %v1840 = vrot.slane %v1835, %v1839
      %v1842 = vadd.f32 %v1834, %v1840
      %v1843 = vpack.c.bf16 %v1842, %v1842
      %v1844 = vld [vmem:[%s7] sm:$0x3]
      %vm1845 = vcmask 64512
      %v1847 = vsel %vm1845, %v1844, 0
      %v1850 = vsel %vm966, %v1843, 0
      %1852 = vmatprep.subr.bf16.mxu0 0
      %1853 = vmatpush1.bf16.msra.mxu0 %v1850
      %1854 = vmatprep.subr.bf16.mxu0 0
      %1855 = vmatpush1.bf16.msra.mxu0 0
      %1856 = vmatprep.subr.bf16.mxu0 0
      %1857 = vmatpush1.bf16.msra.mxu0 0
      %1858 = vmatprep.subr.bf16.mxu0 0
      %1859 = vmatpush1.bf16.msra.mxu0 0
      %1860 = vmatprep.subr.bf16.mxu0 0
      %1861 = vmatpush1.bf16.msra.mxu0 0
      %1862 = vmatprep.subr.bf16.mxu0 0
      %1863 = vmatpush1.bf16.msra.mxu0 0
      %1864 = vmatprep.subr.bf16.mxu0 0
      %1865 = vmatpush1.bf16.msra.mxu0 0
      %1866 = vmatprep.subr.bf16.mxu0 0
      %1867 = vmatpush1.bf16.msra.mxu0 0
      %1868 = vmatprep.subr.bf16.mxu0 0
      %1869 = vmatpush1.bf16.msra.mxu0 0
      %1870 = vmatprep.subr.bf16.mxu0 0
      %1871 = vmatpush1.bf16.msra.mxu0 0
      %1872 = vmatprep.subr.bf16.mxu0 0
      %1873 = vmatpush1.bf16.msra.mxu0 0
      %1874 = vmatprep.subr.bf16.mxu0 0
      %1875 = vmatpush1.bf16.msra.mxu0 0
      %1876 = vmatprep.subr.bf16.mxu0 0
      %1877 = vmatpush1.bf16.msra.mxu0 0
      %1878 = vmatprep.subr.bf16.mxu0 0
      %1879 = vmatpush1.bf16.msra.mxu0 0
      %1880 = vmatprep.subr.bf16.mxu0 0
      %1881 = vmatpush1.bf16.msra.mxu0 0
      %1882 = vmatprep.subr.bf16.mxu0 0
      %1883 = vmatpush1.bf16.msra.mxu0 0
      %1884 = vmatprep.mubr.bf16.mxu0 0
      %1885 = vmatmul.mubr.bf16.gmra.mrb[0].mxu0 %v1847
      %v1886 = vpop.f32.mrb[0].mxu0
      %v1887 = vadd.f32 0.0, %v1886
      %v1888 = vpop.f32.mrb[0].mxu0
      %v1889 = vpop.f32.mrb[0].mxu0
      %v1890 = vpop.f32.mrb[0].mxu0
      %1891 = vdwg.mxu0
      %s1892 = scalar_lea.vmem %s7, 2
      %v1893 = vld [vmem:[%s1892] sm:$0x3]
      %v1895 = vsel %vm1845, %v1893, 0
      %1897 = vmatprep.subr.bf16.mxu0 0
      %1898 = vmatpush1.bf16.msra.mxu0 %v1850
      %1899 = vmatprep.subr.bf16.mxu0 0
      %1900 = vmatpush1.bf16.msra.mxu0 0
      %1901 = vmatprep.subr.bf16.mxu0 0
      %1902 = vmatpush1.bf16.msra.mxu0 0
      %1903 = vmatprep.subr.bf16.mxu0 0
      %1904 = vmatpush1.bf16.msra.mxu0 0
      %1905 = vmatprep.subr.bf16.mxu0 0
      %1906 = vmatpush1.bf16.msra.mxu0 0
      %1907 = vmatprep.subr.bf16.mxu0 0
      %1908 = vmatpush1.bf16.msra.mxu0 0
      %1909 = vmatprep.subr.bf16.mxu0 0
      %1910 = vmatpush1.bf16.msra.mxu0 0
      %1911 = vmatprep.subr.bf16.mxu0 0
      %1912 = vmatpush1.bf16.msra.mxu0 0
      %1913 = vmatprep.subr.bf16.mxu0 0
      %1914 = vmatpush1.bf16.msra.mxu0 0
      %1915 = vmatprep.subr.bf16.mxu0 0
      %1916 = vmatpush1.bf16.msra.mxu0 0
      %1917 = vmatprep.subr.bf16.mxu0 0
      %1918 = vmatpush1.bf16.msra.mxu0 0
      %1919 = vmatprep.subr.bf16.mxu0 0
      %1920 = vmatpush1.bf16.msra.mxu0 0
      %1921 = vmatprep.subr.bf16.mxu0 0
      %1922 = vmatpush1.bf16.msra.mxu0 0
      %1923 = vmatprep.subr.bf16.mxu0 0
      %1924 = vmatpush1.bf16.msra.mxu0 0
      %1925 = vmatprep.subr.bf16.mxu0 0
      %1926 = vmatpush1.bf16.msra.mxu0 0
      %1927 = vmatprep.subr.bf16.mxu0 0
      %1928 = vmatpush1.bf16.msra.mxu0 0
      %1929 = vmatprep.mubr.bf16.mxu0 0
      %1930 = vmatmul.mubr.bf16.gmra.mrb[0].mxu0 %v1895
      %v1931 = vpop.f32.mrb[0].mxu0
      %v1932 = vadd.f32 0.0, %v1931
      %v1933 = vpop.f32.mrb[0].mxu0
      %v1934 = vpop.f32.mrb[0].mxu0
      %v1935 = vpop.f32.mrb[0].mxu0
      %1936 = vdwg.mxu0
      %v1937 = vmax.f32 %v1887, %v1932
      %v1938 = vpack.c.bf16 %v1937, %v1937
      %v1939 = vld [vmem:[%s8] sm:$0xf]
      %v1940 = vld [vmem:[%s8 + $0x4] sm:$0xf]
      %v1941 = vld [vmem:[%s8 + $0x8] sm:$0xf]
      %v1942 = vld [vmem:[%s8 + $0xc] sm:$0xf]
      %v1943 = vld [vmem:[%s8 + $0x10] sm:$0xf]
      %v1944 = vld [vmem:[%s8 + $0x14] sm:$0xf]
      %v1945 = vld [vmem:[%s8 + $0x18] sm:$0xf]
      %v1946 = vld [vmem:[%s8 + $0x1c] sm:$0xf]
      %v1947 = vld [vmem:[%s8 + $0x20] sm:$0xf]
      %v1948 = vld [vmem:[%s8 + $0x24] sm:$0xf]
      %v1949 = vld [vmem:[%s8 + $0x28] sm:$0xf]
      %v1950 = vld [vmem:[%s8 + $0x2c] sm:$0xf]
      %v1951 = vld [vmem:[%s8 + $0x30] sm:$0xf]
      %v1952 = vld [vmem:[%s8 + $0x34] sm:$0xf]
      %v1953 = vld [vmem:[%s8 + $0x38] sm:$0xf]
      %v1954 = vld [vmem:[%s8 + $0x3c] sm:$0xf]
      %v1971 = vunpack.c.l.b16 %v1939
      %v1972 = vunpack.c.l.b16 %v1940
      %v1973 = vunpack.c.l.b16 %v1941
      %v1974 = vunpack.c.l.b16 %v1942
      %v1975 = vunpack.c.l.b16 %v1943
      %v1976 = vunpack.c.l.b16 %v1944
      %v1977 = vunpack.c.l.b16 %v1945
      %v1978 = vunpack.c.l.b16 %v1946
      %v1979 = vunpack.c.l.b16 %v1947
      %v1980 = vunpack.c.l.b16 %v1948
      %v1981 = vunpack.c.l.b16 %v1949
      %v1982 = vunpack.c.l.b16 %v1950
      %v1983 = vunpack.c.l.b16 %v1951
      %v1984 = vunpack.c.l.b16 %v1952
      %v1985 = vunpack.c.l.b16 %v1953
      %v1986 = vunpack.c.l.b16 %v1954
      %v1987 = vpack.c.b16 %v1972, %v1971
      %v1988 = vpack.c.b16 %v1974, %v1973
      %v1989 = vpack.c.b16 %v1976, %v1975
      %v1990 = vpack.c.b16 %v1978, %v1977
      %v1991 = vpack.c.b16 %v1980, %v1979
      %v1992 = vpack.c.b16 %v1982, %v1981
      %v1993 = vpack.c.b16 %v1984, %v1983
      %v1994 = vpack.c.b16 %v1986, %v1985
      %2003 = vmatprep.subr.bf16.mxu0 0
      %2004 = vmatpush1.bf16.msra.mxu0 %v1987
      %2005 = vmatprep.subr.bf16.mxu0 0
      %2006 = vmatpush1.bf16.msra.mxu0 %v1988
      %2007 = vmatprep.subr.bf16.mxu0 0
      %2008 = vmatpush1.bf16.msra.mxu0 %v1989
      %2009 = vmatprep.subr.bf16.mxu0 0
      %2010 = vmatpush1.bf16.msra.mxu0 %v1990
      %2011 = vmatprep.subr.bf16.mxu0 0
      %2012 = vmatpush1.bf16.msra.mxu0 %v1991
      %2013 = vmatprep.subr.bf16.mxu0 0
      %2014 = vmatpush1.bf16.msra.mxu0 %v1992
      %2015 = vmatprep.subr.bf16.mxu0 0
      %2016 = vmatpush1.bf16.msra.mxu0 %v1993
      %2017 = vmatprep.subr.bf16.mxu0 0
      %2018 = vmatpush1.bf16.msra.mxu0 %v1994
      %2019 = vmatprep.subr.bf16.mxu0 0
      %2020 = vmatpush1.bf16.msra.mxu0 0
      %2021 = vmatprep.subr.bf16.mxu0 0
      %2022 = vmatpush1.bf16.msra.mxu0 0
      %2023 = vmatprep.subr.bf16.mxu0 0
      %2024 = vmatpush1.bf16.msra.mxu0 0
      %2025 = vmatprep.subr.bf16.mxu0 0
      %2026 = vmatpush1.bf16.msra.mxu0 0
      %2027 = vmatprep.subr.bf16.mxu0 0
      %2028 = vmatpush1.bf16.msra.mxu0 0
      %2029 = vmatprep.subr.bf16.mxu0 0
      %2030 = vmatpush1.bf16.msra.mxu0 0
      %2031 = vmatprep.subr.bf16.mxu0 0
      %2032 = vmatpush1.bf16.msra.mxu0 0
      %2033 = vmatprep.subr.bf16.mxu0 0
      %2034 = vmatpush1.bf16.msra.mxu0 0
      %2035 = vmatprep.mubr.bf16.mxu0 0
      %2036 = vmatmul.mubr.bf16.gmra.mrb[0].mxu0 %v1938
      %v2037 = vpop.f32.mrb[0].mxu0
      %v2038 = vadd.f32 0.0, %v2037
      %v2039 = vpop.f32.mrb[0].mxu0
      %v2040 = vpop.f32.mrb[0].mxu0
      %v2041 = vpop.f32.mrb[0].mxu0
      %2042 = vdwg.mxu0
      %s2043 = scalar_lea.vmem %s8, 64
      %v2044 = vld [vmem:[%s2043] sm:$0xf]
      %v2045 = vld [vmem:[%s2043 + $0x4] sm:$0xf]
      %v2046 = vld [vmem:[%s2043 + $0x8] sm:$0xf]
      %v2047 = vld [vmem:[%s2043 + $0xc] sm:$0xf]
      %v2048 = vld [vmem:[%s2043 + $0x10] sm:$0xf]
      %v2049 = vld [vmem:[%s2043 + $0x14] sm:$0xf]
      %v2050 = vld [vmem:[%s2043 + $0x18] sm:$0xf]
      %v2051 = vld [vmem:[%s2043 + $0x1c] sm:$0xf]
      %v2052 = vld [vmem:[%s2043 + $0x20] sm:$0xf]
      %v2053 = vld [vmem:[%s2043 + $0x24] sm:$0xf]
      %v2054 = vld [vmem:[%s2043 + $0x28] sm:$0xf]
      %v2055 = vld [vmem:[%s2043 + $0x2c] sm:$0xf]
      %v2056 = vld [vmem:[%s2043 + $0x30] sm:$0xf]
      %v2057 = vld [vmem:[%s2043 + $0x34] sm:$0xf]
      %v2058 = vld [vmem:[%s2043 + $0x38] sm:$0xf]
      %v2059 = vld [vmem:[%s2043 + $0x3c] sm:$0xf]
      %v2076 = vunpack.c.l.b16 %v2044
      %v2077 = vunpack.c.l.b16 %v2045
      %v2078 = vunpack.c.l.b16 %v2046
      %v2079 = vunpack.c.l.b16 %v2047
      %v2080 = vunpack.c.l.b16 %v2048
      %v2081 = vunpack.c.l.b16 %v2049
      %v2082 = vunpack.c.l.b16 %v2050
      %v2083 = vunpack.c.l.b16 %v2051
      %v2084 = vunpack.c.l.b16 %v2052
      %v2085 = vunpack.c.l.b16 %v2053
      %v2086 = vunpack.c.l.b16 %v2054
      %v2087 = vunpack.c.l.b16 %v2055
      %v2088 = vunpack.c.l.b16 %v2056
      %v2089 = vunpack.c.l.b16 %v2057
      %v2090 = vunpack.c.l.b16 %v2058
      %v2091 = vunpack.c.l.b16 %v2059
      %v2092 = vpack.c.b16 %v2077, %v2076
      %v2093 = vpack.c.b16 %v2079, %v2078
      %v2094 = vpack.c.b16 %v2081, %v2080
      %v2095 = vpack.c.b16 %v2083, %v2082
      %v2096 = vpack.c.b16 %v2085, %v2084
      %v2097 = vpack.c.b16 %v2087, %v2086
      %v2098 = vpack.c.b16 %v2089, %v2088
      %v2099 = vpack.c.b16 %v2091, %v2090
      %2108 = vmatprep.subr.bf16.mxu0 0
      %2109 = vmatpush1.bf16.msra.mxu0 %v2092
      %2110 = vmatprep.subr.bf16.mxu0 0
      %2111 = vmatpush1.bf16.msra.mxu0 %v2093
      %2112 = vmatprep.subr.bf16.mxu0 0
      %2113 = vmatpush1.bf16.msra.mxu0 %v2094
      %2114 = vmatprep.subr.bf16.mxu0 0
      %2115 = vmatpush1.bf16.msra.mxu0 %v2095
      %2116 = vmatprep.subr.bf16.mxu0 0
      %2117 = vmatpush1.bf16.msra.mxu0 %v2096
      %2118 = vmatprep.subr.bf16.mxu0 0
      %2119 = vmatpush1.bf16.msra.mxu0 %v2097
      %2120 = vmatprep.subr.bf16.mxu0 0
      %2121 = vmatpush1.bf16.msra.mxu0 %v2098
      %2122 = vmatprep.subr.bf16.mxu0 0
      %2123 = vmatpush1.bf16.msra.mxu0 %v2099
      %2124 = vmatprep.subr.bf16.mxu0 0
      %2125 = vmatpush1.bf16.msra.mxu0 0
      %2126 = vmatprep.subr.bf16.mxu0 0
      %2127 = vmatpush1.bf16.msra.mxu0 0
      %2128 = vmatprep.subr.bf16.mxu0 0
      %2129 = vmatpush1.bf16.msra.mxu0 0
      %2130 = vmatprep.subr.bf16.mxu0 0
      %2131 = vmatpush1.bf16.msra.mxu0 0
      %2132 = vmatprep.subr.bf16.mxu0 0
      %2133 = vmatpush1.bf16.msra.mxu0 0
      %2134 = vmatprep.subr.bf16.mxu0 0
      %2135 = vmatpush1.bf16.msra.mxu0 0
      %2136 = vmatprep.subr.bf16.mxu0 0
      %2137 = vmatpush1.bf16.msra.mxu0 0
      %2138 = vmatprep.subr.bf16.mxu0 0
      %2139 = vmatpush1.bf16.msra.mxu0 0
      %2140 = vmatprep.mubr.bf16.mxu0 0
      %2141 = vmatmul.mubr.bf16.gmra.mrb[0].mxu0 %v1938
      %v2142 = vpop.f32.mrb[0].mxu0
      %v2143 = vadd.f32 0.0, %v2142
      %v2144 = vpop.f32.mrb[0].mxu0
      %v2145 = vpop.f32.mrb[0].mxu0
      %v2146 = vpop.f32.mrb[0].mxu0
      %2147 = vdwg.mxu0
      %v2148 = vmax.f32 %v2038, %v2143
      %v2149 = vmax.f32 %v2148, 0.0
      %v2150 = vpack.c.bf16 %v2149, %v2149
      %v2151 = vld [vmem:[%s9] sm:$0xf]
      %v2152 = vld [vmem:[%s9 + $0x4] sm:$0xf]
      %v2153 = vld [vmem:[%s9 + $0x8] sm:$0xf]
      %v2154 = vld [vmem:[%s9 + $0xc] sm:$0xf]
      %v2155 = vld [vmem:[%s9 + $0x10] sm:$0xf]
      %v2156 = vld [vmem:[%s9 + $0x14] sm:$0xf]
      %v2157 = vld [vmem:[%s9 + $0x18] sm:$0xf]
      %v2158 = vld [vmem:[%s9 + $0x1c] sm:$0xf]
      %s2159 = scalar_lea.vmem %s9, 32
      %v2160 = vld [vmem:[%s2159] sm:$0xf]
      %v2161 = vld [vmem:[%s2159 + $0x4] sm:$0xf]
      %v2162 = vld [vmem:[%s2159 + $0x8] sm:$0xf]
      %v2163 = vld [vmem:[%s2159 + $0xc] sm:$0xf]
      %v2164 = vld [vmem:[%s2159 + $0x10] sm:$0xf]
      %v2165 = vld [vmem:[%s2159 + $0x14] sm:$0xf]
      %v2166 = vld [vmem:[%s2159 + $0x18] sm:$0xf]
      %v2167 = vld [vmem:[%s2159 + $0x1c] sm:$0xf]
      %v2169 = vshrl.u32 %v2150, 16
      %v2171 = vshll.u32 %v2150, 16
      %v2173 = vrot.slane %v2171, 1
      %v2174 = vor.u32 %v2169, %v2173
      %v2183 = vunpack.c.l.b16 %v2160
      %v2184 = vunpack.c.l.b16 %v2161
      %v2185 = vunpack.c.l.b16 %v2162
      %v2186 = vunpack.c.l.b16 %v2163
      %v2187 = vunpack.c.l.b16 %v2164
      %v2188 = vunpack.c.l.b16 %v2165
      %v2189 = vunpack.c.l.b16 %v2166
      %v2190 = vunpack.c.l.b16 %v2167
      %v2191 = vpack.c.b16 %v2184, %v2183
      %v2192 = vpack.c.b16 %v2186, %v2185
      %v2193 = vpack.c.b16 %v2188, %v2187
      %v2194 = vpack.c.b16 %v2190, %v2189
      %v2200 = vsel %vm1172, %v2174, 0
      %2202 = vmatprep.subr.bf16.mxu0 0
      %2203 = vmatpush1.bf16.msra.mxu0 %v2191
      %2204 = vmatprep.subr.bf16.mxu0 0
      %2205 = vmatpush1.bf16.msra.mxu0 %v2192
      %2206 = vmatprep.subr.bf16.mxu0 0
      %2207 = vmatpush1.bf16.msra.mxu0 %v2193
      %2208 = vmatprep.subr.bf16.mxu0 0
      %2209 = vmatpush1.bf16.msra.mxu0 %v2194
      %2210 = vmatprep.subr.bf16.mxu0 0
      %2211 = vmatpush1.bf16.msra.mxu0 0
      %2212 = vmatprep.subr.bf16.mxu0 0
      %2213 = vmatpush1.bf16.msra.mxu0 0
      %2214 = vmatprep.subr.bf16.mxu0 0
      %2215 = vmatpush1.bf16.msra.mxu0 0
      %2216 = vmatprep.subr.bf16.mxu0 0
      %2217 = vmatpush1.bf16.msra.mxu0 0
      %2218 = vmatprep.subr.bf16.mxu0 0
      %2219 = vmatpush1.bf16.msra.mxu0 0
      %2220 = vmatprep.subr.bf16.mxu0 0
      %2221 = vmatpush1.bf16.msra.mxu0 0
      %2222 = vmatprep.subr.bf16.mxu0 0
      %2223 = vmatpush1.bf16.msra.mxu0 0
      %2224 = vmatprep.subr.bf16.mxu0 0
      %2225 = vmatpush1.bf16.msra.mxu0 0
      %2226 = vmatprep.subr.bf16.mxu0 0
      %2227 = vmatpush1.bf16.msra.mxu0 0
      %2228 = vmatprep.subr.bf16.mxu0 0
      %2229 = vmatpush1.bf16.msra.mxu0 0
      %2230 = vmatprep.subr.bf16.mxu0 0
      %2231 = vmatpush1.bf16.msra.mxu0 0
      %2232 = vmatprep.subr.bf16.mxu0 0
      %2233 = vmatpush1.bf16.msra.mxu0 0
      %2234 = vmatprep.mubr.bf16.mxu0 0
      %2235 = vmatmul.mubr.bf16.gmra.mrb[0].mxu0 %v2200
      %v2236 = vpop.f32.mrb[0].mxu0
      %v2237 = vadd.f32 0.0, %v2236
      %v2238 = vpop.f32.mrb[0].mxu0
      %v2239 = vpop.f32.mrb[0].mxu0
      %v2240 = vpop.f32.mrb[0].mxu0
      %2241 = vdwg.mxu0
      %v2250 = vunpack.c.l.b16 %v2151
      %v2251 = vunpack.c.l.b16 %v2152
      %v2252 = vunpack.c.l.b16 %v2153
      %v2253 = vunpack.c.l.b16 %v2154
      %v2254 = vunpack.c.l.b16 %v2155
      %v2255 = vunpack.c.l.b16 %v2156
      %v2256 = vunpack.c.l.b16 %v2157
      %v2257 = vunpack.c.l.b16 %v2158
      %v2258 = vpack.c.b16 %v2251, %v2250
      %v2259 = vpack.c.b16 %v2253, %v2252
      %v2260 = vpack.c.b16 %v2255, %v2254
      %v2261 = vpack.c.b16 %v2257, %v2256
      %v2266 = vsel %vm1172, %v2150, 0
      %2268 = vmatprep.subr.bf16.mxu0 0
      %2269 = vmatpush1.bf16.msra.mxu0 %v2258
      %2270 = vmatprep.subr.bf16.mxu0 0
      %2271 = vmatpush1.bf16.msra.mxu0 %v2259
      %2272 = vmatprep.subr.bf16.mxu0 0
      %2273 = vmatpush1.bf16.msra.mxu0 %v2260
      %2274 = vmatprep.subr.bf16.mxu0 0
      %2275 = vmatpush1.bf16.msra.mxu0 %v2261
      %2276 = vmatprep.subr.bf16.mxu0 0
      %2277 = vmatpush1.bf16.msra.mxu0 0
      %2278 = vmatprep.subr.bf16.mxu0 0
      %2279 = vmatpush1.bf16.msra.mxu0 0
      %2280 = vmatprep.subr.bf16.mxu0 0
      %2281 = vmatpush1.bf16.msra.mxu0 0
      %2282 = vmatprep.subr.bf16.mxu0 0
      %2283 = vmatpush1.bf16.msra.mxu0 0
      %2284 = vmatprep.subr.bf16.mxu0 0
      %2285 = vmatpush1.bf16.msra.mxu0 0
      %2286 = vmatprep.subr.bf16.mxu0 0
      %2287 = vmatpush1.bf16.msra.mxu0 0
      %2288 = vmatprep.subr.bf16.mxu0 0
      %2289 = vmatpush1.bf16.msra.mxu0 0
      %2290 = vmatprep.subr.bf16.mxu0 0
      %2291 = vmatpush1.bf16.msra.mxu0 0
      %2292 = vmatprep.subr.bf16.mxu0 0
      %2293 = vmatpush1.bf16.msra.mxu0 0
      %2294 = vmatprep.subr.bf16.mxu0 0
      %2295 = vmatpush1.bf16.msra.mxu0 0
      %2296 = vmatprep.subr.bf16.mxu0 0
      %2297 = vmatpush1.bf16.msra.mxu0 0
      %2298 = vmatprep.subr.bf16.mxu0 0
      %2299 = vmatpush1.bf16.msra.mxu0 0
      %2300 = vmatprep.mubr.bf16.mxu0 0
      %2301 = vmatmul.mubr.bf16.gmra.mrb[0].mxu0 %v2266
      %v2302 = vpop.f32.mrb[0].mxu0
      %v2303 = vadd.f32 %v2237, %v2302
      %v2304 = vpop.f32.mrb[0].mxu0
      %v2305 = vpop.f32.mrb[0].mxu0
      %v2306 = vpop.f32.mrb[0].mxu0
      %2307 = vdwg.mxu0
      %s2308 = scalar_lea.vmem %s9, 64
      %v2309 = vld [vmem:[%s2308] sm:$0xf]
      %v2310 = vld [vmem:[%s2308 + $0x4] sm:$0xf]
      %v2311 = vld [vmem:[%s2308 + $0x8] sm:$0xf]
      %v2312 = vld [vmem:[%s2308 + $0xc] sm:$0xf]
      %v2313 = vld [vmem:[%s2308 + $0x10] sm:$0xf]
      %v2314 = vld [vmem:[%s2308 + $0x14] sm:$0xf]
      %v2315 = vld [vmem:[%s2308 + $0x18] sm:$0xf]
      %v2316 = vld [vmem:[%s2308 + $0x1c] sm:$0xf]
      %v2318 = vrot.slane %v2150, 1
      %v2327 = vunpack.c.l.b16 %v2309
      %v2328 = vunpack.c.l.b16 %v2310
      %v2329 = vunpack.c.l.b16 %v2311
      %v2330 = vunpack.c.l.b16 %v2312
      %v2331 = vunpack.c.l.b16 %v2313
      %v2332 = vunpack.c.l.b16 %v2314
      %v2333 = vunpack.c.l.b16 %v2315
      %v2334 = vunpack.c.l.b16 %v2316
      %v2335 = vpack.c.b16 %v2328, %v2327
      %v2336 = vpack.c.b16 %v2330, %v2329
      %v2337 = vpack.c.b16 %v2332, %v2331
      %v2338 = vpack.c.b16 %v2334, %v2333
      %v2344 = vsel %vm1172, %v2318, 0
      %2346 = vmatprep.subr.bf16.mxu0 0
      %2347 = vmatpush1.bf16.msra.mxu0 %v2335
      %2348 = vmatprep.subr.bf16.mxu0 0
      %2349 = vmatpush1.bf16.msra.mxu0 %v2336
      %2350 = vmatprep.subr.bf16.mxu0 0
      %2351 = vmatpush1.bf16.msra.mxu0 %v2337
      %2352 = vmatprep.subr.bf16.mxu0 0
      %2353 = vmatpush1.bf16.msra.mxu0 %v2338
      %2354 = vmatprep.subr.bf16.mxu0 0
      %2355 = vmatpush1.bf16.msra.mxu0 0
      %2356 = vmatprep.subr.bf16.mxu0 0
      %2357 = vmatpush1.bf16.msra.mxu0 0
      %2358 = vmatprep.subr.bf16.mxu0 0
      %2359 = vmatpush1.bf16.msra.mxu0 0
      %2360 = vmatprep.subr.bf16.mxu0 0
      %2361 = vmatpush1.bf16.msra.mxu0 0
      %2362 = vmatprep.subr.bf16.mxu0 0
      %2363 = vmatpush1.bf16.msra.mxu0 0
      %2364 = vmatprep.subr.bf16.mxu0 0
      %2365 = vmatpush1.bf16.msra.mxu0 0
      %2366 = vmatprep.subr.bf16.mxu0 0
      %2367 = vmatpush1.bf16.msra.mxu0 0
      %2368 = vmatprep.subr.bf16.mxu0 0
      %2369 = vmatpush1.bf16.msra.mxu0 0
      %2370 = vmatprep.subr.bf16.mxu0 0
      %2371 = vmatpush1.bf16.msra.mxu0 0
      %2372 = vmatprep.subr.bf16.mxu0 0
      %2373 = vmatpush1.bf16.msra.mxu0 0
      %2374 = vmatprep.subr.bf16.mxu0 0
      %2375 = vmatpush1.bf16.msra.mxu0 0
      %2376 = vmatprep.subr.bf16.mxu0 0
      %2377 = vmatpush1.bf16.msra.mxu0 0
      %2378 = vmatprep.mubr.bf16.mxu0 0
      %2379 = vmatmul.mubr.bf16.gmra.mrb[0].mxu0 %v2344
      %v2380 = vpop.f32.mrb[0].mxu0
      %v2381 = vadd.f32 0.0, %v2380
      %v2382 = vpop.f32.mrb[0].mxu0
      %v2383 = vpop.f32.mrb[0].mxu0
      %v2384 = vpop.f32.mrb[0].mxu0
      %2385 = vdwg.mxu0
      %v2386 = vadd.f32 %v2303, %v2381
      %v2387 = vld [vmem:[%s10] sm:$0x1]
      %v2389 = vlaneseq
      %v2390 = vshrl.u32 %v2389, 7
      %v2391 = vsub.s32 0, %v2390
      %v2392 = vrot.slane %v2387, %v2391
      %v2394 = vadd.f32 %v2386, %v2392
      %v2396 = vrot.slane %v2394, 1
      %v2398 = vmax.f32 %v2394, %v2396
      %v2399 = vpack.c.bf16 %v2398, %v2398
      %v2400 = vld [vmem:[%s11] sm:$0xf]
      %v2401 = vld [vmem:[%s11 + $0x4] sm:$0xf]
      %v2402 = vld [vmem:[%s11 + $0x8] sm:$0xf]
      %v2403 = vld [vmem:[%s11 + $0xc] sm:$0xf]
      %v2404 = vld [vmem:[%s11 + $0x10] sm:$0xf]
      %v2405 = vld [vmem:[%s11 + $0x14] sm:$0xf]
      %v2406 = vld [vmem:[%s11 + $0x18] sm:$0xf]
      %v2407 = vld [vmem:[%s11 + $0x1c] sm:$0xf]
      %v2416 = vunpack.c.l.b16 %v2400
      %v2417 = vunpack.c.l.b16 %v2401
      %v2418 = vunpack.c.l.b16 %v2402
      %v2419 = vunpack.c.l.b16 %v2403
      %v2420 = vunpack.c.l.b16 %v2404
      %v2421 = vunpack.c.l.b16 %v2405
      %v2422 = vunpack.c.l.b16 %v2406
      %v2423 = vunpack.c.l.b16 %v2407
      %v2424 = vpack.c.b16 %v2417, %v2416
      %v2425 = vpack.c.b16 %v2419, %v2418
      %v2426 = vpack.c.b16 %v2421, %v2420
      %v2427 = vpack.c.b16 %v2423, %v2422
      %v2433 = vsel %vm1172, %v2399, 0
      %2435 = vmatprep.subr.bf16.mxu0 0
      %2436 = vmatpush1.bf16.msra.mxu0 %v2424
      %2437 = vmatprep.subr.bf16.mxu0 0
      %2438 = vmatpush1.bf16.msra.mxu0 %v2425
      %2439 = vmatprep.subr.bf16.mxu0 0
      %2440 = vmatpush1.bf16.msra.mxu0 %v2426
      %2441 = vmatprep.subr.bf16.mxu0 0
      %2442 = vmatpush1.bf16.msra.mxu0 %v2427
      %2443 = vmatprep.subr.bf16.mxu0 0
      %2444 = vmatpush1.bf16.msra.mxu0 0
      %2445 = vmatprep.subr.bf16.mxu0 0
      %2446 = vmatpush1.bf16.msra.mxu0 0
      %2447 = vmatprep.subr.bf16.mxu0 0
      %2448 = vmatpush1.bf16.msra.mxu0 0
      %2449 = vmatprep.subr.bf16.mxu0 0
      %2450 = vmatpush1.bf16.msra.mxu0 0
      %2451 = vmatprep.subr.bf16.mxu0 0
      %2452 = vmatpush1.bf16.msra.mxu0 0
      %2453 = vmatprep.subr.bf16.mxu0 0
      %2454 = vmatpush1.bf16.msra.mxu0 0
      %2455 = vmatprep.subr.bf16.mxu0 0
      %2456 = vmatpush1.bf16.msra.mxu0 0
      %2457 = vmatprep.subr.bf16.mxu0 0
      %2458 = vmatpush1.bf16.msra.mxu0 0
      %2459 = vmatprep.subr.bf16.mxu0 0
      %2460 = vmatpush1.bf16.msra.mxu0 0
      %2461 = vmatprep.subr.bf16.mxu0 0
      %2462 = vmatpush1.bf16.msra.mxu0 0
      %2463 = vmatprep.subr.bf16.mxu0 0
      %2464 = vmatpush1.bf16.msra.mxu0 0
      %2465 = vmatprep.subr.bf16.mxu0 0
      %2466 = vmatpush1.bf16.msra.mxu0 0
      %2467 = vmatprep.mubr.bf16.mxu0 0
      %2468 = vmatmul.mubr.bf16.gmra.mrb[0].mxu0 %v2433
      %v2469 = vpop.f32.mrb[0].mxu0
      %v2470 = vadd.f32 0.0, %v2469
      %v2471 = vpop.f32.mrb[0].mxu0
      %v2472 = vpop.f32.mrb[0].mxu0
      %v2473 = vpop.f32.mrb[0].mxu0
      %2474 = vdwg.mxu0
      %s2475 = scalar_lea.vmem %s11, 32
      %v2476 = vld [vmem:[%s2475] sm:$0xf]
      %v2477 = vld [vmem:[%s2475 + $0x4] sm:$0xf]
      %v2478 = vld [vmem:[%s2475 + $0x8] sm:$0xf]
      %v2479 = vld [vmem:[%s2475 + $0xc] sm:$0xf]
      %v2480 = vld [vmem:[%s2475 + $0x10] sm:$0xf]
      %v2481 = vld [vmem:[%s2475 + $0x14] sm:$0xf]
      %v2482 = vld [vmem:[%s2475 + $0x18] sm:$0xf]
      %v2483 = vld [vmem:[%s2475 + $0x1c] sm:$0xf]
      %v2492 = vunpack.c.l.b16 %v2476
      %v2493 = vunpack.c.l.b16 %v2477
      %v2494 = vunpack.c.l.b16 %v2478
      %v2495 = vunpack.c.l.b16 %v2479
      %v2496 = vunpack.c.l.b16 %v2480
      %v2497 = vunpack.c.l.b16 %v2481
      %v2498 = vunpack.c.l.b16 %v2482
      %v2499 = vunpack.c.l.b16 %v2483
      %v2500 = vpack.c.b16 %v2493, %v2492
      %v2501 = vpack.c.b16 %v2495, %v2494
      %v2502 = vpack.c.b16 %v2497, %v2496
      %v2503 = vpack.c.b16 %v2499, %v2498
      %2508 = vmatprep.subr.bf16.mxu0 0
      %2509 = vmatpush1.bf16.msra.mxu0 %v2500
      %2510 = vmatprep.subr.bf16.mxu0 0
      %2511 = vmatpush1.bf16.msra.mxu0 %v2501
      %2512 = vmatprep.subr.bf16.mxu0 0
      %2513 = vmatpush1.bf16.msra.mxu0 %v2502
      %2514 = vmatprep.subr.bf16.mxu0 0
      %2515 = vmatpush1.bf16.msra.mxu0 %v2503
      %2516 = vmatprep.subr.bf16.mxu0 0
      %2517 = vmatpush1.bf16.msra.mxu0 0
      %2518 = vmatprep.subr.bf16.mxu0 0
      %2519 = vmatpush1.bf16.msra.mxu0 0
      %2520 = vmatprep.subr.bf16.mxu0 0
      %2521 = vmatpush1.bf16.msra.mxu0 0
      %2522 = vmatprep.subr.bf16.mxu0 0
      %2523 = vmatpush1.bf16.msra.mxu0 0
      %2524 = vmatprep.subr.bf16.mxu0 0
      %2525 = vmatpush1.bf16.msra.mxu0 0
      %2526 = vmatprep.subr.bf16.mxu0 0
      %2527 = vmatpush1.bf16.msra.mxu0 0
      %2528 = vmatprep.subr.bf16.mxu0 0
      %2529 = vmatpush1.bf16.msra.mxu0 0
      %2530 = vmatprep.subr.bf16.mxu0 0
      %2531 = vmatpush1.bf16.msra.mxu0 0
      %2532 = vmatprep.subr.bf16.mxu0 0
      %2533 = vmatpush1.bf16.msra.mxu0 0
      %2534 = vmatprep.subr.bf16.mxu0 0
      %2535 = vmatpush1.bf16.msra.mxu0 0
      %2536 = vmatprep.subr.bf16.mxu0 0
      %2537 = vmatpush1.bf16.msra.mxu0 0
      %2538 = vmatprep.subr.bf16.mxu0 0
      %2539 = vmatpush1.bf16.msra.mxu0 0
      %2540 = vmatprep.mubr.bf16.mxu0 0
      %2541 = vmatmul.mubr.bf16.gmra.mrb[0].mxu0 %v2433
      %v2542 = vpop.f32.mrb[0].mxu0
      %v2543 = vadd.f32 0.0, %v2542
      %v2544 = vpop.f32.mrb[0].mxu0
      %v2545 = vpop.f32.mrb[0].mxu0
      %v2546 = vpop.f32.mrb[0].mxu0
      %2547 = vdwg.mxu0
      %v2548 = vmax.f32 %v2470, %v2543
      %v2549 = vmax.f32 %v2548, 0.0
      %v2550 = vmul.f32 %v2549, %v2549
      %vm2551 = vcmask 253952
      %v2552 = vsel %vm2551, %v2550, 0.0
      %2553 = vadd.xlane.f32.xlu0 %v2552
      %v2554 = vpop.xlane.xlu0 %2553
      %v2555 = vrot.slane %v2554, 4
      %v2556 = vadd.f32 %v2554, %v2555
      %v2557 = vrot.slane %v2556, 2
      %v2558 = vadd.f32 %v2556, %v2557
      %v2559 = vrot.slane %v2558, 1
      %v2560 = vadd.f32 %v2558, %v2559
      %s2561 = vtos %v2560
      %s2562 = smax.f32 %s2561, 1e-24
      %v2563 = vstv %s2562
      %v2564 = vrsqrt.pop %v2563
      %s2565 = vtos %v2564
      %v2566 = vstv %s2565
      %v2567 = vmul.f32 %v2549, %v2566
      %2568 = vst.msk [vmem:[%s414] sm:$0x1] %vm2551, %v2567
      %s2569 = scalar_lea.vmem %s410, 16
      %v2570 = vld [vmem:[%s2569] sm:$0xf]
      %v2571 = vld [vmem:[%s2569 + $0x4] sm:$0xf]
      %v2572 = vld [vmem:[%s2569 + $0x8] sm:$0xf]
      %v2573 = vld [vmem:[%s1] sm:$0xff]
      %v2574 = vld [vmem:[%s1 + $0x8] sm:$0xff]
      %v2575 = vld [vmem:[%s1 + $0x10] sm:$0xff]
      %v2576 = vld [vmem:[%s1 + $0x18] sm:$0x33]
      %v2577 = vld [vmem:[%s2569 + $0xc] sm:$0x1]
      %v2578 = vld [vmem:[%s424] sm:$0xff]
      %v2579 = vld [vmem:[%s424 + $0x8] sm:$0xff]
      %v2580 = vld [vmem:[%s424 + $0x10] sm:$0xff]
      %v2581 = vld [vmem:[%s424 + $0x18] sm:$0x33]
      %v2586 = vunpack.c.l.b16 %v2570
      %v2587 = vunpack.c.l.b16 %v2571
      %v2588 = vunpack.c.l.b16 %v2572
      %v2589 = vunpack.c.l.b16 %v2577
      %v2590 = vpack.c.b16 %v2587, %v2586
      %v2591 = vpack.c.b16 %v2589, %v2588
      %v2593 = vshrl.u32 %v2590, 16
      %v2595 = vshll.u32 %v2590, 16
      %v2597 = vrot.slane %v2595, 1
      %v2598 = vor.u32 %v2593, %v2597
      %v2600 = vshll.u32 %v2591, 16
      %v2602 = vrot.slane %v2600, 1
      %v2603 = vsel %vm439, %v2598, %v2602
      %v2604 = vshrl.u32 %v2591, 16
      %v2606 = vor.u32 %v2604, %v2602
      %v2611 = vunpack.c.l.b16 %v2578
      %v2612 = vunpack.c.h.b16 %v2578
      %v2613 = vunpack.c.l.b16 %v2579
      %v2614 = vunpack.c.h.b16 %v2579
      %v2615 = vunpack.c.l.b16 %v2580
      %v2616 = vunpack.c.h.b16 %v2580
      %v2617 = vunpack.c.l.b16 %v2581
      %v2618 = vunpack.c.h.b16 %v2581
      %v2619 = vpack.c.b16 %v2613, %v2611
      %v2620 = vpack.c.b16 %v2614, %v2612
      %v2621 = vpack.c.b16 %v2617, %v2615
      %v2622 = vpack.c.b16 %v2618, %v2616
      %v2626 = vsel %vm473, %v2603, 0
      %v2629 = vsel %vm473, %v2606, 0
      %v2632 = vsel %vm480, %v2621, 0
      %v2635 = vsel %vm480, %v2622, 0
      %2637 = vmatprep.subr.bf16.mxu0 %v2620
      %2638 = vmatpush1.bf16.msra.mxu0 %v2619
      %2639 = vmatprep.subr.bf16.mxu0 %v2635
      %2640 = vmatpush1.bf16.msra.mxu0 %v2632
      %2641 = vmatprep.subr.bf16.mxu0 0
      %2642 = vmatpush1.bf16.msra.mxu0 0
      %2643 = vmatprep.subr.bf16.mxu0 0
      %2644 = vmatpush1.bf16.msra.mxu0 0
      %2645 = vmatprep.subr.bf16.mxu0 0
      %2646 = vmatpush1.bf16.msra.mxu0 0
      %2647 = vmatprep.subr.bf16.mxu0 0
      %2648 = vmatpush1.bf16.msra.mxu0 0
      %2649 = vmatprep.subr.bf16.mxu0 0
      %2650 = vmatpush1.bf16.msra.mxu0 0
      %2651 = vmatprep.subr.bf16.mxu0 0
      %2652 = vmatpush1.bf16.msra.mxu0 0
      %2653 = vmatprep.subr.bf16.mxu0 0
      %2654 = vmatpush1.bf16.msra.mxu0 0
      %2655 = vmatprep.subr.bf16.mxu0 0
      %2656 = vmatpush1.bf16.msra.mxu0 0
      %2657 = vmatprep.subr.bf16.mxu0 0
      %2658 = vmatpush1.bf16.msra.mxu0 0
      %2659 = vmatprep.subr.bf16.mxu0 0
      %2660 = vmatpush1.bf16.msra.mxu0 0
      %2661 = vmatprep.subr.bf16.mxu0 0
      %2662 = vmatpush1.bf16.msra.mxu0 0
      %2663 = vmatprep.subr.bf16.mxu0 0
      %2664 = vmatpush1.bf16.msra.mxu0 0
      %2665 = vmatprep.subr.bf16.mxu0 0
      %2666 = vmatpush1.bf16.msra.mxu0 0
      %2667 = vmatprep.subr.bf16.mxu0 0
      %2668 = vmatpush1.bf16.msra.mxu0 0
      %2669 = vmatprep.mubr.bf16.mxu0 0
      %2670 = vmatmul.mubr.bf16.gmra.mrb[0].mxu0 %v2626
      %v2671 = vpop.f32.mrb[0].mxu0
      %v2672 = vadd.f32 0.0, %v2671
      %v2673 = vpop.f32.mrb[0].mxu0
      %v2674 = vadd.f32 0.0, %v2673
      %v2675 = vpop.f32.mrb[0].mxu0
      %v2676 = vadd.f32 0.0, %v2675
      %v2677 = vpop.f32.mrb[0].mxu0
      %v2678 = vadd.f32 0.0, %v2677
      %2679 = vmatprep.mubr.bf16.mxu0 0
      %2680 = vmatmul.mubr.bf16.gmra.mrb[0].mxu0 %v2629
      %v2681 = vpop.f32.mrb[0].mxu0
      %v2682 = vadd.f32 0.0, %v2681
      %v2683 = vpop.f32.mrb[0].mxu0
      %v2684 = vadd.f32 0.0, %v2683
      %v2685 = vpop.f32.mrb[0].mxu0
      %v2686 = vpop.f32.mrb[0].mxu0
      %2687 = vdwg.mxu0
      %v2688 = vpack.c.b16 %v2588, %v2588
      %v2693 = vunpack.c.l.b16 %v2573
      %v2694 = vunpack.c.h.b16 %v2573
      %v2695 = vunpack.c.l.b16 %v2574
      %v2696 = vunpack.c.h.b16 %v2574
      %v2697 = vunpack.c.l.b16 %v2575
      %v2698 = vunpack.c.h.b16 %v2575
      %v2699 = vunpack.c.l.b16 %v2576
      %v2700 = vunpack.c.h.b16 %v2576
      %v2701 = vpack.c.b16 %v2695, %v2693
      %v2702 = vpack.c.b16 %v2696, %v2694
      %v2703 = vpack.c.b16 %v2699, %v2697
      %v2704 = vpack.c.b16 %v2700, %v2698
      %v2707 = vsel %vm473, %v2590, 0
      %v2710 = vsel %vm473, %v2688, 0
      %v2713 = vsel %vm480, %v2703, 0
      %v2716 = vsel %vm480, %v2704, 0
      %2718 = vmatprep.subr.bf16.mxu0 %v2702
      %2719 = vmatpush1.bf16.msra.mxu0 %v2701
      %2720 = vmatprep.subr.bf16.mxu0 %v2716
      %2721 = vmatpush1.bf16.msra.mxu0 %v2713
      %2722 = vmatprep.subr.bf16.mxu0 0
      %2723 = vmatpush1.bf16.msra.mxu0 0
      %2724 = vmatprep.subr.bf16.mxu0 0
      %2725 = vmatpush1.bf16.msra.mxu0 0
      %2726 = vmatprep.subr.bf16.mxu0 0
      %2727 = vmatpush1.bf16.msra.mxu0 0
      %2728 = vmatprep.subr.bf16.mxu0 0
      %2729 = vmatpush1.bf16.msra.mxu0 0
      %2730 = vmatprep.subr.bf16.mxu0 0
      %2731 = vmatpush1.bf16.msra.mxu0 0
      %2732 = vmatprep.subr.bf16.mxu0 0
      %2733 = vmatpush1.bf16.msra.mxu0 0
      %2734 = vmatprep.subr.bf16.mxu0 0
      %2735 = vmatpush1.bf16.msra.mxu0 0
      %2736 = vmatprep.subr.bf16.mxu0 0
      %2737 = vmatpush1.bf16.msra.mxu0 0
      %2738 = vmatprep.subr.bf16.mxu0 0
      %2739 = vmatpush1.bf16.msra.mxu0 0
      %2740 = vmatprep.subr.bf16.mxu0 0
      %2741 = vmatpush1.bf16.msra.mxu0 0
      %2742 = vmatprep.subr.bf16.mxu0 0
      %2743 = vmatpush1.bf16.msra.mxu0 0
      %2744 = vmatprep.subr.bf16.mxu0 0
      %2745 = vmatpush1.bf16.msra.mxu0 0
      %2746 = vmatprep.subr.bf16.mxu0 0
      %2747 = vmatpush1.bf16.msra.mxu0 0
      %2748 = vmatprep.subr.bf16.mxu0 0
      %2749 = vmatpush1.bf16.msra.mxu0 0
      %2750 = vmatprep.mubr.bf16.mxu0 0
      %2751 = vmatmul.mubr.bf16.gmra.mrb[0].mxu0 %v2707
      %v2752 = vpop.f32.mrb[0].mxu0
      %v2753 = vadd.f32 %v2672, %v2752
      %v2754 = vpop.f32.mrb[0].mxu0
      %v2755 = vadd.f32 %v2674, %v2754
      %v2756 = vpop.f32.mrb[0].mxu0
      %v2757 = vadd.f32 %v2676, %v2756
      %v2758 = vpop.f32.mrb[0].mxu0
      %v2759 = vadd.f32 %v2678, %v2758
      %2760 = vmatprep.mubr.bf16.mxu0 0
      %2761 = vmatmul.mubr.bf16.gmra.mrb[0].mxu0 %v2710
      %v2762 = vpop.f32.mrb[0].mxu0
      %v2763 = vadd.f32 %v2682, %v2762
      %v2764 = vpop.f32.mrb[0].mxu0
      %v2765 = vadd.f32 %v2684, %v2764
      %v2766 = vpop.f32.mrb[0].mxu0
      %v2767 = vpop.f32.mrb[0].mxu0
      %2768 = vdwg.mxu0
      %v2769 = vld [vmem:[%s2569] sm:$0xe]
      %v2770 = vld [vmem:[%s620] sm:$0xff]
      %v2771 = vld [vmem:[%s620 + $0x8] sm:$0xff]
      %v2772 = vld [vmem:[%s620 + $0x10] sm:$0xff]
      %v2773 = vld [vmem:[%s620 + $0x18] sm:$0x33]
      %v2775 = vunpack.c.l.b16 %v2769
      %v2776 = vpack.c.b16 %v2587, %v2775
      %v2777 = vrot.slane %v2776, 1
      %v2778 = vrot.slane %v2591, 1
      %v2779 = vsel %vm628, %v2777, %v2778
      %v2784 = vunpack.c.l.b16 %v2770
      %v2785 = vunpack.c.h.b16 %v2770
      %v2786 = vunpack.c.l.b16 %v2771
      %v2787 = vunpack.c.h.b16 %v2771
      %v2788 = vunpack.c.l.b16 %v2772
      %v2789 = vunpack.c.h.b16 %v2772
      %v2790 = vunpack.c.l.b16 %v2773
      %v2791 = vunpack.c.h.b16 %v2773
      %v2792 = vpack.c.b16 %v2786, %v2784
      %v2793 = vpack.c.b16 %v2787, %v2785
      %v2794 = vpack.c.b16 %v2790, %v2788
      %v2795 = vpack.c.b16 %v2791, %v2789
      %v2799 = vsel %vm473, %v2779, 0
      %v2802 = vsel %vm473, %v2778, 0
      %v2805 = vsel %vm480, %v2794, 0
      %v2808 = vsel %vm480, %v2795, 0
      %2810 = vmatprep.subr.bf16.mxu0 %v2793
      %2811 = vmatpush1.bf16.msra.mxu0 %v2792
      %2812 = vmatprep.subr.bf16.mxu0 %v2808
      %2813 = vmatpush1.bf16.msra.mxu0 %v2805
      %2814 = vmatprep.subr.bf16.mxu0 0
      %2815 = vmatpush1.bf16.msra.mxu0 0
      %2816 = vmatprep.subr.bf16.mxu0 0
      %2817 = vmatpush1.bf16.msra.mxu0 0
      %2818 = vmatprep.subr.bf16.mxu0 0
      %2819 = vmatpush1.bf16.msra.mxu0 0
      %2820 = vmatprep.subr.bf16.mxu0 0
      %2821 = vmatpush1.bf16.msra.mxu0 0
      %2822 = vmatprep.subr.bf16.mxu0 0
      %2823 = vmatpush1.bf16.msra.mxu0 0
      %2824 = vmatprep.subr.bf16.mxu0 0
      %2825 = vmatpush1.bf16.msra.mxu0 0
      %2826 = vmatprep.subr.bf16.mxu0 0
      %2827 = vmatpush1.bf16.msra.mxu0 0
      %2828 = vmatprep.subr.bf16.mxu0 0
      %2829 = vmatpush1.bf16.msra.mxu0 0
      %2830 = vmatprep.subr.bf16.mxu0 0
      %2831 = vmatpush1.bf16.msra.mxu0 0
      %2832 = vmatprep.subr.bf16.mxu0 0
      %2833 = vmatpush1.bf16.msra.mxu0 0
      %2834 = vmatprep.subr.bf16.mxu0 0
      %2835 = vmatpush1.bf16.msra.mxu0 0
      %2836 = vmatprep.subr.bf16.mxu0 0
      %2837 = vmatpush1.bf16.msra.mxu0 0
      %2838 = vmatprep.subr.bf16.mxu0 0
      %2839 = vmatpush1.bf16.msra.mxu0 0
      %2840 = vmatprep.subr.bf16.mxu0 0
      %2841 = vmatpush1.bf16.msra.mxu0 0
      %2842 = vmatprep.mubr.bf16.mxu0 0
      %2843 = vmatmul.mubr.bf16.gmra.mrb[0].mxu0 %v2799
      %v2844 = vpop.f32.mrb[0].mxu0
      %v2845 = vadd.f32 0.0, %v2844
      %v2846 = vpop.f32.mrb[0].mxu0
      %v2847 = vadd.f32 0.0, %v2846
      %v2848 = vpop.f32.mrb[0].mxu0
      %v2849 = vadd.f32 0.0, %v2848
      %v2850 = vpop.f32.mrb[0].mxu0
      %v2851 = vadd.f32 0.0, %v2850
      %2852 = vmatprep.mubr.bf16.mxu0 0
      %2853 = vmatmul.mubr.bf16.gmra.mrb[0].mxu0 %v2802
      %v2854 = vpop.f32.mrb[0].mxu0
      %v2855 = vadd.f32 0.0, %v2854
      %v2856 = vpop.f32.mrb[0].mxu0
      %v2857 = vadd.f32 0.0, %v2856
      %v2858 = vpop.f32.mrb[0].mxu0
      %v2859 = vpop.f32.mrb[0].mxu0
      %2860 = vdwg.mxu0
      %v2861 = vadd.f32 %v2753, %v2845
      %v2862 = vadd.f32 %v2755, %v2847
      %v2863 = vadd.f32 %v2757, %v2849
      %v2864 = vadd.f32 %v2759, %v2851
      %v2865 = vadd.f32 %v2763, %v2855
      %v2866 = vadd.f32 %v2765, %v2857
      %v2867 = vld [vmem:[%s2569 + $0xc] sm:$0x3]
      %v2868 = vld [vmem:[%s720] sm:$0xff]
      %v2869 = vld [vmem:[%s720 + $0x8] sm:$0xff]
      %v2870 = vld [vmem:[%s720 + $0x10] sm:$0xff]
      %v2871 = vld [vmem:[%s720 + $0x18] sm:$0x33]
      %v2873 = vunpack.c.l.b16 %v2867
      %v2874 = vpack.c.b16 %v2873, %v2588
      %v2876 = vshrl.u32 %v2776, 16
      %v2878 = vrot.slane %v2876, 1
      %v2879 = vshll.u32 %v2776, 16
      %v2881 = vrot.slane %v2879, 2
      %v2882 = vor.u32 %v2878, %v2881
      %v2884 = vshrl.u32 %v2874, 16
      %v2886 = vrot.slane %v2884, 1
      %v2887 = vshll.u32 %v2874, 16
      %v2889 = vrot.slane %v2887, 2
      %v2890 = vor.u32 %v2886, %v2889
      %v2891 = vsel %vm728, %v2882, %v2890
      %v2896 = vunpack.c.l.b16 %v2868
      %v2897 = vunpack.c.h.b16 %v2868
      %v2898 = vunpack.c.l.b16 %v2869
      %v2899 = vunpack.c.h.b16 %v2869
      %v2900 = vunpack.c.l.b16 %v2870
      %v2901 = vunpack.c.h.b16 %v2870
      %v2902 = vunpack.c.l.b16 %v2871
      %v2903 = vunpack.c.h.b16 %v2871
      %v2904 = vpack.c.b16 %v2898, %v2896
      %v2905 = vpack.c.b16 %v2899, %v2897
      %v2906 = vpack.c.b16 %v2902, %v2900
      %v2907 = vpack.c.b16 %v2903, %v2901
      %v2911 = vsel %vm473, %v2891, 0
      %v2914 = vsel %vm473, %v2890, 0
      %v2917 = vsel %vm480, %v2906, 0
      %v2920 = vsel %vm480, %v2907, 0
      %2922 = vmatprep.subr.bf16.mxu0 %v2905
      %2923 = vmatpush1.bf16.msra.mxu0 %v2904
      %2924 = vmatprep.subr.bf16.mxu0 %v2920
      %2925 = vmatpush1.bf16.msra.mxu0 %v2917
      %2926 = vmatprep.subr.bf16.mxu0 0
      %2927 = vmatpush1.bf16.msra.mxu0 0
      %2928 = vmatprep.subr.bf16.mxu0 0
      %2929 = vmatpush1.bf16.msra.mxu0 0
      %2930 = vmatprep.subr.bf16.mxu0 0
      %2931 = vmatpush1.bf16.msra.mxu0 0
      %2932 = vmatprep.subr.bf16.mxu0 0
      %2933 = vmatpush1.bf16.msra.mxu0 0
      %2934 = vmatprep.subr.bf16.mxu0 0
      %2935 = vmatpush1.bf16.msra.mxu0 0
      %2936 = vmatprep.subr.bf16.mxu0 0
      %2937 = vmatpush1.bf16.msra.mxu0 0
      %2938 = vmatprep.subr.bf16.mxu0 0
      %2939 = vmatpush1.bf16.msra.mxu0 0
      %2940 = vmatprep.subr.bf16.mxu0 0
      %2941 = vmatpush1.bf16.msra.mxu0 0
      %2942 = vmatprep.subr.bf16.mxu0 0
      %2943 = vmatpush1.bf16.msra.mxu0 0
      %2944 = vmatprep.subr.bf16.mxu0 0
      %2945 = vmatpush1.bf16.msra.mxu0 0
      %2946 = vmatprep.subr.bf16.mxu0 0
      %2947 = vmatpush1.bf16.msra.mxu0 0
      %2948 = vmatprep.subr.bf16.mxu0 0
      %2949 = vmatpush1.bf16.msra.mxu0 0
      %2950 = vmatprep.subr.bf16.mxu0 0
      %2951 = vmatpush1.bf16.msra.mxu0 0
      %2952 = vmatprep.subr.bf16.mxu0 0
      %2953 = vmatpush1.bf16.msra.mxu0 0
      %2954 = vmatprep.mubr.bf16.mxu0 0
      %2955 = vmatmul.mubr.bf16.gmra.mrb[0].mxu0 %v2911
      %v2956 = vpop.f32.mrb[0].mxu0
      %v2957 = vadd.f32 0.0, %v2956
      %v2958 = vpop.f32.mrb[0].mxu0
      %v2959 = vadd.f32 0.0, %v2958
      %v2960 = vpop.f32.mrb[0].mxu0
      %v2961 = vadd.f32 0.0, %v2960
      %v2962 = vpop.f32.mrb[0].mxu0
      %v2963 = vadd.f32 0.0, %v2962
      %2964 = vmatprep.mubr.bf16.mxu0 0
      %2965 = vmatmul.mubr.bf16.gmra.mrb[0].mxu0 %v2914
      %v2966 = vpop.f32.mrb[0].mxu0
      %v2967 = vadd.f32 0.0, %v2966
      %v2968 = vpop.f32.mrb[0].mxu0
      %v2969 = vadd.f32 0.0, %v2968
      %v2970 = vpop.f32.mrb[0].mxu0
      %v2971 = vpop.f32.mrb[0].mxu0
      %2972 = vdwg.mxu0
      %v2973 = vadd.f32 %v2861, %v2957
      %v2974 = vadd.f32 %v2862, %v2959
      %v2975 = vadd.f32 %v2863, %v2961
      %v2976 = vadd.f32 %v2864, %v2963
      %v2977 = vadd.f32 %v2865, %v2967
      %v2978 = vadd.f32 %v2866, %v2969
      %v2979 = vld [vmem:[%s2569] sm:$0xc]
      %v2980 = vld [vmem:[%s834] sm:$0xff]
      %v2981 = vld [vmem:[%s834 + $0x8] sm:$0xff]
      %v2982 = vld [vmem:[%s834 + $0x10] sm:$0xff]
      %v2983 = vld [vmem:[%s834 + $0x18] sm:$0x33]
      %v2985 = vunpack.c.l.b16 %v2979
      %v2986 = vpack.c.b16 %v2587, %v2985
      %v2987 = vrot.slane %v2986, 2
      %v2988 = vrot.slane %v2874, 2
      %v2989 = vsel %vm842, %v2987, %v2988
      %v2994 = vunpack.c.l.b16 %v2980
      %v2995 = vunpack.c.h.b16 %v2980
      %v2996 = vunpack.c.l.b16 %v2981
      %v2997 = vunpack.c.h.b16 %v2981
      %v2998 = vunpack.c.l.b16 %v2982
      %v2999 = vunpack.c.h.b16 %v2982
      %v3000 = vunpack.c.l.b16 %v2983
      %v3001 = vunpack.c.h.b16 %v2983
      %v3002 = vpack.c.b16 %v2996, %v2994
      %v3003 = vpack.c.b16 %v2997, %v2995
      %v3004 = vpack.c.b16 %v3000, %v2998
      %v3005 = vpack.c.b16 %v3001, %v2999
      %v3009 = vsel %vm473, %v2989, 0
      %v3012 = vsel %vm473, %v2988, 0
      %v3015 = vsel %vm480, %v3004, 0
      %v3018 = vsel %vm480, %v3005, 0
      %3020 = vmatprep.subr.bf16.mxu0 %v3003
      %3021 = vmatpush1.bf16.msra.mxu0 %v3002
      %3022 = vmatprep.subr.bf16.mxu0 %v3018
      %3023 = vmatpush1.bf16.msra.mxu0 %v3015
      %3024 = vmatprep.subr.bf16.mxu0 0
      %3025 = vmatpush1.bf16.msra.mxu0 0
      %3026 = vmatprep.subr.bf16.mxu0 0
      %3027 = vmatpush1.bf16.msra.mxu0 0
      %3028 = vmatprep.subr.bf16.mxu0 0
      %3029 = vmatpush1.bf16.msra.mxu0 0
      %3030 = vmatprep.subr.bf16.mxu0 0
      %3031 = vmatpush1.bf16.msra.mxu0 0
      %3032 = vmatprep.subr.bf16.mxu0 0
      %3033 = vmatpush1.bf16.msra.mxu0 0
      %3034 = vmatprep.subr.bf16.mxu0 0
      %3035 = vmatpush1.bf16.msra.mxu0 0
      %3036 = vmatprep.subr.bf16.mxu0 0
      %3037 = vmatpush1.bf16.msra.mxu0 0
      %3038 = vmatprep.subr.bf16.mxu0 0
      %3039 = vmatpush1.bf16.msra.mxu0 0
      %3040 = vmatprep.subr.bf16.mxu0 0
      %3041 = vmatpush1.bf16.msra.mxu0 0
      %3042 = vmatprep.subr.bf16.mxu0 0
      %3043 = vmatpush1.bf16.msra.mxu0 0
      %3044 = vmatprep.subr.bf16.mxu0 0
      %3045 = vmatpush1.bf16.msra.mxu0 0
      %3046 = vmatprep.subr.bf16.mxu0 0
      %3047 = vmatpush1.bf16.msra.mxu0 0
      %3048 = vmatprep.subr.bf16.mxu0 0
      %3049 = vmatpush1.bf16.msra.mxu0 0
      %3050 = vmatprep.subr.bf16.mxu0 0
      %3051 = vmatpush1.bf16.msra.mxu0 0
      %3052 = vmatprep.mubr.bf16.mxu0 0
      %3053 = vmatmul.mubr.bf16.gmra.mrb[0].mxu0 %v3009
      %v3054 = vpop.f32.mrb[0].mxu0
      %v3055 = vadd.f32 0.0, %v3054
      %v3056 = vpop.f32.mrb[0].mxu0
      %v3057 = vadd.f32 0.0, %v3056
      %v3058 = vpop.f32.mrb[0].mxu0
      %v3059 = vadd.f32 0.0, %v3058
      %v3060 = vpop.f32.mrb[0].mxu0
      %v3061 = vadd.f32 0.0, %v3060
      %3062 = vmatprep.mubr.bf16.mxu0 0
      %3063 = vmatmul.mubr.bf16.gmra.mrb[0].mxu0 %v3012
      %v3064 = vpop.f32.mrb[0].mxu0
      %v3065 = vadd.f32 0.0, %v3064
      %v3066 = vpop.f32.mrb[0].mxu0
      %v3067 = vadd.f32 0.0, %v3066
      %v3068 = vpop.f32.mrb[0].mxu0
      %v3069 = vpop.f32.mrb[0].mxu0
      %3070 = vdwg.mxu0
      %v3071 = vadd.f32 %v2973, %v3055
      %v3072 = vadd.f32 %v2974, %v3057
      %v3073 = vadd.f32 %v2975, %v3059
      %v3074 = vadd.f32 %v2976, %v3061
      %v3075 = vadd.f32 %v2977, %v3065
      %v3076 = vadd.f32 %v2978, %v3067
      %v3077 = vld [vmem:[%s2] sm:$0x3]
      %v3079 = vlaneseq
      %v3080 = vshrl.u32 %v3079, 7
      %v3081 = vsub.s32 0, %v3080
      %v3082 = vrot.slane %v3077, %v3081
      %v3083 = vlaneseq
      %v3084 = vshrl.u32 %v3083, 7
      %v3085 = vsub.s32 1, %v3084
      %v3086 = vrot.slane %v3077, %v3085
      %v3089 = vadd.f32 %v3071, %v3082
      %v3090 = vadd.f32 %v3072, %v3086
      %v3091 = vadd.f32 %v3073, %v3082
      %v3092 = vadd.f32 %v3074, %v3086
      %v3093 = vadd.f32 %v3075, %v3082
      %v3094 = vadd.f32 %v3076, %v3086
      %v3095 = vpack.c.bf16 %v3091, %v3089
      %v3096 = vpack.c.bf16 %v3092, %v3090
      %v3097 = vpack.c.bf16 %v3093, %v3093
      %v3098 = vpack.c.bf16 %v3094, %v3094
      %v3099 = vld [vmem:[%s3] sm:$0xf]
      %v3100 = vld [vmem:[%s3 + $0x4] sm:$0x3]
      %v3103 = vunpack.c.l.b16 %v3099
      %v3104 = vunpack.c.l.b16 %v3100
      %v3105 = vpack.c.b16 %v3104, %v3103
      %v3107 = vsel %vm962, %v3105, 0
      %v3110 = vsel %vm966, %v3097, 0
      %v3113 = vsel %vm966, %v3098, 0
      %3115 = vmatprep.subr.bf16.mxu0 %v3096
      %3116 = vmatpush1.bf16.msra.mxu0 %v3095
      %3117 = vmatprep.subr.bf16.mxu0 %v3113
      %3118 = vmatpush1.bf16.msra.mxu0 %v3110
      %3119 = vmatprep.subr.bf16.mxu0 0
      %3120 = vmatpush1.bf16.msra.mxu0 0
      %3121 = vmatprep.subr.bf16.mxu0 0
      %3122 = vmatpush1.bf16.msra.mxu0 0
      %3123 = vmatprep.subr.bf16.mxu0 0
      %3124 = vmatpush1.bf16.msra.mxu0 0
      %3125 = vmatprep.subr.bf16.mxu0 0
      %3126 = vmatpush1.bf16.msra.mxu0 0
      %3127 = vmatprep.subr.bf16.mxu0 0
      %3128 = vmatpush1.bf16.msra.mxu0 0
      %3129 = vmatprep.subr.bf16.mxu0 0
      %3130 = vmatpush1.bf16.msra.mxu0 0
      %3131 = vmatprep.subr.bf16.mxu0 0
      %3132 = vmatpush1.bf16.msra.mxu0 0
      %3133 = vmatprep.subr.bf16.mxu0 0
      %3134 = vmatpush1.bf16.msra.mxu0 0
      %3135 = vmatprep.subr.bf16.mxu0 0
      %3136 = vmatpush1.bf16.msra.mxu0 0
      %3137 = vmatprep.subr.bf16.mxu0 0
      %3138 = vmatpush1.bf16.msra.mxu0 0
      %3139 = vmatprep.subr.bf16.mxu0 0
      %3140 = vmatpush1.bf16.msra.mxu0 0
      %3141 = vmatprep.subr.bf16.mxu0 0
      %3142 = vmatpush1.bf16.msra.mxu0 0
      %3143 = vmatprep.subr.bf16.mxu0 0
      %3144 = vmatpush1.bf16.msra.mxu0 0
      %3145 = vmatprep.subr.bf16.mxu0 0
      %3146 = vmatpush1.bf16.msra.mxu0 0
      %3147 = vmatprep.mubr.bf16.mxu0 0
      %3148 = vmatmul.mubr.bf16.gmra.mrb[0].mxu0 %v3107
      %v3149 = vpop.f32.mrb[0].mxu0
      %v3150 = vadd.f32 0.0, %v3149
      %v3151 = vpop.f32.mrb[0].mxu0
      %v3152 = vadd.f32 0.0, %v3151
      %v3153 = vpop.f32.mrb[0].mxu0
      %v3154 = vadd.f32 0.0, %v3153
      %v3155 = vpop.f32.mrb[0].mxu0
      %v3156 = vadd.f32 0.0, %v3155
      %3157 = vdwg.mxu0
      %v3158 = vld [vmem:[%s1016] sm:$0xf]
      %v3159 = vld [vmem:[%s1016 + $0x4] sm:$0x3]
      %v3162 = vunpack.c.l.b16 %v3158
      %v3163 = vunpack.c.l.b16 %v3159
      %v3164 = vpack.c.b16 %v3163, %v3162
      %v3166 = vsel %vm962, %v3164, 0
      %3168 = vmatprep.subr.bf16.mxu0 %v3096
      %3169 = vmatpush1.bf16.msra.mxu0 %v3095
      %3170 = vmatprep.subr.bf16.mxu0 %v3113
      %3171 = vmatpush1.bf16.msra.mxu0 %v3110
      %3172 = vmatprep.subr.bf16.mxu0 0
      %3173 = vmatpush1.bf16.msra.mxu0 0
      %3174 = vmatprep.subr.bf16.mxu0 0
      %3175 = vmatpush1.bf16.msra.mxu0 0
      %3176 = vmatprep.subr.bf16.mxu0 0
      %3177 = vmatpush1.bf16.msra.mxu0 0
      %3178 = vmatprep.subr.bf16.mxu0 0
      %3179 = vmatpush1.bf16.msra.mxu0 0
      %3180 = vmatprep.subr.bf16.mxu0 0
      %3181 = vmatpush1.bf16.msra.mxu0 0
      %3182 = vmatprep.subr.bf16.mxu0 0
      %3183 = vmatpush1.bf16.msra.mxu0 0
      %3184 = vmatprep.subr.bf16.mxu0 0
      %3185 = vmatpush1.bf16.msra.mxu0 0
      %3186 = vmatprep.subr.bf16.mxu0 0
      %3187 = vmatpush1.bf16.msra.mxu0 0
      %3188 = vmatprep.subr.bf16.mxu0 0
      %3189 = vmatpush1.bf16.msra.mxu0 0
      %3190 = vmatprep.subr.bf16.mxu0 0
      %3191 = vmatpush1.bf16.msra.mxu0 0
      %3192 = vmatprep.subr.bf16.mxu0 0
      %3193 = vmatpush1.bf16.msra.mxu0 0
      %3194 = vmatprep.subr.bf16.mxu0 0
      %3195 = vmatpush1.bf16.msra.mxu0 0
      %3196 = vmatprep.subr.bf16.mxu0 0
      %3197 = vmatpush1.bf16.msra.mxu0 0
      %3198 = vmatprep.subr.bf16.mxu0 0
      %3199 = vmatpush1.bf16.msra.mxu0 0
      %3200 = vmatprep.mubr.bf16.mxu0 0
      %3201 = vmatmul.mubr.bf16.gmra.mrb[0].mxu0 %v3166
      %v3202 = vpop.f32.mrb[0].mxu0
      %v3203 = vadd.f32 0.0, %v3202
      %v3204 = vpop.f32.mrb[0].mxu0
      %v3205 = vadd.f32 0.0, %v3204
      %v3206 = vpop.f32.mrb[0].mxu0
      %v3207 = vadd.f32 0.0, %v3206
      %v3208 = vpop.f32.mrb[0].mxu0
      %v3209 = vadd.f32 0.0, %v3208
      %3210 = vdwg.mxu0
      %v3211 = vmax.f32 %v3150, %v3203
      %v3212 = vmax.f32 %v3152, %v3205
      %v3213 = vmax.f32 %v3154, %v3207
      %v3214 = vmax.f32 %v3156, %v3209
      %v3215 = vpack.c.bf16 %v3213, %v3211
      %v3216 = vpack.c.bf16 %v3214, %v3212
      %v3217 = vld [vmem:[%s4] sm:$0xf]
      %v3218 = vld [vmem:[%s4 + $0x4] sm:$0xf]
      %v3219 = vld [vmem:[%s4 + $0x8] sm:$0xf]
      %v3220 = vld [vmem:[%s4 + $0xc] sm:$0xf]
      %v3221 = vld [vmem:[%s4 + $0x10] sm:$0xf]
      %v3222 = vld [vmem:[%s4 + $0x14] sm:$0xf]
      %v3223 = vld [vmem:[%s4 + $0x18] sm:$0xf]
      %v3224 = vld [vmem:[%s4 + $0x1c] sm:$0xf]
      %v3225 = vld [vmem:[%s4 + $0x20] sm:$0xf]
      %v3226 = vld [vmem:[%s4 + $0x24] sm:$0xf]
      %v3227 = vld [vmem:[%s4 + $0x28] sm:$0xf]
      %v3228 = vld [vmem:[%s4 + $0x2c] sm:$0xf]
      %v3229 = vld [vmem:[%s4 + $0x30] sm:$0xf]
      %v3230 = vld [vmem:[%s4 + $0x34] sm:$0xf]
      %v3231 = vld [vmem:[%s4 + $0x38] sm:$0xf]
      %v3232 = vld [vmem:[%s4 + $0x3c] sm:$0xf]
      %v3233 = vld [vmem:[%s4 + $0x40] sm:$0xf]
      %v3234 = vld [vmem:[%s4 + $0x44] sm:$0xf]
      %v3235 = vld [vmem:[%s4 + $0x48] sm:$0xf]
      %v3236 = vld [vmem:[%s4 + $0x4c] sm:$0xf]
      %v3237 = vld [vmem:[%s4 + $0x50] sm:$0xf]
      %v3238 = vld [vmem:[%s4 + $0x54] sm:$0xf]
      %v3239 = vld [vmem:[%s4 + $0x58] sm:$0xf]
      %v3240 = vld [vmem:[%s4 + $0x5c] sm:$0xf]
      %v3265 = vunpack.c.l.b16 %v3217
      %v3266 = vunpack.c.l.b16 %v3218
      %v3267 = vunpack.c.l.b16 %v3219
      %v3268 = vunpack.c.l.b16 %v3220
      %v3269 = vunpack.c.l.b16 %v3221
      %v3270 = vunpack.c.l.b16 %v3222
      %v3271 = vunpack.c.l.b16 %v3223
      %v3272 = vunpack.c.l.b16 %v3224
      %v3273 = vunpack.c.l.b16 %v3225
      %v3274 = vunpack.c.l.b16 %v3226
      %v3275 = vunpack.c.l.b16 %v3227
      %v3276 = vunpack.c.l.b16 %v3228
      %v3277 = vunpack.c.l.b16 %v3229
      %v3278 = vunpack.c.l.b16 %v3230
      %v3279 = vunpack.c.l.b16 %v3231
      %v3280 = vunpack.c.l.b16 %v3232
      %v3281 = vunpack.c.l.b16 %v3233
      %v3282 = vunpack.c.l.b16 %v3234
      %v3283 = vunpack.c.l.b16 %v3235
      %v3284 = vunpack.c.l.b16 %v3236
      %v3285 = vunpack.c.l.b16 %v3237
      %v3286 = vunpack.c.l.b16 %v3238
      %v3287 = vunpack.c.l.b16 %v3239
      %v3288 = vunpack.c.l.b16 %v3240
      %v3289 = vpack.c.b16 %v3266, %v3265
      %v3290 = vpack.c.b16 %v3268, %v3267
      %v3291 = vpack.c.b16 %v3270, %v3269
      %v3292 = vpack.c.b16 %v3272, %v3271
      %v3293 = vpack.c.b16 %v3274, %v3273
      %v3294 = vpack.c.b16 %v3276, %v3275
      %v3295 = vpack.c.b16 %v3278, %v3277
      %v3296 = vpack.c.b16 %v3280, %v3279
      %v3297 = vpack.c.b16 %v3282, %v3281
      %v3298 = vpack.c.b16 %v3284, %v3283
      %v3299 = vpack.c.b16 %v3286, %v3285
      %v3300 = vpack.c.b16 %v3288, %v3287
      %v3314 = vsel %vm1172, %v3216, 0
      %3316 = vmatprep.subr.bf16.mxu0 0
      %3317 = vmatpush1.bf16.msra.mxu0 %v3289
      %3318 = vmatprep.subr.bf16.mxu0 0
      %3319 = vmatpush1.bf16.msra.mxu0 %v3290
      %3320 = vmatprep.subr.bf16.mxu0 0
      %3321 = vmatpush1.bf16.msra.mxu0 %v3291
      %3322 = vmatprep.subr.bf16.mxu0 0
      %3323 = vmatpush1.bf16.msra.mxu0 %v3292
      %3324 = vmatprep.subr.bf16.mxu0 0
      %3325 = vmatpush1.bf16.msra.mxu0 %v3293
      %3326 = vmatprep.subr.bf16.mxu0 0
      %3327 = vmatpush1.bf16.msra.mxu0 %v3294
      %3328 = vmatprep.subr.bf16.mxu0 0
      %3329 = vmatpush1.bf16.msra.mxu0 %v3295
      %3330 = vmatprep.subr.bf16.mxu0 0
      %3331 = vmatpush1.bf16.msra.mxu0 %v3296
      %3332 = vmatprep.subr.bf16.mxu0 0
      %3333 = vmatpush1.bf16.msra.mxu0 %v3297
      %3334 = vmatprep.subr.bf16.mxu0 0
      %3335 = vmatpush1.bf16.msra.mxu0 %v3298
      %3336 = vmatprep.subr.bf16.mxu0 0
      %3337 = vmatpush1.bf16.msra.mxu0 %v3299
      %3338 = vmatprep.subr.bf16.mxu0 0
      %3339 = vmatpush1.bf16.msra.mxu0 %v3300
      %3340 = vmatprep.subr.bf16.mxu0 0
      %3341 = vmatpush1.bf16.msra.mxu0 0
      %3342 = vmatprep.subr.bf16.mxu0 0
      %3343 = vmatpush1.bf16.msra.mxu0 0
      %3344 = vmatprep.subr.bf16.mxu0 0
      %3345 = vmatpush1.bf16.msra.mxu0 0
      %3346 = vmatprep.subr.bf16.mxu0 0
      %3347 = vmatpush1.bf16.msra.mxu0 0
      %3348 = vmatprep.mubr.bf16.mxu0 %v3314
      %3349 = vmatmul.mubr.bf16.gmra.mrb[0].mxu0 %v3215
      %v3350 = vpop.f32.mrb[0].mxu0
      %v3351 = vadd.f32 0.0, %v3350
      %v3352 = vpop.f32.mrb[0].mxu0
      %v3353 = vpop.f32.mrb[0].mxu0
      %v3354 = vadd.f32 0.0, %v3353
      %v3355 = vpop.f32.mrb[0].mxu0
      %3356 = vdwg.mxu0
      %v3357 = vld [vmem:[%s1217] sm:$0xf]
      %v3358 = vld [vmem:[%s1217 + $0x4] sm:$0xf]
      %v3359 = vld [vmem:[%s1217 + $0x8] sm:$0xf]
      %v3360 = vld [vmem:[%s1217 + $0xc] sm:$0xf]
      %v3361 = vld [vmem:[%s1217 + $0x10] sm:$0xf]
      %v3362 = vld [vmem:[%s1217 + $0x14] sm:$0xf]
      %v3363 = vld [vmem:[%s1217 + $0x18] sm:$0xf]
      %v3364 = vld [vmem:[%s1217 + $0x1c] sm:$0xf]
      %v3365 = vld [vmem:[%s1217 + $0x20] sm:$0xf]
      %v3366 = vld [vmem:[%s1217 + $0x24] sm:$0xf]
      %v3367 = vld [vmem:[%s1217 + $0x28] sm:$0xf]
      %v3368 = vld [vmem:[%s1217 + $0x2c] sm:$0xf]
      %v3369 = vld [vmem:[%s1217 + $0x30] sm:$0xf]
      %v3370 = vld [vmem:[%s1217 + $0x34] sm:$0xf]
      %v3371 = vld [vmem:[%s1217 + $0x38] sm:$0xf]
      %v3372 = vld [vmem:[%s1217 + $0x3c] sm:$0xf]
      %v3373 = vld [vmem:[%s1217 + $0x40] sm:$0xf]
      %v3374 = vld [vmem:[%s1217 + $0x44] sm:$0xf]
      %v3375 = vld [vmem:[%s1217 + $0x48] sm:$0xf]
      %v3376 = vld [vmem:[%s1217 + $0x4c] sm:$0xf]
      %v3377 = vld [vmem:[%s1217 + $0x50] sm:$0xf]
      %v3378 = vld [vmem:[%s1217 + $0x54] sm:$0xf]
      %v3379 = vld [vmem:[%s1217 + $0x58] sm:$0xf]
      %v3380 = vld [vmem:[%s1217 + $0x5c] sm:$0xf]
      %v3405 = vunpack.c.l.b16 %v3357
      %v3406 = vunpack.c.l.b16 %v3358
      %v3407 = vunpack.c.l.b16 %v3359
      %v3408 = vunpack.c.l.b16 %v3360
      %v3409 = vunpack.c.l.b16 %v3361
      %v3410 = vunpack.c.l.b16 %v3362
      %v3411 = vunpack.c.l.b16 %v3363
      %v3412 = vunpack.c.l.b16 %v3364
      %v3413 = vunpack.c.l.b16 %v3365
      %v3414 = vunpack.c.l.b16 %v3366
      %v3415 = vunpack.c.l.b16 %v3367
      %v3416 = vunpack.c.l.b16 %v3368
      %v3417 = vunpack.c.l.b16 %v3369
      %v3418 = vunpack.c.l.b16 %v3370
      %v3419 = vunpack.c.l.b16 %v3371
      %v3420 = vunpack.c.l.b16 %v3372
      %v3421 = vunpack.c.l.b16 %v3373
      %v3422 = vunpack.c.l.b16 %v3374
      %v3423 = vunpack.c.l.b16 %v3375
      %v3424 = vunpack.c.l.b16 %v3376
      %v3425 = vunpack.c.l.b16 %v3377
      %v3426 = vunpack.c.l.b16 %v3378
      %v3427 = vunpack.c.l.b16 %v3379
      %v3428 = vunpack.c.l.b16 %v3380
      %v3429 = vpack.c.b16 %v3406, %v3405
      %v3430 = vpack.c.b16 %v3408, %v3407
      %v3431 = vpack.c.b16 %v3410, %v3409
      %v3432 = vpack.c.b16 %v3412, %v3411
      %v3433 = vpack.c.b16 %v3414, %v3413
      %v3434 = vpack.c.b16 %v3416, %v3415
      %v3435 = vpack.c.b16 %v3418, %v3417
      %v3436 = vpack.c.b16 %v3420, %v3419
      %v3437 = vpack.c.b16 %v3422, %v3421
      %v3438 = vpack.c.b16 %v3424, %v3423
      %v3439 = vpack.c.b16 %v3426, %v3425
      %v3440 = vpack.c.b16 %v3428, %v3427
      %3453 = vmatprep.subr.bf16.mxu0 0
      %3454 = vmatpush1.bf16.msra.mxu0 %v3429
      %3455 = vmatprep.subr.bf16.mxu0 0
      %3456 = vmatpush1.bf16.msra.mxu0 %v3430
      %3457 = vmatprep.subr.bf16.mxu0 0
      %3458 = vmatpush1.bf16.msra.mxu0 %v3431
      %3459 = vmatprep.subr.bf16.mxu0 0
      %3460 = vmatpush1.bf16.msra.mxu0 %v3432
      %3461 = vmatprep.subr.bf16.mxu0 0
      %3462 = vmatpush1.bf16.msra.mxu0 %v3433
      %3463 = vmatprep.subr.bf16.mxu0 0
      %3464 = vmatpush1.bf16.msra.mxu0 %v3434
      %3465 = vmatprep.subr.bf16.mxu0 0
      %3466 = vmatpush1.bf16.msra.mxu0 %v3435
      %3467 = vmatprep.subr.bf16.mxu0 0
      %3468 = vmatpush1.bf16.msra.mxu0 %v3436
      %3469 = vmatprep.subr.bf16.mxu0 0
      %3470 = vmatpush1.bf16.msra.mxu0 %v3437
      %3471 = vmatprep.subr.bf16.mxu0 0
      %3472 = vmatpush1.bf16.msra.mxu0 %v3438
      %3473 = vmatprep.subr.bf16.mxu0 0
      %3474 = vmatpush1.bf16.msra.mxu0 %v3439
      %3475 = vmatprep.subr.bf16.mxu0 0
      %3476 = vmatpush1.bf16.msra.mxu0 %v3440
      %3477 = vmatprep.subr.bf16.mxu0 0
      %3478 = vmatpush1.bf16.msra.mxu0 0
      %3479 = vmatprep.subr.bf16.mxu0 0
      %3480 = vmatpush1.bf16.msra.mxu0 0
      %3481 = vmatprep.subr.bf16.mxu0 0
      %3482 = vmatpush1.bf16.msra.mxu0 0
      %3483 = vmatprep.subr.bf16.mxu0 0
      %3484 = vmatpush1.bf16.msra.mxu0 0
      %3485 = vmatprep.mubr.bf16.mxu0 %v3314
      %3486 = vmatmul.mubr.bf16.gmra.mrb[0].mxu0 %v3215
      %v3487 = vpop.f32.mrb[0].mxu0
      %v3488 = vadd.f32 0.0, %v3487
      %v3489 = vpop.f32.mrb[0].mxu0
      %v3490 = vpop.f32.mrb[0].mxu0
      %v3491 = vadd.f32 0.0, %v3490
      %v3492 = vpop.f32.mrb[0].mxu0
      %3493 = vdwg.mxu0
      %v3494 = vmax.f32 %v3351, %v3488
      %v3495 = vmax.f32 %v3354, %v3491
      %v3496 = vmax.f32 %v3494, 0.0
      %v3497 = vmax.f32 %v3495, 0.0
      %v3498 = vpack.c.bf16 %v3497, %v3496
      %v3499 = vld [vmem:[%s5] sm:$0xf]
      %v3500 = vld [vmem:[%s5 + $0x4] sm:$0xf]
      %v3501 = vld [vmem:[%s5 + $0x8] sm:$0xf]
      %v3502 = vld [vmem:[%s5 + $0xc] sm:$0xf]
      %v3503 = vld [vmem:[%s5 + $0x10] sm:$0xf]
      %v3504 = vld [vmem:[%s5 + $0x14] sm:$0xf]
      %v3505 = vld [vmem:[%s5 + $0x18] sm:$0xf]
      %v3506 = vld [vmem:[%s5 + $0x1c] sm:$0xf]
      %v3507 = vld [vmem:[%s5 + $0x20] sm:$0xf]
      %v3508 = vld [vmem:[%s5 + $0x24] sm:$0xf]
      %v3509 = vld [vmem:[%s5 + $0x28] sm:$0xf]
      %v3510 = vld [vmem:[%s5 + $0x2c] sm:$0xf]
      %v3511 = vld [vmem:[%s1372] sm:$0xf]
      %v3512 = vld [vmem:[%s1372 + $0x4] sm:$0xf]
      %v3513 = vld [vmem:[%s1372 + $0x8] sm:$0xf]
      %v3514 = vld [vmem:[%s1372 + $0xc] sm:$0xf]
      %v3515 = vld [vmem:[%s1372 + $0x10] sm:$0xf]
      %v3516 = vld [vmem:[%s1372 + $0x14] sm:$0xf]
      %v3517 = vld [vmem:[%s1372 + $0x18] sm:$0xf]
      %v3518 = vld [vmem:[%s1372 + $0x1c] sm:$0xf]
      %v3519 = vld [vmem:[%s1372 + $0x20] sm:$0xf]
      %v3520 = vld [vmem:[%s1372 + $0x24] sm:$0xf]
      %v3521 = vld [vmem:[%s1372 + $0x28] sm:$0xf]
      %v3522 = vld [vmem:[%s1372 + $0x2c] sm:$0xf]
      %v3524 = vshrl.u32 %v3498, 16
      %v3526 = vshll.u32 %v3498, 16
      %v3528 = vrot.slane %v3526, 1
      %v3529 = vor.u32 %v3524, %v3528
      %v3542 = vunpack.c.l.b16 %v3511
      %v3543 = vunpack.c.l.b16 %v3512
      %v3544 = vunpack.c.l.b16 %v3513
      %v3545 = vunpack.c.l.b16 %v3514
      %v3546 = vunpack.c.l.b16 %v3515
      %v3547 = vunpack.c.l.b16 %v3516
      %v3548 = vunpack.c.l.b16 %v3517
      %v3549 = vunpack.c.l.b16 %v3518
      %v3550 = vunpack.c.l.b16 %v3519
      %v3551 = vunpack.c.l.b16 %v3520
      %v3552 = vunpack.c.l.b16 %v3521
      %v3553 = vunpack.c.l.b16 %v3522
      %v3554 = vpack.c.b16 %v3543, %v3542
      %v3555 = vpack.c.b16 %v3545, %v3544
      %v3556 = vpack.c.b16 %v3547, %v3546
      %v3557 = vpack.c.b16 %v3549, %v3548
      %v3558 = vpack.c.b16 %v3551, %v3550
      %v3559 = vpack.c.b16 %v3553, %v3552
      %v3567 = vsel %vm1428, %v3529, 0
      %3569 = vmatprep.subr.bf16.mxu0 0
      %3570 = vmatpush1.bf16.msra.mxu0 %v3554
      %3571 = vmatprep.subr.bf16.mxu0 0
      %3572 = vmatpush1.bf16.msra.mxu0 %v3555
      %3573 = vmatprep.subr.bf16.mxu0 0
      %3574 = vmatpush1.bf16.msra.mxu0 %v3556
      %3575 = vmatprep.subr.bf16.mxu0 0
      %3576 = vmatpush1.bf16.msra.mxu0 %v3557
      %3577 = vmatprep.subr.bf16.mxu0 0
      %3578 = vmatpush1.bf16.msra.mxu0 %v3558
      %3579 = vmatprep.subr.bf16.mxu0 0
      %3580 = vmatpush1.bf16.msra.mxu0 %v3559
      %3581 = vmatprep.subr.bf16.mxu0 0
      %3582 = vmatpush1.bf16.msra.mxu0 0
      %3583 = vmatprep.subr.bf16.mxu0 0
      %3584 = vmatpush1.bf16.msra.mxu0 0
      %3585 = vmatprep.subr.bf16.mxu0 0
      %3586 = vmatpush1.bf16.msra.mxu0 0
      %3587 = vmatprep.subr.bf16.mxu0 0
      %3588 = vmatpush1.bf16.msra.mxu0 0
      %3589 = vmatprep.subr.bf16.mxu0 0
      %3590 = vmatpush1.bf16.msra.mxu0 0
      %3591 = vmatprep.subr.bf16.mxu0 0
      %3592 = vmatpush1.bf16.msra.mxu0 0
      %3593 = vmatprep.subr.bf16.mxu0 0
      %3594 = vmatpush1.bf16.msra.mxu0 0
      %3595 = vmatprep.subr.bf16.mxu0 0
      %3596 = vmatpush1.bf16.msra.mxu0 0
      %3597 = vmatprep.subr.bf16.mxu0 0
      %3598 = vmatpush1.bf16.msra.mxu0 0
      %3599 = vmatprep.subr.bf16.mxu0 0
      %3600 = vmatpush1.bf16.msra.mxu0 0
      %3601 = vmatprep.mubr.bf16.mxu0 0
      %3602 = vmatmul.mubr.bf16.gmra.mrb[0].mxu0 %v3567
      %v3603 = vpop.f32.mrb[0].mxu0
      %v3604 = vadd.f32 0.0, %v3603
      %v3605 = vpop.f32.mrb[0].mxu0
      %v3606 = vpop.f32.mrb[0].mxu0
      %v3607 = vpop.f32.mrb[0].mxu0
      %3608 = vdwg.mxu0
      %v3621 = vunpack.c.l.b16 %v3499
      %v3622 = vunpack.c.l.b16 %v3500
      %v3623 = vunpack.c.l.b16 %v3501
      %v3624 = vunpack.c.l.b16 %v3502
      %v3625 = vunpack.c.l.b16 %v3503
      %v3626 = vunpack.c.l.b16 %v3504
      %v3627 = vunpack.c.l.b16 %v3505
      %v3628 = vunpack.c.l.b16 %v3506
      %v3629 = vunpack.c.l.b16 %v3507
      %v3630 = vunpack.c.l.b16 %v3508
      %v3631 = vunpack.c.l.b16 %v3509
      %v3632 = vunpack.c.l.b16 %v3510
      %v3633 = vpack.c.b16 %v3622, %v3621
      %v3634 = vpack.c.b16 %v3624, %v3623
      %v3635 = vpack.c.b16 %v3626, %v3625
      %v3636 = vpack.c.b16 %v3628, %v3627
      %v3637 = vpack.c.b16 %v3630, %v3629
      %v3638 = vpack.c.b16 %v3632, %v3631
      %v3645 = vsel %vm1428, %v3498, 0
      %3647 = vmatprep.subr.bf16.mxu0 0
      %3648 = vmatpush1.bf16.msra.mxu0 %v3633
      %3649 = vmatprep.subr.bf16.mxu0 0
      %3650 = vmatpush1.bf16.msra.mxu0 %v3634
      %3651 = vmatprep.subr.bf16.mxu0 0
      %3652 = vmatpush1.bf16.msra.mxu0 %v3635
      %3653 = vmatprep.subr.bf16.mxu0 0
      %3654 = vmatpush1.bf16.msra.mxu0 %v3636
      %3655 = vmatprep.subr.bf16.mxu0 0
      %3656 = vmatpush1.bf16.msra.mxu0 %v3637
      %3657 = vmatprep.subr.bf16.mxu0 0
      %3658 = vmatpush1.bf16.msra.mxu0 %v3638
      %3659 = vmatprep.subr.bf16.mxu0 0
      %3660 = vmatpush1.bf16.msra.mxu0 0
      %3661 = vmatprep.subr.bf16.mxu0 0
      %3662 = vmatpush1.bf16.msra.mxu0 0
      %3663 = vmatprep.subr.bf16.mxu0 0
      %3664 = vmatpush1.bf16.msra.mxu0 0
      %3665 = vmatprep.subr.bf16.mxu0 0
      %3666 = vmatpush1.bf16.msra.mxu0 0
      %3667 = vmatprep.subr.bf16.mxu0 0
      %3668 = vmatpush1.bf16.msra.mxu0 0
      %3669 = vmatprep.subr.bf16.mxu0 0
      %3670 = vmatpush1.bf16.msra.mxu0 0
      %3671 = vmatprep.subr.bf16.mxu0 0
      %3672 = vmatpush1.bf16.msra.mxu0 0
      %3673 = vmatprep.subr.bf16.mxu0 0
      %3674 = vmatpush1.bf16.msra.mxu0 0
      %3675 = vmatprep.subr.bf16.mxu0 0
      %3676 = vmatpush1.bf16.msra.mxu0 0
      %3677 = vmatprep.subr.bf16.mxu0 0
      %3678 = vmatpush1.bf16.msra.mxu0 0
      %3679 = vmatprep.mubr.bf16.mxu0 0
      %3680 = vmatmul.mubr.bf16.gmra.mrb[0].mxu0 %v3645
      %v3681 = vpop.f32.mrb[0].mxu0
      %v3682 = vadd.f32 %v3604, %v3681
      %v3683 = vpop.f32.mrb[0].mxu0
      %v3684 = vpop.f32.mrb[0].mxu0
      %v3685 = vpop.f32.mrb[0].mxu0
      %3686 = vdwg.mxu0
      %v3687 = vld [vmem:[%s1550] sm:$0xf]
      %v3688 = vld [vmem:[%s1550 + $0x4] sm:$0xf]
      %v3689 = vld [vmem:[%s1550 + $0x8] sm:$0xf]
      %v3690 = vld [vmem:[%s1550 + $0xc] sm:$0xf]
      %v3691 = vld [vmem:[%s1550 + $0x10] sm:$0xf]
      %v3692 = vld [vmem:[%s1550 + $0x14] sm:$0xf]
      %v3693 = vld [vmem:[%s1550 + $0x18] sm:$0xf]
      %v3694 = vld [vmem:[%s1550 + $0x1c] sm:$0xf]
      %v3695 = vld [vmem:[%s1550 + $0x20] sm:$0xf]
      %v3696 = vld [vmem:[%s1550 + $0x24] sm:$0xf]
      %v3697 = vld [vmem:[%s1550 + $0x28] sm:$0xf]
      %v3698 = vld [vmem:[%s1550 + $0x2c] sm:$0xf]
      %v3700 = vrot.slane %v3498, 1
      %v3713 = vunpack.c.l.b16 %v3687
      %v3714 = vunpack.c.l.b16 %v3688
      %v3715 = vunpack.c.l.b16 %v3689
      %v3716 = vunpack.c.l.b16 %v3690
      %v3717 = vunpack.c.l.b16 %v3691
      %v3718 = vunpack.c.l.b16 %v3692
      %v3719 = vunpack.c.l.b16 %v3693
      %v3720 = vunpack.c.l.b16 %v3694
      %v3721 = vunpack.c.l.b16 %v3695
      %v3722 = vunpack.c.l.b16 %v3696
      %v3723 = vunpack.c.l.b16 %v3697
      %v3724 = vunpack.c.l.b16 %v3698
      %v3725 = vpack.c.b16 %v3714, %v3713
      %v3726 = vpack.c.b16 %v3716, %v3715
      %v3727 = vpack.c.b16 %v3718, %v3717
      %v3728 = vpack.c.b16 %v3720, %v3719
      %v3729 = vpack.c.b16 %v3722, %v3721
      %v3730 = vpack.c.b16 %v3724, %v3723
      %v3738 = vsel %vm1428, %v3700, 0
      %3740 = vmatprep.subr.bf16.mxu0 0
      %3741 = vmatpush1.bf16.msra.mxu0 %v3725
      %3742 = vmatprep.subr.bf16.mxu0 0
      %3743 = vmatpush1.bf16.msra.mxu0 %v3726
      %3744 = vmatprep.subr.bf16.mxu0 0
      %3745 = vmatpush1.bf16.msra.mxu0 %v3727
      %3746 = vmatprep.subr.bf16.mxu0 0
      %3747 = vmatpush1.bf16.msra.mxu0 %v3728
      %3748 = vmatprep.subr.bf16.mxu0 0
      %3749 = vmatpush1.bf16.msra.mxu0 %v3729
      %3750 = vmatprep.subr.bf16.mxu0 0
      %3751 = vmatpush1.bf16.msra.mxu0 %v3730
      %3752 = vmatprep.subr.bf16.mxu0 0
      %3753 = vmatpush1.bf16.msra.mxu0 0
      %3754 = vmatprep.subr.bf16.mxu0 0
      %3755 = vmatpush1.bf16.msra.mxu0 0
      %3756 = vmatprep.subr.bf16.mxu0 0
      %3757 = vmatpush1.bf16.msra.mxu0 0
      %3758 = vmatprep.subr.bf16.mxu0 0
      %3759 = vmatpush1.bf16.msra.mxu0 0
      %3760 = vmatprep.subr.bf16.mxu0 0
      %3761 = vmatpush1.bf16.msra.mxu0 0
      %3762 = vmatprep.subr.bf16.mxu0 0
      %3763 = vmatpush1.bf16.msra.mxu0 0
      %3764 = vmatprep.subr.bf16.mxu0 0
      %3765 = vmatpush1.bf16.msra.mxu0 0
      %3766 = vmatprep.subr.bf16.mxu0 0
      %3767 = vmatpush1.bf16.msra.mxu0 0
      %3768 = vmatprep.subr.bf16.mxu0 0
      %3769 = vmatpush1.bf16.msra.mxu0 0
      %3770 = vmatprep.subr.bf16.mxu0 0
      %3771 = vmatpush1.bf16.msra.mxu0 0
      %3772 = vmatprep.mubr.bf16.mxu0 0
      %3773 = vmatmul.mubr.bf16.gmra.mrb[0].mxu0 %v3738
      %v3774 = vpop.f32.mrb[0].mxu0
      %v3775 = vadd.f32 0.0, %v3774
      %v3776 = vpop.f32.mrb[0].mxu0
      %v3777 = vpop.f32.mrb[0].mxu0
      %v3778 = vpop.f32.mrb[0].mxu0
      %3779 = vdwg.mxu0
      %v3780 = vadd.f32 %v3682, %v3775
      %v3781 = vld [vmem:[%s1645] sm:$0xf]
      %v3782 = vld [vmem:[%s1645 + $0x4] sm:$0xf]
      %v3783 = vld [vmem:[%s1645 + $0x8] sm:$0xf]
      %v3784 = vld [vmem:[%s1645 + $0xc] sm:$0xf]
      %v3785 = vld [vmem:[%s1645 + $0x10] sm:$0xf]
      %v3786 = vld [vmem:[%s1645 + $0x14] sm:$0xf]
      %v3787 = vld [vmem:[%s1645 + $0x18] sm:$0xf]
      %v3788 = vld [vmem:[%s1645 + $0x1c] sm:$0xf]
      %v3789 = vld [vmem:[%s1645 + $0x20] sm:$0xf]
      %v3790 = vld [vmem:[%s1645 + $0x24] sm:$0xf]
      %v3791 = vld [vmem:[%s1645 + $0x28] sm:$0xf]
      %v3792 = vld [vmem:[%s1645 + $0x2c] sm:$0xf]
      %v3793 = vrot.slane %v3524, 1
      %v3794 = vrot.slane %v3526, 2
      %v3795 = vor.u32 %v3793, %v3794
      %v3808 = vunpack.c.l.b16 %v3781
      %v3809 = vunpack.c.l.b16 %v3782
      %v3810 = vunpack.c.l.b16 %v3783
      %v3811 = vunpack.c.l.b16 %v3784
      %v3812 = vunpack.c.l.b16 %v3785
      %v3813 = vunpack.c.l.b16 %v3786
      %v3814 = vunpack.c.l.b16 %v3787
      %v3815 = vunpack.c.l.b16 %v3788
      %v3816 = vunpack.c.l.b16 %v3789
      %v3817 = vunpack.c.l.b16 %v3790
      %v3818 = vunpack.c.l.b16 %v3791
      %v3819 = vunpack.c.l.b16 %v3792
      %v3820 = vpack.c.b16 %v3809, %v3808
      %v3821 = vpack.c.b16 %v3811, %v3810
      %v3822 = vpack.c.b16 %v3813, %v3812
      %v3823 = vpack.c.b16 %v3815, %v3814
      %v3824 = vpack.c.b16 %v3817, %v3816
      %v3825 = vpack.c.b16 %v3819, %v3818
      %v3833 = vsel %vm1428, %v3795, 0
      %3835 = vmatprep.subr.bf16.mxu0 0
      %3836 = vmatpush1.bf16.msra.mxu0 %v3820
      %3837 = vmatprep.subr.bf16.mxu0 0
      %3838 = vmatpush1.bf16.msra.mxu0 %v3821
      %3839 = vmatprep.subr.bf16.mxu0 0
      %3840 = vmatpush1.bf16.msra.mxu0 %v3822
      %3841 = vmatprep.subr.bf16.mxu0 0
      %3842 = vmatpush1.bf16.msra.mxu0 %v3823
      %3843 = vmatprep.subr.bf16.mxu0 0
      %3844 = vmatpush1.bf16.msra.mxu0 %v3824
      %3845 = vmatprep.subr.bf16.mxu0 0
      %3846 = vmatpush1.bf16.msra.mxu0 %v3825
      %3847 = vmatprep.subr.bf16.mxu0 0
      %3848 = vmatpush1.bf16.msra.mxu0 0
      %3849 = vmatprep.subr.bf16.mxu0 0
      %3850 = vmatpush1.bf16.msra.mxu0 0
      %3851 = vmatprep.subr.bf16.mxu0 0
      %3852 = vmatpush1.bf16.msra.mxu0 0
      %3853 = vmatprep.subr.bf16.mxu0 0
      %3854 = vmatpush1.bf16.msra.mxu0 0
      %3855 = vmatprep.subr.bf16.mxu0 0
      %3856 = vmatpush1.bf16.msra.mxu0 0
      %3857 = vmatprep.subr.bf16.mxu0 0
      %3858 = vmatpush1.bf16.msra.mxu0 0
      %3859 = vmatprep.subr.bf16.mxu0 0
      %3860 = vmatpush1.bf16.msra.mxu0 0
      %3861 = vmatprep.subr.bf16.mxu0 0
      %3862 = vmatpush1.bf16.msra.mxu0 0
      %3863 = vmatprep.subr.bf16.mxu0 0
      %3864 = vmatpush1.bf16.msra.mxu0 0
      %3865 = vmatprep.subr.bf16.mxu0 0
      %3866 = vmatpush1.bf16.msra.mxu0 0
      %3867 = vmatprep.mubr.bf16.mxu0 0
      %3868 = vmatmul.mubr.bf16.gmra.mrb[0].mxu0 %v3833
      %v3869 = vpop.f32.mrb[0].mxu0
      %v3870 = vadd.f32 0.0, %v3869
      %v3871 = vpop.f32.mrb[0].mxu0
      %v3872 = vpop.f32.mrb[0].mxu0
      %v3873 = vpop.f32.mrb[0].mxu0
      %3874 = vdwg.mxu0
      %v3875 = vadd.f32 %v3780, %v3870
      %v3876 = vld [vmem:[%s1741] sm:$0xf]
      %v3877 = vld [vmem:[%s1741 + $0x4] sm:$0xf]
      %v3878 = vld [vmem:[%s1741 + $0x8] sm:$0xf]
      %v3879 = vld [vmem:[%s1741 + $0xc] sm:$0xf]
      %v3880 = vld [vmem:[%s1741 + $0x10] sm:$0xf]
      %v3881 = vld [vmem:[%s1741 + $0x14] sm:$0xf]
      %v3882 = vld [vmem:[%s1741 + $0x18] sm:$0xf]
      %v3883 = vld [vmem:[%s1741 + $0x1c] sm:$0xf]
      %v3884 = vld [vmem:[%s1741 + $0x20] sm:$0xf]
      %v3885 = vld [vmem:[%s1741 + $0x24] sm:$0xf]
      %v3886 = vld [vmem:[%s1741 + $0x28] sm:$0xf]
      %v3887 = vld [vmem:[%s1741 + $0x2c] sm:$0xf]
      %v3888 = vrot.slane %v3498, 2
      %v3901 = vunpack.c.l.b16 %v3876
      %v3902 = vunpack.c.l.b16 %v3877
      %v3903 = vunpack.c.l.b16 %v3878
      %v3904 = vunpack.c.l.b16 %v3879
      %v3905 = vunpack.c.l.b16 %v3880
      %v3906 = vunpack.c.l.b16 %v3881
      %v3907 = vunpack.c.l.b16 %v3882
      %v3908 = vunpack.c.l.b16 %v3883
      %v3909 = vunpack.c.l.b16 %v3884
      %v3910 = vunpack.c.l.b16 %v3885
      %v3911 = vunpack.c.l.b16 %v3886
      %v3912 = vunpack.c.l.b16 %v3887
      %v3913 = vpack.c.b16 %v3902, %v3901
      %v3914 = vpack.c.b16 %v3904, %v3903
      %v3915 = vpack.c.b16 %v3906, %v3905
      %v3916 = vpack.c.b16 %v3908, %v3907
      %v3917 = vpack.c.b16 %v3910, %v3909
      %v3918 = vpack.c.b16 %v3912, %v3911
      %v3926 = vsel %vm1428, %v3888, 0
      %3928 = vmatprep.subr.bf16.mxu0 0
      %3929 = vmatpush1.bf16.msra.mxu0 %v3913
      %3930 = vmatprep.subr.bf16.mxu0 0
      %3931 = vmatpush1.bf16.msra.mxu0 %v3914
      %3932 = vmatprep.subr.bf16.mxu0 0
      %3933 = vmatpush1.bf16.msra.mxu0 %v3915
      %3934 = vmatprep.subr.bf16.mxu0 0
      %3935 = vmatpush1.bf16.msra.mxu0 %v3916
      %3936 = vmatprep.subr.bf16.mxu0 0
      %3937 = vmatpush1.bf16.msra.mxu0 %v3917
      %3938 = vmatprep.subr.bf16.mxu0 0
      %3939 = vmatpush1.bf16.msra.mxu0 %v3918
      %3940 = vmatprep.subr.bf16.mxu0 0
      %3941 = vmatpush1.bf16.msra.mxu0 0
      %3942 = vmatprep.subr.bf16.mxu0 0
      %3943 = vmatpush1.bf16.msra.mxu0 0
      %3944 = vmatprep.subr.bf16.mxu0 0
      %3945 = vmatpush1.bf16.msra.mxu0 0
      %3946 = vmatprep.subr.bf16.mxu0 0
      %3947 = vmatpush1.bf16.msra.mxu0 0
      %3948 = vmatprep.subr.bf16.mxu0 0
      %3949 = vmatpush1.bf16.msra.mxu0 0
      %3950 = vmatprep.subr.bf16.mxu0 0
      %3951 = vmatpush1.bf16.msra.mxu0 0
      %3952 = vmatprep.subr.bf16.mxu0 0
      %3953 = vmatpush1.bf16.msra.mxu0 0
      %3954 = vmatprep.subr.bf16.mxu0 0
      %3955 = vmatpush1.bf16.msra.mxu0 0
      %3956 = vmatprep.subr.bf16.mxu0 0
      %3957 = vmatpush1.bf16.msra.mxu0 0
      %3958 = vmatprep.subr.bf16.mxu0 0
      %3959 = vmatpush1.bf16.msra.mxu0 0
      %3960 = vmatprep.mubr.bf16.mxu0 0
      %3961 = vmatmul.mubr.bf16.gmra.mrb[0].mxu0 %v3926
      %v3962 = vpop.f32.mrb[0].mxu0
      %v3963 = vadd.f32 0.0, %v3962
      %v3964 = vpop.f32.mrb[0].mxu0
      %v3965 = vpop.f32.mrb[0].mxu0
      %v3966 = vpop.f32.mrb[0].mxu0
      %3967 = vdwg.mxu0
      %v3968 = vadd.f32 %v3875, %v3963
      %v3969 = vld [vmem:[%s6] sm:$0x1]
      %v3971 = vlaneseq
      %v3972 = vshrl.u32 %v3971, 7
      %v3973 = vsub.s32 0, %v3972
      %v3974 = vrot.slane %v3969, %v3973
      %v3976 = vadd.f32 %v3968, %v3974
      %v3977 = vpack.c.bf16 %v3976, %v3976
      %v3978 = vld [vmem:[%s7] sm:$0x3]
      %v3980 = vsel %vm1845, %v3978, 0
      %v3983 = vsel %vm966, %v3977, 0
      %3985 = vmatprep.subr.bf16.mxu0 0
      %3986 = vmatpush1.bf16.msra.mxu0 %v3983
      %3987 = vmatprep.subr.bf16.mxu0 0
      %3988 = vmatpush1.bf16.msra.mxu0 0
      %3989 = vmatprep.subr.bf16.mxu0 0
      %3990 = vmatpush1.bf16.msra.mxu0 0
      %3991 = vmatprep.subr.bf16.mxu0 0
      %3992 = vmatpush1.bf16.msra.mxu0 0
      %3993 = vmatprep.subr.bf16.mxu0 0
      %3994 = vmatpush1.bf16.msra.mxu0 0
      %3995 = vmatprep.subr.bf16.mxu0 0
      %3996 = vmatpush1.bf16.msra.mxu0 0
      %3997 = vmatprep.subr.bf16.mxu0 0
      %3998 = vmatpush1.bf16.msra.mxu0 0
      %3999 = vmatprep.subr.bf16.mxu0 0
      %4000 = vmatpush1.bf16.msra.mxu0 0
      %4001 = vmatprep.subr.bf16.mxu0 0
      %4002 = vmatpush1.bf16.msra.mxu0 0
      %4003 = vmatprep.subr.bf16.mxu0 0
      %4004 = vmatpush1.bf16.msra.mxu0 0
      %4005 = vmatprep.subr.bf16.mxu0 0
      %4006 = vmatpush1.bf16.msra.mxu0 0
      %4007 = vmatprep.subr.bf16.mxu0 0
      %4008 = vmatpush1.bf16.msra.mxu0 0
      %4009 = vmatprep.subr.bf16.mxu0 0
      %4010 = vmatpush1.bf16.msra.mxu0 0
      %4011 = vmatprep.subr.bf16.mxu0 0
      %4012 = vmatpush1.bf16.msra.mxu0 0
      %4013 = vmatprep.subr.bf16.mxu0 0
      %4014 = vmatpush1.bf16.msra.mxu0 0
      %4015 = vmatprep.subr.bf16.mxu0 0
      %4016 = vmatpush1.bf16.msra.mxu0 0
      %4017 = vmatprep.mubr.bf16.mxu0 0
      %4018 = vmatmul.mubr.bf16.gmra.mrb[0].mxu0 %v3980
      %v4019 = vpop.f32.mrb[0].mxu0
      %v4020 = vadd.f32 0.0, %v4019
      %v4021 = vpop.f32.mrb[0].mxu0
      %v4022 = vpop.f32.mrb[0].mxu0
      %v4023 = vpop.f32.mrb[0].mxu0
      %4024 = vdwg.mxu0
      %v4025 = vld [vmem:[%s1892] sm:$0x3]
      %v4027 = vsel %vm1845, %v4025, 0
      %4029 = vmatprep.subr.bf16.mxu0 0
      %4030 = vmatpush1.bf16.msra.mxu0 %v3983
      %4031 = vmatprep.subr.bf16.mxu0 0
      %4032 = vmatpush1.bf16.msra.mxu0 0
      %4033 = vmatprep.subr.bf16.mxu0 0
      %4034 = vmatpush1.bf16.msra.mxu0 0
      %4035 = vmatprep.subr.bf16.mxu0 0
      %4036 = vmatpush1.bf16.msra.mxu0 0
      %4037 = vmatprep.subr.bf16.mxu0 0
      %4038 = vmatpush1.bf16.msra.mxu0 0
      %4039 = vmatprep.subr.bf16.mxu0 0
      %4040 = vmatpush1.bf16.msra.mxu0 0
      %4041 = vmatprep.subr.bf16.mxu0 0
      %4042 = vmatpush1.bf16.msra.mxu0 0
      %4043 = vmatprep.subr.bf16.mxu0 0
      %4044 = vmatpush1.bf16.msra.mxu0 0
      %4045 = vmatprep.subr.bf16.mxu0 0
      %4046 = vmatpush1.bf16.msra.mxu0 0
      %4047 = vmatprep.subr.bf16.mxu0 0
      %4048 = vmatpush1.bf16.msra.mxu0 0
      %4049 = vmatprep.subr.bf16.mxu0 0
      %4050 = vmatpush1.bf16.msra.mxu0 0
      %4051 = vmatprep.subr.bf16.mxu0 0
      %4052 = vmatpush1.bf16.msra.mxu0 0
      %4053 = vmatprep.subr.bf16.mxu0 0
      %4054 = vmatpush1.bf16.msra.mxu0 0
      %4055 = vmatprep.subr.bf16.mxu0 0
      %4056 = vmatpush1.bf16.msra.mxu0 0
      %4057 = vmatprep.subr.bf16.mxu0 0
      %4058 = vmatpush1.bf16.msra.mxu0 0
      %4059 = vmatprep.subr.bf16.mxu0 0
      %4060 = vmatpush1.bf16.msra.mxu0 0
      %4061 = vmatprep.mubr.bf16.mxu0 0
      %4062 = vmatmul.mubr.bf16.gmra.mrb[0].mxu0 %v4027
      %v4063 = vpop.f32.mrb[0].mxu0
      %v4064 = vadd.f32 0.0, %v4063
      %v4065 = vpop.f32.mrb[0].mxu0
      %v4066 = vpop.f32.mrb[0].mxu0
      %v4067 = vpop.f32.mrb[0].mxu0
      %4068 = vdwg.mxu0
      %v4069 = vmax.f32 %v4020, %v4064
      %v4070 = vpack.c.bf16 %v4069, %v4069
      %v4071 = vld [vmem:[%s8] sm:$0xf]
      %v4072 = vld [vmem:[%s8 + $0x4] sm:$0xf]
      %v4073 = vld [vmem:[%s8 + $0x8] sm:$0xf]
      %v4074 = vld [vmem:[%s8 + $0xc] sm:$0xf]
      %v4075 = vld [vmem:[%s8 + $0x10] sm:$0xf]
      %v4076 = vld [vmem:[%s8 + $0x14] sm:$0xf]
      %v4077 = vld [vmem:[%s8 + $0x18] sm:$0xf]
      %v4078 = vld [vmem:[%s8 + $0x1c] sm:$0xf]
      %v4079 = vld [vmem:[%s8 + $0x20] sm:$0xf]
      %v4080 = vld [vmem:[%s8 + $0x24] sm:$0xf]
      %v4081 = vld [vmem:[%s8 + $0x28] sm:$0xf]
      %v4082 = vld [vmem:[%s8 + $0x2c] sm:$0xf]
      %v4083 = vld [vmem:[%s8 + $0x30] sm:$0xf]
      %v4084 = vld [vmem:[%s8 + $0x34] sm:$0xf]
      %v4085 = vld [vmem:[%s8 + $0x38] sm:$0xf]
      %v4086 = vld [vmem:[%s8 + $0x3c] sm:$0xf]
      %v4103 = vunpack.c.l.b16 %v4071
      %v4104 = vunpack.c.l.b16 %v4072
      %v4105 = vunpack.c.l.b16 %v4073
      %v4106 = vunpack.c.l.b16 %v4074
      %v4107 = vunpack.c.l.b16 %v4075
      %v4108 = vunpack.c.l.b16 %v4076
      %v4109 = vunpack.c.l.b16 %v4077
      %v4110 = vunpack.c.l.b16 %v4078
      %v4111 = vunpack.c.l.b16 %v4079
      %v4112 = vunpack.c.l.b16 %v4080
      %v4113 = vunpack.c.l.b16 %v4081
      %v4114 = vunpack.c.l.b16 %v4082
      %v4115 = vunpack.c.l.b16 %v4083
      %v4116 = vunpack.c.l.b16 %v4084
      %v4117 = vunpack.c.l.b16 %v4085
      %v4118 = vunpack.c.l.b16 %v4086
      %v4119 = vpack.c.b16 %v4104, %v4103
      %v4120 = vpack.c.b16 %v4106, %v4105
      %v4121 = vpack.c.b16 %v4108, %v4107
      %v4122 = vpack.c.b16 %v4110, %v4109
      %v4123 = vpack.c.b16 %v4112, %v4111
      %v4124 = vpack.c.b16 %v4114, %v4113
      %v4125 = vpack.c.b16 %v4116, %v4115
      %v4126 = vpack.c.b16 %v4118, %v4117
      %4135 = vmatprep.subr.bf16.mxu0 0
      %4136 = vmatpush1.bf16.msra.mxu0 %v4119
      %4137 = vmatprep.subr.bf16.mxu0 0
      %4138 = vmatpush1.bf16.msra.mxu0 %v4120
      %4139 = vmatprep.subr.bf16.mxu0 0
      %4140 = vmatpush1.bf16.msra.mxu0 %v4121
      %4141 = vmatprep.subr.bf16.mxu0 0
      %4142 = vmatpush1.bf16.msra.mxu0 %v4122
      %4143 = vmatprep.subr.bf16.mxu0 0
      %4144 = vmatpush1.bf16.msra.mxu0 %v4123
      %4145 = vmatprep.subr.bf16.mxu0 0
      %4146 = vmatpush1.bf16.msra.mxu0 %v4124
      %4147 = vmatprep.subr.bf16.mxu0 0
      %4148 = vmatpush1.bf16.msra.mxu0 %v4125
      %4149 = vmatprep.subr.bf16.mxu0 0
      %4150 = vmatpush1.bf16.msra.mxu0 %v4126
      %4151 = vmatprep.subr.bf16.mxu0 0
      %4152 = vmatpush1.bf16.msra.mxu0 0
      %4153 = vmatprep.subr.bf16.mxu0 0
      %4154 = vmatpush1.bf16.msra.mxu0 0
      %4155 = vmatprep.subr.bf16.mxu0 0
      %4156 = vmatpush1.bf16.msra.mxu0 0
      %4157 = vmatprep.subr.bf16.mxu0 0
      %4158 = vmatpush1.bf16.msra.mxu0 0
      %4159 = vmatprep.subr.bf16.mxu0 0
      %4160 = vmatpush1.bf16.msra.mxu0 0
      %4161 = vmatprep.subr.bf16.mxu0 0
      %4162 = vmatpush1.bf16.msra.mxu0 0
      %4163 = vmatprep.subr.bf16.mxu0 0
      %4164 = vmatpush1.bf16.msra.mxu0 0
      %4165 = vmatprep.subr.bf16.mxu0 0
      %4166 = vmatpush1.bf16.msra.mxu0 0
      %4167 = vmatprep.mubr.bf16.mxu0 0
      %4168 = vmatmul.mubr.bf16.gmra.mrb[0].mxu0 %v4070
      %v4169 = vpop.f32.mrb[0].mxu0
      %v4170 = vadd.f32 0.0, %v4169
      %v4171 = vpop.f32.mrb[0].mxu0
      %v4172 = vpop.f32.mrb[0].mxu0
      %v4173 = vpop.f32.mrb[0].mxu0
      %4174 = vdwg.mxu0
      %v4175 = vld [vmem:[%s2043] sm:$0xf]
      %v4176 = vld [vmem:[%s2043 + $0x4] sm:$0xf]
      %v4177 = vld [vmem:[%s2043 + $0x8] sm:$0xf]
      %v4178 = vld [vmem:[%s2043 + $0xc] sm:$0xf]
      %v4179 = vld [vmem:[%s2043 + $0x10] sm:$0xf]
      %v4180 = vld [vmem:[%s2043 + $0x14] sm:$0xf]
      %v4181 = vld [vmem:[%s2043 + $0x18] sm:$0xf]
      %v4182 = vld [vmem:[%s2043 + $0x1c] sm:$0xf]
      %v4183 = vld [vmem:[%s2043 + $0x20] sm:$0xf]
      %v4184 = vld [vmem:[%s2043 + $0x24] sm:$0xf]
      %v4185 = vld [vmem:[%s2043 + $0x28] sm:$0xf]
      %v4186 = vld [vmem:[%s2043 + $0x2c] sm:$0xf]
      %v4187 = vld [vmem:[%s2043 + $0x30] sm:$0xf]
      %v4188 = vld [vmem:[%s2043 + $0x34] sm:$0xf]
      %v4189 = vld [vmem:[%s2043 + $0x38] sm:$0xf]
      %v4190 = vld [vmem:[%s2043 + $0x3c] sm:$0xf]
      %v4207 = vunpack.c.l.b16 %v4175
      %v4208 = vunpack.c.l.b16 %v4176
      %v4209 = vunpack.c.l.b16 %v4177
      %v4210 = vunpack.c.l.b16 %v4178
      %v4211 = vunpack.c.l.b16 %v4179
      %v4212 = vunpack.c.l.b16 %v4180
      %v4213 = vunpack.c.l.b16 %v4181
      %v4214 = vunpack.c.l.b16 %v4182
      %v4215 = vunpack.c.l.b16 %v4183
      %v4216 = vunpack.c.l.b16 %v4184
      %v4217 = vunpack.c.l.b16 %v4185
      %v4218 = vunpack.c.l.b16 %v4186
      %v4219 = vunpack.c.l.b16 %v4187
      %v4220 = vunpack.c.l.b16 %v4188
      %v4221 = vunpack.c.l.b16 %v4189
      %v4222 = vunpack.c.l.b16 %v4190
      %v4223 = vpack.c.b16 %v4208, %v4207
      %v4224 = vpack.c.b16 %v4210, %v4209
      %v4225 = vpack.c.b16 %v4212, %v4211
      %v4226 = vpack.c.b16 %v4214, %v4213
      %v4227 = vpack.c.b16 %v4216, %v4215
      %v4228 = vpack.c.b16 %v4218, %v4217
      %v4229 = vpack.c.b16 %v4220, %v4219
      %v4230 = vpack.c.b16 %v4222, %v4221
      %4239 = vmatprep.subr.bf16.mxu0 0
      %4240 = vmatpush1.bf16.msra.mxu0 %v4223
      %4241 = vmatprep.subr.bf16.mxu0 0
      %4242 = vmatpush1.bf16.msra.mxu0 %v4224
      %4243 = vmatprep.subr.bf16.mxu0 0
      %4244 = vmatpush1.bf16.msra.mxu0 %v4225
      %4245 = vmatprep.subr.bf16.mxu0 0
      %4246 = vmatpush1.bf16.msra.mxu0 %v4226
      %4247 = vmatprep.subr.bf16.mxu0 0
      %4248 = vmatpush1.bf16.msra.mxu0 %v4227
      %4249 = vmatprep.subr.bf16.mxu0 0
      %4250 = vmatpush1.bf16.msra.mxu0 %v4228
      %4251 = vmatprep.subr.bf16.mxu0 0
      %4252 = vmatpush1.bf16.msra.mxu0 %v4229
      %4253 = vmatprep.subr.bf16.mxu0 0
      %4254 = vmatpush1.bf16.msra.mxu0 %v4230
      %4255 = vmatprep.subr.bf16.mxu0 0
      %4256 = vmatpush1.bf16.msra.mxu0 0
      %4257 = vmatprep.subr.bf16.mxu0 0
      %4258 = vmatpush1.bf16.msra.mxu0 0
      %4259 = vmatprep.subr.bf16.mxu0 0
      %4260 = vmatpush1.bf16.msra.mxu0 0
      %4261 = vmatprep.subr.bf16.mxu0 0
      %4262 = vmatpush1.bf16.msra.mxu0 0
      %4263 = vmatprep.subr.bf16.mxu0 0
      %4264 = vmatpush1.bf16.msra.mxu0 0
      %4265 = vmatprep.subr.bf16.mxu0 0
      %4266 = vmatpush1.bf16.msra.mxu0 0
      %4267 = vmatprep.subr.bf16.mxu0 0
      %4268 = vmatpush1.bf16.msra.mxu0 0
      %4269 = vmatprep.subr.bf16.mxu0 0
      %4270 = vmatpush1.bf16.msra.mxu0 0
      %4271 = vmatprep.mubr.bf16.mxu0 0
      %4272 = vmatmul.mubr.bf16.gmra.mrb[0].mxu0 %v4070
      %v4273 = vpop.f32.mrb[0].mxu0
      %v4274 = vadd.f32 0.0, %v4273
      %v4275 = vpop.f32.mrb[0].mxu0
      %v4276 = vpop.f32.mrb[0].mxu0
      %v4277 = vpop.f32.mrb[0].mxu0
      %4278 = vdwg.mxu0
      %v4279 = vmax.f32 %v4170, %v4274
      %v4280 = vmax.f32 %v4279, 0.0
      %v4281 = vpack.c.bf16 %v4280, %v4280
      %v4282 = vld [vmem:[%s9] sm:$0xf]
      %v4283 = vld [vmem:[%s9 + $0x4] sm:$0xf]
      %v4284 = vld [vmem:[%s9 + $0x8] sm:$0xf]
      %v4285 = vld [vmem:[%s9 + $0xc] sm:$0xf]
      %v4286 = vld [vmem:[%s9 + $0x10] sm:$0xf]
      %v4287 = vld [vmem:[%s9 + $0x14] sm:$0xf]
      %v4288 = vld [vmem:[%s9 + $0x18] sm:$0xf]
      %v4289 = vld [vmem:[%s9 + $0x1c] sm:$0xf]
      %v4290 = vld [vmem:[%s2159] sm:$0xf]
      %v4291 = vld [vmem:[%s2159 + $0x4] sm:$0xf]
      %v4292 = vld [vmem:[%s2159 + $0x8] sm:$0xf]
      %v4293 = vld [vmem:[%s2159 + $0xc] sm:$0xf]
      %v4294 = vld [vmem:[%s2159 + $0x10] sm:$0xf]
      %v4295 = vld [vmem:[%s2159 + $0x14] sm:$0xf]
      %v4296 = vld [vmem:[%s2159 + $0x18] sm:$0xf]
      %v4297 = vld [vmem:[%s2159 + $0x1c] sm:$0xf]
      %v4299 = vshrl.u32 %v4281, 16
      %v4301 = vshll.u32 %v4281, 16
      %v4303 = vrot.slane %v4301, 1
      %v4304 = vor.u32 %v4299, %v4303
      %v4313 = vunpack.c.l.b16 %v4290
      %v4314 = vunpack.c.l.b16 %v4291
      %v4315 = vunpack.c.l.b16 %v4292
      %v4316 = vunpack.c.l.b16 %v4293
      %v4317 = vunpack.c.l.b16 %v4294
      %v4318 = vunpack.c.l.b16 %v4295
      %v4319 = vunpack.c.l.b16 %v4296
      %v4320 = vunpack.c.l.b16 %v4297
      %v4321 = vpack.c.b16 %v4314, %v4313
      %v4322 = vpack.c.b16 %v4316, %v4315
      %v4323 = vpack.c.b16 %v4318, %v4317
      %v4324 = vpack.c.b16 %v4320, %v4319
      %v4330 = vsel %vm1172, %v4304, 0
      %4332 = vmatprep.subr.bf16.mxu0 0
      %4333 = vmatpush1.bf16.msra.mxu0 %v4321
      %4334 = vmatprep.subr.bf16.mxu0 0
      %4335 = vmatpush1.bf16.msra.mxu0 %v4322
      %4336 = vmatprep.subr.bf16.mxu0 0
      %4337 = vmatpush1.bf16.msra.mxu0 %v4323
      %4338 = vmatprep.subr.bf16.mxu0 0
      %4339 = vmatpush1.bf16.msra.mxu0 %v4324
      %4340 = vmatprep.subr.bf16.mxu0 0
      %4341 = vmatpush1.bf16.msra.mxu0 0
      %4342 = vmatprep.subr.bf16.mxu0 0
      %4343 = vmatpush1.bf16.msra.mxu0 0
      %4344 = vmatprep.subr.bf16.mxu0 0
      %4345 = vmatpush1.bf16.msra.mxu0 0
      %4346 = vmatprep.subr.bf16.mxu0 0
      %4347 = vmatpush1.bf16.msra.mxu0 0
      %4348 = vmatprep.subr.bf16.mxu0 0
      %4349 = vmatpush1.bf16.msra.mxu0 0
      %4350 = vmatprep.subr.bf16.mxu0 0
      %4351 = vmatpush1.bf16.msra.mxu0 0
      %4352 = vmatprep.subr.bf16.mxu0 0
      %4353 = vmatpush1.bf16.msra.mxu0 0
      %4354 = vmatprep.subr.bf16.mxu0 0
      %4355 = vmatpush1.bf16.msra.mxu0 0
      %4356 = vmatprep.subr.bf16.mxu0 0
      %4357 = vmatpush1.bf16.msra.mxu0 0
      %4358 = vmatprep.subr.bf16.mxu0 0
      %4359 = vmatpush1.bf16.msra.mxu0 0
      %4360 = vmatprep.subr.bf16.mxu0 0
      %4361 = vmatpush1.bf16.msra.mxu0 0
      %4362 = vmatprep.subr.bf16.mxu0 0
      %4363 = vmatpush1.bf16.msra.mxu0 0
      %4364 = vmatprep.mubr.bf16.mxu0 0
      %4365 = vmatmul.mubr.bf16.gmra.mrb[0].mxu0 %v4330
      %v4366 = vpop.f32.mrb[0].mxu0
      %v4367 = vadd.f32 0.0, %v4366
      %v4368 = vpop.f32.mrb[0].mxu0
      %v4369 = vpop.f32.mrb[0].mxu0
      %v4370 = vpop.f32.mrb[0].mxu0
      %4371 = vdwg.mxu0
      %v4380 = vunpack.c.l.b16 %v4282
      %v4381 = vunpack.c.l.b16 %v4283
      %v4382 = vunpack.c.l.b16 %v4284
      %v4383 = vunpack.c.l.b16 %v4285
      %v4384 = vunpack.c.l.b16 %v4286
      %v4385 = vunpack.c.l.b16 %v4287
      %v4386 = vunpack.c.l.b16 %v4288
      %v4387 = vunpack.c.l.b16 %v4289
      %v4388 = vpack.c.b16 %v4381, %v4380
      %v4389 = vpack.c.b16 %v4383, %v4382
      %v4390 = vpack.c.b16 %v4385, %v4384
      %v4391 = vpack.c.b16 %v4387, %v4386
      %v4396 = vsel %vm1172, %v4281, 0
      %4398 = vmatprep.subr.bf16.mxu0 0
      %4399 = vmatpush1.bf16.msra.mxu0 %v4388
      %4400 = vmatprep.subr.bf16.mxu0 0
      %4401 = vmatpush1.bf16.msra.mxu0 %v4389
      %4402 = vmatprep.subr.bf16.mxu0 0
      %4403 = vmatpush1.bf16.msra.mxu0 %v4390
      %4404 = vmatprep.subr.bf16.mxu0 0
      %4405 = vmatpush1.bf16.msra.mxu0 %v4391
      %4406 = vmatprep.subr.bf16.mxu0 0
      %4407 = vmatpush1.bf16.msra.mxu0 0
      %4408 = vmatprep.subr.bf16.mxu0 0
      %4409 = vmatpush1.bf16.msra.mxu0 0
      %4410 = vmatprep.subr.bf16.mxu0 0
      %4411 = vmatpush1.bf16.msra.mxu0 0
      %4412 = vmatprep.subr.bf16.mxu0 0
      %4413 = vmatpush1.bf16.msra.mxu0 0
      %4414 = vmatprep.subr.bf16.mxu0 0
      %4415 = vmatpush1.bf16.msra.mxu0 0
      %4416 = vmatprep.subr.bf16.mxu0 0
      %4417 = vmatpush1.bf16.msra.mxu0 0
      %4418 = vmatprep.subr.bf16.mxu0 0
      %4419 = vmatpush1.bf16.msra.mxu0 0
      %4420 = vmatprep.subr.bf16.mxu0 0
      %4421 = vmatpush1.bf16.msra.mxu0 0
      %4422 = vmatprep.subr.bf16.mxu0 0
      %4423 = vmatpush1.bf16.msra.mxu0 0
      %4424 = vmatprep.subr.bf16.mxu0 0
      %4425 = vmatpush1.bf16.msra.mxu0 0
      %4426 = vmatprep.subr.bf16.mxu0 0
      %4427 = vmatpush1.bf16.msra.mxu0 0
      %4428 = vmatprep.subr.bf16.mxu0 0
      %4429 = vmatpush1.bf16.msra.mxu0 0
      %4430 = vmatprep.mubr.bf16.mxu0 0
      %4431 = vmatmul.mubr.bf16.gmra.mrb[0].mxu0 %v4396
      %v4432 = vpop.f32.mrb[0].mxu0
      %v4433 = vadd.f32 %v4367, %v4432
      %v4434 = vpop.f32.mrb[0].mxu0
      %v4435 = vpop.f32.mrb[0].mxu0
      %v4436 = vpop.f32.mrb[0].mxu0
      %4437 = vdwg.mxu0
      %v4438 = vld [vmem:[%s2308] sm:$0xf]
      %v4439 = vld [vmem:[%s2308 + $0x4] sm:$0xf]
      %v4440 = vld [vmem:[%s2308 + $0x8] sm:$0xf]
      %v4441 = vld [vmem:[%s2308 + $0xc] sm:$0xf]
      %v4442 = vld [vmem:[%s2308 + $0x10] sm:$0xf]
      %v4443 = vld [vmem:[%s2308 + $0x14] sm:$0xf]
      %v4444 = vld [vmem:[%s2308 + $0x18] sm:$0xf]
      %v4445 = vld [vmem:[%s2308 + $0x1c] sm:$0xf]
      %v4447 = vrot.slane %v4281, 1
      %v4456 = vunpack.c.l.b16 %v4438
      %v4457 = vunpack.c.l.b16 %v4439
      %v4458 = vunpack.c.l.b16 %v4440
      %v4459 = vunpack.c.l.b16 %v4441
      %v4460 = vunpack.c.l.b16 %v4442
      %v4461 = vunpack.c.l.b16 %v4443
      %v4462 = vunpack.c.l.b16 %v4444
      %v4463 = vunpack.c.l.b16 %v4445
      %v4464 = vpack.c.b16 %v4457, %v4456
      %v4465 = vpack.c.b16 %v4459, %v4458
      %v4466 = vpack.c.b16 %v4461, %v4460
      %v4467 = vpack.c.b16 %v4463, %v4462
      %v4473 = vsel %vm1172, %v4447, 0
      %4475 = vmatprep.subr.bf16.mxu0 0
      %4476 = vmatpush1.bf16.msra.mxu0 %v4464
      %4477 = vmatprep.subr.bf16.mxu0 0
      %4478 = vmatpush1.bf16.msra.mxu0 %v4465
      %4479 = vmatprep.subr.bf16.mxu0 0
      %4480 = vmatpush1.bf16.msra.mxu0 %v4466
      %4481 = vmatprep.subr.bf16.mxu0 0
      %4482 = vmatpush1.bf16.msra.mxu0 %v4467
      %4483 = vmatprep.subr.bf16.mxu0 0
      %4484 = vmatpush1.bf16.msra.mxu0 0
      %4485 = vmatprep.subr.bf16.mxu0 0
      %4486 = vmatpush1.bf16.msra.mxu0 0
      %4487 = vmatprep.subr.bf16.mxu0 0
      %4488 = vmatpush1.bf16.msra.mxu0 0
      %4489 = vmatprep.subr.bf16.mxu0 0
      %4490 = vmatpush1.bf16.msra.mxu0 0
      %4491 = vmatprep.subr.bf16.mxu0 0
      %4492 = vmatpush1.bf16.msra.mxu0 0
      %4493 = vmatprep.subr.bf16.mxu0 0
      %4494 = vmatpush1.bf16.msra.mxu0 0
      %4495 = vmatprep.subr.bf16.mxu0 0
      %4496 = vmatpush1.bf16.msra.mxu0 0
      %4497 = vmatprep.subr.bf16.mxu0 0
      %4498 = vmatpush1.bf16.msra.mxu0 0
      %4499 = vmatprep.subr.bf16.mxu0 0
      %4500 = vmatpush1.bf16.msra.mxu0 0
      %4501 = vmatprep.subr.bf16.mxu0 0
      %4502 = vmatpush1.bf16.msra.mxu0 0
      %4503 = vmatprep.subr.bf16.mxu0 0
      %4504 = vmatpush1.bf16.msra.mxu0 0
      %4505 = vmatprep.subr.bf16.mxu0 0
      %4506 = vmatpush1.bf16.msra.mxu0 0
      %4507 = vmatprep.mubr.bf16.mxu0 0
      %4508 = vmatmul.mubr.bf16.gmra.mrb[0].mxu0 %v4473
      %v4509 = vpop.f32.mrb[0].mxu0
      %v4510 = vadd.f32 0.0, %v4509
      %v4511 = vpop.f32.mrb[0].mxu0
      %v4512 = vpop.f32.mrb[0].mxu0
      %v4513 = vpop.f32.mrb[0].mxu0
      %4514 = vdwg.mxu0
      %v4515 = vadd.f32 %v4433, %v4510
      %v4516 = vld [vmem:[%s10] sm:$0x1]
      %v4518 = vlaneseq
      %v4519 = vshrl.u32 %v4518, 7
      %v4520 = vsub.s32 0, %v4519
      %v4521 = vrot.slane %v4516, %v4520
      %v4523 = vadd.f32 %v4515, %v4521
      %v4525 = vrot.slane %v4523, 1
      %v4527 = vmax.f32 %v4523, %v4525
      %v4528 = vpack.c.bf16 %v4527, %v4527
      %v4529 = vld [vmem:[%s11] sm:$0xf]
      %v4530 = vld [vmem:[%s11 + $0x4] sm:$0xf]
      %v4531 = vld [vmem:[%s11 + $0x8] sm:$0xf]
      %v4532 = vld [vmem:[%s11 + $0xc] sm:$0xf]
      %v4533 = vld [vmem:[%s11 + $0x10] sm:$0xf]
      %v4534 = vld [vmem:[%s11 + $0x14] sm:$0xf]
      %v4535 = vld [vmem:[%s11 + $0x18] sm:$0xf]
      %v4536 = vld [vmem:[%s11 + $0x1c] sm:$0xf]
      %v4545 = vunpack.c.l.b16 %v4529
      %v4546 = vunpack.c.l.b16 %v4530
      %v4547 = vunpack.c.l.b16 %v4531
      %v4548 = vunpack.c.l.b16 %v4532
      %v4549 = vunpack.c.l.b16 %v4533
      %v4550 = vunpack.c.l.b16 %v4534
      %v4551 = vunpack.c.l.b16 %v4535
      %v4552 = vunpack.c.l.b16 %v4536
      %v4553 = vpack.c.b16 %v4546, %v4545
      %v4554 = vpack.c.b16 %v4548, %v4547
      %v4555 = vpack.c.b16 %v4550, %v4549
      %v4556 = vpack.c.b16 %v4552, %v4551
      %v4562 = vsel %vm1172, %v4528, 0
      %4564 = vmatprep.subr.bf16.mxu0 0
      %4565 = vmatpush1.bf16.msra.mxu0 %v4553
      %4566 = vmatprep.subr.bf16.mxu0 0
      %4567 = vmatpush1.bf16.msra.mxu0 %v4554
      %4568 = vmatprep.subr.bf16.mxu0 0
      %4569 = vmatpush1.bf16.msra.mxu0 %v4555
      %4570 = vmatprep.subr.bf16.mxu0 0
      %4571 = vmatpush1.bf16.msra.mxu0 %v4556
      %4572 = vmatprep.subr.bf16.mxu0 0
      %4573 = vmatpush1.bf16.msra.mxu0 0
      %4574 = vmatprep.subr.bf16.mxu0 0
      %4575 = vmatpush1.bf16.msra.mxu0 0
      %4576 = vmatprep.subr.bf16.mxu0 0
      %4577 = vmatpush1.bf16.msra.mxu0 0
      %4578 = vmatprep.subr.bf16.mxu0 0
      %4579 = vmatpush1.bf16.msra.mxu0 0
      %4580 = vmatprep.subr.bf16.mxu0 0
      %4581 = vmatpush1.bf16.msra.mxu0 0
      %4582 = vmatprep.subr.bf16.mxu0 0
      %4583 = vmatpush1.bf16.msra.mxu0 0
      %4584 = vmatprep.subr.bf16.mxu0 0
      %4585 = vmatpush1.bf16.msra.mxu0 0
      %4586 = vmatprep.subr.bf16.mxu0 0
      %4587 = vmatpush1.bf16.msra.mxu0 0
      %4588 = vmatprep.subr.bf16.mxu0 0
      %4589 = vmatpush1.bf16.msra.mxu0 0
      %4590 = vmatprep.subr.bf16.mxu0 0
      %4591 = vmatpush1.bf16.msra.mxu0 0
      %4592 = vmatprep.subr.bf16.mxu0 0
      %4593 = vmatpush1.bf16.msra.mxu0 0
      %4594 = vmatprep.subr.bf16.mxu0 0
      %4595 = vmatpush1.bf16.msra.mxu0 0
      %4596 = vmatprep.mubr.bf16.mxu0 0
      %4597 = vmatmul.mubr.bf16.gmra.mrb[0].mxu0 %v4562
      %v4598 = vpop.f32.mrb[0].mxu0
      %v4599 = vadd.f32 0.0, %v4598
      %v4600 = vpop.f32.mrb[0].mxu0
      %v4601 = vpop.f32.mrb[0].mxu0
      %v4602 = vpop.f32.mrb[0].mxu0
      %4603 = vdwg.mxu0
      %v4604 = vld [vmem:[%s2475] sm:$0xf]
      %v4605 = vld [vmem:[%s2475 + $0x4] sm:$0xf]
      %v4606 = vld [vmem:[%s2475 + $0x8] sm:$0xf]
      %v4607 = vld [vmem:[%s2475 + $0xc] sm:$0xf]
      %v4608 = vld [vmem:[%s2475 + $0x10] sm:$0xf]
      %v4609 = vld [vmem:[%s2475 + $0x14] sm:$0xf]
      %v4610 = vld [vmem:[%s2475 + $0x18] sm:$0xf]
      %v4611 = vld [vmem:[%s2475 + $0x1c] sm:$0xf]
      %v4620 = vunpack.c.l.b16 %v4604
      %v4621 = vunpack.c.l.b16 %v4605
      %v4622 = vunpack.c.l.b16 %v4606
      %v4623 = vunpack.c.l.b16 %v4607
      %v4624 = vunpack.c.l.b16 %v4608
      %v4625 = vunpack.c.l.b16 %v4609
      %v4626 = vunpack.c.l.b16 %v4610
      %v4627 = vunpack.c.l.b16 %v4611
      %v4628 = vpack.c.b16 %v4621, %v4620
      %v4629 = vpack.c.b16 %v4623, %v4622
      %v4630 = vpack.c.b16 %v4625, %v4624
      %v4631 = vpack.c.b16 %v4627, %v4626
      %4636 = vmatprep.subr.bf16.mxu0 0
      %4637 = vmatpush1.bf16.msra.mxu0 %v4628
      %4638 = vmatprep.subr.bf16.mxu0 0
      %4639 = vmatpush1.bf16.msra.mxu0 %v4629
      %4640 = vmatprep.subr.bf16.mxu0 0
      %4641 = vmatpush1.bf16.msra.mxu0 %v4630
      %4642 = vmatprep.subr.bf16.mxu0 0
      %4643 = vmatpush1.bf16.msra.mxu0 %v4631
      %4644 = vmatprep.subr.bf16.mxu0 0
      %4645 = vmatpush1.bf16.msra.mxu0 0
      %4646 = vmatprep.subr.bf16.mxu0 0
      %4647 = vmatpush1.bf16.msra.mxu0 0
      %4648 = vmatprep.subr.bf16.mxu0 0
      %4649 = vmatpush1.bf16.msra.mxu0 0
      %4650 = vmatprep.subr.bf16.mxu0 0
      %4651 = vmatpush1.bf16.msra.mxu0 0
      %4652 = vmatprep.subr.bf16.mxu0 0
      %4653 = vmatpush1.bf16.msra.mxu0 0
      %4654 = vmatprep.subr.bf16.mxu0 0
      %4655 = vmatpush1.bf16.msra.mxu0 0
      %4656 = vmatprep.subr.bf16.mxu0 0
      %4657 = vmatpush1.bf16.msra.mxu0 0
      %4658 = vmatprep.subr.bf16.mxu0 0
      %4659 = vmatpush1.bf16.msra.mxu0 0
      %4660 = vmatprep.subr.bf16.mxu0 0
      %4661 = vmatpush1.bf16.msra.mxu0 0
      %4662 = vmatprep.subr.bf16.mxu0 0
      %4663 = vmatpush1.bf16.msra.mxu0 0
      %4664 = vmatprep.subr.bf16.mxu0 0
      %4665 = vmatpush1.bf16.msra.mxu0 0
      %4666 = vmatprep.subr.bf16.mxu0 0
      %4667 = vmatpush1.bf16.msra.mxu0 0
      %4668 = vmatprep.mubr.bf16.mxu0 0
      %4669 = vmatmul.mubr.bf16.gmra.mrb[0].mxu0 %v4562
      %v4670 = vpop.f32.mrb[0].mxu0
      %v4671 = vadd.f32 0.0, %v4670
      %v4672 = vpop.f32.mrb[0].mxu0
      %v4673 = vpop.f32.mrb[0].mxu0
      %v4674 = vpop.f32.mrb[0].mxu0
      %4675 = vdwg.mxu0
      %v4676 = vmax.f32 %v4599, %v4671
      %v4677 = vmax.f32 %v4676, 0.0
      %v4678 = vmul.f32 %v4677, %v4677
      %v4679 = vsel %vm2551, %v4678, 0.0
      %4680 = vadd.xlane.f32.xlu0 %v4679
      %v4681 = vpop.xlane.xlu0 %4680
      %v4682 = vrot.slane %v4681, 4
      %v4683 = vadd.f32 %v4681, %v4682
      %v4684 = vrot.slane %v4683, 2
      %v4685 = vadd.f32 %v4683, %v4684
      %v4686 = vrot.slane %v4685, 1
      %v4687 = vadd.f32 %v4685, %v4686
      %s4688 = vtos %v4687
      %s4689 = smax.f32 %s4688, 1e-24
      %v4690 = vstv %s4689
      %v4691 = vrsqrt.pop %v4690
      %s4692 = vtos %v4691
      %v4693 = vstv %s4692
      %v4694 = vmul.f32 %v4677, %v4693
      %4696 = vrot.lane.b32.xlu0 %v4694, 32
      %v4697 = vpop.permute.xlu0 %4696
      %vm4699 = vcmask 516352
      %4700 = vst.msk [vmem:[%s414] sm:$0x1] %vm4699, %v4697
      %s4701 = scalar_lea.vmem %s410, 32
      %v4702 = vld [vmem:[%s4701] sm:$0xf]
      %v4703 = vld [vmem:[%s4701 + $0x4] sm:$0xf]
      %v4704 = vld [vmem:[%s4701 + $0x8] sm:$0xf]
      %v4705 = vld [vmem:[%s1] sm:$0xff]
      %v4706 = vld [vmem:[%s1 + $0x8] sm:$0xff]
      %v4707 = vld [vmem:[%s1 + $0x10] sm:$0xff]
      %v4708 = vld [vmem:[%s1 + $0x18] sm:$0x33]
      %v4709 = vld [vmem:[%s4701 + $0xc] sm:$0x1]
      %v4710 = vld [vmem:[%s424] sm:$0xff]
      %v4711 = vld [vmem:[%s424 + $0x8] sm:$0xff]
      %v4712 = vld [vmem:[%s424 + $0x10] sm:$0xff]
      %v4713 = vld [vmem:[%s424 + $0x18] sm:$0x33]
      %v4718 = vunpack.c.l.b16 %v4702
      %v4719 = vunpack.c.l.b16 %v4703
      %v4720 = vunpack.c.l.b16 %v4704
      %v4721 = vunpack.c.l.b16 %v4709
      %v4722 = vpack.c.b16 %v4719, %v4718
      %v4723 = vpack.c.b16 %v4721, %v4720
      %v4725 = vshrl.u32 %v4722, 16
      %v4727 = vshll.u32 %v4722, 16
      %v4729 = vrot.slane %v4727, 1
      %v4730 = vor.u32 %v4725, %v4729
      %v4732 = vshll.u32 %v4723, 16
      %v4734 = vrot.slane %v4732, 1
      %v4735 = vsel %vm439, %v4730, %v4734
      %v4736 = vshrl.u32 %v4723, 16
      %v4738 = vor.u32 %v4736, %v4734
      %v4743 = vunpack.c.l.b16 %v4710
      %v4744 = vunpack.c.h.b16 %v4710
      %v4745 = vunpack.c.l.b16 %v4711
      %v4746 = vunpack.c.h.b16 %v4711
      %v4747 = vunpack.c.l.b16 %v4712
      %v4748 = vunpack.c.h.b16 %v4712
      %v4749 = vunpack.c.l.b16 %v4713
      %v4750 = vunpack.c.h.b16 %v4713
      %v4751 = vpack.c.b16 %v4745, %v4743
      %v4752 = vpack.c.b16 %v4746, %v4744
      %v4753 = vpack.c.b16 %v4749, %v4747
      %v4754 = vpack.c.b16 %v4750, %v4748
      %v4758 = vsel %vm473, %v4735, 0
      %v4761 = vsel %vm473, %v4738, 0
      %v4764 = vsel %vm480, %v4753, 0
      %v4767 = vsel %vm480, %v4754, 0
      %4769 = vmatprep.subr.bf16.mxu0 %v4752
      %4770 = vmatpush1.bf16.msra.mxu0 %v4751
      %4771 = vmatprep.subr.bf16.mxu0 %v4767
      %4772 = vmatpush1.bf16.msra.mxu0 %v4764
      %4773 = vmatprep.subr.bf16.mxu0 0
      %4774 = vmatpush1.bf16.msra.mxu0 0
      %4775 = vmatprep.subr.bf16.mxu0 0
      %4776 = vmatpush1.bf16.msra.mxu0 0
      %4777 = vmatprep.subr.bf16.mxu0 0
      %4778 = vmatpush1.bf16.msra.mxu0 0
      %4779 = vmatprep.subr.bf16.mxu0 0
      %4780 = vmatpush1.bf16.msra.mxu0 0
      %4781 = vmatprep.subr.bf16.mxu0 0
      %4782 = vmatpush1.bf16.msra.mxu0 0
      %4783 = vmatprep.subr.bf16.mxu0 0
      %4784 = vmatpush1.bf16.msra.mxu0 0
      %4785 = vmatprep.subr.bf16.mxu0 0
      %4786 = vmatpush1.bf16.msra.mxu0 0
      %4787 = vmatprep.subr.bf16.mxu0 0
      %4788 = vmatpush1.bf16.msra.mxu0 0
      %4789 = vmatprep.subr.bf16.mxu0 0
      %4790 = vmatpush1.bf16.msra.mxu0 0
      %4791 = vmatprep.subr.bf16.mxu0 0
      %4792 = vmatpush1.bf16.msra.mxu0 0
      %4793 = vmatprep.subr.bf16.mxu0 0
      %4794 = vmatpush1.bf16.msra.mxu0 0
      %4795 = vmatprep.subr.bf16.mxu0 0
      %4796 = vmatpush1.bf16.msra.mxu0 0
      %4797 = vmatprep.subr.bf16.mxu0 0
      %4798 = vmatpush1.bf16.msra.mxu0 0
      %4799 = vmatprep.subr.bf16.mxu0 0
      %4800 = vmatpush1.bf16.msra.mxu0 0
      %4801 = vmatprep.mubr.bf16.mxu0 0
      %4802 = vmatmul.mubr.bf16.gmra.mrb[0].mxu0 %v4758
      %v4803 = vpop.f32.mrb[0].mxu0
      %v4804 = vadd.f32 0.0, %v4803
      %v4805 = vpop.f32.mrb[0].mxu0
      %v4806 = vadd.f32 0.0, %v4805
      %v4807 = vpop.f32.mrb[0].mxu0
      %v4808 = vadd.f32 0.0, %v4807
      %v4809 = vpop.f32.mrb[0].mxu0
      %v4810 = vadd.f32 0.0, %v4809
      %4811 = vmatprep.mubr.bf16.mxu0 0
      %4812 = vmatmul.mubr.bf16.gmra.mrb[0].mxu0 %v4761
      %v4813 = vpop.f32.mrb[0].mxu0
      %v4814 = vadd.f32 0.0, %v4813
      %v4815 = vpop.f32.mrb[0].mxu0
      %v4816 = vadd.f32 0.0, %v4815
      %v4817 = vpop.f32.mrb[0].mxu0
      %v4818 = vpop.f32.mrb[0].mxu0
      %4819 = vdwg.mxu0
      %v4820 = vpack.c.b16 %v4720, %v4720
      %v4825 = vunpack.c.l.b16 %v4705
      %v4826 = vunpack.c.h.b16 %v4705
      %v4827 = vunpack.c.l.b16 %v4706
      %v4828 = vunpack.c.h.b16 %v4706
      %v4829 = vunpack.c.l.b16 %v4707
      %v4830 = vunpack.c.h.b16 %v4707
      %v4831 = vunpack.c.l.b16 %v4708
      %v4832 = vunpack.c.h.b16 %v4708
      %v4833 = vpack.c.b16 %v4827, %v4825
      %v4834 = vpack.c.b16 %v4828, %v4826
      %v4835 = vpack.c.b16 %v4831, %v4829
      %v4836 = vpack.c.b16 %v4832, %v4830
      %v4839 = vsel %vm473, %v4722, 0
      %v4842 = vsel %vm473, %v4820, 0
      %v4845 = vsel %vm480, %v4835, 0
      %v4848 = vsel %vm480, %v4836, 0
      %4850 = vmatprep.subr.bf16.mxu0 %v4834
      %4851 = vmatpush1.bf16.msra.mxu0 %v4833
      %4852 = vmatprep.subr.bf16.mxu0 %v4848
      %4853 = vmatpush1.bf16.msra.mxu0 %v4845
      %4854 = vmatprep.subr.bf16.mxu0 0
      %4855 = vmatpush1.bf16.msra.mxu0 0
      %4856 = vmatprep.subr.bf16.mxu0 0
      %4857 = vmatpush1.bf16.msra.mxu0 0
      %4858 = vmatprep.subr.bf16.mxu0 0
      %4859 = vmatpush1.bf16.msra.mxu0 0
      %4860 = vmatprep.subr.bf16.mxu0 0
      %4861 = vmatpush1.bf16.msra.mxu0 0
      %4862 = vmatprep.subr.bf16.mxu0 0
      %4863 = vmatpush1.bf16.msra.mxu0 0
      %4864 = vmatprep.subr.bf16.mxu0 0
      %4865 = vmatpush1.bf16.msra.mxu0 0
      %4866 = vmatprep.subr.bf16.mxu0 0
      %4867 = vmatpush1.bf16.msra.mxu0 0
      %4868 = vmatprep.subr.bf16.mxu0 0
      %4869 = vmatpush1.bf16.msra.mxu0 0
      %4870 = vmatprep.subr.bf16.mxu0 0
      %4871 = vmatpush1.bf16.msra.mxu0 0
      %4872 = vmatprep.subr.bf16.mxu0 0
      %4873 = vmatpush1.bf16.msra.mxu0 0
      %4874 = vmatprep.subr.bf16.mxu0 0
      %4875 = vmatpush1.bf16.msra.mxu0 0
      %4876 = vmatprep.subr.bf16.mxu0 0
      %4877 = vmatpush1.bf16.msra.mxu0 0
      %4878 = vmatprep.subr.bf16.mxu0 0
      %4879 = vmatpush1.bf16.msra.mxu0 0
      %4880 = vmatprep.subr.bf16.mxu0 0
      %4881 = vmatpush1.bf16.msra.mxu0 0
      %4882 = vmatprep.mubr.bf16.mxu0 0
      %4883 = vmatmul.mubr.bf16.gmra.mrb[0].mxu0 %v4839
      %v4884 = vpop.f32.mrb[0].mxu0
      %v4885 = vadd.f32 %v4804, %v4884
      %v4886 = vpop.f32.mrb[0].mxu0
      %v4887 = vadd.f32 %v4806, %v4886
      %v4888 = vpop.f32.mrb[0].mxu0
      %v4889 = vadd.f32 %v4808, %v4888
      %v4890 = vpop.f32.mrb[0].mxu0
      %v4891 = vadd.f32 %v4810, %v4890
      %4892 = vmatprep.mubr.bf16.mxu0 0
      %4893 = vmatmul.mubr.bf16.gmra.mrb[0].mxu0 %v4842
      %v4894 = vpop.f32.mrb[0].mxu0
      %v4895 = vadd.f32 %v4814, %v4894
      %v4896 = vpop.f32.mrb[0].mxu0
      %v4897 = vadd.f32 %v4816, %v4896
      %v4898 = vpop.f32.mrb[0].mxu0
      %v4899 = vpop.f32.mrb[0].mxu0
      %4900 = vdwg.mxu0
      %v4901 = vld [vmem:[%s4701] sm:$0xe]
      %v4902 = vld [vmem:[%s620] sm:$0xff]
      %v4903 = vld [vmem:[%s620 + $0x8] sm:$0xff]
      %v4904 = vld [vmem:[%s620 + $0x10] sm:$0xff]
      %v4905 = vld [vmem:[%s620 + $0x18] sm:$0x33]
      %v4907 = vunpack.c.l.b16 %v4901
      %v4908 = vpack.c.b16 %v4719, %v4907
      %v4909 = vrot.slane %v4908, 1
      %v4910 = vrot.slane %v4723, 1
      %v4911 = vsel %vm628, %v4909, %v4910
      %v4916 = vunpack.c.l.b16 %v4902
      %v4917 = vunpack.c.h.b16 %v4902
      %v4918 = vunpack.c.l.b16 %v4903
      %v4919 = vunpack.c.h.b16 %v4903
      %v4920 = vunpack.c.l.b16 %v4904
      %v4921 = vunpack.c.h.b16 %v4904
      %v4922 = vunpack.c.l.b16 %v4905
      %v4923 = vunpack.c.h.b16 %v4905
      %v4924 = vpack.c.b16 %v4918, %v4916
      %v4925 = vpack.c.b16 %v4919, %v4917
      %v4926 = vpack.c.b16 %v4922, %v4920
      %v4927 = vpack.c.b16 %v4923, %v4921
      %v4931 = vsel %vm473, %v4911, 0
      %v4934 = vsel %vm473, %v4910, 0
      %v4937 = vsel %vm480, %v4926, 0
      %v4940 = vsel %vm480, %v4927, 0
      %4942 = vmatprep.subr.bf16.mxu0 %v4925
      %4943 = vmatpush1.bf16.msra.mxu0 %v4924
      %4944 = vmatprep.subr.bf16.mxu0 %v4940
      %4945 = vmatpush1.bf16.msra.mxu0 %v4937
      %4946 = vmatprep.subr.bf16.mxu0 0
      %4947 = vmatpush1.bf16.msra.mxu0 0
      %4948 = vmatprep.subr.bf16.mxu0 0
      %4949 = vmatpush1.bf16.msra.mxu0 0
      %4950 = vmatprep.subr.bf16.mxu0 0
      %4951 = vmatpush1.bf16.msra.mxu0 0
      %4952 = vmatprep.subr.bf16.mxu0 0
      %4953 = vmatpush1.bf16.msra.mxu0 0
      %4954 = vmatprep.subr.bf16.mxu0 0
      %4955 = vmatpush1.bf16.msra.mxu0 0
      %4956 = vmatprep.subr.bf16.mxu0 0
      %4957 = vmatpush1.bf16.msra.mxu0 0
      %4958 = vmatprep.subr.bf16.mxu0 0
      %4959 = vmatpush1.bf16.msra.mxu0 0
      %4960 = vmatprep.subr.bf16.mxu0 0
      %4961 = vmatpush1.bf16.msra.mxu0 0
      %4962 = vmatprep.subr.bf16.mxu0 0
      %4963 = vmatpush1.bf16.msra.mxu0 0
      %4964 = vmatprep.subr.bf16.mxu0 0
      %4965 = vmatpush1.bf16.msra.mxu0 0
      %4966 = vmatprep.subr.bf16.mxu0 0
      %4967 = vmatpush1.bf16.msra.mxu0 0
      %4968 = vmatprep.subr.bf16.mxu0 0
      %4969 = vmatpush1.bf16.msra.mxu0 0
      %4970 = vmatprep.subr.bf16.mxu0 0
      %4971 = vmatpush1.bf16.msra.mxu0 0
      %4972 = vmatprep.subr.bf16.mxu0 0
      %4973 = vmatpush1.bf16.msra.mxu0 0
      %4974 = vmatprep.mubr.bf16.mxu0 0
      %4975 = vmatmul.mubr.bf16.gmra.mrb[0].mxu0 %v4931
      %v4976 = vpop.f32.mrb[0].mxu0
      %v4977 = vadd.f32 0.0, %v4976
      %v4978 = vpop.f32.mrb[0].mxu0
      %v4979 = vadd.f32 0.0, %v4978
      %v4980 = vpop.f32.mrb[0].mxu0
      %v4981 = vadd.f32 0.0, %v4980
      %v4982 = vpop.f32.mrb[0].mxu0
      %v4983 = vadd.f32 0.0, %v4982
      %4984 = vmatprep.mubr.bf16.mxu0 0
      %4985 = vmatmul.mubr.bf16.gmra.mrb[0].mxu0 %v4934
      %v4986 = vpop.f32.mrb[0].mxu0
      %v4987 = vadd.f32 0.0, %v4986
      %v4988 = vpop.f32.mrb[0].mxu0
      %v4989 = vadd.f32 0.0, %v4988
      %v4990 = vpop.f32.mrb[0].mxu0
      %v4991 = vpop.f32.mrb[0].mxu0
      %4992 = vdwg.mxu0
      %v4993 = vadd.f32 %v4885, %v4977
      %v4994 = vadd.f32 %v4887, %v4979
      %v4995 = vadd.f32 %v4889, %v4981
      %v4996 = vadd.f32 %v4891, %v4983
      %v4997 = vadd.f32 %v4895, %v4987
      %v4998 = vadd.f32 %v4897, %v4989
      %v4999 = vld [vmem:[%s4701 + $0xc] sm:$0x3]
      %v5000 = vld [vmem:[%s720] sm:$0xff]
      %v5001 = vld [vmem:[%s720 + $0x8] sm:$0xff]
      %v5002 = vld [vmem:[%s720 + $0x10] sm:$0xff]
      %v5003 = vld [vmem:[%s720 + $0x18] sm:$0x33]
      %v5005 = vunpack.c.l.b16 %v4999
      %v5006 = vpack.c.b16 %v5005, %v4720
      %v5008 = vshrl.u32 %v4908, 16
      %v5010 = vrot.slane %v5008, 1
      %v5011 = vshll.u32 %v4908, 16
      %v5013 = vrot.slane %v5011, 2
      %v5014 = vor.u32 %v5010, %v5013
      %v5016 = vshrl.u32 %v5006, 16
      %v5018 = vrot.slane %v5016, 1
      %v5019 = vshll.u32 %v5006, 16
      %v5021 = vrot.slane %v5019, 2
      %v5022 = vor.u32 %v5018, %v5021
      %v5023 = vsel %vm728, %v5014, %v5022
      %v5028 = vunpack.c.l.b16 %v5000
      %v5029 = vunpack.c.h.b16 %v5000
      %v5030 = vunpack.c.l.b16 %v5001
      %v5031 = vunpack.c.h.b16 %v5001
      %v5032 = vunpack.c.l.b16 %v5002
      %v5033 = vunpack.c.h.b16 %v5002
      %v5034 = vunpack.c.l.b16 %v5003
      %v5035 = vunpack.c.h.b16 %v5003
      %v5036 = vpack.c.b16 %v5030, %v5028
      %v5037 = vpack.c.b16 %v5031, %v5029
      %v5038 = vpack.c.b16 %v5034, %v5032
      %v5039 = vpack.c.b16 %v5035, %v5033
      %v5043 = vsel %vm473, %v5023, 0
      %v5046 = vsel %vm473, %v5022, 0
      %v5049 = vsel %vm480, %v5038, 0
      %v5052 = vsel %vm480, %v5039, 0
      %5054 = vmatprep.subr.bf16.mxu0 %v5037
      %5055 = vmatpush1.bf16.msra.mxu0 %v5036
      %5056 = vmatprep.subr.bf16.mxu0 %v5052
      %5057 = vmatpush1.bf16.msra.mxu0 %v5049
      %5058 = vmatprep.subr.bf16.mxu0 0
      %5059 = vmatpush1.bf16.msra.mxu0 0
      %5060 = vmatprep.subr.bf16.mxu0 0
      %5061 = vmatpush1.bf16.msra.mxu0 0
      %5062 = vmatprep.subr.bf16.mxu0 0
      %5063 = vmatpush1.bf16.msra.mxu0 0
      %5064 = vmatprep.subr.bf16.mxu0 0
      %5065 = vmatpush1.bf16.msra.mxu0 0
      %5066 = vmatprep.subr.bf16.mxu0 0
      %5067 = vmatpush1.bf16.msra.mxu0 0
      %5068 = vmatprep.subr.bf16.mxu0 0
      %5069 = vmatpush1.bf16.msra.mxu0 0
      %5070 = vmatprep.subr.bf16.mxu0 0
      %5071 = vmatpush1.bf16.msra.mxu0 0
      %5072 = vmatprep.subr.bf16.mxu0 0
      %5073 = vmatpush1.bf16.msra.mxu0 0
      %5074 = vmatprep.subr.bf16.mxu0 0
      %5075 = vmatpush1.bf16.msra.mxu0 0
      %5076 = vmatprep.subr.bf16.mxu0 0
      %5077 = vmatpush1.bf16.msra.mxu0 0
      %5078 = vmatprep.subr.bf16.mxu0 0
      %5079 = vmatpush1.bf16.msra.mxu0 0
      %5080 = vmatprep.subr.bf16.mxu0 0
      %5081 = vmatpush1.bf16.msra.mxu0 0
      %5082 = vmatprep.subr.bf16.mxu0 0
      %5083 = vmatpush1.bf16.msra.mxu0 0
      %5084 = vmatprep.subr.bf16.mxu0 0
      %5085 = vmatpush1.bf16.msra.mxu0 0
      %5086 = vmatprep.mubr.bf16.mxu0 0
      %5087 = vmatmul.mubr.bf16.gmra.mrb[0].mxu0 %v5043
      %v5088 = vpop.f32.mrb[0].mxu0
      %v5089 = vadd.f32 0.0, %v5088
      %v5090 = vpop.f32.mrb[0].mxu0
      %v5091 = vadd.f32 0.0, %v5090
      %v5092 = vpop.f32.mrb[0].mxu0
      %v5093 = vadd.f32 0.0, %v5092
      %v5094 = vpop.f32.mrb[0].mxu0
      %v5095 = vadd.f32 0.0, %v5094
      %5096 = vmatprep.mubr.bf16.mxu0 0
      %5097 = vmatmul.mubr.bf16.gmra.mrb[0].mxu0 %v5046
      %v5098 = vpop.f32.mrb[0].mxu0
      %v5099 = vadd.f32 0.0, %v5098
      %v5100 = vpop.f32.mrb[0].mxu0
      %v5101 = vadd.f32 0.0, %v5100
      %v5102 = vpop.f32.mrb[0].mxu0
      %v5103 = vpop.f32.mrb[0].mxu0
      %5104 = vdwg.mxu0
      %v5105 = vadd.f32 %v4993, %v5089
      %v5106 = vadd.f32 %v4994, %v5091
      %v5107 = vadd.f32 %v4995, %v5093
      %v5108 = vadd.f32 %v4996, %v5095
      %v5109 = vadd.f32 %v4997, %v5099
      %v5110 = vadd.f32 %v4998, %v5101
      %v5111 = vld [vmem:[%s4701] sm:$0xc]
      %v5112 = vld [vmem:[%s834] sm:$0xff]
      %v5113 = vld [vmem:[%s834 + $0x8] sm:$0xff]
      %v5114 = vld [vmem:[%s834 + $0x10] sm:$0xff]
      %v5115 = vld [vmem:[%s834 + $0x18] sm:$0x33]
      %v5117 = vunpack.c.l.b16 %v5111
      %v5118 = vpack.c.b16 %v4719, %v5117
      %v5119 = vrot.slane %v5118, 2
      %v5120 = vrot.slane %v5006, 2
      %v5121 = vsel %vm842, %v5119, %v5120
      %v5126 = vunpack.c.l.b16 %v5112
      %v5127 = vunpack.c.h.b16 %v5112
      %v5128 = vunpack.c.l.b16 %v5113
      %v5129 = vunpack.c.h.b16 %v5113
      %v5130 = vunpack.c.l.b16 %v5114
      %v5131 = vunpack.c.h.b16 %v5114
      %v5132 = vunpack.c.l.b16 %v5115
      %v5133 = vunpack.c.h.b16 %v5115
      %v5134 = vpack.c.b16 %v5128, %v5126
      %v5135 = vpack.c.b16 %v5129, %v5127
      %v5136 = vpack.c.b16 %v5132, %v5130
      %v5137 = vpack.c.b16 %v5133, %v5131
      %v5141 = vsel %vm473, %v5121, 0
      %v5144 = vsel %vm473, %v5120, 0
      %v5147 = vsel %vm480, %v5136, 0
      %v5150 = vsel %vm480, %v5137, 0
      %5152 = vmatprep.subr.bf16.mxu0 %v5135
      %5153 = vmatpush1.bf16.msra.mxu0 %v5134
      %5154 = vmatprep.subr.bf16.mxu0 %v5150
      %5155 = vmatpush1.bf16.msra.mxu0 %v5147
      %5156 = vmatprep.subr.bf16.mxu0 0
      %5157 = vmatpush1.bf16.msra.mxu0 0
      %5158 = vmatprep.subr.bf16.mxu0 0
      %5159 = vmatpush1.bf16.msra.mxu0 0
      %5160 = vmatprep.subr.bf16.mxu0 0
      %5161 = vmatpush1.bf16.msra.mxu0 0
      %5162 = vmatprep.subr.bf16.mxu0 0
      %5163 = vmatpush1.bf16.msra.mxu0 0
      %5164 = vmatprep.subr.bf16.mxu0 0
      %5165 = vmatpush1.bf16.msra.mxu0 0
      %5166 = vmatprep.subr.bf16.mxu0 0
      %5167 = vmatpush1.bf16.msra.mxu0 0
      %5168 = vmatprep.subr.bf16.mxu0 0
      %5169 = vmatpush1.bf16.msra.mxu0 0
      %5170 = vmatprep.subr.bf16.mxu0 0
      %5171 = vmatpush1.bf16.msra.mxu0 0
      %5172 = vmatprep.subr.bf16.mxu0 0
      %5173 = vmatpush1.bf16.msra.mxu0 0
      %5174 = vmatprep.subr.bf16.mxu0 0
      %5175 = vmatpush1.bf16.msra.mxu0 0
      %5176 = vmatprep.subr.bf16.mxu0 0
      %5177 = vmatpush1.bf16.msra.mxu0 0
      %5178 = vmatprep.subr.bf16.mxu0 0
      %5179 = vmatpush1.bf16.msra.mxu0 0
      %5180 = vmatprep.subr.bf16.mxu0 0
      %5181 = vmatpush1.bf16.msra.mxu0 0
      %5182 = vmatprep.subr.bf16.mxu0 0
      %5183 = vmatpush1.bf16.msra.mxu0 0
      %5184 = vmatprep.mubr.bf16.mxu0 0
      %5185 = vmatmul.mubr.bf16.gmra.mrb[0].mxu0 %v5141
      %v5186 = vpop.f32.mrb[0].mxu0
      %v5187 = vadd.f32 0.0, %v5186
      %v5188 = vpop.f32.mrb[0].mxu0
      %v5189 = vadd.f32 0.0, %v5188
      %v5190 = vpop.f32.mrb[0].mxu0
      %v5191 = vadd.f32 0.0, %v5190
      %v5192 = vpop.f32.mrb[0].mxu0
      %v5193 = vadd.f32 0.0, %v5192
      %5194 = vmatprep.mubr.bf16.mxu0 0
      %5195 = vmatmul.mubr.bf16.gmra.mrb[0].mxu0 %v5144
      %v5196 = vpop.f32.mrb[0].mxu0
      %v5197 = vadd.f32 0.0, %v5196
      %v5198 = vpop.f32.mrb[0].mxu0
      %v5199 = vadd.f32 0.0, %v5198
      %v5200 = vpop.f32.mrb[0].mxu0
      %v5201 = vpop.f32.mrb[0].mxu0
      %5202 = vdwg.mxu0
      %v5203 = vadd.f32 %v5105, %v5187
      %v5204 = vadd.f32 %v5106, %v5189
      %v5205 = vadd.f32 %v5107, %v5191
      %v5206 = vadd.f32 %v5108, %v5193
      %v5207 = vadd.f32 %v5109, %v5197
      %v5208 = vadd.f32 %v5110, %v5199
      %v5209 = vld [vmem:[%s2] sm:$0x3]
      %v5211 = vlaneseq
      %v5212 = vshrl.u32 %v5211, 7
      %v5213 = vsub.s32 0, %v5212
      %v5214 = vrot.slane %v5209, %v5213
      %v5215 = vlaneseq
      %v5216 = vshrl.u32 %v5215, 7
      %v5217 = vsub.s32 1, %v5216
      %v5218 = vrot.slane %v5209, %v5217
      %v5221 = vadd.f32 %v5203, %v5214
      %v5222 = vadd.f32 %v5204, %v5218
      %v5223 = vadd.f32 %v5205, %v5214
      %v5224 = vadd.f32 %v5206, %v5218
      %v5225 = vadd.f32 %v5207, %v5214
      %v5226 = vadd.f32 %v5208, %v5218
      %v5227 = vpack.c.bf16 %v5223, %v5221
      %v5228 = vpack.c.bf16 %v5224, %v5222
      %v5229 = vpack.c.bf16 %v5225, %v5225
      %v5230 = vpack.c.bf16 %v5226, %v5226
      %v5231 = vld [vmem:[%s3] sm:$0xf]
      %v5232 = vld [vmem:[%s3 + $0x4] sm:$0x3]
      %v5235 = vunpack.c.l.b16 %v5231
      %v5236 = vunpack.c.l.b16 %v5232
      %v5237 = vpack.c.b16 %v5236, %v5235
      %v5239 = vsel %vm962, %v5237, 0
      %v5242 = vsel %vm966, %v5229, 0
      %v5245 = vsel %vm966, %v5230, 0
      %5247 = vmatprep.subr.bf16.mxu0 %v5228
      %5248 = vmatpush1.bf16.msra.mxu0 %v5227
      %5249 = vmatprep.subr.bf16.mxu0 %v5245
      %5250 = vmatpush1.bf16.msra.mxu0 %v5242
      %5251 = vmatprep.subr.bf16.mxu0 0
      %5252 = vmatpush1.bf16.msra.mxu0 0
      %5253 = vmatprep.subr.bf16.mxu0 0
      %5254 = vmatpush1.bf16.msra.mxu0 0
      %5255 = vmatprep.subr.bf16.mxu0 0
      %5256 = vmatpush1.bf16.msra.mxu0 0
      %5257 = vmatprep.subr.bf16.mxu0 0
      %5258 = vmatpush1.bf16.msra.mxu0 0
      %5259 = vmatprep.subr.bf16.mxu0 0
      %5260 = vmatpush1.bf16.msra.mxu0 0
      %5261 = vmatprep.subr.bf16.mxu0 0
      %5262 = vmatpush1.bf16.msra.mxu0 0
      %5263 = vmatprep.subr.bf16.mxu0 0
      %5264 = vmatpush1.bf16.msra.mxu0 0
      %5265 = vmatprep.subr.bf16.mxu0 0
      %5266 = vmatpush1.bf16.msra.mxu0 0
      %5267 = vmatprep.subr.bf16.mxu0 0
      %5268 = vmatpush1.bf16.msra.mxu0 0
      %5269 = vmatprep.subr.bf16.mxu0 0
      %5270 = vmatpush1.bf16.msra.mxu0 0
      %5271 = vmatprep.subr.bf16.mxu0 0
      %5272 = vmatpush1.bf16.msra.mxu0 0
      %5273 = vmatprep.subr.bf16.mxu0 0
      %5274 = vmatpush1.bf16.msra.mxu0 0
      %5275 = vmatprep.subr.bf16.mxu0 0
      %5276 = vmatpush1.bf16.msra.mxu0 0
      %5277 = vmatprep.subr.bf16.mxu0 0
      %5278 = vmatpush1.bf16.msra.mxu0 0
      %5279 = vmatprep.mubr.bf16.mxu0 0
      %5280 = vmatmul.mubr.bf16.gmra.mrb[0].mxu0 %v5239
      %v5281 = vpop.f32.mrb[0].mxu0
      %v5282 = vadd.f32 0.0, %v5281
      %v5283 = vpop.f32.mrb[0].mxu0
      %v5284 = vadd.f32 0.0, %v5283
      %v5285 = vpop.f32.mrb[0].mxu0
      %v5286 = vadd.f32 0.0, %v5285
      %v5287 = vpop.f32.mrb[0].mxu0
      %v5288 = vadd.f32 0.0, %v5287
      %5289 = vdwg.mxu0
      %v5290 = vld [vmem:[%s1016] sm:$0xf]
      %v5291 = vld [vmem:[%s1016 + $0x4] sm:$0x3]
      %v5294 = vunpack.c.l.b16 %v5290
      %v5295 = vunpack.c.l.b16 %v5291
      %v5296 = vpack.c.b16 %v5295, %v5294
      %v5298 = vsel %vm962, %v5296, 0
      %5300 = vmatprep.subr.bf16.mxu0 %v5228
      %5301 = vmatpush1.bf16.msra.mxu0 %v5227
      %5302 = vmatprep.subr.bf16.mxu0 %v5245
      %5303 = vmatpush1.bf16.msra.mxu0 %v5242
      %5304 = vmatprep.subr.bf16.mxu0 0
      %5305 = vmatpush1.bf16.msra.mxu0 0
      %5306 = vmatprep.subr.bf16.mxu0 0
      %5307 = vmatpush1.bf16.msra.mxu0 0
      %5308 = vmatprep.subr.bf16.mxu0 0
      %5309 = vmatpush1.bf16.msra.mxu0 0
      %5310 = vmatprep.subr.bf16.mxu0 0
      %5311 = vmatpush1.bf16.msra.mxu0 0
      %5312 = vmatprep.subr.bf16.mxu0 0
      %5313 = vmatpush1.bf16.msra.mxu0 0
      %5314 = vmatprep.subr.bf16.mxu0 0
      %5315 = vmatpush1.bf16.msra.mxu0 0
      %5316 = vmatprep.subr.bf16.mxu0 0
      %5317 = vmatpush1.bf16.msra.mxu0 0
      %5318 = vmatprep.subr.bf16.mxu0 0
      %5319 = vmatpush1.bf16.msra.mxu0 0
      %5320 = vmatprep.subr.bf16.mxu0 0
      %5321 = vmatpush1.bf16.msra.mxu0 0
      %5322 = vmatprep.subr.bf16.mxu0 0
      %5323 = vmatpush1.bf16.msra.mxu0 0
      %5324 = vmatprep.subr.bf16.mxu0 0
      %5325 = vmatpush1.bf16.msra.mxu0 0
      %5326 = vmatprep.subr.bf16.mxu0 0
      %5327 = vmatpush1.bf16.msra.mxu0 0
      %5328 = vmatprep.subr.bf16.mxu0 0
      %5329 = vmatpush1.bf16.msra.mxu0 0
      %5330 = vmatprep.subr.bf16.mxu0 0
      %5331 = vmatpush1.bf16.msra.mxu0 0
      %5332 = vmatprep.mubr.bf16.mxu0 0
      %5333 = vmatmul.mubr.bf16.gmra.mrb[0].mxu0 %v5298
      %v5334 = vpop.f32.mrb[0].mxu0
      %v5335 = vadd.f32 0.0, %v5334
      %v5336 = vpop.f32.mrb[0].mxu0
      %v5337 = vadd.f32 0.0, %v5336
      %v5338 = vpop.f32.mrb[0].mxu0
      %v5339 = vadd.f32 0.0, %v5338
      %v5340 = vpop.f32.mrb[0].mxu0
      %v5341 = vadd.f32 0.0, %v5340
      %5342 = vdwg.mxu0
      %v5343 = vmax.f32 %v5282, %v5335
      %v5344 = vmax.f32 %v5284, %v5337
      %v5345 = vmax.f32 %v5286, %v5339
      %v5346 = vmax.f32 %v5288, %v5341
      %v5347 = vpack.c.bf16 %v5345, %v5343
      %v5348 = vpack.c.bf16 %v5346, %v5344
      %v5349 = vld [vmem:[%s4] sm:$0xf]
      %v5350 = vld [vmem:[%s4 + $0x4] sm:$0xf]
      %v5351 = vld [vmem:[%s4 + $0x8] sm:$0xf]
      %v5352 = vld [vmem:[%s4 + $0xc] sm:$0xf]
      %v5353 = vld [vmem:[%s4 + $0x10] sm:$0xf]
      %v5354 = vld [vmem:[%s4 + $0x14] sm:$0xf]
      %v5355 = vld [vmem:[%s4 + $0x18] sm:$0xf]
      %v5356 = vld [vmem:[%s4 + $0x1c] sm:$0xf]
      %v5357 = vld [vmem:[%s4 + $0x20] sm:$0xf]
      %v5358 = vld [vmem:[%s4 + $0x24] sm:$0xf]
      %v5359 = vld [vmem:[%s4 + $0x28] sm:$0xf]
      %v5360 = vld [vmem:[%s4 + $0x2c] sm:$0xf]
      %v5361 = vld [vmem:[%s4 + $0x30] sm:$0xf]
      %v5362 = vld [vmem:[%s4 + $0x34] sm:$0xf]
      %v5363 = vld [vmem:[%s4 + $0x38] sm:$0xf]
      %v5364 = vld [vmem:[%s4 + $0x3c] sm:$0xf]
      %v5365 = vld [vmem:[%s4 + $0x40] sm:$0xf]
      %v5366 = vld [vmem:[%s4 + $0x44] sm:$0xf]
      %v5367 = vld [vmem:[%s4 + $0x48] sm:$0xf]
      %v5368 = vld [vmem:[%s4 + $0x4c] sm:$0xf]
      %v5369 = vld [vmem:[%s4 + $0x50] sm:$0xf]
      %v5370 = vld [vmem:[%s4 + $0x54] sm:$0xf]
      %v5371 = vld [vmem:[%s4 + $0x58] sm:$0xf]
      %v5372 = vld [vmem:[%s4 + $0x5c] sm:$0xf]
      %v5397 = vunpack.c.l.b16 %v5349
      %v5398 = vunpack.c.l.b16 %v5350
      %v5399 = vunpack.c.l.b16 %v5351
      %v5400 = vunpack.c.l.b16 %v5352
      %v5401 = vunpack.c.l.b16 %v5353
      %v5402 = vunpack.c.l.b16 %v5354
      %v5403 = vunpack.c.l.b16 %v5355
      %v5404 = vunpack.c.l.b16 %v5356
      %v5405 = vunpack.c.l.b16 %v5357
      %v5406 = vunpack.c.l.b16 %v5358
      %v5407 = vunpack.c.l.b16 %v5359
      %v5408 = vunpack.c.l.b16 %v5360
      %v5409 = vunpack.c.l.b16 %v5361
      %v5410 = vunpack.c.l.b16 %v5362
      %v5411 = vunpack.c.l.b16 %v5363
      %v5412 = vunpack.c.l.b16 %v5364
      %v5413 = vunpack.c.l.b16 %v5365
      %v5414 = vunpack.c.l.b16 %v5366
      %v5415 = vunpack.c.l.b16 %v5367
      %v5416 = vunpack.c.l.b16 %v5368
      %v5417 = vunpack.c.l.b16 %v5369
      %v5418 = vunpack.c.l.b16 %v5370
      %v5419 = vunpack.c.l.b16 %v5371
      %v5420 = vunpack.c.l.b16 %v5372
      %v5421 = vpack.c.b16 %v5398, %v5397
      %v5422 = vpack.c.b16 %v5400, %v5399
      %v5423 = vpack.c.b16 %v5402, %v5401
      %v5424 = vpack.c.b16 %v5404, %v5403
      %v5425 = vpack.c.b16 %v5406, %v5405
      %v5426 = vpack.c.b16 %v5408, %v5407
      %v5427 = vpack.c.b16 %v5410, %v5409
      %v5428 = vpack.c.b16 %v5412, %v5411
      %v5429 = vpack.c.b16 %v5414, %v5413
      %v5430 = vpack.c.b16 %v5416, %v5415
      %v5431 = vpack.c.b16 %v5418, %v5417
      %v5432 = vpack.c.b16 %v5420, %v5419
      %v5446 = vsel %vm1172, %v5348, 0
      %5448 = vmatprep.subr.bf16.mxu0 0
      %5449 = vmatpush1.bf16.msra.mxu0 %v5421
      %5450 = vmatprep.subr.bf16.mxu0 0
      %5451 = vmatpush1.bf16.msra.mxu0 %v5422
      %5452 = vmatprep.subr.bf16.mxu0 0
      %5453 = vmatpush1.bf16.msra.mxu0 %v5423
      %5454 = vmatprep.subr.bf16.mxu0 0
      %5455 = vmatpush1.bf16.msra.mxu0 %v5424
      %5456 = vmatprep.subr.bf16.mxu0 0
      %5457 = vmatpush1.bf16.msra.mxu0 %v5425
      %5458 = vmatprep.subr.bf16.mxu0 0
      %5459 = vmatpush1.bf16.msra.mxu0 %v5426
      %5460 = vmatprep.subr.bf16.mxu0 0
      %5461 = vmatpush1.bf16.msra.mxu0 %v5427
      %5462 = vmatprep.subr.bf16.mxu0 0
      %5463 = vmatpush1.bf16.msra.mxu0 %v5428
      %5464 = vmatprep.subr.bf16.mxu0 0
      %5465 = vmatpush1.bf16.msra.mxu0 %v5429
      %5466 = vmatprep.subr.bf16.mxu0 0
      %5467 = vmatpush1.bf16.msra.mxu0 %v5430
      %5468 = vmatprep.subr.bf16.mxu0 0
      %5469 = vmatpush1.bf16.msra.mxu0 %v5431
      %5470 = vmatprep.subr.bf16.mxu0 0
      %5471 = vmatpush1.bf16.msra.mxu0 %v5432
      %5472 = vmatprep.subr.bf16.mxu0 0
      %5473 = vmatpush1.bf16.msra.mxu0 0
      %5474 = vmatprep.subr.bf16.mxu0 0
      %5475 = vmatpush1.bf16.msra.mxu0 0
      %5476 = vmatprep.subr.bf16.mxu0 0
      %5477 = vmatpush1.bf16.msra.mxu0 0
      %5478 = vmatprep.subr.bf16.mxu0 0
      %5479 = vmatpush1.bf16.msra.mxu0 0
      %5480 = vmatprep.mubr.bf16.mxu0 %v5446
      %5481 = vmatmul.mubr.bf16.gmra.mrb[0].mxu0 %v5347
      %v5482 = vpop.f32.mrb[0].mxu0
      %v5483 = vadd.f32 0.0, %v5482
      %v5484 = vpop.f32.mrb[0].mxu0
      %v5485 = vpop.f32.mrb[0].mxu0
      %v5486 = vadd.f32 0.0, %v5485
      %v5487 = vpop.f32.mrb[0].mxu0
      %5488 = vdwg.mxu0
      %v5489 = vld [vmem:[%s1217] sm:$0xf]
      %v5490 = vld [vmem:[%s1217 + $0x4] sm:$0xf]
      %v5491 = vld [vmem:[%s1217 + $0x8] sm:$0xf]
      %v5492 = vld [vmem:[%s1217 + $0xc] sm:$0xf]
      %v5493 = vld [vmem:[%s1217 + $0x10] sm:$0xf]
      %v5494 = vld [vmem:[%s1217 + $0x14] sm:$0xf]
      %v5495 = vld [vmem:[%s1217 + $0x18] sm:$0xf]
      %v5496 = vld [vmem:[%s1217 + $0x1c] sm:$0xf]
      %v5497 = vld [vmem:[%s1217 + $0x20] sm:$0xf]
      %v5498 = vld [vmem:[%s1217 + $0x24] sm:$0xf]
      %v5499 = vld [vmem:[%s1217 + $0x28] sm:$0xf]
      %v5500 = vld [vmem:[%s1217 + $0x2c] sm:$0xf]
      %v5501 = vld [vmem:[%s1217 + $0x30] sm:$0xf]
      %v5502 = vld [vmem:[%s1217 + $0x34] sm:$0xf]
      %v5503 = vld [vmem:[%s1217 + $0x38] sm:$0xf]
      %v5504 = vld [vmem:[%s1217 + $0x3c] sm:$0xf]
      %v5505 = vld [vmem:[%s1217 + $0x40] sm:$0xf]
      %v5506 = vld [vmem:[%s1217 + $0x44] sm:$0xf]
      %v5507 = vld [vmem:[%s1217 + $0x48] sm:$0xf]
      %v5508 = vld [vmem:[%s1217 + $0x4c] sm:$0xf]
      %v5509 = vld [vmem:[%s1217 + $0x50] sm:$0xf]
      %v5510 = vld [vmem:[%s1217 + $0x54] sm:$0xf]
      %v5511 = vld [vmem:[%s1217 + $0x58] sm:$0xf]
      %v5512 = vld [vmem:[%s1217 + $0x5c] sm:$0xf]
      %v5537 = vunpack.c.l.b16 %v5489
      %v5538 = vunpack.c.l.b16 %v5490
      %v5539 = vunpack.c.l.b16 %v5491
      %v5540 = vunpack.c.l.b16 %v5492
      %v5541 = vunpack.c.l.b16 %v5493
      %v5542 = vunpack.c.l.b16 %v5494
      %v5543 = vunpack.c.l.b16 %v5495
      %v5544 = vunpack.c.l.b16 %v5496
      %v5545 = vunpack.c.l.b16 %v5497
      %v5546 = vunpack.c.l.b16 %v5498
      %v5547 = vunpack.c.l.b16 %v5499
      %v5548 = vunpack.c.l.b16 %v5500
      %v5549 = vunpack.c.l.b16 %v5501
      %v5550 = vunpack.c.l.b16 %v5502
      %v5551 = vunpack.c.l.b16 %v5503
      %v5552 = vunpack.c.l.b16 %v5504
      %v5553 = vunpack.c.l.b16 %v5505
      %v5554 = vunpack.c.l.b16 %v5506
      %v5555 = vunpack.c.l.b16 %v5507
      %v5556 = vunpack.c.l.b16 %v5508
      %v5557 = vunpack.c.l.b16 %v5509
      %v5558 = vunpack.c.l.b16 %v5510
      %v5559 = vunpack.c.l.b16 %v5511
      %v5560 = vunpack.c.l.b16 %v5512
      %v5561 = vpack.c.b16 %v5538, %v5537
      %v5562 = vpack.c.b16 %v5540, %v5539
      %v5563 = vpack.c.b16 %v5542, %v5541
      %v5564 = vpack.c.b16 %v5544, %v5543
      %v5565 = vpack.c.b16 %v5546, %v5545
      %v5566 = vpack.c.b16 %v5548, %v5547
      %v5567 = vpack.c.b16 %v5550, %v5549
      %v5568 = vpack.c.b16 %v5552, %v5551
      %v5569 = vpack.c.b16 %v5554, %v5553
      %v5570 = vpack.c.b16 %v5556, %v5555
      %v5571 = vpack.c.b16 %v5558, %v5557
      %v5572 = vpack.c.b16 %v5560, %v5559
      %5585 = vmatprep.subr.bf16.mxu0 0
      %5586 = vmatpush1.bf16.msra.mxu0 %v5561
      %5587 = vmatprep.subr.bf16.mxu0 0
      %5588 = vmatpush1.bf16.msra.mxu0 %v5562
      %5589 = vmatprep.subr.bf16.mxu0 0
      %5590 = vmatpush1.bf16.msra.mxu0 %v5563
      %5591 = vmatprep.subr.bf16.mxu0 0
      %5592 = vmatpush1.bf16.msra.mxu0 %v5564
      %5593 = vmatprep.subr.bf16.mxu0 0
      %5594 = vmatpush1.bf16.msra.mxu0 %v5565
      %5595 = vmatprep.subr.bf16.mxu0 0
      %5596 = vmatpush1.bf16.msra.mxu0 %v5566
      %5597 = vmatprep.subr.bf16.mxu0 0
      %5598 = vmatpush1.bf16.msra.mxu0 %v5567
      %5599 = vmatprep.subr.bf16.mxu0 0
      %5600 = vmatpush1.bf16.msra.mxu0 %v5568
      %5601 = vmatprep.subr.bf16.mxu0 0
      %5602 = vmatpush1.bf16.msra.mxu0 %v5569
      %5603 = vmatprep.subr.bf16.mxu0 0
      %5604 = vmatpush1.bf16.msra.mxu0 %v5570
      %5605 = vmatprep.subr.bf16.mxu0 0
      %5606 = vmatpush1.bf16.msra.mxu0 %v5571
      %5607 = vmatprep.subr.bf16.mxu0 0
      %5608 = vmatpush1.bf16.msra.mxu0 %v5572
      %5609 = vmatprep.subr.bf16.mxu0 0
      %5610 = vmatpush1.bf16.msra.mxu0 0
      %5611 = vmatprep.subr.bf16.mxu0 0
      %5612 = vmatpush1.bf16.msra.mxu0 0
      %5613 = vmatprep.subr.bf16.mxu0 0
      %5614 = vmatpush1.bf16.msra.mxu0 0
      %5615 = vmatprep.subr.bf16.mxu0 0
      %5616 = vmatpush1.bf16.msra.mxu0 0
      %5617 = vmatprep.mubr.bf16.mxu0 %v5446
      %5618 = vmatmul.mubr.bf16.gmra.mrb[0].mxu0 %v5347
      %v5619 = vpop.f32.mrb[0].mxu0
      %v5620 = vadd.f32 0.0, %v5619
      %v5621 = vpop.f32.mrb[0].mxu0
      %v5622 = vpop.f32.mrb[0].mxu0
      %v5623 = vadd.f32 0.0, %v5622
      %v5624 = vpop.f32.mrb[0].mxu0
      %5625 = vdwg.mxu0
      %v5626 = vmax.f32 %v5483, %v5620
      %v5627 = vmax.f32 %v5486, %v5623
      %v5628 = vmax.f32 %v5626, 0.0
      %v5629 = vmax.f32 %v5627, 0.0
      %v5630 = vpack.c.bf16 %v5629, %v5628
      %v5631 = vld [vmem:[%s5] sm:$0xf]
      %v5632 = vld [vmem:[%s5 + $0x4] sm:$0xf]
      %v5633 = vld [vmem:[%s5 + $0x8] sm:$0xf]
      %v5634 = vld [vmem:[%s5 + $0xc] sm:$0xf]
      %v5635 = vld [vmem:[%s5 + $0x10] sm:$0xf]
      %v5636 = vld [vmem:[%s5 + $0x14] sm:$0xf]
      %v5637 = vld [vmem:[%s5 + $0x18] sm:$0xf]
      %v5638 = vld [vmem:[%s5 + $0x1c] sm:$0xf]
      %v5639 = vld [vmem:[%s5 + $0x20] sm:$0xf]
      %v5640 = vld [vmem:[%s5 + $0x24] sm:$0xf]
      %v5641 = vld [vmem:[%s5 + $0x28] sm:$0xf]
      %v5642 = vld [vmem:[%s5 + $0x2c] sm:$0xf]
      %v5643 = vld [vmem:[%s1372] sm:$0xf]
      %v5644 = vld [vmem:[%s1372 + $0x4] sm:$0xf]
      %v5645 = vld [vmem:[%s1372 + $0x8] sm:$0xf]
      %v5646 = vld [vmem:[%s1372 + $0xc] sm:$0xf]
      %v5647 = vld [vmem:[%s1372 + $0x10] sm:$0xf]
      %v5648 = vld [vmem:[%s1372 + $0x14] sm:$0xf]
      %v5649 = vld [vmem:[%s1372 + $0x18] sm:$0xf]
      %v5650 = vld [vmem:[%s1372 + $0x1c] sm:$0xf]
      %v5651 = vld [vmem:[%s1372 + $0x20] sm:$0xf]
      %v5652 = vld [vmem:[%s1372 + $0x24] sm:$0xf]
      %v5653 = vld [vmem:[%s1372 + $0x28] sm:$0xf]
      %v5654 = vld [vmem:[%s1372 + $0x2c] sm:$0xf]
      %v5656 = vshrl.u32 %v5630, 16
      %v5658 = vshll.u32 %v5630, 16
      %v5660 = vrot.slane %v5658, 1
      %v5661 = vor.u32 %v5656, %v5660
      %v5674 = vunpack.c.l.b16 %v5643
      %v5675 = vunpack.c.l.b16 %v5644
      %v5676 = vunpack.c.l.b16 %v5645
      %v5677 = vunpack.c.l.b16 %v5646
      %v5678 = vunpack.c.l.b16 %v5647
      %v5679 = vunpack.c.l.b16 %v5648
      %v5680 = vunpack.c.l.b16 %v5649
      %v5681 = vunpack.c.l.b16 %v5650
      %v5682 = vunpack.c.l.b16 %v5651
      %v5683 = vunpack.c.l.b16 %v5652
      %v5684 = vunpack.c.l.b16 %v5653
      %v5685 = vunpack.c.l.b16 %v5654
      %v5686 = vpack.c.b16 %v5675, %v5674
      %v5687 = vpack.c.b16 %v5677, %v5676
      %v5688 = vpack.c.b16 %v5679, %v5678
      %v5689 = vpack.c.b16 %v5681, %v5680
      %v5690 = vpack.c.b16 %v5683, %v5682
      %v5691 = vpack.c.b16 %v5685, %v5684
      %v5699 = vsel %vm1428, %v5661, 0
      %5701 = vmatprep.subr.bf16.mxu0 0
      %5702 = vmatpush1.bf16.msra.mxu0 %v5686
      %5703 = vmatprep.subr.bf16.mxu0 0
      %5704 = vmatpush1.bf16.msra.mxu0 %v5687
      %5705 = vmatprep.subr.bf16.mxu0 0
      %5706 = vmatpush1.bf16.msra.mxu0 %v5688
      %5707 = vmatprep.subr.bf16.mxu0 0
      %5708 = vmatpush1.bf16.msra.mxu0 %v5689
      %5709 = vmatprep.subr.bf16.mxu0 0
      %5710 = vmatpush1.bf16.msra.mxu0 %v5690
      %5711 = vmatprep.subr.bf16.mxu0 0
      %5712 = vmatpush1.bf16.msra.mxu0 %v5691
      %5713 = vmatprep.subr.bf16.mxu0 0
      %5714 = vmatpush1.bf16.msra.mxu0 0
      %5715 = vmatprep.subr.bf16.mxu0 0
      %5716 = vmatpush1.bf16.msra.mxu0 0
      %5717 = vmatprep.subr.bf16.mxu0 0
      %5718 = vmatpush1.bf16.msra.mxu0 0
      %5719 = vmatprep.subr.bf16.mxu0 0
      %5720 = vmatpush1.bf16.msra.mxu0 0
      %5721 = vmatprep.subr.bf16.mxu0 0
      %5722 = vmatpush1.bf16.msra.mxu0 0
      %5723 = vmatprep.subr.bf16.mxu0 0
      %5724 = vmatpush1.bf16.msra.mxu0 0
      %5725 = vmatprep.subr.bf16.mxu0 0
      %5726 = vmatpush1.bf16.msra.mxu0 0
      %5727 = vmatprep.subr.bf16.mxu0 0
      %5728 = vmatpush1.bf16.msra.mxu0 0
      %5729 = vmatprep.subr.bf16.mxu0 0
      %5730 = vmatpush1.bf16.msra.mxu0 0
      %5731 = vmatprep.subr.bf16.mxu0 0
      %5732 = vmatpush1.bf16.msra.mxu0 0
      %5733 = vmatprep.mubr.bf16.mxu0 0
      %5734 = vmatmul.mubr.bf16.gmra.mrb[0].mxu0 %v5699
      %v5735 = vpop.f32.mrb[0].mxu0
      %v5736 = vadd.f32 0.0, %v5735
      %v5737 = vpop.f32.mrb[0].mxu0
      %v5738 = vpop.f32.mrb[0].mxu0
      %v5739 = vpop.f32.mrb[0].mxu0
      %5740 = vdwg.mxu0
      %v5753 = vunpack.c.l.b16 %v5631
      %v5754 = vunpack.c.l.b16 %v5632
      %v5755 = vunpack.c.l.b16 %v5633
      %v5756 = vunpack.c.l.b16 %v5634
      %v5757 = vunpack.c.l.b16 %v5635
      %v5758 = vunpack.c.l.b16 %v5636
      %v5759 = vunpack.c.l.b16 %v5637
      %v5760 = vunpack.c.l.b16 %v5638
      %v5761 = vunpack.c.l.b16 %v5639
      %v5762 = vunpack.c.l.b16 %v5640
      %v5763 = vunpack.c.l.b16 %v5641
      %v5764 = vunpack.c.l.b16 %v5642
      %v5765 = vpack.c.b16 %v5754, %v5753
      %v5766 = vpack.c.b16 %v5756, %v5755
      %v5767 = vpack.c.b16 %v5758, %v5757
      %v5768 = vpack.c.b16 %v5760, %v5759
      %v5769 = vpack.c.b16 %v5762, %v5761
      %v5770 = vpack.c.b16 %v5764, %v5763
      %v5777 = vsel %vm1428, %v5630, 0
      %5779 = vmatprep.subr.bf16.mxu0 0
      %5780 = vmatpush1.bf16.msra.mxu0 %v5765
      %5781 = vmatprep.subr.bf16.mxu0 0
      %5782 = vmatpush1.bf16.msra.mxu0 %v5766
      %5783 = vmatprep.subr.bf16.mxu0 0
      %5784 = vmatpush1.bf16.msra.mxu0 %v5767
      %5785 = vmatprep.subr.bf16.mxu0 0
      %5786 = vmatpush1.bf16.msra.mxu0 %v5768
      %5787 = vmatprep.subr.bf16.mxu0 0
      %5788 = vmatpush1.bf16.msra.mxu0 %v5769
      %5789 = vmatprep.subr.bf16.mxu0 0
      %5790 = vmatpush1.bf16.msra.mxu0 %v5770
      %5791 = vmatprep.subr.bf16.mxu0 0
      %5792 = vmatpush1.bf16.msra.mxu0 0
      %5793 = vmatprep.subr.bf16.mxu0 0
      %5794 = vmatpush1.bf16.msra.mxu0 0
      %5795 = vmatprep.subr.bf16.mxu0 0
      %5796 = vmatpush1.bf16.msra.mxu0 0
      %5797 = vmatprep.subr.bf16.mxu0 0
      %5798 = vmatpush1.bf16.msra.mxu0 0
      %5799 = vmatprep.subr.bf16.mxu0 0
      %5800 = vmatpush1.bf16.msra.mxu0 0
      %5801 = vmatprep.subr.bf16.mxu0 0
      %5802 = vmatpush1.bf16.msra.mxu0 0
      %5803 = vmatprep.subr.bf16.mxu0 0
      %5804 = vmatpush1.bf16.msra.mxu0 0
      %5805 = vmatprep.subr.bf16.mxu0 0
      %5806 = vmatpush1.bf16.msra.mxu0 0
      %5807 = vmatprep.subr.bf16.mxu0 0
      %5808 = vmatpush1.bf16.msra.mxu0 0
      %5809 = vmatprep.subr.bf16.mxu0 0
      %5810 = vmatpush1.bf16.msra.mxu0 0
      %5811 = vmatprep.mubr.bf16.mxu0 0
      %5812 = vmatmul.mubr.bf16.gmra.mrb[0].mxu0 %v5777
      %v5813 = vpop.f32.mrb[0].mxu0
      %v5814 = vadd.f32 %v5736, %v5813
      %v5815 = vpop.f32.mrb[0].mxu0
      %v5816 = vpop.f32.mrb[0].mxu0
      %v5817 = vpop.f32.mrb[0].mxu0
      %5818 = vdwg.mxu0
      %v5819 = vld [vmem:[%s1550] sm:$0xf]
      %v5820 = vld [vmem:[%s1550 + $0x4] sm:$0xf]
      %v5821 = vld [vmem:[%s1550 + $0x8] sm:$0xf]
      %v5822 = vld [vmem:[%s1550 + $0xc] sm:$0xf]
      %v5823 = vld [vmem:[%s1550 + $0x10] sm:$0xf]
      %v5824 = vld [vmem:[%s1550 + $0x14] sm:$0xf]
      %v5825 = vld [vmem:[%s1550 + $0x18] sm:$0xf]
      %v5826 = vld [vmem:[%s1550 + $0x1c] sm:$0xf]
      %v5827 = vld [vmem:[%s1550 + $0x20] sm:$0xf]
      %v5828 = vld [vmem:[%s1550 + $0x24] sm:$0xf]
      %v5829 = vld [vmem:[%s1550 + $0x28] sm:$0xf]
      %v5830 = vld [vmem:[%s1550 + $0x2c] sm:$0xf]
      %v5832 = vrot.slane %v5630, 1
      %v5845 = vunpack.c.l.b16 %v5819
      %v5846 = vunpack.c.l.b16 %v5820
      %v5847 = vunpack.c.l.b16 %v5821
      %v5848 = vunpack.c.l.b16 %v5822
      %v5849 = vunpack.c.l.b16 %v5823
      %v5850 = vunpack.c.l.b16 %v5824
      %v5851 = vunpack.c.l.b16 %v5825
      %v5852 = vunpack.c.l.b16 %v5826
      %v5853 = vunpack.c.l.b16 %v5827
      %v5854 = vunpack.c.l.b16 %v5828
      %v5855 = vunpack.c.l.b16 %v5829
      %v5856 = vunpack.c.l.b16 %v5830
      %v5857 = vpack.c.b16 %v5846, %v5845
      %v5858 = vpack.c.b16 %v5848, %v5847
      %v5859 = vpack.c.b16 %v5850, %v5849
      %v5860 = vpack.c.b16 %v5852, %v5851
      %v5861 = vpack.c.b16 %v5854, %v5853
      %v5862 = vpack.c.b16 %v5856, %v5855
      %v5870 = vsel %vm1428, %v5832, 0
      %5872 = vmatprep.subr.bf16.mxu0 0
      %5873 = vmatpush1.bf16.msra.mxu0 %v5857
      %5874 = vmatprep.subr.bf16.mxu0 0
      %5875 = vmatpush1.bf16.msra.mxu0 %v5858
      %5876 = vmatprep.subr.bf16.mxu0 0
      %5877 = vmatpush1.bf16.msra.mxu0 %v5859
      %5878 = vmatprep.subr.bf16.mxu0 0
      %5879 = vmatpush1.bf16.msra.mxu0 %v5860
      %5880 = vmatprep.subr.bf16.mxu0 0
      %5881 = vmatpush1.bf16.msra.mxu0 %v5861
      %5882 = vmatprep.subr.bf16.mxu0 0
      %5883 = vmatpush1.bf16.msra.mxu0 %v5862
      %5884 = vmatprep.subr.bf16.mxu0 0
      %5885 = vmatpush1.bf16.msra.mxu0 0
      %5886 = vmatprep.subr.bf16.mxu0 0
      %5887 = vmatpush1.bf16.msra.mxu0 0
      %5888 = vmatprep.subr.bf16.mxu0 0
      %5889 = vmatpush1.bf16.msra.mxu0 0
      %5890 = vmatprep.subr.bf16.mxu0 0
      %5891 = vmatpush1.bf16.msra.mxu0 0
      %5892 = vmatprep.subr.bf16.mxu0 0
      %5893 = vmatpush1.bf16.msra.mxu0 0
      %5894 = vmatprep.subr.bf16.mxu0 0
      %5895 = vmatpush1.bf16.msra.mxu0 0
      %5896 = vmatprep.subr.bf16.mxu0 0
      %5897 = vmatpush1.bf16.msra.mxu0 0
      %5898 = vmatprep.subr.bf16.mxu0 0
      %5899 = vmatpush1.bf16.msra.mxu0 0
      %5900 = vmatprep.subr.bf16.mxu0 0
      %5901 = vmatpush1.bf16.msra.mxu0 0
      %5902 = vmatprep.subr.bf16.mxu0 0
      %5903 = vmatpush1.bf16.msra.mxu0 0
      %5904 = vmatprep.mubr.bf16.mxu0 0
      %5905 = vmatmul.mubr.bf16.gmra.mrb[0].mxu0 %v5870
      %v5906 = vpop.f32.mrb[0].mxu0
      %v5907 = vadd.f32 0.0, %v5906
      %v5908 = vpop.f32.mrb[0].mxu0
      %v5909 = vpop.f32.mrb[0].mxu0
      %v5910 = vpop.f32.mrb[0].mxu0
      %5911 = vdwg.mxu0
      %v5912 = vadd.f32 %v5814, %v5907
      %v5913 = vld [vmem:[%s1645] sm:$0xf]
      %v5914 = vld [vmem:[%s1645 + $0x4] sm:$0xf]
      %v5915 = vld [vmem:[%s1645 + $0x8] sm:$0xf]
      %v5916 = vld [vmem:[%s1645 + $0xc] sm:$0xf]
      %v5917 = vld [vmem:[%s1645 + $0x10] sm:$0xf]
      %v5918 = vld [vmem:[%s1645 + $0x14] sm:$0xf]
      %v5919 = vld [vmem:[%s1645 + $0x18] sm:$0xf]
      %v5920 = vld [vmem:[%s1645 + $0x1c] sm:$0xf]
      %v5921 = vld [vmem:[%s1645 + $0x20] sm:$0xf]
      %v5922 = vld [vmem:[%s1645 + $0x24] sm:$0xf]
      %v5923 = vld [vmem:[%s1645 + $0x28] sm:$0xf]
      %v5924 = vld [vmem:[%s1645 + $0x2c] sm:$0xf]
      %v5925 = vrot.slane %v5656, 1
      %v5926 = vrot.slane %v5658, 2
      %v5927 = vor.u32 %v5925, %v5926
      %v5940 = vunpack.c.l.b16 %v5913
      %v5941 = vunpack.c.l.b16 %v5914
      %v5942 = vunpack.c.l.b16 %v5915
      %v5943 = vunpack.c.l.b16 %v5916
      %v5944 = vunpack.c.l.b16 %v5917
      %v5945 = vunpack.c.l.b16 %v5918
      %v5946 = vunpack.c.l.b16 %v5919
      %v5947 = vunpack.c.l.b16 %v5920
      %v5948 = vunpack.c.l.b16 %v5921
      %v5949 = vunpack.c.l.b16 %v5922
      %v5950 = vunpack.c.l.b16 %v5923
      %v5951 = vunpack.c.l.b16 %v5924
      %v5952 = vpack.c.b16 %v5941, %v5940
      %v5953 = vpack.c.b16 %v5943, %v5942
      %v5954 = vpack.c.b16 %v5945, %v5944
      %v5955 = vpack.c.b16 %v5947, %v5946
      %v5956 = vpack.c.b16 %v5949, %v5948
      %v5957 = vpack.c.b16 %v5951, %v5950
      %v5965 = vsel %vm1428, %v5927, 0
      %5967 = vmatprep.subr.bf16.mxu0 0
      %5968 = vmatpush1.bf16.msra.mxu0 %v5952
      %5969 = vmatprep.subr.bf16.mxu0 0
      %5970 = vmatpush1.bf16.msra.mxu0 %v5953
      %5971 = vmatprep.subr.bf16.mxu0 0
      %5972 = vmatpush1.bf16.msra.mxu0 %v5954
      %5973 = vmatprep.subr.bf16.mxu0 0
      %5974 = vmatpush1.bf16.msra.mxu0 %v5955
      %5975 = vmatprep.subr.bf16.mxu0 0
      %5976 = vmatpush1.bf16.msra.mxu0 %v5956
      %5977 = vmatprep.subr.bf16.mxu0 0
      %5978 = vmatpush1.bf16.msra.mxu0 %v5957
      %5979 = vmatprep.subr.bf16.mxu0 0
      %5980 = vmatpush1.bf16.msra.mxu0 0
      %5981 = vmatprep.subr.bf16.mxu0 0
      %5982 = vmatpush1.bf16.msra.mxu0 0
      %5983 = vmatprep.subr.bf16.mxu0 0
      %5984 = vmatpush1.bf16.msra.mxu0 0
      %5985 = vmatprep.subr.bf16.mxu0 0
      %5986 = vmatpush1.bf16.msra.mxu0 0
      %5987 = vmatprep.subr.bf16.mxu0 0
      %5988 = vmatpush1.bf16.msra.mxu0 0
      %5989 = vmatprep.subr.bf16.mxu0 0
      %5990 = vmatpush1.bf16.msra.mxu0 0
      %5991 = vmatprep.subr.bf16.mxu0 0
      %5992 = vmatpush1.bf16.msra.mxu0 0
      %5993 = vmatprep.subr.bf16.mxu0 0
      %5994 = vmatpush1.bf16.msra.mxu0 0
      %5995 = vmatprep.subr.bf16.mxu0 0
      %5996 = vmatpush1.bf16.msra.mxu0 0
      %5997 = vmatprep.subr.bf16.mxu0 0
      %5998 = vmatpush1.bf16.msra.mxu0 0
      %5999 = vmatprep.mubr.bf16.mxu0 0
      %6000 = vmatmul.mubr.bf16.gmra.mrb[0].mxu0 %v5965
      %v6001 = vpop.f32.mrb[0].mxu0
      %v6002 = vadd.f32 0.0, %v6001
      %v6003 = vpop.f32.mrb[0].mxu0
      %v6004 = vpop.f32.mrb[0].mxu0
      %v6005 = vpop.f32.mrb[0].mxu0
      %6006 = vdwg.mxu0
      %v6007 = vadd.f32 %v5912, %v6002
      %v6008 = vld [vmem:[%s1741] sm:$0xf]
      %v6009 = vld [vmem:[%s1741 + $0x4] sm:$0xf]
      %v6010 = vld [vmem:[%s1741 + $0x8] sm:$0xf]
      %v6011 = vld [vmem:[%s1741 + $0xc] sm:$0xf]
      %v6012 = vld [vmem:[%s1741 + $0x10] sm:$0xf]
      %v6013 = vld [vmem:[%s1741 + $0x14] sm:$0xf]
      %v6014 = vld [vmem:[%s1741 + $0x18] sm:$0xf]
      %v6015 = vld [vmem:[%s1741 + $0x1c] sm:$0xf]
      %v6016 = vld [vmem:[%s1741 + $0x20] sm:$0xf]
      %v6017 = vld [vmem:[%s1741 + $0x24] sm:$0xf]
      %v6018 = vld [vmem:[%s1741 + $0x28] sm:$0xf]
      %v6019 = vld [vmem:[%s1741 + $0x2c] sm:$0xf]
      %v6020 = vrot.slane %v5630, 2
      %v6033 = vunpack.c.l.b16 %v6008
      %v6034 = vunpack.c.l.b16 %v6009
      %v6035 = vunpack.c.l.b16 %v6010
      %v6036 = vunpack.c.l.b16 %v6011
      %v6037 = vunpack.c.l.b16 %v6012
      %v6038 = vunpack.c.l.b16 %v6013
      %v6039 = vunpack.c.l.b16 %v6014
      %v6040 = vunpack.c.l.b16 %v6015
      %v6041 = vunpack.c.l.b16 %v6016
      %v6042 = vunpack.c.l.b16 %v6017
      %v6043 = vunpack.c.l.b16 %v6018
      %v6044 = vunpack.c.l.b16 %v6019
      %v6045 = vpack.c.b16 %v6034, %v6033
      %v6046 = vpack.c.b16 %v6036, %v6035
      %v6047 = vpack.c.b16 %v6038, %v6037
      %v6048 = vpack.c.b16 %v6040, %v6039
      %v6049 = vpack.c.b16 %v6042, %v6041
      %v6050 = vpack.c.b16 %v6044, %v6043
      %v6058 = vsel %vm1428, %v6020, 0
      %6060 = vmatprep.subr.bf16.mxu0 0
      %6061 = vmatpush1.bf16.msra.mxu0 %v6045
      %6062 = vmatprep.subr.bf16.mxu0 0
      %6063 = vmatpush1.bf16.msra.mxu0 %v6046
      %6064 = vmatprep.subr.bf16.mxu0 0
      %6065 = vmatpush1.bf16.msra.mxu0 %v6047
      %6066 = vmatprep.subr.bf16.mxu0 0
      %6067 = vmatpush1.bf16.msra.mxu0 %v6048
      %6068 = vmatprep.subr.bf16.mxu0 0
      %6069 = vmatpush1.bf16.msra.mxu0 %v6049
      %6070 = vmatprep.subr.bf16.mxu0 0
      %6071 = vmatpush1.bf16.msra.mxu0 %v6050
      %6072 = vmatprep.subr.bf16.mxu0 0
      %6073 = vmatpush1.bf16.msra.mxu0 0
      %6074 = vmatprep.subr.bf16.mxu0 0
      %6075 = vmatpush1.bf16.msra.mxu0 0
      %6076 = vmatprep.subr.bf16.mxu0 0
      %6077 = vmatpush1.bf16.msra.mxu0 0
      %6078 = vmatprep.subr.bf16.mxu0 0
      %6079 = vmatpush1.bf16.msra.mxu0 0
      %6080 = vmatprep.subr.bf16.mxu0 0
      %6081 = vmatpush1.bf16.msra.mxu0 0
      %6082 = vmatprep.subr.bf16.mxu0 0
      %6083 = vmatpush1.bf16.msra.mxu0 0
      %6084 = vmatprep.subr.bf16.mxu0 0
      %6085 = vmatpush1.bf16.msra.mxu0 0
      %6086 = vmatprep.subr.bf16.mxu0 0
      %6087 = vmatpush1.bf16.msra.mxu0 0
      %6088 = vmatprep.subr.bf16.mxu0 0
      %6089 = vmatpush1.bf16.msra.mxu0 0
      %6090 = vmatprep.subr.bf16.mxu0 0
      %6091 = vmatpush1.bf16.msra.mxu0 0
      %6092 = vmatprep.mubr.bf16.mxu0 0
      %6093 = vmatmul.mubr.bf16.gmra.mrb[0].mxu0 %v6058
      %v6094 = vpop.f32.mrb[0].mxu0
      %v6095 = vadd.f32 0.0, %v6094
      %v6096 = vpop.f32.mrb[0].mxu0
      %v6097 = vpop.f32.mrb[0].mxu0
      %v6098 = vpop.f32.mrb[0].mxu0
      %6099 = vdwg.mxu0
      %v6100 = vadd.f32 %v6007, %v6095
      %v6101 = vld [vmem:[%s6] sm:$0x1]
      %v6103 = vlaneseq
      %v6104 = vshrl.u32 %v6103, 7
      %v6105 = vsub.s32 0, %v6104
      %v6106 = vrot.slane %v6101, %v6105
      %v6108 = vadd.f32 %v6100, %v6106
      %v6109 = vpack.c.bf16 %v6108, %v6108
      %v6110 = vld [vmem:[%s7] sm:$0x3]
      %v6112 = vsel %vm1845, %v6110, 0
      %v6115 = vsel %vm966, %v6109, 0
      %6117 = vmatprep.subr.bf16.mxu0 0
      %6118 = vmatpush1.bf16.msra.mxu0 %v6115
      %6119 = vmatprep.subr.bf16.mxu0 0
      %6120 = vmatpush1.bf16.msra.mxu0 0
      %6121 = vmatprep.subr.bf16.mxu0 0
      %6122 = vmatpush1.bf16.msra.mxu0 0
      %6123 = vmatprep.subr.bf16.mxu0 0
      %6124 = vmatpush1.bf16.msra.mxu0 0
      %6125 = vmatprep.subr.bf16.mxu0 0
      %6126 = vmatpush1.bf16.msra.mxu0 0
      %6127 = vmatprep.subr.bf16.mxu0 0
      %6128 = vmatpush1.bf16.msra.mxu0 0
      %6129 = vmatprep.subr.bf16.mxu0 0
      %6130 = vmatpush1.bf16.msra.mxu0 0
      %6131 = vmatprep.subr.bf16.mxu0 0
      %6132 = vmatpush1.bf16.msra.mxu0 0
      %6133 = vmatprep.subr.bf16.mxu0 0
      %6134 = vmatpush1.bf16.msra.mxu0 0
      %6135 = vmatprep.subr.bf16.mxu0 0
      %6136 = vmatpush1.bf16.msra.mxu0 0
      %6137 = vmatprep.subr.bf16.mxu0 0
      %6138 = vmatpush1.bf16.msra.mxu0 0
      %6139 = vmatprep.subr.bf16.mxu0 0
      %6140 = vmatpush1.bf16.msra.mxu0 0
      %6141 = vmatprep.subr.bf16.mxu0 0
      %6142 = vmatpush1.bf16.msra.mxu0 0
      %6143 = vmatprep.subr.bf16.mxu0 0
      %6144 = vmatpush1.bf16.msra.mxu0 0
      %6145 = vmatprep.subr.bf16.mxu0 0
      %6146 = vmatpush1.bf16.msra.mxu0 0
      %6147 = vmatprep.subr.bf16.mxu0 0
      %6148 = vmatpush1.bf16.msra.mxu0 0
      %6149 = vmatprep.mubr.bf16.mxu0 0
      %6150 = vmatmul.mubr.bf16.gmra.mrb[0].mxu0 %v6112
      %v6151 = vpop.f32.mrb[0].mxu0
      %v6152 = vadd.f32 0.0, %v6151
      %v6153 = vpop.f32.mrb[0].mxu0
      %v6154 = vpop.f32.mrb[0].mxu0
      %v6155 = vpop.f32.mrb[0].mxu0
      %6156 = vdwg.mxu0
      %v6157 = vld [vmem:[%s1892] sm:$0x3]
      %v6159 = vsel %vm1845, %v6157, 0
      %6161 = vmatprep.subr.bf16.mxu0 0
      %6162 = vmatpush1.bf16.msra.mxu0 %v6115
      %6163 = vmatprep.subr.bf16.mxu0 0
      %6164 = vmatpush1.bf16.msra.mxu0 0
      %6165 = vmatprep.subr.bf16.mxu0 0
      %6166 = vmatpush1.bf16.msra.mxu0 0
      %6167 = vmatprep.subr.bf16.mxu0 0
      %6168 = vmatpush1.bf16.msra.mxu0 0
      %6169 = vmatprep.subr.bf16.mxu0 0
      %6170 = vmatpush1.bf16.msra.mxu0 0
      %6171 = vmatprep.subr.bf16.mxu0 0
      %6172 = vmatpush1.bf16.msra.mxu0 0
      %6173 = vmatprep.subr.bf16.mxu0 0
      %6174 = vmatpush1.bf16.msra.mxu0 0
      %6175 = vmatprep.subr.bf16.mxu0 0
      %6176 = vmatpush1.bf16.msra.mxu0 0
      %6177 = vmatprep.subr.bf16.mxu0 0
      %6178 = vmatpush1.bf16.msra.mxu0 0
      %6179 = vmatprep.subr.bf16.mxu0 0
      %6180 = vmatpush1.bf16.msra.mxu0 0
      %6181 = vmatprep.subr.bf16.mxu0 0
      %6182 = vmatpush1.bf16.msra.mxu0 0
      %6183 = vmatprep.subr.bf16.mxu0 0
      %6184 = vmatpush1.bf16.msra.mxu0 0
      %6185 = vmatprep.subr.bf16.mxu0 0
      %6186 = vmatpush1.bf16.msra.mxu0 0
      %6187 = vmatprep.subr.bf16.mxu0 0
      %6188 = vmatpush1.bf16.msra.mxu0 0
      %6189 = vmatprep.subr.bf16.mxu0 0
      %6190 = vmatpush1.bf16.msra.mxu0 0
      %6191 = vmatprep.subr.bf16.mxu0 0
      %6192 = vmatpush1.bf16.msra.mxu0 0
      %6193 = vmatprep.mubr.bf16.mxu0 0
      %6194 = vmatmul.mubr.bf16.gmra.mrb[0].mxu0 %v6159
      %v6195 = vpop.f32.mrb[0].mxu0
      %v6196 = vadd.f32 0.0, %v6195
      %v6197 = vpop.f32.mrb[0].mxu0
      %v6198 = vpop.f32.mrb[0].mxu0
      %v6199 = vpop.f32.mrb[0].mxu0
      %6200 = vdwg.mxu0
      %v6201 = vmax.f32 %v6152, %v6196
      %v6202 = vpack.c.bf16 %v6201, %v6201
      %v6203 = vld [vmem:[%s8] sm:$0xf]
      %v6204 = vld [vmem:[%s8 + $0x4] sm:$0xf]
      %v6205 = vld [vmem:[%s8 + $0x8] sm:$0xf]
      %v6206 = vld [vmem:[%s8 + $0xc] sm:$0xf]
      %v6207 = vld [vmem:[%s8 + $0x10] sm:$0xf]
      %v6208 = vld [vmem:[%s8 + $0x14] sm:$0xf]
      %v6209 = vld [vmem:[%s8 + $0x18] sm:$0xf]
      %v6210 = vld [vmem:[%s8 + $0x1c] sm:$0xf]
      %v6211 = vld [vmem:[%s8 + $0x20] sm:$0xf]
      %v6212 = vld [vmem:[%s8 + $0x24] sm:$0xf]
      %v6213 = vld [vmem:[%s8 + $0x28] sm:$0xf]
      %v6214 = vld [vmem:[%s8 + $0x2c] sm:$0xf]
      %v6215 = vld [vmem:[%s8 + $0x30] sm:$0xf]
      %v6216 = vld [vmem:[%s8 + $0x34] sm:$0xf]
      %v6217 = vld [vmem:[%s8 + $0x38] sm:$0xf]
      %v6218 = vld [vmem:[%s8 + $0x3c] sm:$0xf]
      %v6235 = vunpack.c.l.b16 %v6203
      %v6236 = vunpack.c.l.b16 %v6204
      %v6237 = vunpack.c.l.b16 %v6205
      %v6238 = vunpack.c.l.b16 %v6206
      %v6239 = vunpack.c.l.b16 %v6207
      %v6240 = vunpack.c.l.b16 %v6208
      %v6241 = vunpack.c.l.b16 %v6209
      %v6242 = vunpack.c.l.b16 %v6210
      %v6243 = vunpack.c.l.b16 %v6211
      %v6244 = vunpack.c.l.b16 %v6212
      %v6245 = vunpack.c.l.b16 %v6213
      %v6246 = vunpack.c.l.b16 %v6214
      %v6247 = vunpack.c.l.b16 %v6215
      %v6248 = vunpack.c.l.b16 %v6216
      %v6249 = vunpack.c.l.b16 %v6217
      %v6250 = vunpack.c.l.b16 %v6218
      %v6251 = vpack.c.b16 %v6236, %v6235
      %v6252 = vpack.c.b16 %v6238, %v6237
      %v6253 = vpack.c.b16 %v6240, %v6239
      %v6254 = vpack.c.b16 %v6242, %v6241
      %v6255 = vpack.c.b16 %v6244, %v6243
      %v6256 = vpack.c.b16 %v6246, %v6245
      %v6257 = vpack.c.b16 %v6248, %v6247
      %v6258 = vpack.c.b16 %v6250, %v6249
      %6267 = vmatprep.subr.bf16.mxu0 0
      %6268 = vmatpush1.bf16.msra.mxu0 %v6251
      %6269 = vmatprep.subr.bf16.mxu0 0
      %6270 = vmatpush1.bf16.msra.mxu0 %v6252
      %6271 = vmatprep.subr.bf16.mxu0 0
      %6272 = vmatpush1.bf16.msra.mxu0 %v6253
      %6273 = vmatprep.subr.bf16.mxu0 0
      %6274 = vmatpush1.bf16.msra.mxu0 %v6254
      %6275 = vmatprep.subr.bf16.mxu0 0
      %6276 = vmatpush1.bf16.msra.mxu0 %v6255
      %6277 = vmatprep.subr.bf16.mxu0 0
      %6278 = vmatpush1.bf16.msra.mxu0 %v6256
      %6279 = vmatprep.subr.bf16.mxu0 0
      %6280 = vmatpush1.bf16.msra.mxu0 %v6257
      %6281 = vmatprep.subr.bf16.mxu0 0
      %6282 = vmatpush1.bf16.msra.mxu0 %v6258
      %6283 = vmatprep.subr.bf16.mxu0 0
      %6284 = vmatpush1.bf16.msra.mxu0 0
      %6285 = vmatprep.subr.bf16.mxu0 0
      %6286 = vmatpush1.bf16.msra.mxu0 0
      %6287 = vmatprep.subr.bf16.mxu0 0
      %6288 = vmatpush1.bf16.msra.mxu0 0
      %6289 = vmatprep.subr.bf16.mxu0 0
      %6290 = vmatpush1.bf16.msra.mxu0 0
      %6291 = vmatprep.subr.bf16.mxu0 0
      %6292 = vmatpush1.bf16.msra.mxu0 0
      %6293 = vmatprep.subr.bf16.mxu0 0
      %6294 = vmatpush1.bf16.msra.mxu0 0
      %6295 = vmatprep.subr.bf16.mxu0 0
      %6296 = vmatpush1.bf16.msra.mxu0 0
      %6297 = vmatprep.subr.bf16.mxu0 0
      %6298 = vmatpush1.bf16.msra.mxu0 0
      %6299 = vmatprep.mubr.bf16.mxu0 0
      %6300 = vmatmul.mubr.bf16.gmra.mrb[0].mxu0 %v6202
      %v6301 = vpop.f32.mrb[0].mxu0
      %v6302 = vadd.f32 0.0, %v6301
      %v6303 = vpop.f32.mrb[0].mxu0
      %v6304 = vpop.f32.mrb[0].mxu0
      %v6305 = vpop.f32.mrb[0].mxu0
      %6306 = vdwg.mxu0
      %v6307 = vld [vmem:[%s2043] sm:$0xf]
      %v6308 = vld [vmem:[%s2043 + $0x4] sm:$0xf]
      %v6309 = vld [vmem:[%s2043 + $0x8] sm:$0xf]
      %v6310 = vld [vmem:[%s2043 + $0xc] sm:$0xf]
      %v6311 = vld [vmem:[%s2043 + $0x10] sm:$0xf]
      %v6312 = vld [vmem:[%s2043 + $0x14] sm:$0xf]
      %v6313 = vld [vmem:[%s2043 + $0x18] sm:$0xf]
      %v6314 = vld [vmem:[%s2043 + $0x1c] sm:$0xf]
      %v6315 = vld [vmem:[%s2043 + $0x20] sm:$0xf]
      %v6316 = vld [vmem:[%s2043 + $0x24] sm:$0xf]
      %v6317 = vld [vmem:[%s2043 + $0x28] sm:$0xf]
      %v6318 = vld [vmem:[%s2043 + $0x2c] sm:$0xf]
      %v6319 = vld [vmem:[%s2043 + $0x30] sm:$0xf]
      %v6320 = vld [vmem:[%s2043 + $0x34] sm:$0xf]
      %v6321 = vld [vmem:[%s2043 + $0x38] sm:$0xf]
      %v6322 = vld [vmem:[%s2043 + $0x3c] sm:$0xf]
      %v6339 = vunpack.c.l.b16 %v6307
      %v6340 = vunpack.c.l.b16 %v6308
      %v6341 = vunpack.c.l.b16 %v6309
      %v6342 = vunpack.c.l.b16 %v6310
      %v6343 = vunpack.c.l.b16 %v6311
      %v6344 = vunpack.c.l.b16 %v6312
      %v6345 = vunpack.c.l.b16 %v6313
      %v6346 = vunpack.c.l.b16 %v6314
      %v6347 = vunpack.c.l.b16 %v6315
      %v6348 = vunpack.c.l.b16 %v6316
      %v6349 = vunpack.c.l.b16 %v6317
      %v6350 = vunpack.c.l.b16 %v6318
      %v6351 = vunpack.c.l.b16 %v6319
      %v6352 = vunpack.c.l.b16 %v6320
      %v6353 = vunpack.c.l.b16 %v6321
      %v6354 = vunpack.c.l.b16 %v6322
      %v6355 = vpack.c.b16 %v6340, %v6339
      %v6356 = vpack.c.b16 %v6342, %v6341
      %v6357 = vpack.c.b16 %v6344, %v6343
      %v6358 = vpack.c.b16 %v6346, %v6345
      %v6359 = vpack.c.b16 %v6348, %v6347
      %v6360 = vpack.c.b16 %v6350, %v6349
      %v6361 = vpack.c.b16 %v6352, %v6351
      %v6362 = vpack.c.b16 %v6354, %v6353
      %6371 = vmatprep.subr.bf16.mxu0 0
      %6372 = vmatpush1.bf16.msra.mxu0 %v6355
      %6373 = vmatprep.subr.bf16.mxu0 0
      %6374 = vmatpush1.bf16.msra.mxu0 %v6356
      %6375 = vmatprep.subr.bf16.mxu0 0
      %6376 = vmatpush1.bf16.msra.mxu0 %v6357
      %6377 = vmatprep.subr.bf16.mxu0 0
      %6378 = vmatpush1.bf16.msra.mxu0 %v6358
      %6379 = vmatprep.subr.bf16.mxu0 0
      %6380 = vmatpush1.bf16.msra.mxu0 %v6359
      %6381 = vmatprep.subr.bf16.mxu0 0
      %6382 = vmatpush1.bf16.msra.mxu0 %v6360
      %6383 = vmatprep.subr.bf16.mxu0 0
      %6384 = vmatpush1.bf16.msra.mxu0 %v6361
      %6385 = vmatprep.subr.bf16.mxu0 0
      %6386 = vmatpush1.bf16.msra.mxu0 %v6362
      %6387 = vmatprep.subr.bf16.mxu0 0
      %6388 = vmatpush1.bf16.msra.mxu0 0
      %6389 = vmatprep.subr.bf16.mxu0 0
      %6390 = vmatpush1.bf16.msra.mxu0 0
      %6391 = vmatprep.subr.bf16.mxu0 0
      %6392 = vmatpush1.bf16.msra.mxu0 0
      %6393 = vmatprep.subr.bf16.mxu0 0
      %6394 = vmatpush1.bf16.msra.mxu0 0
      %6395 = vmatprep.subr.bf16.mxu0 0
      %6396 = vmatpush1.bf16.msra.mxu0 0
      %6397 = vmatprep.subr.bf16.mxu0 0
      %6398 = vmatpush1.bf16.msra.mxu0 0
      %6399 = vmatprep.subr.bf16.mxu0 0
      %6400 = vmatpush1.bf16.msra.mxu0 0
      %6401 = vmatprep.subr.bf16.mxu0 0
      %6402 = vmatpush1.bf16.msra.mxu0 0
      %6403 = vmatprep.mubr.bf16.mxu0 0
      %6404 = vmatmul.mubr.bf16.gmra.mrb[0].mxu0 %v6202
      %v6405 = vpop.f32.mrb[0].mxu0
      %v6406 = vadd.f32 0.0, %v6405
      %v6407 = vpop.f32.mrb[0].mxu0
      %v6408 = vpop.f32.mrb[0].mxu0
      %v6409 = vpop.f32.mrb[0].mxu0
      %6410 = vdwg.mxu0
      %v6411 = vmax.f32 %v6302, %v6406
      %v6412 = vmax.f32 %v6411, 0.0
      %v6413 = vpack.c.bf16 %v6412, %v6412
      %v6414 = vld [vmem:[%s9] sm:$0xf]
      %v6415 = vld [vmem:[%s9 + $0x4] sm:$0xf]
      %v6416 = vld [vmem:[%s9 + $0x8] sm:$0xf]
      %v6417 = vld [vmem:[%s9 + $0xc] sm:$0xf]
      %v6418 = vld [vmem:[%s9 + $0x10] sm:$0xf]
      %v6419 = vld [vmem:[%s9 + $0x14] sm:$0xf]
      %v6420 = vld [vmem:[%s9 + $0x18] sm:$0xf]
      %v6421 = vld [vmem:[%s9 + $0x1c] sm:$0xf]
      %v6422 = vld [vmem:[%s2159] sm:$0xf]
      %v6423 = vld [vmem:[%s2159 + $0x4] sm:$0xf]
      %v6424 = vld [vmem:[%s2159 + $0x8] sm:$0xf]
      %v6425 = vld [vmem:[%s2159 + $0xc] sm:$0xf]
      %v6426 = vld [vmem:[%s2159 + $0x10] sm:$0xf]
      %v6427 = vld [vmem:[%s2159 + $0x14] sm:$0xf]
      %v6428 = vld [vmem:[%s2159 + $0x18] sm:$0xf]
      %v6429 = vld [vmem:[%s2159 + $0x1c] sm:$0xf]
      %v6431 = vshrl.u32 %v6413, 16
      %v6433 = vshll.u32 %v6413, 16
      %v6435 = vrot.slane %v6433, 1
      %v6436 = vor.u32 %v6431, %v6435
      %v6445 = vunpack.c.l.b16 %v6422
      %v6446 = vunpack.c.l.b16 %v6423
      %v6447 = vunpack.c.l.b16 %v6424
      %v6448 = vunpack.c.l.b16 %v6425
      %v6449 = vunpack.c.l.b16 %v6426
      %v6450 = vunpack.c.l.b16 %v6427
      %v6451 = vunpack.c.l.b16 %v6428
      %v6452 = vunpack.c.l.b16 %v6429
      %v6453 = vpack.c.b16 %v6446, %v6445
      %v6454 = vpack.c.b16 %v6448, %v6447
      %v6455 = vpack.c.b16 %v6450, %v6449
      %v6456 = vpack.c.b16 %v6452, %v6451
      %v6462 = vsel %vm1172, %v6436, 0
      %6464 = vmatprep.subr.bf16.mxu0 0
      %6465 = vmatpush1.bf16.msra.mxu0 %v6453
      %6466 = vmatprep.subr.bf16.mxu0 0
      %6467 = vmatpush1.bf16.msra.mxu0 %v6454
      %6468 = vmatprep.subr.bf16.mxu0 0
      %6469 = vmatpush1.bf16.msra.mxu0 %v6455
      %6470 = vmatprep.subr.bf16.mxu0 0
      %6471 = vmatpush1.bf16.msra.mxu0 %v6456
      %6472 = vmatprep.subr.bf16.mxu0 0
      %6473 = vmatpush1.bf16.msra.mxu0 0
      %6474 = vmatprep.subr.bf16.mxu0 0
      %6475 = vmatpush1.bf16.msra.mxu0 0
      %6476 = vmatprep.subr.bf16.mxu0 0
      %6477 = vmatpush1.bf16.msra.mxu0 0
      %6478 = vmatprep.subr.bf16.mxu0 0
      %6479 = vmatpush1.bf16.msra.mxu0 0
      %6480 = vmatprep.subr.bf16.mxu0 0
      %6481 = vmatpush1.bf16.msra.mxu0 0
      %6482 = vmatprep.subr.bf16.mxu0 0
      %6483 = vmatpush1.bf16.msra.mxu0 0
      %6484 = vmatprep.subr.bf16.mxu0 0
      %6485 = vmatpush1.bf16.msra.mxu0 0
      %6486 = vmatprep.subr.bf16.mxu0 0
      %6487 = vmatpush1.bf16.msra.mxu0 0
      %6488 = vmatprep.subr.bf16.mxu0 0
      %6489 = vmatpush1.bf16.msra.mxu0 0
      %6490 = vmatprep.subr.bf16.mxu0 0
      %6491 = vmatpush1.bf16.msra.mxu0 0
      %6492 = vmatprep.subr.bf16.mxu0 0
      %6493 = vmatpush1.bf16.msra.mxu0 0
      %6494 = vmatprep.subr.bf16.mxu0 0
      %6495 = vmatpush1.bf16.msra.mxu0 0
      %6496 = vmatprep.mubr.bf16.mxu0 0
      %6497 = vmatmul.mubr.bf16.gmra.mrb[0].mxu0 %v6462
      %v6498 = vpop.f32.mrb[0].mxu0
      %v6499 = vadd.f32 0.0, %v6498
      %v6500 = vpop.f32.mrb[0].mxu0
      %v6501 = vpop.f32.mrb[0].mxu0
      %v6502 = vpop.f32.mrb[0].mxu0
      %6503 = vdwg.mxu0
      %v6512 = vunpack.c.l.b16 %v6414
      %v6513 = vunpack.c.l.b16 %v6415
      %v6514 = vunpack.c.l.b16 %v6416
      %v6515 = vunpack.c.l.b16 %v6417
      %v6516 = vunpack.c.l.b16 %v6418
      %v6517 = vunpack.c.l.b16 %v6419
      %v6518 = vunpack.c.l.b16 %v6420
      %v6519 = vunpack.c.l.b16 %v6421
      %v6520 = vpack.c.b16 %v6513, %v6512
      %v6521 = vpack.c.b16 %v6515, %v6514
      %v6522 = vpack.c.b16 %v6517, %v6516
      %v6523 = vpack.c.b16 %v6519, %v6518
      %v6528 = vsel %vm1172, %v6413, 0
      %6530 = vmatprep.subr.bf16.mxu0 0
      %6531 = vmatpush1.bf16.msra.mxu0 %v6520
      %6532 = vmatprep.subr.bf16.mxu0 0
      %6533 = vmatpush1.bf16.msra.mxu0 %v6521
      %6534 = vmatprep.subr.bf16.mxu0 0
      %6535 = vmatpush1.bf16.msra.mxu0 %v6522
      %6536 = vmatprep.subr.bf16.mxu0 0
      %6537 = vmatpush1.bf16.msra.mxu0 %v6523
      %6538 = vmatprep.subr.bf16.mxu0 0
      %6539 = vmatpush1.bf16.msra.mxu0 0
      %6540 = vmatprep.subr.bf16.mxu0 0
      %6541 = vmatpush1.bf16.msra.mxu0 0
      %6542 = vmatprep.subr.bf16.mxu0 0
      %6543 = vmatpush1.bf16.msra.mxu0 0
      %6544 = vmatprep.subr.bf16.mxu0 0
      %6545 = vmatpush1.bf16.msra.mxu0 0
      %6546 = vmatprep.subr.bf16.mxu0 0
      %6547 = vmatpush1.bf16.msra.mxu0 0
      %6548 = vmatprep.subr.bf16.mxu0 0
      %6549 = vmatpush1.bf16.msra.mxu0 0
      %6550 = vmatprep.subr.bf16.mxu0 0
      %6551 = vmatpush1.bf16.msra.mxu0 0
      %6552 = vmatprep.subr.bf16.mxu0 0
      %6553 = vmatpush1.bf16.msra.mxu0 0
      %6554 = vmatprep.subr.bf16.mxu0 0
      %6555 = vmatpush1.bf16.msra.mxu0 0
      %6556 = vmatprep.subr.bf16.mxu0 0
      %6557 = vmatpush1.bf16.msra.mxu0 0
      %6558 = vmatprep.subr.bf16.mxu0 0
      %6559 = vmatpush1.bf16.msra.mxu0 0
      %6560 = vmatprep.subr.bf16.mxu0 0
      %6561 = vmatpush1.bf16.msra.mxu0 0
      %6562 = vmatprep.mubr.bf16.mxu0 0
      %6563 = vmatmul.mubr.bf16.gmra.mrb[0].mxu0 %v6528
      %v6564 = vpop.f32.mrb[0].mxu0
      %v6565 = vadd.f32 %v6499, %v6564
      %v6566 = vpop.f32.mrb[0].mxu0
      %v6567 = vpop.f32.mrb[0].mxu0
      %v6568 = vpop.f32.mrb[0].mxu0
      %6569 = vdwg.mxu0
      %v6570 = vld [vmem:[%s2308] sm:$0xf]
      %v6571 = vld [vmem:[%s2308 + $0x4] sm:$0xf]
      %v6572 = vld [vmem:[%s2308 + $0x8] sm:$0xf]
      %v6573 = vld [vmem:[%s2308 + $0xc] sm:$0xf]
      %v6574 = vld [vmem:[%s2308 + $0x10] sm:$0xf]
      %v6575 = vld [vmem:[%s2308 + $0x14] sm:$0xf]
      %v6576 = vld [vmem:[%s2308 + $0x18] sm:$0xf]
      %v6577 = vld [vmem:[%s2308 + $0x1c] sm:$0xf]
      %v6579 = vrot.slane %v6413, 1
      %v6588 = vunpack.c.l.b16 %v6570
      %v6589 = vunpack.c.l.b16 %v6571
      %v6590 = vunpack.c.l.b16 %v6572
      %v6591 = vunpack.c.l.b16 %v6573
      %v6592 = vunpack.c.l.b16 %v6574
      %v6593 = vunpack.c.l.b16 %v6575
      %v6594 = vunpack.c.l.b16 %v6576
      %v6595 = vunpack.c.l.b16 %v6577
      %v6596 = vpack.c.b16 %v6589, %v6588
      %v6597 = vpack.c.b16 %v6591, %v6590
      %v6598 = vpack.c.b16 %v6593, %v6592
      %v6599 = vpack.c.b16 %v6595, %v6594
      %v6605 = vsel %vm1172, %v6579, 0
      %6607 = vmatprep.subr.bf16.mxu0 0
      %6608 = vmatpush1.bf16.msra.mxu0 %v6596
      %6609 = vmatprep.subr.bf16.mxu0 0
      %6610 = vmatpush1.bf16.msra.mxu0 %v6597
      %6611 = vmatprep.subr.bf16.mxu0 0
      %6612 = vmatpush1.bf16.msra.mxu0 %v6598
      %6613 = vmatprep.subr.bf16.mxu0 0
      %6614 = vmatpush1.bf16.msra.mxu0 %v6599
      %6615 = vmatprep.subr.bf16.mxu0 0
      %6616 = vmatpush1.bf16.msra.mxu0 0
      %6617 = vmatprep.subr.bf16.mxu0 0
      %6618 = vmatpush1.bf16.msra.mxu0 0
      %6619 = vmatprep.subr.bf16.mxu0 0
      %6620 = vmatpush1.bf16.msra.mxu0 0
      %6621 = vmatprep.subr.bf16.mxu0 0
      %6622 = vmatpush1.bf16.msra.mxu0 0
      %6623 = vmatprep.subr.bf16.mxu0 0
      %6624 = vmatpush1.bf16.msra.mxu0 0
      %6625 = vmatprep.subr.bf16.mxu0 0
      %6626 = vmatpush1.bf16.msra.mxu0 0
      %6627 = vmatprep.subr.bf16.mxu0 0
      %6628 = vmatpush1.bf16.msra.mxu0 0
      %6629 = vmatprep.subr.bf16.mxu0 0
      %6630 = vmatpush1.bf16.msra.mxu0 0
      %6631 = vmatprep.subr.bf16.mxu0 0
      %6632 = vmatpush1.bf16.msra.mxu0 0
      %6633 = vmatprep.subr.bf16.mxu0 0
      %6634 = vmatpush1.bf16.msra.mxu0 0
      %6635 = vmatprep.subr.bf16.mxu0 0
      %6636 = vmatpush1.bf16.msra.mxu0 0
      %6637 = vmatprep.subr.bf16.mxu0 0
      %6638 = vmatpush1.bf16.msra.mxu0 0
      %6639 = vmatprep.mubr.bf16.mxu0 0
      %6640 = vmatmul.mubr.bf16.gmra.mrb[0].mxu0 %v6605
      %v6641 = vpop.f32.mrb[0].mxu0
      %v6642 = vadd.f32 0.0, %v6641
      %v6643 = vpop.f32.mrb[0].mxu0
      %v6644 = vpop.f32.mrb[0].mxu0
      %v6645 = vpop.f32.mrb[0].mxu0
      %6646 = vdwg.mxu0
      %v6647 = vadd.f32 %v6565, %v6642
      %v6648 = vld [vmem:[%s10] sm:$0x1]
      %v6650 = vlaneseq
      %v6651 = vshrl.u32 %v6650, 7
      %v6652 = vsub.s32 0, %v6651
      %v6653 = vrot.slane %v6648, %v6652
      %v6655 = vadd.f32 %v6647, %v6653
      %v6657 = vrot.slane %v6655, 1
      %v6659 = vmax.f32 %v6655, %v6657
      %v6660 = vpack.c.bf16 %v6659, %v6659
      %v6661 = vld [vmem:[%s11] sm:$0xf]
      %v6662 = vld [vmem:[%s11 + $0x4] sm:$0xf]
      %v6663 = vld [vmem:[%s11 + $0x8] sm:$0xf]
      %v6664 = vld [vmem:[%s11 + $0xc] sm:$0xf]
      %v6665 = vld [vmem:[%s11 + $0x10] sm:$0xf]
      %v6666 = vld [vmem:[%s11 + $0x14] sm:$0xf]
      %v6667 = vld [vmem:[%s11 + $0x18] sm:$0xf]
      %v6668 = vld [vmem:[%s11 + $0x1c] sm:$0xf]
      %v6677 = vunpack.c.l.b16 %v6661
      %v6678 = vunpack.c.l.b16 %v6662
      %v6679 = vunpack.c.l.b16 %v6663
      %v6680 = vunpack.c.l.b16 %v6664
      %v6681 = vunpack.c.l.b16 %v6665
      %v6682 = vunpack.c.l.b16 %v6666
      %v6683 = vunpack.c.l.b16 %v6667
      %v6684 = vunpack.c.l.b16 %v6668
      %v6685 = vpack.c.b16 %v6678, %v6677
      %v6686 = vpack.c.b16 %v6680, %v6679
      %v6687 = vpack.c.b16 %v6682, %v6681
      %v6688 = vpack.c.b16 %v6684, %v6683
      %v6694 = vsel %vm1172, %v6660, 0
      %6696 = vmatprep.subr.bf16.mxu0 0
      %6697 = vmatpush1.bf16.msra.mxu0 %v6685
      %6698 = vmatprep.subr.bf16.mxu0 0
      %6699 = vmatpush1.bf16.msra.mxu0 %v6686
      %6700 = vmatprep.subr.bf16.mxu0 0
      %6701 = vmatpush1.bf16.msra.mxu0 %v6687
      %6702 = vmatprep.subr.bf16.mxu0 0
      %6703 = vmatpush1.bf16.msra.mxu0 %v6688
      %6704 = vmatprep.subr.bf16.mxu0 0
      %6705 = vmatpush1.bf16.msra.mxu0 0
      %6706 = vmatprep.subr.bf16.mxu0 0
      %6707 = vmatpush1.bf16.msra.mxu0 0
      %6708 = vmatprep.subr.bf16.mxu0 0
      %6709 = vmatpush1.bf16.msra.mxu0 0
      %6710 = vmatprep.subr.bf16.mxu0 0
      %6711 = vmatpush1.bf16.msra.mxu0 0
      %6712 = vmatprep.subr.bf16.mxu0 0
      %6713 = vmatpush1.bf16.msra.mxu0 0
      %6714 = vmatprep.subr.bf16.mxu0 0
      %6715 = vmatpush1.bf16.msra.mxu0 0
      %6716 = vmatprep.subr.bf16.mxu0 0
      %6717 = vmatpush1.bf16.msra.mxu0 0
      %6718 = vmatprep.subr.bf16.mxu0 0
      %6719 = vmatpush1.bf16.msra.mxu0 0
      %6720 = vmatprep.subr.bf16.mxu0 0
      %6721 = vmatpush1.bf16.msra.mxu0 0
      %6722 = vmatprep.subr.bf16.mxu0 0
      %6723 = vmatpush1.bf16.msra.mxu0 0
      %6724 = vmatprep.subr.bf16.mxu0 0
      %6725 = vmatpush1.bf16.msra.mxu0 0
      %6726 = vmatprep.subr.bf16.mxu0 0
      %6727 = vmatpush1.bf16.msra.mxu0 0
      %6728 = vmatprep.mubr.bf16.mxu0 0
      %6729 = vmatmul.mubr.bf16.gmra.mrb[0].mxu0 %v6694
      %v6730 = vpop.f32.mrb[0].mxu0
      %v6731 = vadd.f32 0.0, %v6730
      %v6732 = vpop.f32.mrb[0].mxu0
      %v6733 = vpop.f32.mrb[0].mxu0
      %v6734 = vpop.f32.mrb[0].mxu0
      %6735 = vdwg.mxu0
      %v6736 = vld [vmem:[%s2475] sm:$0xf]
      %v6737 = vld [vmem:[%s2475 + $0x4] sm:$0xf]
      %v6738 = vld [vmem:[%s2475 + $0x8] sm:$0xf]
      %v6739 = vld [vmem:[%s2475 + $0xc] sm:$0xf]
      %v6740 = vld [vmem:[%s2475 + $0x10] sm:$0xf]
      %v6741 = vld [vmem:[%s2475 + $0x14] sm:$0xf]
      %v6742 = vld [vmem:[%s2475 + $0x18] sm:$0xf]
      %v6743 = vld [vmem:[%s2475 + $0x1c] sm:$0xf]
      %v6752 = vunpack.c.l.b16 %v6736
      %v6753 = vunpack.c.l.b16 %v6737
      %v6754 = vunpack.c.l.b16 %v6738
      %v6755 = vunpack.c.l.b16 %v6739
      %v6756 = vunpack.c.l.b16 %v6740
      %v6757 = vunpack.c.l.b16 %v6741
      %v6758 = vunpack.c.l.b16 %v6742
      %v6759 = vunpack.c.l.b16 %v6743
      %v6760 = vpack.c.b16 %v6753, %v6752
      %v6761 = vpack.c.b16 %v6755, %v6754
      %v6762 = vpack.c.b16 %v6757, %v6756
      %v6763 = vpack.c.b16 %v6759, %v6758
      %6768 = vmatprep.subr.bf16.mxu0 0
      %6769 = vmatpush1.bf16.msra.mxu0 %v6760
      %6770 = vmatprep.subr.bf16.mxu0 0
      %6771 = vmatpush1.bf16.msra.mxu0 %v6761
      %6772 = vmatprep.subr.bf16.mxu0 0
      %6773 = vmatpush1.bf16.msra.mxu0 %v6762
      %6774 = vmatprep.subr.bf16.mxu0 0
      %6775 = vmatpush1.bf16.msra.mxu0 %v6763
      %6776 = vmatprep.subr.bf16.mxu0 0
      %6777 = vmatpush1.bf16.msra.mxu0 0
      %6778 = vmatprep.subr.bf16.mxu0 0
      %6779 = vmatpush1.bf16.msra.mxu0 0
      %6780 = vmatprep.subr.bf16.mxu0 0
      %6781 = vmatpush1.bf16.msra.mxu0 0
      %6782 = vmatprep.subr.bf16.mxu0 0
      %6783 = vmatpush1.bf16.msra.mxu0 0
      %6784 = vmatprep.subr.bf16.mxu0 0
      %6785 = vmatpush1.bf16.msra.mxu0 0
      %6786 = vmatprep.subr.bf16.mxu0 0
      %6787 = vmatpush1.bf16.msra.mxu0 0
      %6788 = vmatprep.subr.bf16.mxu0 0
      %6789 = vmatpush1.bf16.msra.mxu0 0
      %6790 = vmatprep.subr.bf16.mxu0 0
      %6791 = vmatpush1.bf16.msra.mxu0 0
      %6792 = vmatprep.subr.bf16.mxu0 0
      %6793 = vmatpush1.bf16.msra.mxu0 0
      %6794 = vmatprep.subr.bf16.mxu0 0
      %6795 = vmatpush1.bf16.msra.mxu0 0
      %6796 = vmatprep.subr.bf16.mxu0 0
      %6797 = vmatpush1.bf16.msra.mxu0 0
      %6798 = vmatprep.subr.bf16.mxu0 0
      %6799 = vmatpush1.bf16.msra.mxu0 0
      %6800 = vmatprep.mubr.bf16.mxu0 0
      %6801 = vmatmul.mubr.bf16.gmra.mrb[0].mxu0 %v6694
      %v6802 = vpop.f32.mrb[0].mxu0
      %v6803 = vadd.f32 0.0, %v6802
      %v6804 = vpop.f32.mrb[0].mxu0
      %v6805 = vpop.f32.mrb[0].mxu0
      %v6806 = vpop.f32.mrb[0].mxu0
      %6807 = vdwg.mxu0
      %v6808 = vmax.f32 %v6731, %v6803
      %v6809 = vmax.f32 %v6808, 0.0
      %v6810 = vmul.f32 %v6809, %v6809
      %v6811 = vsel %vm2551, %v6810, 0.0
      %6812 = vadd.xlane.f32.xlu0 %v6811
      %v6813 = vpop.xlane.xlu0 %6812
      %v6814 = vrot.slane %v6813, 4
      %v6815 = vadd.f32 %v6813, %v6814
      %v6816 = vrot.slane %v6815, 2
      %v6817 = vadd.f32 %v6815, %v6816
      %v6818 = vrot.slane %v6817, 1
      %v6819 = vadd.f32 %v6817, %v6818
      %s6820 = vtos %v6819
      %s6821 = smax.f32 %s6820, 1e-24
      %v6822 = vstv %s6821
      %v6823 = vrsqrt.pop %v6822
      %s6824 = vtos %v6823
      %v6825 = vstv %s6824
      %v6826 = vmul.f32 %v6809, %v6825
      %6828 = vrot.lane.b32.xlu0 %v6826, 64
      %v6829 = vpop.permute.xlu0 %6828
      %vm6831 = vcmask 778752
      %6832 = vst.msk [vmem:[%s414] sm:$0x1] %vm6831, %v6829
      %s6833 = scalar_lea.vmem %s410, 48
      %v6834 = vld [vmem:[%s6833] sm:$0xf]
      %v6835 = vld [vmem:[%s6833 + $0x4] sm:$0xf]
      %v6836 = vld [vmem:[%s6833 + $0x8] sm:$0xf]
      %v6837 = vld [vmem:[%s1] sm:$0xff]
      %v6838 = vld [vmem:[%s1 + $0x8] sm:$0xff]
      %v6839 = vld [vmem:[%s1 + $0x10] sm:$0xff]
      %v6840 = vld [vmem:[%s1 + $0x18] sm:$0x33]
      %v6841 = vld [vmem:[%s6833 + $0xc] sm:$0x1]
      %v6842 = vld [vmem:[%s424] sm:$0xff]
      %v6843 = vld [vmem:[%s424 + $0x8] sm:$0xff]
      %v6844 = vld [vmem:[%s424 + $0x10] sm:$0xff]
      %v6845 = vld [vmem:[%s424 + $0x18] sm:$0x33]
      %v6850 = vunpack.c.l.b16 %v6834
      %v6851 = vunpack.c.l.b16 %v6835
      %v6852 = vunpack.c.l.b16 %v6836
      %v6853 = vunpack.c.l.b16 %v6841
      %v6854 = vpack.c.b16 %v6851, %v6850
      %v6855 = vpack.c.b16 %v6853, %v6852
      %v6857 = vshrl.u32 %v6854, 16
      %v6859 = vshll.u32 %v6854, 16
      %v6861 = vrot.slane %v6859, 1
      %v6862 = vor.u32 %v6857, %v6861
      %v6864 = vshll.u32 %v6855, 16
      %v6866 = vrot.slane %v6864, 1
      %v6867 = vsel %vm439, %v6862, %v6866
      %v6868 = vshrl.u32 %v6855, 16
      %v6870 = vor.u32 %v6868, %v6866
      %v6875 = vunpack.c.l.b16 %v6842
      %v6876 = vunpack.c.h.b16 %v6842
      %v6877 = vunpack.c.l.b16 %v6843
      %v6878 = vunpack.c.h.b16 %v6843
      %v6879 = vunpack.c.l.b16 %v6844
      %v6880 = vunpack.c.h.b16 %v6844
      %v6881 = vunpack.c.l.b16 %v6845
      %v6882 = vunpack.c.h.b16 %v6845
      %v6883 = vpack.c.b16 %v6877, %v6875
      %v6884 = vpack.c.b16 %v6878, %v6876
      %v6885 = vpack.c.b16 %v6881, %v6879
      %v6886 = vpack.c.b16 %v6882, %v6880
      %v6890 = vsel %vm473, %v6867, 0
      %v6893 = vsel %vm473, %v6870, 0
      %v6896 = vsel %vm480, %v6885, 0
      %v6899 = vsel %vm480, %v6886, 0
      %6901 = vmatprep.subr.bf16.mxu0 %v6884
      %6902 = vmatpush1.bf16.msra.mxu0 %v6883
      %6903 = vmatprep.subr.bf16.mxu0 %v6899
      %6904 = vmatpush1.bf16.msra.mxu0 %v6896
      %6905 = vmatprep.subr.bf16.mxu0 0
      %6906 = vmatpush1.bf16.msra.mxu0 0
      %6907 = vmatprep.subr.bf16.mxu0 0
      %6908 = vmatpush1.bf16.msra.mxu0 0
      %6909 = vmatprep.subr.bf16.mxu0 0
      %6910 = vmatpush1.bf16.msra.mxu0 0
      %6911 = vmatprep.subr.bf16.mxu0 0
      %6912 = vmatpush1.bf16.msra.mxu0 0
      %6913 = vmatprep.subr.bf16.mxu0 0
      %6914 = vmatpush1.bf16.msra.mxu0 0
      %6915 = vmatprep.subr.bf16.mxu0 0
      %6916 = vmatpush1.bf16.msra.mxu0 0
      %6917 = vmatprep.subr.bf16.mxu0 0
      %6918 = vmatpush1.bf16.msra.mxu0 0
      %6919 = vmatprep.subr.bf16.mxu0 0
      %6920 = vmatpush1.bf16.msra.mxu0 0
      %6921 = vmatprep.subr.bf16.mxu0 0
      %6922 = vmatpush1.bf16.msra.mxu0 0
      %6923 = vmatprep.subr.bf16.mxu0 0
      %6924 = vmatpush1.bf16.msra.mxu0 0
      %6925 = vmatprep.subr.bf16.mxu0 0
      %6926 = vmatpush1.bf16.msra.mxu0 0
      %6927 = vmatprep.subr.bf16.mxu0 0
      %6928 = vmatpush1.bf16.msra.mxu0 0
      %6929 = vmatprep.subr.bf16.mxu0 0
      %6930 = vmatpush1.bf16.msra.mxu0 0
      %6931 = vmatprep.subr.bf16.mxu0 0
      %6932 = vmatpush1.bf16.msra.mxu0 0
      %6933 = vmatprep.mubr.bf16.mxu0 0
      %6934 = vmatmul.mubr.bf16.gmra.mrb[0].mxu0 %v6890
      %v6935 = vpop.f32.mrb[0].mxu0
      %v6936 = vadd.f32 0.0, %v6935
      %v6937 = vpop.f32.mrb[0].mxu0
      %v6938 = vadd.f32 0.0, %v6937
      %v6939 = vpop.f32.mrb[0].mxu0
      %v6940 = vadd.f32 0.0, %v6939
      %v6941 = vpop.f32.mrb[0].mxu0
      %v6942 = vadd.f32 0.0, %v6941
      %6943 = vmatprep.mubr.bf16.mxu0 0
      %6944 = vmatmul.mubr.bf16.gmra.mrb[0].mxu0 %v6893
      %v6945 = vpop.f32.mrb[0].mxu0
      %v6946 = vadd.f32 0.0, %v6945
      %v6947 = vpop.f32.mrb[0].mxu0
      %v6948 = vadd.f32 0.0, %v6947
      %v6949 = vpop.f32.mrb[0].mxu0
      %v6950 = vpop.f32.mrb[0].mxu0
      %6951 = vdwg.mxu0
      %v6952 = vpack.c.b16 %v6852, %v6852
      %v6957 = vunpack.c.l.b16 %v6837
      %v6958 = vunpack.c.h.b16 %v6837
      %v6959 = vunpack.c.l.b16 %v6838
      %v6960 = vunpack.c.h.b16 %v6838
      %v6961 = vunpack.c.l.b16 %v6839
      %v6962 = vunpack.c.h.b16 %v6839
      %v6963 = vunpack.c.l.b16 %v6840
      %v6964 = vunpack.c.h.b16 %v6840
      %v6965 = vpack.c.b16 %v6959, %v6957
      %v6966 = vpack.c.b16 %v6960, %v6958
      %v6967 = vpack.c.b16 %v6963, %v6961
      %v6968 = vpack.c.b16 %v6964, %v6962
      %v6971 = vsel %vm473, %v6854, 0
      %v6974 = vsel %vm473, %v6952, 0
      %v6977 = vsel %vm480, %v6967, 0
      %v6980 = vsel %vm480, %v6968, 0
      %6982 = vmatprep.subr.bf16.mxu0 %v6966
      %6983 = vmatpush1.bf16.msra.mxu0 %v6965
      %6984 = vmatprep.subr.bf16.mxu0 %v6980
      %6985 = vmatpush1.bf16.msra.mxu0 %v6977
      %6986 = vmatprep.subr.bf16.mxu0 0
      %6987 = vmatpush1.bf16.msra.mxu0 0
      %6988 = vmatprep.subr.bf16.mxu0 0
      %6989 = vmatpush1.bf16.msra.mxu0 0
      %6990 = vmatprep.subr.bf16.mxu0 0
      %6991 = vmatpush1.bf16.msra.mxu0 0
      %6992 = vmatprep.subr.bf16.mxu0 0
      %6993 = vmatpush1.bf16.msra.mxu0 0
      %6994 = vmatprep.subr.bf16.mxu0 0
      %6995 = vmatpush1.bf16.msra.mxu0 0
      %6996 = vmatprep.subr.bf16.mxu0 0
      %6997 = vmatpush1.bf16.msra.mxu0 0
      %6998 = vmatprep.subr.bf16.mxu0 0
      %6999 = vmatpush1.bf16.msra.mxu0 0
      %7000 = vmatprep.subr.bf16.mxu0 0
      %7001 = vmatpush1.bf16.msra.mxu0 0
      %7002 = vmatprep.subr.bf16.mxu0 0
      %7003 = vmatpush1.bf16.msra.mxu0 0
      %7004 = vmatprep.subr.bf16.mxu0 0
      %7005 = vmatpush1.bf16.msra.mxu0 0
      %7006 = vmatprep.subr.bf16.mxu0 0
      %7007 = vmatpush1.bf16.msra.mxu0 0
      %7008 = vmatprep.subr.bf16.mxu0 0
      %7009 = vmatpush1.bf16.msra.mxu0 0
      %7010 = vmatprep.subr.bf16.mxu0 0
      %7011 = vmatpush1.bf16.msra.mxu0 0
      %7012 = vmatprep.subr.bf16.mxu0 0
      %7013 = vmatpush1.bf16.msra.mxu0 0
      %7014 = vmatprep.mubr.bf16.mxu0 0
      %7015 = vmatmul.mubr.bf16.gmra.mrb[0].mxu0 %v6971
      %v7016 = vpop.f32.mrb[0].mxu0
      %v7017 = vadd.f32 %v6936, %v7016
      %v7018 = vpop.f32.mrb[0].mxu0
      %v7019 = vadd.f32 %v6938, %v7018
      %v7020 = vpop.f32.mrb[0].mxu0
      %v7021 = vadd.f32 %v6940, %v7020
      %v7022 = vpop.f32.mrb[0].mxu0
      %v7023 = vadd.f32 %v6942, %v7022
      %7024 = vmatprep.mubr.bf16.mxu0 0
      %7025 = vmatmul.mubr.bf16.gmra.mrb[0].mxu0 %v6974
      %v7026 = vpop.f32.mrb[0].mxu0
      %v7027 = vadd.f32 %v6946, %v7026
      %v7028 = vpop.f32.mrb[0].mxu0
      %v7029 = vadd.f32 %v6948, %v7028
      %v7030 = vpop.f32.mrb[0].mxu0
      %v7031 = vpop.f32.mrb[0].mxu0
      %7032 = vdwg.mxu0
      %v7033 = vld [vmem:[%s6833] sm:$0xe]
      %v7034 = vld [vmem:[%s620] sm:$0xff]
      %v7035 = vld [vmem:[%s620 + $0x8] sm:$0xff]
      %v7036 = vld [vmem:[%s620 + $0x10] sm:$0xff]
      %v7037 = vld [vmem:[%s620 + $0x18] sm:$0x33]
      %v7039 = vunpack.c.l.b16 %v7033
      %v7040 = vpack.c.b16 %v6851, %v7039
      %v7041 = vrot.slane %v7040, 1
      %v7042 = vrot.slane %v6855, 1
      %v7043 = vsel %vm628, %v7041, %v7042
      %v7048 = vunpack.c.l.b16 %v7034
      %v7049 = vunpack.c.h.b16 %v7034
      %v7050 = vunpack.c.l.b16 %v7035
      %v7051 = vunpack.c.h.b16 %v7035
      %v7052 = vunpack.c.l.b16 %v7036
      %v7053 = vunpack.c.h.b16 %v7036
      %v7054 = vunpack.c.l.b16 %v7037
      %v7055 = vunpack.c.h.b16 %v7037
      %v7056 = vpack.c.b16 %v7050, %v7048
      %v7057 = vpack.c.b16 %v7051, %v7049
      %v7058 = vpack.c.b16 %v7054, %v7052
      %v7059 = vpack.c.b16 %v7055, %v7053
      %v7063 = vsel %vm473, %v7043, 0
      %v7066 = vsel %vm473, %v7042, 0
      %v7069 = vsel %vm480, %v7058, 0
      %v7072 = vsel %vm480, %v7059, 0
      %7074 = vmatprep.subr.bf16.mxu0 %v7057
      %7075 = vmatpush1.bf16.msra.mxu0 %v7056
      %7076 = vmatprep.subr.bf16.mxu0 %v7072
      %7077 = vmatpush1.bf16.msra.mxu0 %v7069
      %7078 = vmatprep.subr.bf16.mxu0 0
      %7079 = vmatpush1.bf16.msra.mxu0 0
      %7080 = vmatprep.subr.bf16.mxu0 0
      %7081 = vmatpush1.bf16.msra.mxu0 0
      %7082 = vmatprep.subr.bf16.mxu0 0
      %7083 = vmatpush1.bf16.msra.mxu0 0
      %7084 = vmatprep.subr.bf16.mxu0 0
      %7085 = vmatpush1.bf16.msra.mxu0 0
      %7086 = vmatprep.subr.bf16.mxu0 0
      %7087 = vmatpush1.bf16.msra.mxu0 0
      %7088 = vmatprep.subr.bf16.mxu0 0
      %7089 = vmatpush1.bf16.msra.mxu0 0
      %7090 = vmatprep.subr.bf16.mxu0 0
      %7091 = vmatpush1.bf16.msra.mxu0 0
      %7092 = vmatprep.subr.bf16.mxu0 0
      %7093 = vmatpush1.bf16.msra.mxu0 0
      %7094 = vmatprep.subr.bf16.mxu0 0
      %7095 = vmatpush1.bf16.msra.mxu0 0
      %7096 = vmatprep.subr.bf16.mxu0 0
      %7097 = vmatpush1.bf16.msra.mxu0 0
      %7098 = vmatprep.subr.bf16.mxu0 0
      %7099 = vmatpush1.bf16.msra.mxu0 0
      %7100 = vmatprep.subr.bf16.mxu0 0
      %7101 = vmatpush1.bf16.msra.mxu0 0
      %7102 = vmatprep.subr.bf16.mxu0 0
      %7103 = vmatpush1.bf16.msra.mxu0 0
      %7104 = vmatprep.subr.bf16.mxu0 0
      %7105 = vmatpush1.bf16.msra.mxu0 0
      %7106 = vmatprep.mubr.bf16.mxu0 0
      %7107 = vmatmul.mubr.bf16.gmra.mrb[0].mxu0 %v7063
      %v7108 = vpop.f32.mrb[0].mxu0
      %v7109 = vadd.f32 0.0, %v7108
      %v7110 = vpop.f32.mrb[0].mxu0
      %v7111 = vadd.f32 0.0, %v7110
      %v7112 = vpop.f32.mrb[0].mxu0
      %v7113 = vadd.f32 0.0, %v7112
      %v7114 = vpop.f32.mrb[0].mxu0
      %v7115 = vadd.f32 0.0, %v7114
      %7116 = vmatprep.mubr.bf16.mxu0 0
      %7117 = vmatmul.mubr.bf16.gmra.mrb[0].mxu0 %v7066
      %v7118 = vpop.f32.mrb[0].mxu0
      %v7119 = vadd.f32 0.0, %v7118
      %v7120 = vpop.f32.mrb[0].mxu0
      %v7121 = vadd.f32 0.0, %v7120
      %v7122 = vpop.f32.mrb[0].mxu0
      %v7123 = vpop.f32.mrb[0].mxu0
      %7124 = vdwg.mxu0
      %v7125 = vadd.f32 %v7017, %v7109
      %v7126 = vadd.f32 %v7019, %v7111
      %v7127 = vadd.f32 %v7021, %v7113
      %v7128 = vadd.f32 %v7023, %v7115
      %v7129 = vadd.f32 %v7027, %v7119
      %v7130 = vadd.f32 %v7029, %v7121
      %v7131 = vld [vmem:[%s6833 + $0xc] sm:$0x3]
      %v7132 = vld [vmem:[%s720] sm:$0xff]
      %v7133 = vld [vmem:[%s720 + $0x8] sm:$0xff]
      %v7134 = vld [vmem:[%s720 + $0x10] sm:$0xff]
      %v7135 = vld [vmem:[%s720 + $0x18] sm:$0x33]
      %v7137 = vunpack.c.l.b16 %v7131
      %v7138 = vpack.c.b16 %v7137, %v6852
      %v7140 = vshrl.u32 %v7040, 16
      %v7142 = vrot.slane %v7140, 1
      %v7143 = vshll.u32 %v7040, 16
      %v7145 = vrot.slane %v7143, 2
      %v7146 = vor.u32 %v7142, %v7145
      %v7148 = vshrl.u32 %v7138, 16
      %v7150 = vrot.slane %v7148, 1
      %v7151 = vshll.u32 %v7138, 16
      %v7153 = vrot.slane %v7151, 2
      %v7154 = vor.u32 %v7150, %v7153
      %v7155 = vsel %vm728, %v7146, %v7154
      %v7160 = vunpack.c.l.b16 %v7132
      %v7161 = vunpack.c.h.b16 %v7132
      %v7162 = vunpack.c.l.b16 %v7133
      %v7163 = vunpack.c.h.b16 %v7133
      %v7164 = vunpack.c.l.b16 %v7134
      %v7165 = vunpack.c.h.b16 %v7134
      %v7166 = vunpack.c.l.b16 %v7135
      %v7167 = vunpack.c.h.b16 %v7135
      %v7168 = vpack.c.b16 %v7162, %v7160
      %v7169 = vpack.c.b16 %v7163, %v7161
      %v7170 = vpack.c.b16 %v7166, %v7164
      %v7171 = vpack.c.b16 %v7167, %v7165
      %v7175 = vsel %vm473, %v7155, 0
      %v7178 = vsel %vm473, %v7154, 0
      %v7181 = vsel %vm480, %v7170, 0
      %v7184 = vsel %vm480, %v7171, 0
      %7186 = vmatprep.subr.bf16.mxu0 %v7169
      %7187 = vmatpush1.bf16.msra.mxu0 %v7168
      %7188 = vmatprep.subr.bf16.mxu0 %v7184
      %7189 = vmatpush1.bf16.msra.mxu0 %v7181
      %7190 = vmatprep.subr.bf16.mxu0 0
      %7191 = vmatpush1.bf16.msra.mxu0 0
      %7192 = vmatprep.subr.bf16.mxu0 0
      %7193 = vmatpush1.bf16.msra.mxu0 0
      %7194 = vmatprep.subr.bf16.mxu0 0
      %7195 = vmatpush1.bf16.msra.mxu0 0
      %7196 = vmatprep.subr.bf16.mxu0 0
      %7197 = vmatpush1.bf16.msra.mxu0 0
      %7198 = vmatprep.subr.bf16.mxu0 0
      %7199 = vmatpush1.bf16.msra.mxu0 0
      %7200 = vmatprep.subr.bf16.mxu0 0
      %7201 = vmatpush1.bf16.msra.mxu0 0
      %7202 = vmatprep.subr.bf16.mxu0 0
      %7203 = vmatpush1.bf16.msra.mxu0 0
      %7204 = vmatprep.subr.bf16.mxu0 0
      %7205 = vmatpush1.bf16.msra.mxu0 0
      %7206 = vmatprep.subr.bf16.mxu0 0
      %7207 = vmatpush1.bf16.msra.mxu0 0
      %7208 = vmatprep.subr.bf16.mxu0 0
      %7209 = vmatpush1.bf16.msra.mxu0 0
      %7210 = vmatprep.subr.bf16.mxu0 0
      %7211 = vmatpush1.bf16.msra.mxu0 0
      %7212 = vmatprep.subr.bf16.mxu0 0
      %7213 = vmatpush1.bf16.msra.mxu0 0
      %7214 = vmatprep.subr.bf16.mxu0 0
      %7215 = vmatpush1.bf16.msra.mxu0 0
      %7216 = vmatprep.subr.bf16.mxu0 0
      %7217 = vmatpush1.bf16.msra.mxu0 0
      %7218 = vmatprep.mubr.bf16.mxu0 0
      %7219 = vmatmul.mubr.bf16.gmra.mrb[0].mxu0 %v7175
      %v7220 = vpop.f32.mrb[0].mxu0
      %v7221 = vadd.f32 0.0, %v7220
      %v7222 = vpop.f32.mrb[0].mxu0
      %v7223 = vadd.f32 0.0, %v7222
      %v7224 = vpop.f32.mrb[0].mxu0
      %v7225 = vadd.f32 0.0, %v7224
      %v7226 = vpop.f32.mrb[0].mxu0
      %v7227 = vadd.f32 0.0, %v7226
      %7228 = vmatprep.mubr.bf16.mxu0 0
      %7229 = vmatmul.mubr.bf16.gmra.mrb[0].mxu0 %v7178
      %v7230 = vpop.f32.mrb[0].mxu0
      %v7231 = vadd.f32 0.0, %v7230
      %v7232 = vpop.f32.mrb[0].mxu0
      %v7233 = vadd.f32 0.0, %v7232
      %v7234 = vpop.f32.mrb[0].mxu0
      %v7235 = vpop.f32.mrb[0].mxu0
      %7236 = vdwg.mxu0
      %v7237 = vadd.f32 %v7125, %v7221
      %v7238 = vadd.f32 %v7126, %v7223
      %v7239 = vadd.f32 %v7127, %v7225
      %v7240 = vadd.f32 %v7128, %v7227
      %v7241 = vadd.f32 %v7129, %v7231
      %v7242 = vadd.f32 %v7130, %v7233
      %v7243 = vld [vmem:[%s6833] sm:$0xc]
      %v7244 = vld [vmem:[%s834] sm:$0xff]
      %v7245 = vld [vmem:[%s834 + $0x8] sm:$0xff]
      %v7246 = vld [vmem:[%s834 + $0x10] sm:$0xff]
      %v7247 = vld [vmem:[%s834 + $0x18] sm:$0x33]
      %v7249 = vunpack.c.l.b16 %v7243
      %v7250 = vpack.c.b16 %v6851, %v7249
      %v7251 = vrot.slane %v7250, 2
      %v7252 = vrot.slane %v7138, 2
      %v7253 = vsel %vm842, %v7251, %v7252
      %v7258 = vunpack.c.l.b16 %v7244
      %v7259 = vunpack.c.h.b16 %v7244
      %v7260 = vunpack.c.l.b16 %v7245
      %v7261 = vunpack.c.h.b16 %v7245
      %v7262 = vunpack.c.l.b16 %v7246
      %v7263 = vunpack.c.h.b16 %v7246
      %v7264 = vunpack.c.l.b16 %v7247
      %v7265 = vunpack.c.h.b16 %v7247
      %v7266 = vpack.c.b16 %v7260, %v7258
      %v7267 = vpack.c.b16 %v7261, %v7259
      %v7268 = vpack.c.b16 %v7264, %v7262
      %v7269 = vpack.c.b16 %v7265, %v7263
      %v7273 = vsel %vm473, %v7253, 0
      %v7276 = vsel %vm473, %v7252, 0
      %v7279 = vsel %vm480, %v7268, 0
      %v7282 = vsel %vm480, %v7269, 0
      %7284 = vmatprep.subr.bf16.mxu0 %v7267
      %7285 = vmatpush1.bf16.msra.mxu0 %v7266
      %7286 = vmatprep.subr.bf16.mxu0 %v7282
      %7287 = vmatpush1.bf16.msra.mxu0 %v7279
      %7288 = vmatprep.subr.bf16.mxu0 0
      %7289 = vmatpush1.bf16.msra.mxu0 0
      %7290 = vmatprep.subr.bf16.mxu0 0
      %7291 = vmatpush1.bf16.msra.mxu0 0
      %7292 = vmatprep.subr.bf16.mxu0 0
      %7293 = vmatpush1.bf16.msra.mxu0 0
      %7294 = vmatprep.subr.bf16.mxu0 0
      %7295 = vmatpush1.bf16.msra.mxu0 0
      %7296 = vmatprep.subr.bf16.mxu0 0
      %7297 = vmatpush1.bf16.msra.mxu0 0
      %7298 = vmatprep.subr.bf16.mxu0 0
      %7299 = vmatpush1.bf16.msra.mxu0 0
      %7300 = vmatprep.subr.bf16.mxu0 0
      %7301 = vmatpush1.bf16.msra.mxu0 0
      %7302 = vmatprep.subr.bf16.mxu0 0
      %7303 = vmatpush1.bf16.msra.mxu0 0
      %7304 = vmatprep.subr.bf16.mxu0 0
      %7305 = vmatpush1.bf16.msra.mxu0 0
      %7306 = vmatprep.subr.bf16.mxu0 0
      %7307 = vmatpush1.bf16.msra.mxu0 0
      %7308 = vmatprep.subr.bf16.mxu0 0
      %7309 = vmatpush1.bf16.msra.mxu0 0
      %7310 = vmatprep.subr.bf16.mxu0 0
      %7311 = vmatpush1.bf16.msra.mxu0 0
      %7312 = vmatprep.subr.bf16.mxu0 0
      %7313 = vmatpush1.bf16.msra.mxu0 0
      %7314 = vmatprep.subr.bf16.mxu0 0
      %7315 = vmatpush1.bf16.msra.mxu0 0
      %7316 = vmatprep.mubr.bf16.mxu0 0
      %7317 = vmatmul.mubr.bf16.gmra.mrb[0].mxu0 %v7273
      %v7318 = vpop.f32.mrb[0].mxu0
      %v7319 = vadd.f32 0.0, %v7318
      %v7320 = vpop.f32.mrb[0].mxu0
      %v7321 = vadd.f32 0.0, %v7320
      %v7322 = vpop.f32.mrb[0].mxu0
      %v7323 = vadd.f32 0.0, %v7322
      %v7324 = vpop.f32.mrb[0].mxu0
      %v7325 = vadd.f32 0.0, %v7324
      %7326 = vmatprep.mubr.bf16.mxu0 0
      %7327 = vmatmul.mubr.bf16.gmra.mrb[0].mxu0 %v7276
      %v7328 = vpop.f32.mrb[0].mxu0
      %v7329 = vadd.f32 0.0, %v7328
      %v7330 = vpop.f32.mrb[0].mxu0
      %v7331 = vadd.f32 0.0, %v7330
      %v7332 = vpop.f32.mrb[0].mxu0
      %v7333 = vpop.f32.mrb[0].mxu0
      %7334 = vdwg.mxu0
      %v7335 = vadd.f32 %v7237, %v7319
      %v7336 = vadd.f32 %v7238, %v7321
      %v7337 = vadd.f32 %v7239, %v7323
      %v7338 = vadd.f32 %v7240, %v7325
      %v7339 = vadd.f32 %v7241, %v7329
      %v7340 = vadd.f32 %v7242, %v7331
      %v7341 = vld [vmem:[%s2] sm:$0x3]
      %v7343 = vlaneseq
      %v7344 = vshrl.u32 %v7343, 7
      %v7345 = vsub.s32 0, %v7344
      %v7346 = vrot.slane %v7341, %v7345
      %v7347 = vlaneseq
      %v7348 = vshrl.u32 %v7347, 7
      %v7349 = vsub.s32 1, %v7348
      %v7350 = vrot.slane %v7341, %v7349
      %v7353 = vadd.f32 %v7335, %v7346
      %v7354 = vadd.f32 %v7336, %v7350
      %v7355 = vadd.f32 %v7337, %v7346
      %v7356 = vadd.f32 %v7338, %v7350
      %v7357 = vadd.f32 %v7339, %v7346
      %v7358 = vadd.f32 %v7340, %v7350
      %v7359 = vpack.c.bf16 %v7355, %v7353
      %v7360 = vpack.c.bf16 %v7356, %v7354
      %v7361 = vpack.c.bf16 %v7357, %v7357
      %v7362 = vpack.c.bf16 %v7358, %v7358
      %v7363 = vld [vmem:[%s3] sm:$0xf]
      %v7364 = vld [vmem:[%s3 + $0x4] sm:$0x3]
      %v7367 = vunpack.c.l.b16 %v7363
      %v7368 = vunpack.c.l.b16 %v7364
      %v7369 = vpack.c.b16 %v7368, %v7367
      %v7371 = vsel %vm962, %v7369, 0
      %v7374 = vsel %vm966, %v7361, 0
      %v7377 = vsel %vm966, %v7362, 0
      %7379 = vmatprep.subr.bf16.mxu0 %v7360
      %7380 = vmatpush1.bf16.msra.mxu0 %v7359
      %7381 = vmatprep.subr.bf16.mxu0 %v7377
      %7382 = vmatpush1.bf16.msra.mxu0 %v7374
      %7383 = vmatprep.subr.bf16.mxu0 0
      %7384 = vmatpush1.bf16.msra.mxu0 0
      %7385 = vmatprep.subr.bf16.mxu0 0
      %7386 = vmatpush1.bf16.msra.mxu0 0
      %7387 = vmatprep.subr.bf16.mxu0 0
      %7388 = vmatpush1.bf16.msra.mxu0 0
      %7389 = vmatprep.subr.bf16.mxu0 0
      %7390 = vmatpush1.bf16.msra.mxu0 0
      %7391 = vmatprep.subr.bf16.mxu0 0
      %7392 = vmatpush1.bf16.msra.mxu0 0
      %7393 = vmatprep.subr.bf16.mxu0 0
      %7394 = vmatpush1.bf16.msra.mxu0 0
      %7395 = vmatprep.subr.bf16.mxu0 0
      %7396 = vmatpush1.bf16.msra.mxu0 0
      %7397 = vmatprep.subr.bf16.mxu0 0
      %7398 = vmatpush1.bf16.msra.mxu0 0
      %7399 = vmatprep.subr.bf16.mxu0 0
      %7400 = vmatpush1.bf16.msra.mxu0 0
      %7401 = vmatprep.subr.bf16.mxu0 0
      %7402 = vmatpush1.bf16.msra.mxu0 0
      %7403 = vmatprep.subr.bf16.mxu0 0
      %7404 = vmatpush1.bf16.msra.mxu0 0
      %7405 = vmatprep.subr.bf16.mxu0 0
      %7406 = vmatpush1.bf16.msra.mxu0 0
      %7407 = vmatprep.subr.bf16.mxu0 0
      %7408 = vmatpush1.bf16.msra.mxu0 0
      %7409 = vmatprep.subr.bf16.mxu0 0
      %7410 = vmatpush1.bf16.msra.mxu0 0
      %7411 = vmatprep.mubr.bf16.mxu0 0
      %7412 = vmatmul.mubr.bf16.gmra.mrb[0].mxu0 %v7371
      %v7413 = vpop.f32.mrb[0].mxu0
      %v7414 = vadd.f32 0.0, %v7413
      %v7415 = vpop.f32.mrb[0].mxu0
      %v7416 = vadd.f32 0.0, %v7415
      %v7417 = vpop.f32.mrb[0].mxu0
      %v7418 = vadd.f32 0.0, %v7417
      %v7419 = vpop.f32.mrb[0].mxu0
      %v7420 = vadd.f32 0.0, %v7419
      %7421 = vdwg.mxu0
      %v7422 = vld [vmem:[%s1016] sm:$0xf]
      %v7423 = vld [vmem:[%s1016 + $0x4] sm:$0x3]
      %v7426 = vunpack.c.l.b16 %v7422
      %v7427 = vunpack.c.l.b16 %v7423
      %v7428 = vpack.c.b16 %v7427, %v7426
      %v7430 = vsel %vm962, %v7428, 0
      %7432 = vmatprep.subr.bf16.mxu0 %v7360
      %7433 = vmatpush1.bf16.msra.mxu0 %v7359
      %7434 = vmatprep.subr.bf16.mxu0 %v7377
      %7435 = vmatpush1.bf16.msra.mxu0 %v7374
      %7436 = vmatprep.subr.bf16.mxu0 0
      %7437 = vmatpush1.bf16.msra.mxu0 0
      %7438 = vmatprep.subr.bf16.mxu0 0
      %7439 = vmatpush1.bf16.msra.mxu0 0
      %7440 = vmatprep.subr.bf16.mxu0 0
      %7441 = vmatpush1.bf16.msra.mxu0 0
      %7442 = vmatprep.subr.bf16.mxu0 0
      %7443 = vmatpush1.bf16.msra.mxu0 0
      %7444 = vmatprep.subr.bf16.mxu0 0
      %7445 = vmatpush1.bf16.msra.mxu0 0
      %7446 = vmatprep.subr.bf16.mxu0 0
      %7447 = vmatpush1.bf16.msra.mxu0 0
      %7448 = vmatprep.subr.bf16.mxu0 0
      %7449 = vmatpush1.bf16.msra.mxu0 0
      %7450 = vmatprep.subr.bf16.mxu0 0
      %7451 = vmatpush1.bf16.msra.mxu0 0
      %7452 = vmatprep.subr.bf16.mxu0 0
      %7453 = vmatpush1.bf16.msra.mxu0 0
      %7454 = vmatprep.subr.bf16.mxu0 0
      %7455 = vmatpush1.bf16.msra.mxu0 0
      %7456 = vmatprep.subr.bf16.mxu0 0
      %7457 = vmatpush1.bf16.msra.mxu0 0
      %7458 = vmatprep.subr.bf16.mxu0 0
      %7459 = vmatpush1.bf16.msra.mxu0 0
      %7460 = vmatprep.subr.bf16.mxu0 0
      %7461 = vmatpush1.bf16.msra.mxu0 0
      %7462 = vmatprep.subr.bf16.mxu0 0
      %7463 = vmatpush1.bf16.msra.mxu0 0
      %7464 = vmatprep.mubr.bf16.mxu0 0
      %7465 = vmatmul.mubr.bf16.gmra.mrb[0].mxu0 %v7430
      %v7466 = vpop.f32.mrb[0].mxu0
      %v7467 = vadd.f32 0.0, %v7466
      %v7468 = vpop.f32.mrb[0].mxu0
      %v7469 = vadd.f32 0.0, %v7468
      %v7470 = vpop.f32.mrb[0].mxu0
      %v7471 = vadd.f32 0.0, %v7470
      %v7472 = vpop.f32.mrb[0].mxu0
      %v7473 = vadd.f32 0.0, %v7472
      %7474 = vdwg.mxu0
      %v7475 = vmax.f32 %v7414, %v7467
      %v7476 = vmax.f32 %v7416, %v7469
      %v7477 = vmax.f32 %v7418, %v7471
      %v7478 = vmax.f32 %v7420, %v7473
      %v7479 = vpack.c.bf16 %v7477, %v7475
      %v7480 = vpack.c.bf16 %v7478, %v7476
      %v7481 = vld [vmem:[%s4] sm:$0xf]
      %v7482 = vld [vmem:[%s4 + $0x4] sm:$0xf]
      %v7483 = vld [vmem:[%s4 + $0x8] sm:$0xf]
      %v7484 = vld [vmem:[%s4 + $0xc] sm:$0xf]
      %v7485 = vld [vmem:[%s4 + $0x10] sm:$0xf]
      %v7486 = vld [vmem:[%s4 + $0x14] sm:$0xf]
      %v7487 = vld [vmem:[%s4 + $0x18] sm:$0xf]
      %v7488 = vld [vmem:[%s4 + $0x1c] sm:$0xf]
      %v7489 = vld [vmem:[%s4 + $0x20] sm:$0xf]
      %v7490 = vld [vmem:[%s4 + $0x24] sm:$0xf]
      %v7491 = vld [vmem:[%s4 + $0x28] sm:$0xf]
      %v7492 = vld [vmem:[%s4 + $0x2c] sm:$0xf]
      %v7493 = vld [vmem:[%s4 + $0x30] sm:$0xf]
      %v7494 = vld [vmem:[%s4 + $0x34] sm:$0xf]
      %v7495 = vld [vmem:[%s4 + $0x38] sm:$0xf]
      %v7496 = vld [vmem:[%s4 + $0x3c] sm:$0xf]
      %v7497 = vld [vmem:[%s4 + $0x40] sm:$0xf]
      %v7498 = vld [vmem:[%s4 + $0x44] sm:$0xf]
      %v7499 = vld [vmem:[%s4 + $0x48] sm:$0xf]
      %v7500 = vld [vmem:[%s4 + $0x4c] sm:$0xf]
      %v7501 = vld [vmem:[%s4 + $0x50] sm:$0xf]
      %v7502 = vld [vmem:[%s4 + $0x54] sm:$0xf]
      %v7503 = vld [vmem:[%s4 + $0x58] sm:$0xf]
      %v7504 = vld [vmem:[%s4 + $0x5c] sm:$0xf]
      %v7529 = vunpack.c.l.b16 %v7481
      %v7530 = vunpack.c.l.b16 %v7482
      %v7531 = vunpack.c.l.b16 %v7483
      %v7532 = vunpack.c.l.b16 %v7484
      %v7533 = vunpack.c.l.b16 %v7485
      %v7534 = vunpack.c.l.b16 %v7486
      %v7535 = vunpack.c.l.b16 %v7487
      %v7536 = vunpack.c.l.b16 %v7488
      %v7537 = vunpack.c.l.b16 %v7489
      %v7538 = vunpack.c.l.b16 %v7490
      %v7539 = vunpack.c.l.b16 %v7491
      %v7540 = vunpack.c.l.b16 %v7492
      %v7541 = vunpack.c.l.b16 %v7493
      %v7542 = vunpack.c.l.b16 %v7494
      %v7543 = vunpack.c.l.b16 %v7495
      %v7544 = vunpack.c.l.b16 %v7496
      %v7545 = vunpack.c.l.b16 %v7497
      %v7546 = vunpack.c.l.b16 %v7498
      %v7547 = vunpack.c.l.b16 %v7499
      %v7548 = vunpack.c.l.b16 %v7500
      %v7549 = vunpack.c.l.b16 %v7501
      %v7550 = vunpack.c.l.b16 %v7502
      %v7551 = vunpack.c.l.b16 %v7503
      %v7552 = vunpack.c.l.b16 %v7504
      %v7553 = vpack.c.b16 %v7530, %v7529
      %v7554 = vpack.c.b16 %v7532, %v7531
      %v7555 = vpack.c.b16 %v7534, %v7533
      %v7556 = vpack.c.b16 %v7536, %v7535
      %v7557 = vpack.c.b16 %v7538, %v7537
      %v7558 = vpack.c.b16 %v7540, %v7539
      %v7559 = vpack.c.b16 %v7542, %v7541
      %v7560 = vpack.c.b16 %v7544, %v7543
      %v7561 = vpack.c.b16 %v7546, %v7545
      %v7562 = vpack.c.b16 %v7548, %v7547
      %v7563 = vpack.c.b16 %v7550, %v7549
      %v7564 = vpack.c.b16 %v7552, %v7551
      %v7578 = vsel %vm1172, %v7480, 0
      %7580 = vmatprep.subr.bf16.mxu0 0
      %7581 = vmatpush1.bf16.msra.mxu0 %v7553
      %7582 = vmatprep.subr.bf16.mxu0 0
      %7583 = vmatpush1.bf16.msra.mxu0 %v7554
      %7584 = vmatprep.subr.bf16.mxu0 0
      %7585 = vmatpush1.bf16.msra.mxu0 %v7555
      %7586 = vmatprep.subr.bf16.mxu0 0
      %7587 = vmatpush1.bf16.msra.mxu0 %v7556
      %7588 = vmatprep.subr.bf16.mxu0 0
      %7589 = vmatpush1.bf16.msra.mxu0 %v7557
      %7590 = vmatprep.subr.bf16.mxu0 0
      %7591 = vmatpush1.bf16.msra.mxu0 %v7558
      %7592 = vmatprep.subr.bf16.mxu0 0
      %7593 = vmatpush1.bf16.msra.mxu0 %v7559
      %7594 = vmatprep.subr.bf16.mxu0 0
      %7595 = vmatpush1.bf16.msra.mxu0 %v7560
      %7596 = vmatprep.subr.bf16.mxu0 0
      %7597 = vmatpush1.bf16.msra.mxu0 %v7561
      %7598 = vmatprep.subr.bf16.mxu0 0
      %7599 = vmatpush1.bf16.msra.mxu0 %v7562
      %7600 = vmatprep.subr.bf16.mxu0 0
      %7601 = vmatpush1.bf16.msra.mxu0 %v7563
      %7602 = vmatprep.subr.bf16.mxu0 0
      %7603 = vmatpush1.bf16.msra.mxu0 %v7564
      %7604 = vmatprep.subr.bf16.mxu0 0
      %7605 = vmatpush1.bf16.msra.mxu0 0
      %7606 = vmatprep.subr.bf16.mxu0 0
      %7607 = vmatpush1.bf16.msra.mxu0 0
      %7608 = vmatprep.subr.bf16.mxu0 0
      %7609 = vmatpush1.bf16.msra.mxu0 0
      %7610 = vmatprep.subr.bf16.mxu0 0
      %7611 = vmatpush1.bf16.msra.mxu0 0
      %7612 = vmatprep.mubr.bf16.mxu0 %v7578
      %7613 = vmatmul.mubr.bf16.gmra.mrb[0].mxu0 %v7479
      %v7614 = vpop.f32.mrb[0].mxu0
      %v7615 = vadd.f32 0.0, %v7614
      %v7616 = vpop.f32.mrb[0].mxu0
      %v7617 = vpop.f32.mrb[0].mxu0
      %v7618 = vadd.f32 0.0, %v7617
      %v7619 = vpop.f32.mrb[0].mxu0
      %7620 = vdwg.mxu0
      %v7621 = vld [vmem:[%s1217] sm:$0xf]
      %v7622 = vld [vmem:[%s1217 + $0x4] sm:$0xf]
      %v7623 = vld [vmem:[%s1217 + $0x8] sm:$0xf]
      %v7624 = vld [vmem:[%s1217 + $0xc] sm:$0xf]
      %v7625 = vld [vmem:[%s1217 + $0x10] sm:$0xf]
      %v7626 = vld [vmem:[%s1217 + $0x14] sm:$0xf]
      %v7627 = vld [vmem:[%s1217 + $0x18] sm:$0xf]
      %v7628 = vld [vmem:[%s1217 + $0x1c] sm:$0xf]
      %v7629 = vld [vmem:[%s1217 + $0x20] sm:$0xf]
      %v7630 = vld [vmem:[%s1217 + $0x24] sm:$0xf]
      %v7631 = vld [vmem:[%s1217 + $0x28] sm:$0xf]
      %v7632 = vld [vmem:[%s1217 + $0x2c] sm:$0xf]
      %v7633 = vld [vmem:[%s1217 + $0x30] sm:$0xf]
      %v7634 = vld [vmem:[%s1217 + $0x34] sm:$0xf]
      %v7635 = vld [vmem:[%s1217 + $0x38] sm:$0xf]
      %v7636 = vld [vmem:[%s1217 + $0x3c] sm:$0xf]
      %v7637 = vld [vmem:[%s1217 + $0x40] sm:$0xf]
      %v7638 = vld [vmem:[%s1217 + $0x44] sm:$0xf]
      %v7639 = vld [vmem:[%s1217 + $0x48] sm:$0xf]
      %v7640 = vld [vmem:[%s1217 + $0x4c] sm:$0xf]
      %v7641 = vld [vmem:[%s1217 + $0x50] sm:$0xf]
      %v7642 = vld [vmem:[%s1217 + $0x54] sm:$0xf]
      %v7643 = vld [vmem:[%s1217 + $0x58] sm:$0xf]
      %v7644 = vld [vmem:[%s1217 + $0x5c] sm:$0xf]
      %v7669 = vunpack.c.l.b16 %v7621
      %v7670 = vunpack.c.l.b16 %v7622
      %v7671 = vunpack.c.l.b16 %v7623
      %v7672 = vunpack.c.l.b16 %v7624
      %v7673 = vunpack.c.l.b16 %v7625
      %v7674 = vunpack.c.l.b16 %v7626
      %v7675 = vunpack.c.l.b16 %v7627
      %v7676 = vunpack.c.l.b16 %v7628
      %v7677 = vunpack.c.l.b16 %v7629
      %v7678 = vunpack.c.l.b16 %v7630
      %v7679 = vunpack.c.l.b16 %v7631
      %v7680 = vunpack.c.l.b16 %v7632
      %v7681 = vunpack.c.l.b16 %v7633
      %v7682 = vunpack.c.l.b16 %v7634
      %v7683 = vunpack.c.l.b16 %v7635
      %v7684 = vunpack.c.l.b16 %v7636
      %v7685 = vunpack.c.l.b16 %v7637
      %v7686 = vunpack.c.l.b16 %v7638
      %v7687 = vunpack.c.l.b16 %v7639
      %v7688 = vunpack.c.l.b16 %v7640
      %v7689 = vunpack.c.l.b16 %v7641
      %v7690 = vunpack.c.l.b16 %v7642
      %v7691 = vunpack.c.l.b16 %v7643
      %v7692 = vunpack.c.l.b16 %v7644
      %v7693 = vpack.c.b16 %v7670, %v7669
      %v7694 = vpack.c.b16 %v7672, %v7671
      %v7695 = vpack.c.b16 %v7674, %v7673
      %v7696 = vpack.c.b16 %v7676, %v7675
      %v7697 = vpack.c.b16 %v7678, %v7677
      %v7698 = vpack.c.b16 %v7680, %v7679
      %v7699 = vpack.c.b16 %v7682, %v7681
      %v7700 = vpack.c.b16 %v7684, %v7683
      %v7701 = vpack.c.b16 %v7686, %v7685
      %v7702 = vpack.c.b16 %v7688, %v7687
      %v7703 = vpack.c.b16 %v7690, %v7689
      %v7704 = vpack.c.b16 %v7692, %v7691
      %7717 = vmatprep.subr.bf16.mxu0 0
      %7718 = vmatpush1.bf16.msra.mxu0 %v7693
      %7719 = vmatprep.subr.bf16.mxu0 0
      %7720 = vmatpush1.bf16.msra.mxu0 %v7694
      %7721 = vmatprep.subr.bf16.mxu0 0
      %7722 = vmatpush1.bf16.msra.mxu0 %v7695
      %7723 = vmatprep.subr.bf16.mxu0 0
      %7724 = vmatpush1.bf16.msra.mxu0 %v7696
      %7725 = vmatprep.subr.bf16.mxu0 0
      %7726 = vmatpush1.bf16.msra.mxu0 %v7697
      %7727 = vmatprep.subr.bf16.mxu0 0
      %7728 = vmatpush1.bf16.msra.mxu0 %v7698
      %7729 = vmatprep.subr.bf16.mxu0 0
      %7730 = vmatpush1.bf16.msra.mxu0 %v7699
      %7731 = vmatprep.subr.bf16.mxu0 0
      %7732 = vmatpush1.bf16.msra.mxu0 %v7700
      %7733 = vmatprep.subr.bf16.mxu0 0
      %7734 = vmatpush1.bf16.msra.mxu0 %v7701
      %7735 = vmatprep.subr.bf16.mxu0 0
      %7736 = vmatpush1.bf16.msra.mxu0 %v7702
      %7737 = vmatprep.subr.bf16.mxu0 0
      %7738 = vmatpush1.bf16.msra.mxu0 %v7703
      %7739 = vmatprep.subr.bf16.mxu0 0
      %7740 = vmatpush1.bf16.msra.mxu0 %v7704
      %7741 = vmatprep.subr.bf16.mxu0 0
      %7742 = vmatpush1.bf16.msra.mxu0 0
      %7743 = vmatprep.subr.bf16.mxu0 0
      %7744 = vmatpush1.bf16.msra.mxu0 0
      %7745 = vmatprep.subr.bf16.mxu0 0
      %7746 = vmatpush1.bf16.msra.mxu0 0
      %7747 = vmatprep.subr.bf16.mxu0 0
      %7748 = vmatpush1.bf16.msra.mxu0 0
      %7749 = vmatprep.mubr.bf16.mxu0 %v7578
      %7750 = vmatmul.mubr.bf16.gmra.mrb[0].mxu0 %v7479
      %v7751 = vpop.f32.mrb[0].mxu0
      %v7752 = vadd.f32 0.0, %v7751
      %v7753 = vpop.f32.mrb[0].mxu0
      %v7754 = vpop.f32.mrb[0].mxu0
      %v7755 = vadd.f32 0.0, %v7754
      %v7756 = vpop.f32.mrb[0].mxu0
      %7757 = vdwg.mxu0
      %v7758 = vmax.f32 %v7615, %v7752
      %v7759 = vmax.f32 %v7618, %v7755
      %v7760 = vmax.f32 %v7758, 0.0
      %v7761 = vmax.f32 %v7759, 0.0
      %v7762 = vpack.c.bf16 %v7761, %v7760
      %v7763 = vld [vmem:[%s5] sm:$0xf]
      %v7764 = vld [vmem:[%s5 + $0x4] sm:$0xf]
      %v7765 = vld [vmem:[%s5 + $0x8] sm:$0xf]
      %v7766 = vld [vmem:[%s5 + $0xc] sm:$0xf]
      %v7767 = vld [vmem:[%s5 + $0x10] sm:$0xf]
      %v7768 = vld [vmem:[%s5 + $0x14] sm:$0xf]
      %v7769 = vld [vmem:[%s5 + $0x18] sm:$0xf]
      %v7770 = vld [vmem:[%s5 + $0x1c] sm:$0xf]
      %v7771 = vld [vmem:[%s5 + $0x20] sm:$0xf]
      %v7772 = vld [vmem:[%s5 + $0x24] sm:$0xf]
      %v7773 = vld [vmem:[%s5 + $0x28] sm:$0xf]
      %v7774 = vld [vmem:[%s5 + $0x2c] sm:$0xf]
      %v7775 = vld [vmem:[%s1372] sm:$0xf]
      %v7776 = vld [vmem:[%s1372 + $0x4] sm:$0xf]
      %v7777 = vld [vmem:[%s1372 + $0x8] sm:$0xf]
      %v7778 = vld [vmem:[%s1372 + $0xc] sm:$0xf]
      %v7779 = vld [vmem:[%s1372 + $0x10] sm:$0xf]
      %v7780 = vld [vmem:[%s1372 + $0x14] sm:$0xf]
      %v7781 = vld [vmem:[%s1372 + $0x18] sm:$0xf]
      %v7782 = vld [vmem:[%s1372 + $0x1c] sm:$0xf]
      %v7783 = vld [vmem:[%s1372 + $0x20] sm:$0xf]
      %v7784 = vld [vmem:[%s1372 + $0x24] sm:$0xf]
      %v7785 = vld [vmem:[%s1372 + $0x28] sm:$0xf]
      %v7786 = vld [vmem:[%s1372 + $0x2c] sm:$0xf]
      %v7788 = vshrl.u32 %v7762, 16
      %v7790 = vshll.u32 %v7762, 16
      %v7792 = vrot.slane %v7790, 1
      %v7793 = vor.u32 %v7788, %v7792
      %v7806 = vunpack.c.l.b16 %v7775
      %v7807 = vunpack.c.l.b16 %v7776
      %v7808 = vunpack.c.l.b16 %v7777
      %v7809 = vunpack.c.l.b16 %v7778
      %v7810 = vunpack.c.l.b16 %v7779
      %v7811 = vunpack.c.l.b16 %v7780
      %v7812 = vunpack.c.l.b16 %v7781
      %v7813 = vunpack.c.l.b16 %v7782
      %v7814 = vunpack.c.l.b16 %v7783
      %v7815 = vunpack.c.l.b16 %v7784
      %v7816 = vunpack.c.l.b16 %v7785
      %v7817 = vunpack.c.l.b16 %v7786
      %v7818 = vpack.c.b16 %v7807, %v7806
      %v7819 = vpack.c.b16 %v7809, %v7808
      %v7820 = vpack.c.b16 %v7811, %v7810
      %v7821 = vpack.c.b16 %v7813, %v7812
      %v7822 = vpack.c.b16 %v7815, %v7814
      %v7823 = vpack.c.b16 %v7817, %v7816
      %v7831 = vsel %vm1428, %v7793, 0
      %7833 = vmatprep.subr.bf16.mxu0 0
      %7834 = vmatpush1.bf16.msra.mxu0 %v7818
      %7835 = vmatprep.subr.bf16.mxu0 0
      %7836 = vmatpush1.bf16.msra.mxu0 %v7819
      %7837 = vmatprep.subr.bf16.mxu0 0
      %7838 = vmatpush1.bf16.msra.mxu0 %v7820
      %7839 = vmatprep.subr.bf16.mxu0 0
      %7840 = vmatpush1.bf16.msra.mxu0 %v7821
      %7841 = vmatprep.subr.bf16.mxu0 0
      %7842 = vmatpush1.bf16.msra.mxu0 %v7822
      %7843 = vmatprep.subr.bf16.mxu0 0
      %7844 = vmatpush1.bf16.msra.mxu0 %v7823
      %7845 = vmatprep.subr.bf16.mxu0 0
      %7846 = vmatpush1.bf16.msra.mxu0 0
      %7847 = vmatprep.subr.bf16.mxu0 0
      %7848 = vmatpush1.bf16.msra.mxu0 0
      %7849 = vmatprep.subr.bf16.mxu0 0
      %7850 = vmatpush1.bf16.msra.mxu0 0
      %7851 = vmatprep.subr.bf16.mxu0 0
      %7852 = vmatpush1.bf16.msra.mxu0 0
      %7853 = vmatprep.subr.bf16.mxu0 0
      %7854 = vmatpush1.bf16.msra.mxu0 0
      %7855 = vmatprep.subr.bf16.mxu0 0
      %7856 = vmatpush1.bf16.msra.mxu0 0
      %7857 = vmatprep.subr.bf16.mxu0 0
      %7858 = vmatpush1.bf16.msra.mxu0 0
      %7859 = vmatprep.subr.bf16.mxu0 0
      %7860 = vmatpush1.bf16.msra.mxu0 0
      %7861 = vmatprep.subr.bf16.mxu0 0
      %7862 = vmatpush1.bf16.msra.mxu0 0
      %7863 = vmatprep.subr.bf16.mxu0 0
      %7864 = vmatpush1.bf16.msra.mxu0 0
      %7865 = vmatprep.mubr.bf16.mxu0 0
      %7866 = vmatmul.mubr.bf16.gmra.mrb[0].mxu0 %v7831
      %v7867 = vpop.f32.mrb[0].mxu0
      %v7868 = vadd.f32 0.0, %v7867
      %v7869 = vpop.f32.mrb[0].mxu0
      %v7870 = vpop.f32.mrb[0].mxu0
      %v7871 = vpop.f32.mrb[0].mxu0
      %7872 = vdwg.mxu0
      %v7885 = vunpack.c.l.b16 %v7763
      %v7886 = vunpack.c.l.b16 %v7764
      %v7887 = vunpack.c.l.b16 %v7765
      %v7888 = vunpack.c.l.b16 %v7766
      %v7889 = vunpack.c.l.b16 %v7767
      %v7890 = vunpack.c.l.b16 %v7768
      %v7891 = vunpack.c.l.b16 %v7769
      %v7892 = vunpack.c.l.b16 %v7770
      %v7893 = vunpack.c.l.b16 %v7771
      %v7894 = vunpack.c.l.b16 %v7772
      %v7895 = vunpack.c.l.b16 %v7773
      %v7896 = vunpack.c.l.b16 %v7774
      %v7897 = vpack.c.b16 %v7886, %v7885
      %v7898 = vpack.c.b16 %v7888, %v7887
      %v7899 = vpack.c.b16 %v7890, %v7889
      %v7900 = vpack.c.b16 %v7892, %v7891
      %v7901 = vpack.c.b16 %v7894, %v7893
      %v7902 = vpack.c.b16 %v7896, %v7895
      %v7909 = vsel %vm1428, %v7762, 0
      %7911 = vmatprep.subr.bf16.mxu0 0
      %7912 = vmatpush1.bf16.msra.mxu0 %v7897
      %7913 = vmatprep.subr.bf16.mxu0 0
      %7914 = vmatpush1.bf16.msra.mxu0 %v7898
      %7915 = vmatprep.subr.bf16.mxu0 0
      %7916 = vmatpush1.bf16.msra.mxu0 %v7899
      %7917 = vmatprep.subr.bf16.mxu0 0
      %7918 = vmatpush1.bf16.msra.mxu0 %v7900
      %7919 = vmatprep.subr.bf16.mxu0 0
      %7920 = vmatpush1.bf16.msra.mxu0 %v7901
      %7921 = vmatprep.subr.bf16.mxu0 0
      %7922 = vmatpush1.bf16.msra.mxu0 %v7902
      %7923 = vmatprep.subr.bf16.mxu0 0
      %7924 = vmatpush1.bf16.msra.mxu0 0
      %7925 = vmatprep.subr.bf16.mxu0 0
      %7926 = vmatpush1.bf16.msra.mxu0 0
      %7927 = vmatprep.subr.bf16.mxu0 0
      %7928 = vmatpush1.bf16.msra.mxu0 0
      %7929 = vmatprep.subr.bf16.mxu0 0
      %7930 = vmatpush1.bf16.msra.mxu0 0
      %7931 = vmatprep.subr.bf16.mxu0 0
      %7932 = vmatpush1.bf16.msra.mxu0 0
      %7933 = vmatprep.subr.bf16.mxu0 0
      %7934 = vmatpush1.bf16.msra.mxu0 0
      %7935 = vmatprep.subr.bf16.mxu0 0
      %7936 = vmatpush1.bf16.msra.mxu0 0
      %7937 = vmatprep.subr.bf16.mxu0 0
      %7938 = vmatpush1.bf16.msra.mxu0 0
      %7939 = vmatprep.subr.bf16.mxu0 0
      %7940 = vmatpush1.bf16.msra.mxu0 0
      %7941 = vmatprep.subr.bf16.mxu0 0
      %7942 = vmatpush1.bf16.msra.mxu0 0
      %7943 = vmatprep.mubr.bf16.mxu0 0
      %7944 = vmatmul.mubr.bf16.gmra.mrb[0].mxu0 %v7909
      %v7945 = vpop.f32.mrb[0].mxu0
      %v7946 = vadd.f32 %v7868, %v7945
      %v7947 = vpop.f32.mrb[0].mxu0
      %v7948 = vpop.f32.mrb[0].mxu0
      %v7949 = vpop.f32.mrb[0].mxu0
      %7950 = vdwg.mxu0
      %v7951 = vld [vmem:[%s1550] sm:$0xf]
      %v7952 = vld [vmem:[%s1550 + $0x4] sm:$0xf]
      %v7953 = vld [vmem:[%s1550 + $0x8] sm:$0xf]
      %v7954 = vld [vmem:[%s1550 + $0xc] sm:$0xf]
      %v7955 = vld [vmem:[%s1550 + $0x10] sm:$0xf]
      %v7956 = vld [vmem:[%s1550 + $0x14] sm:$0xf]
      %v7957 = vld [vmem:[%s1550 + $0x18] sm:$0xf]
      %v7958 = vld [vmem:[%s1550 + $0x1c] sm:$0xf]
      %v7959 = vld [vmem:[%s1550 + $0x20] sm:$0xf]
      %v7960 = vld [vmem:[%s1550 + $0x24] sm:$0xf]
      %v7961 = vld [vmem:[%s1550 + $0x28] sm:$0xf]
      %v7962 = vld [vmem:[%s1550 + $0x2c] sm:$0xf]
      %v7964 = vrot.slane %v7762, 1
      %v7977 = vunpack.c.l.b16 %v7951
      %v7978 = vunpack.c.l.b16 %v7952
      %v7979 = vunpack.c.l.b16 %v7953
      %v7980 = vunpack.c.l.b16 %v7954
      %v7981 = vunpack.c.l.b16 %v7955
      %v7982 = vunpack.c.l.b16 %v7956
      %v7983 = vunpack.c.l.b16 %v7957
      %v7984 = vunpack.c.l.b16 %v7958
      %v7985 = vunpack.c.l.b16 %v7959
      %v7986 = vunpack.c.l.b16 %v7960
      %v7987 = vunpack.c.l.b16 %v7961
      %v7988 = vunpack.c.l.b16 %v7962
      %v7989 = vpack.c.b16 %v7978, %v7977
      %v7990 = vpack.c.b16 %v7980, %v7979
      %v7991 = vpack.c.b16 %v7982, %v7981
      %v7992 = vpack.c.b16 %v7984, %v7983
      %v7993 = vpack.c.b16 %v7986, %v7985
      %v7994 = vpack.c.b16 %v7988, %v7987
      %v8002 = vsel %vm1428, %v7964, 0
      %8004 = vmatprep.subr.bf16.mxu0 0
      %8005 = vmatpush1.bf16.msra.mxu0 %v7989
      %8006 = vmatprep.subr.bf16.mxu0 0
      %8007 = vmatpush1.bf16.msra.mxu0 %v7990
      %8008 = vmatprep.subr.bf16.mxu0 0
      %8009 = vmatpush1.bf16.msra.mxu0 %v7991
      %8010 = vmatprep.subr.bf16.mxu0 0
      %8011 = vmatpush1.bf16.msra.mxu0 %v7992
      %8012 = vmatprep.subr.bf16.mxu0 0
      %8013 = vmatpush1.bf16.msra.mxu0 %v7993
      %8014 = vmatprep.subr.bf16.mxu0 0
      %8015 = vmatpush1.bf16.msra.mxu0 %v7994
      %8016 = vmatprep.subr.bf16.mxu0 0
      %8017 = vmatpush1.bf16.msra.mxu0 0
      %8018 = vmatprep.subr.bf16.mxu0 0
      %8019 = vmatpush1.bf16.msra.mxu0 0
      %8020 = vmatprep.subr.bf16.mxu0 0
      %8021 = vmatpush1.bf16.msra.mxu0 0
      %8022 = vmatprep.subr.bf16.mxu0 0
      %8023 = vmatpush1.bf16.msra.mxu0 0
      %8024 = vmatprep.subr.bf16.mxu0 0
      %8025 = vmatpush1.bf16.msra.mxu0 0
      %8026 = vmatprep.subr.bf16.mxu0 0
      %8027 = vmatpush1.bf16.msra.mxu0 0
      %8028 = vmatprep.subr.bf16.mxu0 0
      %8029 = vmatpush1.bf16.msra.mxu0 0
      %8030 = vmatprep.subr.bf16.mxu0 0
      %8031 = vmatpush1.bf16.msra.mxu0 0
      %8032 = vmatprep.subr.bf16.mxu0 0
      %8033 = vmatpush1.bf16.msra.mxu0 0
      %8034 = vmatprep.subr.bf16.mxu0 0
      %8035 = vmatpush1.bf16.msra.mxu0 0
      %8036 = vmatprep.mubr.bf16.mxu0 0
      %8037 = vmatmul.mubr.bf16.gmra.mrb[0].mxu0 %v8002
      %v8038 = vpop.f32.mrb[0].mxu0
      %v8039 = vadd.f32 0.0, %v8038
      %v8040 = vpop.f32.mrb[0].mxu0
      %v8041 = vpop.f32.mrb[0].mxu0
      %v8042 = vpop.f32.mrb[0].mxu0
      %8043 = vdwg.mxu0
      %v8044 = vadd.f32 %v7946, %v8039
      %v8045 = vld [vmem:[%s1645] sm:$0xf]
      %v8046 = vld [vmem:[%s1645 + $0x4] sm:$0xf]
      %v8047 = vld [vmem:[%s1645 + $0x8] sm:$0xf]
      %v8048 = vld [vmem:[%s1645 + $0xc] sm:$0xf]
      %v8049 = vld [vmem:[%s1645 + $0x10] sm:$0xf]
      %v8050 = vld [vmem:[%s1645 + $0x14] sm:$0xf]
      %v8051 = vld [vmem:[%s1645 + $0x18] sm:$0xf]
      %v8052 = vld [vmem:[%s1645 + $0x1c] sm:$0xf]
      %v8053 = vld [vmem:[%s1645 + $0x20] sm:$0xf]
      %v8054 = vld [vmem:[%s1645 + $0x24] sm:$0xf]
      %v8055 = vld [vmem:[%s1645 + $0x28] sm:$0xf]
      %v8056 = vld [vmem:[%s1645 + $0x2c] sm:$0xf]
      %v8057 = vrot.slane %v7788, 1
      %v8058 = vrot.slane %v7790, 2
      %v8059 = vor.u32 %v8057, %v8058
      %v8072 = vunpack.c.l.b16 %v8045
      %v8073 = vunpack.c.l.b16 %v8046
      %v8074 = vunpack.c.l.b16 %v8047
      %v8075 = vunpack.c.l.b16 %v8048
      %v8076 = vunpack.c.l.b16 %v8049
      %v8077 = vunpack.c.l.b16 %v8050
      %v8078 = vunpack.c.l.b16 %v8051
      %v8079 = vunpack.c.l.b16 %v8052
      %v8080 = vunpack.c.l.b16 %v8053
      %v8081 = vunpack.c.l.b16 %v8054
      %v8082 = vunpack.c.l.b16 %v8055
      %v8083 = vunpack.c.l.b16 %v8056
      %v8084 = vpack.c.b16 %v8073, %v8072
      %v8085 = vpack.c.b16 %v8075, %v8074
      %v8086 = vpack.c.b16 %v8077, %v8076
      %v8087 = vpack.c.b16 %v8079, %v8078
      %v8088 = vpack.c.b16 %v8081, %v8080
      %v8089 = vpack.c.b16 %v8083, %v8082
      %v8097 = vsel %vm1428, %v8059, 0
      %8099 = vmatprep.subr.bf16.mxu0 0
      %8100 = vmatpush1.bf16.msra.mxu0 %v8084
      %8101 = vmatprep.subr.bf16.mxu0 0
      %8102 = vmatpush1.bf16.msra.mxu0 %v8085
      %8103 = vmatprep.subr.bf16.mxu0 0
      %8104 = vmatpush1.bf16.msra.mxu0 %v8086
      %8105 = vmatprep.subr.bf16.mxu0 0
      %8106 = vmatpush1.bf16.msra.mxu0 %v8087
      %8107 = vmatprep.subr.bf16.mxu0 0
      %8108 = vmatpush1.bf16.msra.mxu0 %v8088
      %8109 = vmatprep.subr.bf16.mxu0 0
      %8110 = vmatpush1.bf16.msra.mxu0 %v8089
      %8111 = vmatprep.subr.bf16.mxu0 0
      %8112 = vmatpush1.bf16.msra.mxu0 0
      %8113 = vmatprep.subr.bf16.mxu0 0
      %8114 = vmatpush1.bf16.msra.mxu0 0
      %8115 = vmatprep.subr.bf16.mxu0 0
      %8116 = vmatpush1.bf16.msra.mxu0 0
      %8117 = vmatprep.subr.bf16.mxu0 0
      %8118 = vmatpush1.bf16.msra.mxu0 0
      %8119 = vmatprep.subr.bf16.mxu0 0
      %8120 = vmatpush1.bf16.msra.mxu0 0
      %8121 = vmatprep.subr.bf16.mxu0 0
      %8122 = vmatpush1.bf16.msra.mxu0 0
      %8123 = vmatprep.subr.bf16.mxu0 0
      %8124 = vmatpush1.bf16.msra.mxu0 0
      %8125 = vmatprep.subr.bf16.mxu0 0
      %8126 = vmatpush1.bf16.msra.mxu0 0
      %8127 = vmatprep.subr.bf16.mxu0 0
      %8128 = vmatpush1.bf16.msra.mxu0 0
      %8129 = vmatprep.subr.bf16.mxu0 0
      %8130 = vmatpush1.bf16.msra.mxu0 0
      %8131 = vmatprep.mubr.bf16.mxu0 0
      %8132 = vmatmul.mubr.bf16.gmra.mrb[0].mxu0 %v8097
      %v8133 = vpop.f32.mrb[0].mxu0
      %v8134 = vadd.f32 0.0, %v8133
      %v8135 = vpop.f32.mrb[0].mxu0
      %v8136 = vpop.f32.mrb[0].mxu0
      %v8137 = vpop.f32.mrb[0].mxu0
      %8138 = vdwg.mxu0
      %v8139 = vadd.f32 %v8044, %v8134
      %v8140 = vld [vmem:[%s1741] sm:$0xf]
      %v8141 = vld [vmem:[%s1741 + $0x4] sm:$0xf]
      %v8142 = vld [vmem:[%s1741 + $0x8] sm:$0xf]
      %v8143 = vld [vmem:[%s1741 + $0xc] sm:$0xf]
      %v8144 = vld [vmem:[%s1741 + $0x10] sm:$0xf]
      %v8145 = vld [vmem:[%s1741 + $0x14] sm:$0xf]
      %v8146 = vld [vmem:[%s1741 + $0x18] sm:$0xf]
      %v8147 = vld [vmem:[%s1741 + $0x1c] sm:$0xf]
      %v8148 = vld [vmem:[%s1741 + $0x20] sm:$0xf]
      %v8149 = vld [vmem:[%s1741 + $0x24] sm:$0xf]
      %v8150 = vld [vmem:[%s1741 + $0x28] sm:$0xf]
      %v8151 = vld [vmem:[%s1741 + $0x2c] sm:$0xf]
      %v8152 = vrot.slane %v7762, 2
      %v8165 = vunpack.c.l.b16 %v8140
      %v8166 = vunpack.c.l.b16 %v8141
      %v8167 = vunpack.c.l.b16 %v8142
      %v8168 = vunpack.c.l.b16 %v8143
      %v8169 = vunpack.c.l.b16 %v8144
      %v8170 = vunpack.c.l.b16 %v8145
      %v8171 = vunpack.c.l.b16 %v8146
      %v8172 = vunpack.c.l.b16 %v8147
      %v8173 = vunpack.c.l.b16 %v8148
      %v8174 = vunpack.c.l.b16 %v8149
      %v8175 = vunpack.c.l.b16 %v8150
      %v8176 = vunpack.c.l.b16 %v8151
      %v8177 = vpack.c.b16 %v8166, %v8165
      %v8178 = vpack.c.b16 %v8168, %v8167
      %v8179 = vpack.c.b16 %v8170, %v8169
      %v8180 = vpack.c.b16 %v8172, %v8171
      %v8181 = vpack.c.b16 %v8174, %v8173
      %v8182 = vpack.c.b16 %v8176, %v8175
      %v8190 = vsel %vm1428, %v8152, 0
      %8192 = vmatprep.subr.bf16.mxu0 0
      %8193 = vmatpush1.bf16.msra.mxu0 %v8177
      %8194 = vmatprep.subr.bf16.mxu0 0
      %8195 = vmatpush1.bf16.msra.mxu0 %v8178
      %8196 = vmatprep.subr.bf16.mxu0 0
      %8197 = vmatpush1.bf16.msra.mxu0 %v8179
      %8198 = vmatprep.subr.bf16.mxu0 0
      %8199 = vmatpush1.bf16.msra.mxu0 %v8180
      %8200 = vmatprep.subr.bf16.mxu0 0
      %8201 = vmatpush1.bf16.msra.mxu0 %v8181
      %8202 = vmatprep.subr.bf16.mxu0 0
      %8203 = vmatpush1.bf16.msra.mxu0 %v8182
      %8204 = vmatprep.subr.bf16.mxu0 0
      %8205 = vmatpush1.bf16.msra.mxu0 0
      %8206 = vmatprep.subr.bf16.mxu0 0
      %8207 = vmatpush1.bf16.msra.mxu0 0
      %8208 = vmatprep.subr.bf16.mxu0 0
      %8209 = vmatpush1.bf16.msra.mxu0 0
      %8210 = vmatprep.subr.bf16.mxu0 0
      %8211 = vmatpush1.bf16.msra.mxu0 0
      %8212 = vmatprep.subr.bf16.mxu0 0
      %8213 = vmatpush1.bf16.msra.mxu0 0
      %8214 = vmatprep.subr.bf16.mxu0 0
      %8215 = vmatpush1.bf16.msra.mxu0 0
      %8216 = vmatprep.subr.bf16.mxu0 0
      %8217 = vmatpush1.bf16.msra.mxu0 0
      %8218 = vmatprep.subr.bf16.mxu0 0
      %8219 = vmatpush1.bf16.msra.mxu0 0
      %8220 = vmatprep.subr.bf16.mxu0 0
      %8221 = vmatpush1.bf16.msra.mxu0 0
      %8222 = vmatprep.subr.bf16.mxu0 0
      %8223 = vmatpush1.bf16.msra.mxu0 0
      %8224 = vmatprep.mubr.bf16.mxu0 0
      %8225 = vmatmul.mubr.bf16.gmra.mrb[0].mxu0 %v8190
      %v8226 = vpop.f32.mrb[0].mxu0
      %v8227 = vadd.f32 0.0, %v8226
      %v8228 = vpop.f32.mrb[0].mxu0
      %v8229 = vpop.f32.mrb[0].mxu0
      %v8230 = vpop.f32.mrb[0].mxu0
      %8231 = vdwg.mxu0
      %v8232 = vadd.f32 %v8139, %v8227
      %v8233 = vld [vmem:[%s6] sm:$0x1]
      %v8235 = vlaneseq
      %v8236 = vshrl.u32 %v8235, 7
      %v8237 = vsub.s32 0, %v8236
      %v8238 = vrot.slane %v8233, %v8237
      %v8240 = vadd.f32 %v8232, %v8238
      %v8241 = vpack.c.bf16 %v8240, %v8240
      %v8242 = vld [vmem:[%s7] sm:$0x3]
      %v8244 = vsel %vm1845, %v8242, 0
      %v8247 = vsel %vm966, %v8241, 0
      %8249 = vmatprep.subr.bf16.mxu0 0
      %8250 = vmatpush1.bf16.msra.mxu0 %v8247
      %8251 = vmatprep.subr.bf16.mxu0 0
      %8252 = vmatpush1.bf16.msra.mxu0 0
      %8253 = vmatprep.subr.bf16.mxu0 0
      %8254 = vmatpush1.bf16.msra.mxu0 0
      %8255 = vmatprep.subr.bf16.mxu0 0
      %8256 = vmatpush1.bf16.msra.mxu0 0
      %8257 = vmatprep.subr.bf16.mxu0 0
      %8258 = vmatpush1.bf16.msra.mxu0 0
      %8259 = vmatprep.subr.bf16.mxu0 0
      %8260 = vmatpush1.bf16.msra.mxu0 0
      %8261 = vmatprep.subr.bf16.mxu0 0
      %8262 = vmatpush1.bf16.msra.mxu0 0
      %8263 = vmatprep.subr.bf16.mxu0 0
      %8264 = vmatpush1.bf16.msra.mxu0 0
      %8265 = vmatprep.subr.bf16.mxu0 0
      %8266 = vmatpush1.bf16.msra.mxu0 0
      %8267 = vmatprep.subr.bf16.mxu0 0
      %8268 = vmatpush1.bf16.msra.mxu0 0
      %8269 = vmatprep.subr.bf16.mxu0 0
      %8270 = vmatpush1.bf16.msra.mxu0 0
      %8271 = vmatprep.subr.bf16.mxu0 0
      %8272 = vmatpush1.bf16.msra.mxu0 0
      %8273 = vmatprep.subr.bf16.mxu0 0
      %8274 = vmatpush1.bf16.msra.mxu0 0
      %8275 = vmatprep.subr.bf16.mxu0 0
      %8276 = vmatpush1.bf16.msra.mxu0 0
      %8277 = vmatprep.subr.bf16.mxu0 0
      %8278 = vmatpush1.bf16.msra.mxu0 0
      %8279 = vmatprep.subr.bf16.mxu0 0
      %8280 = vmatpush1.bf16.msra.mxu0 0
      %8281 = vmatprep.mubr.bf16.mxu0 0
      %8282 = vmatmul.mubr.bf16.gmra.mrb[0].mxu0 %v8244
      %v8283 = vpop.f32.mrb[0].mxu0
      %v8284 = vadd.f32 0.0, %v8283
      %v8285 = vpop.f32.mrb[0].mxu0
      %v8286 = vpop.f32.mrb[0].mxu0
      %v8287 = vpop.f32.mrb[0].mxu0
      %8288 = vdwg.mxu0
      %v8289 = vld [vmem:[%s1892] sm:$0x3]
      %v8291 = vsel %vm1845, %v8289, 0
      %8293 = vmatprep.subr.bf16.mxu0 0
      %8294 = vmatpush1.bf16.msra.mxu0 %v8247
      %8295 = vmatprep.subr.bf16.mxu0 0
      %8296 = vmatpush1.bf16.msra.mxu0 0
      %8297 = vmatprep.subr.bf16.mxu0 0
      %8298 = vmatpush1.bf16.msra.mxu0 0
      %8299 = vmatprep.subr.bf16.mxu0 0
      %8300 = vmatpush1.bf16.msra.mxu0 0
      %8301 = vmatprep.subr.bf16.mxu0 0
      %8302 = vmatpush1.bf16.msra.mxu0 0
      %8303 = vmatprep.subr.bf16.mxu0 0
      %8304 = vmatpush1.bf16.msra.mxu0 0
      %8305 = vmatprep.subr.bf16.mxu0 0
      %8306 = vmatpush1.bf16.msra.mxu0 0
      %8307 = vmatprep.subr.bf16.mxu0 0
      %8308 = vmatpush1.bf16.msra.mxu0 0
      %8309 = vmatprep.subr.bf16.mxu0 0
      %8310 = vmatpush1.bf16.msra.mxu0 0
      %8311 = vmatprep.subr.bf16.mxu0 0
      %8312 = vmatpush1.bf16.msra.mxu0 0
      %8313 = vmatprep.subr.bf16.mxu0 0
      %8314 = vmatpush1.bf16.msra.mxu0 0
      %8315 = vmatprep.subr.bf16.mxu0 0
      %8316 = vmatpush1.bf16.msra.mxu0 0
      %8317 = vmatprep.subr.bf16.mxu0 0
      %8318 = vmatpush1.bf16.msra.mxu0 0
      %8319 = vmatprep.subr.bf16.mxu0 0
      %8320 = vmatpush1.bf16.msra.mxu0 0
      %8321 = vmatprep.subr.bf16.mxu0 0
      %8322 = vmatpush1.bf16.msra.mxu0 0
      %8323 = vmatprep.subr.bf16.mxu0 0
      %8324 = vmatpush1.bf16.msra.mxu0 0
      %8325 = vmatprep.mubr.bf16.mxu0 0
      %8326 = vmatmul.mubr.bf16.gmra.mrb[0].mxu0 %v8291
      %v8327 = vpop.f32.mrb[0].mxu0
      %v8328 = vadd.f32 0.0, %v8327
      %v8329 = vpop.f32.mrb[0].mxu0
      %v8330 = vpop.f32.mrb[0].mxu0
      %v8331 = vpop.f32.mrb[0].mxu0
      %8332 = vdwg.mxu0
      %v8333 = vmax.f32 %v8284, %v8328
      %v8334 = vpack.c.bf16 %v8333, %v8333
      %v8335 = vld [vmem:[%s8] sm:$0xf]
      %v8336 = vld [vmem:[%s8 + $0x4] sm:$0xf]
      %v8337 = vld [vmem:[%s8 + $0x8] sm:$0xf]
      %v8338 = vld [vmem:[%s8 + $0xc] sm:$0xf]
      %v8339 = vld [vmem:[%s8 + $0x10] sm:$0xf]
      %v8340 = vld [vmem:[%s8 + $0x14] sm:$0xf]
      %v8341 = vld [vmem:[%s8 + $0x18] sm:$0xf]
      %v8342 = vld [vmem:[%s8 + $0x1c] sm:$0xf]
      %v8343 = vld [vmem:[%s8 + $0x20] sm:$0xf]
      %v8344 = vld [vmem:[%s8 + $0x24] sm:$0xf]
      %v8345 = vld [vmem:[%s8 + $0x28] sm:$0xf]
      %v8346 = vld [vmem:[%s8 + $0x2c] sm:$0xf]
      %v8347 = vld [vmem:[%s8 + $0x30] sm:$0xf]
      %v8348 = vld [vmem:[%s8 + $0x34] sm:$0xf]
      %v8349 = vld [vmem:[%s8 + $0x38] sm:$0xf]
      %v8350 = vld [vmem:[%s8 + $0x3c] sm:$0xf]
      %v8367 = vunpack.c.l.b16 %v8335
      %v8368 = vunpack.c.l.b16 %v8336
      %v8369 = vunpack.c.l.b16 %v8337
      %v8370 = vunpack.c.l.b16 %v8338
      %v8371 = vunpack.c.l.b16 %v8339
      %v8372 = vunpack.c.l.b16 %v8340
      %v8373 = vunpack.c.l.b16 %v8341
      %v8374 = vunpack.c.l.b16 %v8342
      %v8375 = vunpack.c.l.b16 %v8343
      %v8376 = vunpack.c.l.b16 %v8344
      %v8377 = vunpack.c.l.b16 %v8345
      %v8378 = vunpack.c.l.b16 %v8346
      %v8379 = vunpack.c.l.b16 %v8347
      %v8380 = vunpack.c.l.b16 %v8348
      %v8381 = vunpack.c.l.b16 %v8349
      %v8382 = vunpack.c.l.b16 %v8350
      %v8383 = vpack.c.b16 %v8368, %v8367
      %v8384 = vpack.c.b16 %v8370, %v8369
      %v8385 = vpack.c.b16 %v8372, %v8371
      %v8386 = vpack.c.b16 %v8374, %v8373
      %v8387 = vpack.c.b16 %v8376, %v8375
      %v8388 = vpack.c.b16 %v8378, %v8377
      %v8389 = vpack.c.b16 %v8380, %v8379
      %v8390 = vpack.c.b16 %v8382, %v8381
      %8399 = vmatprep.subr.bf16.mxu0 0
      %8400 = vmatpush1.bf16.msra.mxu0 %v8383
      %8401 = vmatprep.subr.bf16.mxu0 0
      %8402 = vmatpush1.bf16.msra.mxu0 %v8384
      %8403 = vmatprep.subr.bf16.mxu0 0
      %8404 = vmatpush1.bf16.msra.mxu0 %v8385
      %8405 = vmatprep.subr.bf16.mxu0 0
      %8406 = vmatpush1.bf16.msra.mxu0 %v8386
      %8407 = vmatprep.subr.bf16.mxu0 0
      %8408 = vmatpush1.bf16.msra.mxu0 %v8387
      %8409 = vmatprep.subr.bf16.mxu0 0
      %8410 = vmatpush1.bf16.msra.mxu0 %v8388
      %8411 = vmatprep.subr.bf16.mxu0 0
      %8412 = vmatpush1.bf16.msra.mxu0 %v8389
      %8413 = vmatprep.subr.bf16.mxu0 0
      %8414 = vmatpush1.bf16.msra.mxu0 %v8390
      %8415 = vmatprep.subr.bf16.mxu0 0
      %8416 = vmatpush1.bf16.msra.mxu0 0
      %8417 = vmatprep.subr.bf16.mxu0 0
      %8418 = vmatpush1.bf16.msra.mxu0 0
      %8419 = vmatprep.subr.bf16.mxu0 0
      %8420 = vmatpush1.bf16.msra.mxu0 0
      %8421 = vmatprep.subr.bf16.mxu0 0
      %8422 = vmatpush1.bf16.msra.mxu0 0
      %8423 = vmatprep.subr.bf16.mxu0 0
      %8424 = vmatpush1.bf16.msra.mxu0 0
      %8425 = vmatprep.subr.bf16.mxu0 0
      %8426 = vmatpush1.bf16.msra.mxu0 0
      %8427 = vmatprep.subr.bf16.mxu0 0
      %8428 = vmatpush1.bf16.msra.mxu0 0
      %8429 = vmatprep.subr.bf16.mxu0 0
      %8430 = vmatpush1.bf16.msra.mxu0 0
      %8431 = vmatprep.mubr.bf16.mxu0 0
      %8432 = vmatmul.mubr.bf16.gmra.mrb[0].mxu0 %v8334
      %v8433 = vpop.f32.mrb[0].mxu0
      %v8434 = vadd.f32 0.0, %v8433
      %v8435 = vpop.f32.mrb[0].mxu0
      %v8436 = vpop.f32.mrb[0].mxu0
      %v8437 = vpop.f32.mrb[0].mxu0
      %8438 = vdwg.mxu0
      %v8439 = vld [vmem:[%s2043] sm:$0xf]
      %v8440 = vld [vmem:[%s2043 + $0x4] sm:$0xf]
      %v8441 = vld [vmem:[%s2043 + $0x8] sm:$0xf]
      %v8442 = vld [vmem:[%s2043 + $0xc] sm:$0xf]
      %v8443 = vld [vmem:[%s2043 + $0x10] sm:$0xf]
      %v8444 = vld [vmem:[%s2043 + $0x14] sm:$0xf]
      %v8445 = vld [vmem:[%s2043 + $0x18] sm:$0xf]
      %v8446 = vld [vmem:[%s2043 + $0x1c] sm:$0xf]
      %v8447 = vld [vmem:[%s2043 + $0x20] sm:$0xf]
      %v8448 = vld [vmem:[%s2043 + $0x24] sm:$0xf]
      %v8449 = vld [vmem:[%s2043 + $0x28] sm:$0xf]
      %v8450 = vld [vmem:[%s2043 + $0x2c] sm:$0xf]
      %v8451 = vld [vmem:[%s2043 + $0x30] sm:$0xf]
      %v8452 = vld [vmem:[%s2043 + $0x34] sm:$0xf]
      %v8453 = vld [vmem:[%s2043 + $0x38] sm:$0xf]
      %v8454 = vld [vmem:[%s2043 + $0x3c] sm:$0xf]
      %v8471 = vunpack.c.l.b16 %v8439
      %v8472 = vunpack.c.l.b16 %v8440
      %v8473 = vunpack.c.l.b16 %v8441
      %v8474 = vunpack.c.l.b16 %v8442
      %v8475 = vunpack.c.l.b16 %v8443
      %v8476 = vunpack.c.l.b16 %v8444
      %v8477 = vunpack.c.l.b16 %v8445
      %v8478 = vunpack.c.l.b16 %v8446
      %v8479 = vunpack.c.l.b16 %v8447
      %v8480 = vunpack.c.l.b16 %v8448
      %v8481 = vunpack.c.l.b16 %v8449
      %v8482 = vunpack.c.l.b16 %v8450
      %v8483 = vunpack.c.l.b16 %v8451
      %v8484 = vunpack.c.l.b16 %v8452
      %v8485 = vunpack.c.l.b16 %v8453
      %v8486 = vunpack.c.l.b16 %v8454
      %v8487 = vpack.c.b16 %v8472, %v8471
      %v8488 = vpack.c.b16 %v8474, %v8473
      %v8489 = vpack.c.b16 %v8476, %v8475
      %v8490 = vpack.c.b16 %v8478, %v8477
      %v8491 = vpack.c.b16 %v8480, %v8479
      %v8492 = vpack.c.b16 %v8482, %v8481
      %v8493 = vpack.c.b16 %v8484, %v8483
      %v8494 = vpack.c.b16 %v8486, %v8485
      %8503 = vmatprep.subr.bf16.mxu0 0
      %8504 = vmatpush1.bf16.msra.mxu0 %v8487
      %8505 = vmatprep.subr.bf16.mxu0 0
      %8506 = vmatpush1.bf16.msra.mxu0 %v8488
      %8507 = vmatprep.subr.bf16.mxu0 0
      %8508 = vmatpush1.bf16.msra.mxu0 %v8489
      %8509 = vmatprep.subr.bf16.mxu0 0
      %8510 = vmatpush1.bf16.msra.mxu0 %v8490
      %8511 = vmatprep.subr.bf16.mxu0 0
      %8512 = vmatpush1.bf16.msra.mxu0 %v8491
      %8513 = vmatprep.subr.bf16.mxu0 0
      %8514 = vmatpush1.bf16.msra.mxu0 %v8492
      %8515 = vmatprep.subr.bf16.mxu0 0
      %8516 = vmatpush1.bf16.msra.mxu0 %v8493
      %8517 = vmatprep.subr.bf16.mxu0 0
      %8518 = vmatpush1.bf16.msra.mxu0 %v8494
      %8519 = vmatprep.subr.bf16.mxu0 0
      %8520 = vmatpush1.bf16.msra.mxu0 0
      %8521 = vmatprep.subr.bf16.mxu0 0
      %8522 = vmatpush1.bf16.msra.mxu0 0
      %8523 = vmatprep.subr.bf16.mxu0 0
      %8524 = vmatpush1.bf16.msra.mxu0 0
      %8525 = vmatprep.subr.bf16.mxu0 0
      %8526 = vmatpush1.bf16.msra.mxu0 0
      %8527 = vmatprep.subr.bf16.mxu0 0
      %8528 = vmatpush1.bf16.msra.mxu0 0
      %8529 = vmatprep.subr.bf16.mxu0 0
      %8530 = vmatpush1.bf16.msra.mxu0 0
      %8531 = vmatprep.subr.bf16.mxu0 0
      %8532 = vmatpush1.bf16.msra.mxu0 0
      %8533 = vmatprep.subr.bf16.mxu0 0
      %8534 = vmatpush1.bf16.msra.mxu0 0
      %8535 = vmatprep.mubr.bf16.mxu0 0
      %8536 = vmatmul.mubr.bf16.gmra.mrb[0].mxu0 %v8334
      %v8537 = vpop.f32.mrb[0].mxu0
      %v8538 = vadd.f32 0.0, %v8537
      %v8539 = vpop.f32.mrb[0].mxu0
      %v8540 = vpop.f32.mrb[0].mxu0
      %v8541 = vpop.f32.mrb[0].mxu0
      %8542 = vdwg.mxu0
      %v8543 = vmax.f32 %v8434, %v8538
      %v8544 = vmax.f32 %v8543, 0.0
      %v8545 = vpack.c.bf16 %v8544, %v8544
      %v8546 = vld [vmem:[%s9] sm:$0xf]
      %v8547 = vld [vmem:[%s9 + $0x4] sm:$0xf]
      %v8548 = vld [vmem:[%s9 + $0x8] sm:$0xf]
      %v8549 = vld [vmem:[%s9 + $0xc] sm:$0xf]
      %v8550 = vld [vmem:[%s9 + $0x10] sm:$0xf]
      %v8551 = vld [vmem:[%s9 + $0x14] sm:$0xf]
      %v8552 = vld [vmem:[%s9 + $0x18] sm:$0xf]
      %v8553 = vld [vmem:[%s9 + $0x1c] sm:$0xf]
      %v8554 = vld [vmem:[%s2159] sm:$0xf]
      %v8555 = vld [vmem:[%s2159 + $0x4] sm:$0xf]
      %v8556 = vld [vmem:[%s2159 + $0x8] sm:$0xf]
      %v8557 = vld [vmem:[%s2159 + $0xc] sm:$0xf]
      %v8558 = vld [vmem:[%s2159 + $0x10] sm:$0xf]
      %v8559 = vld [vmem:[%s2159 + $0x14] sm:$0xf]
      %v8560 = vld [vmem:[%s2159 + $0x18] sm:$0xf]
      %v8561 = vld [vmem:[%s2159 + $0x1c] sm:$0xf]
      %v8563 = vshrl.u32 %v8545, 16
      %v8565 = vshll.u32 %v8545, 16
      %v8567 = vrot.slane %v8565, 1
      %v8568 = vor.u32 %v8563, %v8567
      %v8577 = vunpack.c.l.b16 %v8554
      %v8578 = vunpack.c.l.b16 %v8555
      %v8579 = vunpack.c.l.b16 %v8556
      %v8580 = vunpack.c.l.b16 %v8557
      %v8581 = vunpack.c.l.b16 %v8558
      %v8582 = vunpack.c.l.b16 %v8559
      %v8583 = vunpack.c.l.b16 %v8560
      %v8584 = vunpack.c.l.b16 %v8561
      %v8585 = vpack.c.b16 %v8578, %v8577
      %v8586 = vpack.c.b16 %v8580, %v8579
      %v8587 = vpack.c.b16 %v8582, %v8581
      %v8588 = vpack.c.b16 %v8584, %v8583
      %v8594 = vsel %vm1172, %v8568, 0
      %8596 = vmatprep.subr.bf16.mxu0 0
      %8597 = vmatpush1.bf16.msra.mxu0 %v8585
      %8598 = vmatprep.subr.bf16.mxu0 0
      %8599 = vmatpush1.bf16.msra.mxu0 %v8586
      %8600 = vmatprep.subr.bf16.mxu0 0
      %8601 = vmatpush1.bf16.msra.mxu0 %v8587
      %8602 = vmatprep.subr.bf16.mxu0 0
      %8603 = vmatpush1.bf16.msra.mxu0 %v8588
      %8604 = vmatprep.subr.bf16.mxu0 0
      %8605 = vmatpush1.bf16.msra.mxu0 0
      %8606 = vmatprep.subr.bf16.mxu0 0
      %8607 = vmatpush1.bf16.msra.mxu0 0
      %8608 = vmatprep.subr.bf16.mxu0 0
      %8609 = vmatpush1.bf16.msra.mxu0 0
      %8610 = vmatprep.subr.bf16.mxu0 0
      %8611 = vmatpush1.bf16.msra.mxu0 0
      %8612 = vmatprep.subr.bf16.mxu0 0
      %8613 = vmatpush1.bf16.msra.mxu0 0
      %8614 = vmatprep.subr.bf16.mxu0 0
      %8615 = vmatpush1.bf16.msra.mxu0 0
      %8616 = vmatprep.subr.bf16.mxu0 0
      %8617 = vmatpush1.bf16.msra.mxu0 0
      %8618 = vmatprep.subr.bf16.mxu0 0
      %8619 = vmatpush1.bf16.msra.mxu0 0
      %8620 = vmatprep.subr.bf16.mxu0 0
      %8621 = vmatpush1.bf16.msra.mxu0 0
      %8622 = vmatprep.subr.bf16.mxu0 0
      %8623 = vmatpush1.bf16.msra.mxu0 0
      %8624 = vmatprep.subr.bf16.mxu0 0
      %8625 = vmatpush1.bf16.msra.mxu0 0
      %8626 = vmatprep.subr.bf16.mxu0 0
      %8627 = vmatpush1.bf16.msra.mxu0 0
      %8628 = vmatprep.mubr.bf16.mxu0 0
      %8629 = vmatmul.mubr.bf16.gmra.mrb[0].mxu0 %v8594
      %v8630 = vpop.f32.mrb[0].mxu0
      %v8631 = vadd.f32 0.0, %v8630
      %v8632 = vpop.f32.mrb[0].mxu0
      %v8633 = vpop.f32.mrb[0].mxu0
      %v8634 = vpop.f32.mrb[0].mxu0
      %8635 = vdwg.mxu0
      %v8644 = vunpack.c.l.b16 %v8546
      %v8645 = vunpack.c.l.b16 %v8547
      %v8646 = vunpack.c.l.b16 %v8548
      %v8647 = vunpack.c.l.b16 %v8549
      %v8648 = vunpack.c.l.b16 %v8550
      %v8649 = vunpack.c.l.b16 %v8551
      %v8650 = vunpack.c.l.b16 %v8552
      %v8651 = vunpack.c.l.b16 %v8553
      %v8652 = vpack.c.b16 %v8645, %v8644
      %v8653 = vpack.c.b16 %v8647, %v8646
      %v8654 = vpack.c.b16 %v8649, %v8648
      %v8655 = vpack.c.b16 %v8651, %v8650
      %v8660 = vsel %vm1172, %v8545, 0
      %8662 = vmatprep.subr.bf16.mxu0 0
      %8663 = vmatpush1.bf16.msra.mxu0 %v8652
      %8664 = vmatprep.subr.bf16.mxu0 0
      %8665 = vmatpush1.bf16.msra.mxu0 %v8653
      %8666 = vmatprep.subr.bf16.mxu0 0
      %8667 = vmatpush1.bf16.msra.mxu0 %v8654
      %8668 = vmatprep.subr.bf16.mxu0 0
      %8669 = vmatpush1.bf16.msra.mxu0 %v8655
      %8670 = vmatprep.subr.bf16.mxu0 0
      %8671 = vmatpush1.bf16.msra.mxu0 0
      %8672 = vmatprep.subr.bf16.mxu0 0
      %8673 = vmatpush1.bf16.msra.mxu0 0
      %8674 = vmatprep.subr.bf16.mxu0 0
      %8675 = vmatpush1.bf16.msra.mxu0 0
      %8676 = vmatprep.subr.bf16.mxu0 0
      %8677 = vmatpush1.bf16.msra.mxu0 0
      %8678 = vmatprep.subr.bf16.mxu0 0
      %8679 = vmatpush1.bf16.msra.mxu0 0
      %8680 = vmatprep.subr.bf16.mxu0 0
      %8681 = vmatpush1.bf16.msra.mxu0 0
      %8682 = vmatprep.subr.bf16.mxu0 0
      %8683 = vmatpush1.bf16.msra.mxu0 0
      %8684 = vmatprep.subr.bf16.mxu0 0
      %8685 = vmatpush1.bf16.msra.mxu0 0
      %8686 = vmatprep.subr.bf16.mxu0 0
      %8687 = vmatpush1.bf16.msra.mxu0 0
      %8688 = vmatprep.subr.bf16.mxu0 0
      %8689 = vmatpush1.bf16.msra.mxu0 0
      %8690 = vmatprep.subr.bf16.mxu0 0
      %8691 = vmatpush1.bf16.msra.mxu0 0
      %8692 = vmatprep.subr.bf16.mxu0 0
      %8693 = vmatpush1.bf16.msra.mxu0 0
      %8694 = vmatprep.mubr.bf16.mxu0 0
      %8695 = vmatmul.mubr.bf16.gmra.mrb[0].mxu0 %v8660
      %v8696 = vpop.f32.mrb[0].mxu0
      %v8697 = vadd.f32 %v8631, %v8696
      %v8698 = vpop.f32.mrb[0].mxu0
      %v8699 = vpop.f32.mrb[0].mxu0
      %v8700 = vpop.f32.mrb[0].mxu0
      %8701 = vdwg.mxu0
      %v8702 = vld [vmem:[%s2308] sm:$0xf]
      %v8703 = vld [vmem:[%s2308 + $0x4] sm:$0xf]
      %v8704 = vld [vmem:[%s2308 + $0x8] sm:$0xf]
      %v8705 = vld [vmem:[%s2308 + $0xc] sm:$0xf]
      %v8706 = vld [vmem:[%s2308 + $0x10] sm:$0xf]
      %v8707 = vld [vmem:[%s2308 + $0x14] sm:$0xf]
      %v8708 = vld [vmem:[%s2308 + $0x18] sm:$0xf]
      %v8709 = vld [vmem:[%s2308 + $0x1c] sm:$0xf]
      %v8711 = vrot.slane %v8545, 1
      %v8720 = vunpack.c.l.b16 %v8702
      %v8721 = vunpack.c.l.b16 %v8703
      %v8722 = vunpack.c.l.b16 %v8704
      %v8723 = vunpack.c.l.b16 %v8705
      %v8724 = vunpack.c.l.b16 %v8706
      %v8725 = vunpack.c.l.b16 %v8707
      %v8726 = vunpack.c.l.b16 %v8708
      %v8727 = vunpack.c.l.b16 %v8709
      %v8728 = vpack.c.b16 %v8721, %v8720
      %v8729 = vpack.c.b16 %v8723, %v8722
      %v8730 = vpack.c.b16 %v8725, %v8724
      %v8731 = vpack.c.b16 %v8727, %v8726
      %v8737 = vsel %vm1172, %v8711, 0
      %8739 = vmatprep.subr.bf16.mxu0 0
      %8740 = vmatpush1.bf16.msra.mxu0 %v8728
      %8741 = vmatprep.subr.bf16.mxu0 0
      %8742 = vmatpush1.bf16.msra.mxu0 %v8729
      %8743 = vmatprep.subr.bf16.mxu0 0
      %8744 = vmatpush1.bf16.msra.mxu0 %v8730
      %8745 = vmatprep.subr.bf16.mxu0 0
      %8746 = vmatpush1.bf16.msra.mxu0 %v8731
      %8747 = vmatprep.subr.bf16.mxu0 0
      %8748 = vmatpush1.bf16.msra.mxu0 0
      %8749 = vmatprep.subr.bf16.mxu0 0
      %8750 = vmatpush1.bf16.msra.mxu0 0
      %8751 = vmatprep.subr.bf16.mxu0 0
      %8752 = vmatpush1.bf16.msra.mxu0 0
      %8753 = vmatprep.subr.bf16.mxu0 0
      %8754 = vmatpush1.bf16.msra.mxu0 0
      %8755 = vmatprep.subr.bf16.mxu0 0
      %8756 = vmatpush1.bf16.msra.mxu0 0
      %8757 = vmatprep.subr.bf16.mxu0 0
      %8758 = vmatpush1.bf16.msra.mxu0 0
      %8759 = vmatprep.subr.bf16.mxu0 0
      %8760 = vmatpush1.bf16.msra.mxu0 0
      %8761 = vmatprep.subr.bf16.mxu0 0
      %8762 = vmatpush1.bf16.msra.mxu0 0
      %8763 = vmatprep.subr.bf16.mxu0 0
      %8764 = vmatpush1.bf16.msra.mxu0 0
      %8765 = vmatprep.subr.bf16.mxu0 0
      %8766 = vmatpush1.bf16.msra.mxu0 0
      %8767 = vmatprep.subr.bf16.mxu0 0
      %8768 = vmatpush1.bf16.msra.mxu0 0
      %8769 = vmatprep.subr.bf16.mxu0 0
      %8770 = vmatpush1.bf16.msra.mxu0 0
      %8771 = vmatprep.mubr.bf16.mxu0 0
      %8772 = vmatmul.mubr.bf16.gmra.mrb[0].mxu0 %v8737
      %v8773 = vpop.f32.mrb[0].mxu0
      %v8774 = vadd.f32 0.0, %v8773
      %v8775 = vpop.f32.mrb[0].mxu0
      %v8776 = vpop.f32.mrb[0].mxu0
      %v8777 = vpop.f32.mrb[0].mxu0
      %8778 = vdwg.mxu0
      %v8779 = vadd.f32 %v8697, %v8774
      %v8780 = vld [vmem:[%s10] sm:$0x1]
      %v8782 = vlaneseq
      %v8783 = vshrl.u32 %v8782, 7
      %v8784 = vsub.s32 0, %v8783
      %v8785 = vrot.slane %v8780, %v8784
      %v8787 = vadd.f32 %v8779, %v8785
      %v8789 = vrot.slane %v8787, 1
      %v8791 = vmax.f32 %v8787, %v8789
      %v8792 = vpack.c.bf16 %v8791, %v8791
      %v8793 = vld [vmem:[%s11] sm:$0xf]
      %v8794 = vld [vmem:[%s11 + $0x4] sm:$0xf]
      %v8795 = vld [vmem:[%s11 + $0x8] sm:$0xf]
      %v8796 = vld [vmem:[%s11 + $0xc] sm:$0xf]
      %v8797 = vld [vmem:[%s11 + $0x10] sm:$0xf]
      %v8798 = vld [vmem:[%s11 + $0x14] sm:$0xf]
      %v8799 = vld [vmem:[%s11 + $0x18] sm:$0xf]
      %v8800 = vld [vmem:[%s11 + $0x1c] sm:$0xf]
      %v8809 = vunpack.c.l.b16 %v8793
      %v8810 = vunpack.c.l.b16 %v8794
      %v8811 = vunpack.c.l.b16 %v8795
      %v8812 = vunpack.c.l.b16 %v8796
      %v8813 = vunpack.c.l.b16 %v8797
      %v8814 = vunpack.c.l.b16 %v8798
      %v8815 = vunpack.c.l.b16 %v8799
      %v8816 = vunpack.c.l.b16 %v8800
      %v8817 = vpack.c.b16 %v8810, %v8809
      %v8818 = vpack.c.b16 %v8812, %v8811
      %v8819 = vpack.c.b16 %v8814, %v8813
      %v8820 = vpack.c.b16 %v8816, %v8815
      %v8826 = vsel %vm1172, %v8792, 0
      %8828 = vmatprep.subr.bf16.mxu0 0
      %8829 = vmatpush1.bf16.msra.mxu0 %v8817
      %8830 = vmatprep.subr.bf16.mxu0 0
      %8831 = vmatpush1.bf16.msra.mxu0 %v8818
      %8832 = vmatprep.subr.bf16.mxu0 0
      %8833 = vmatpush1.bf16.msra.mxu0 %v8819
      %8834 = vmatprep.subr.bf16.mxu0 0
      %8835 = vmatpush1.bf16.msra.mxu0 %v8820
      %8836 = vmatprep.subr.bf16.mxu0 0
      %8837 = vmatpush1.bf16.msra.mxu0 0
      %8838 = vmatprep.subr.bf16.mxu0 0
      %8839 = vmatpush1.bf16.msra.mxu0 0
      %8840 = vmatprep.subr.bf16.mxu0 0
      %8841 = vmatpush1.bf16.msra.mxu0 0
      %8842 = vmatprep.subr.bf16.mxu0 0
      %8843 = vmatpush1.bf16.msra.mxu0 0
      %8844 = vmatprep.subr.bf16.mxu0 0
      %8845 = vmatpush1.bf16.msra.mxu0 0
      %8846 = vmatprep.subr.bf16.mxu0 0
      %8847 = vmatpush1.bf16.msra.mxu0 0
      %8848 = vmatprep.subr.bf16.mxu0 0
      %8849 = vmatpush1.bf16.msra.mxu0 0
      %8850 = vmatprep.subr.bf16.mxu0 0
      %8851 = vmatpush1.bf16.msra.mxu0 0
      %8852 = vmatprep.subr.bf16.mxu0 0
      %8853 = vmatpush1.bf16.msra.mxu0 0
      %8854 = vmatprep.subr.bf16.mxu0 0
      %8855 = vmatpush1.bf16.msra.mxu0 0
      %8856 = vmatprep.subr.bf16.mxu0 0
      %8857 = vmatpush1.bf16.msra.mxu0 0
      %8858 = vmatprep.subr.bf16.mxu0 0
      %8859 = vmatpush1.bf16.msra.mxu0 0
      %8860 = vmatprep.mubr.bf16.mxu0 0
      %8861 = vmatmul.mubr.bf16.gmra.mrb[0].mxu0 %v8826
      %v8862 = vpop.f32.mrb[0].mxu0
      %v8863 = vadd.f32 0.0, %v8862
      %v8864 = vpop.f32.mrb[0].mxu0
      %v8865 = vpop.f32.mrb[0].mxu0
      %v8866 = vpop.f32.mrb[0].mxu0
      %8867 = vdwg.mxu0
      %v8868 = vld [vmem:[%s2475] sm:$0xf]
      %v8869 = vld [vmem:[%s2475 + $0x4] sm:$0xf]
      %v8870 = vld [vmem:[%s2475 + $0x8] sm:$0xf]
      %v8871 = vld [vmem:[%s2475 + $0xc] sm:$0xf]
      %v8872 = vld [vmem:[%s2475 + $0x10] sm:$0xf]
      %v8873 = vld [vmem:[%s2475 + $0x14] sm:$0xf]
      %v8874 = vld [vmem:[%s2475 + $0x18] sm:$0xf]
      %v8875 = vld [vmem:[%s2475 + $0x1c] sm:$0xf]
      %v8884 = vunpack.c.l.b16 %v8868
      %v8885 = vunpack.c.l.b16 %v8869
      %v8886 = vunpack.c.l.b16 %v8870
      %v8887 = vunpack.c.l.b16 %v8871
      %v8888 = vunpack.c.l.b16 %v8872
      %v8889 = vunpack.c.l.b16 %v8873
      %v8890 = vunpack.c.l.b16 %v8874
      %v8891 = vunpack.c.l.b16 %v8875
      %v8892 = vpack.c.b16 %v8885, %v8884
      %v8893 = vpack.c.b16 %v8887, %v8886
      %v8894 = vpack.c.b16 %v8889, %v8888
      %v8895 = vpack.c.b16 %v8891, %v8890
      %8900 = vmatprep.subr.bf16.mxu0 0
      %8901 = vmatpush1.bf16.msra.mxu0 %v8892
      %8902 = vmatprep.subr.bf16.mxu0 0
      %8903 = vmatpush1.bf16.msra.mxu0 %v8893
      %8904 = vmatprep.subr.bf16.mxu0 0
      %8905 = vmatpush1.bf16.msra.mxu0 %v8894
      %8906 = vmatprep.subr.bf16.mxu0 0
      %8907 = vmatpush1.bf16.msra.mxu0 %v8895
      %8908 = vmatprep.subr.bf16.mxu0 0
      %8909 = vmatpush1.bf16.msra.mxu0 0
      %8910 = vmatprep.subr.bf16.mxu0 0
      %8911 = vmatpush1.bf16.msra.mxu0 0
      %8912 = vmatprep.subr.bf16.mxu0 0
      %8913 = vmatpush1.bf16.msra.mxu0 0
      %8914 = vmatprep.subr.bf16.mxu0 0
      %8915 = vmatpush1.bf16.msra.mxu0 0
      %8916 = vmatprep.subr.bf16.mxu0 0
      %8917 = vmatpush1.bf16.msra.mxu0 0
      %8918 = vmatprep.subr.bf16.mxu0 0
      %8919 = vmatpush1.bf16.msra.mxu0 0
      %8920 = vmatprep.subr.bf16.mxu0 0
      %8921 = vmatpush1.bf16.msra.mxu0 0
      %8922 = vmatprep.subr.bf16.mxu0 0
      %8923 = vmatpush1.bf16.msra.mxu0 0
      %8924 = vmatprep.subr.bf16.mxu0 0
      %8925 = vmatpush1.bf16.msra.mxu0 0
      %8926 = vmatprep.subr.bf16.mxu0 0
      %8927 = vmatpush1.bf16.msra.mxu0 0
      %8928 = vmatprep.subr.bf16.mxu0 0
      %8929 = vmatpush1.bf16.msra.mxu0 0
      %8930 = vmatprep.subr.bf16.mxu0 0
      %8931 = vmatpush1.bf16.msra.mxu0 0
      %8932 = vmatprep.mubr.bf16.mxu0 0
      %8933 = vmatmul.mubr.bf16.gmra.mrb[0].mxu0 %v8826
      %v8934 = vpop.f32.mrb[0].mxu0
      %v8935 = vadd.f32 0.0, %v8934
      %v8936 = vpop.f32.mrb[0].mxu0
      %v8937 = vpop.f32.mrb[0].mxu0
      %v8938 = vpop.f32.mrb[0].mxu0
      %8939 = vdwg.mxu0
      %v8940 = vmax.f32 %v8863, %v8935
      %v8941 = vmax.f32 %v8940, 0.0
      %v8942 = vmul.f32 %v8941, %v8941
      %v8943 = vsel %vm2551, %v8942, 0.0
      %8944 = vadd.xlane.f32.xlu0 %v8943
      %v8945 = vpop.xlane.xlu0 %8944
      %v8946 = vrot.slane %v8945, 4
      %v8947 = vadd.f32 %v8945, %v8946
      %v8948 = vrot.slane %v8947, 2
      %v8949 = vadd.f32 %v8947, %v8948
      %v8950 = vrot.slane %v8949, 1
      %v8951 = vadd.f32 %v8949, %v8950
      %s8952 = vtos %v8951
      %s8953 = smax.f32 %s8952, 1e-24
      %v8954 = vstv %s8953
      %v8955 = vrsqrt.pop %v8954
      %s8956 = vtos %v8955
      %v8957 = vstv %s8956
      %v8958 = vmul.f32 %v8941, %v8957
      %8960 = vrot.lane.b32.xlu0 %v8958, 96
      %v8961 = vpop.permute.xlu0 %8960
      %vm8963 = vcmask 1041152
      %8964 = vst.msk [vmem:[%s414] sm:$0x1] %vm8963, %v8961
      %p8965 = scmp.lt.s32.totalorder %s23, 1
      %s8966 = scalar_select %p8965, %s23, 1
      %s8967 = scalar_lea.vmem %s12, %s8966
      // Predicated region
      $region69: #{model_forward.1} parent=67 // pred_check
        %p8968 = pneg %p298
      $region70: #{model_forward.1} parent=67 // pred_check_branch
        %8970 = sbr.rel (%p8968) target = $region72
      $region71: #{model_forward.1} parent=67 // pred_region
        _
      $region72: #{model_forward.1} parent=67 // pred_fallthru
        _
    $region68: #{model_forward.1} parent=5 // pred_fallthru
      _
    %p8971 = scmp.le.s32.totalorder 2, %s18
    // Predicated region
    $region73: #{model_forward.1} parent=5 // pred_check
      %p8972 = pneg %p8971
    $region74: #{model_forward.1} parent=5 // pred_check_branch
      %8974 = sbr.rel (%p8972) target = $region76
    $region75: #{model_forward.1} parent=5 // pred_region
      %s8975 = ssub.s32 %s18, 2
      // Predicated region
      $region77: #{model_forward.1} parent=75 // pred_check
        %p8976 = pneg %p304
      $region78: #{model_forward.1} parent=75 // pred_check_branch
        %8978 = sbr.rel (%p8976) target = $region80
      $region79: #{model_forward.1} parent=75 // pred_region
        %p8979 = scmp.lt.s32.totalorder %s24, 1
        %s8980 = scalar_select %p8979, %s24, 1
        %s8981 = scalar_lea.vmem %s12, %s8980
      $region80: #{model_forward.1} parent=75 // pred_fallthru
        _
    $region76: #{model_forward.1} parent=5 // pred_fallthru
      _
  $region6: #{model_forward.1} parent=0 // loop_footer
    %s22 = sadd.s32 1, %s18
  $region7: #{model_forward.1} parent=0 // loop_footer_branch
    %17 = sbr.rel target = $region3
  $region8: #{model_forward.1} parent=0 // loop_exit
    _

</llo_original>
